<compile_context>
chip_gen: v7x
topology: tpu7x:2x2x1
jax: 0.10.0
libtpu: 0.0.40
codegen_flags: <defaults>
</compile_context>

<pallas_src>
import functools
from types import SimpleNamespace

import jax
import jax.numpy as jnp
from jax import lax
from jax.experimental import pallas as pl
from jax.experimental.pallas import tpu as pltpu


# 48 MiB scoped VMEM: fits v7x (64 MiB physical) as well as v5e/v6e (128 MiB).
_VMEM_LIMIT = 48 * 1024 * 1024


def _gelu(x):
    # Exact-erf GELU (PyTorch nn.GELU default), erf via Abramowitz&Stegun
    # 7.1.26 (|err| < 1.5e-7).  The divide is kept exact to stay close to the
    # reference numerics; exp rides the otherwise-idle EUP slot.
    z = jnp.abs(x) * 0.7071067811865475
    t = 1.0 / (1.0 + 0.3275911 * z)
    poly = ((((1.061405429 * t - 1.453152027) * t + 1.421413741) * t
             - 0.284496736) * t + 0.254829592) * t
    erf_abs = 1.0 - poly * jnp.exp(-z * z)
    erf = jnp.where(x >= 0, erf_abs, -erf_abs)
    return 0.5 * x * (1.0 + erf)


# ----------------------------------------------------------------------------
# Pallas kernel: P4D tube embedding (1x1 conv 4->C + max over Kt*k neighborhood)
# ----------------------------------------------------------------------------
def _p4d_embed_kernel(d_ref, wt_ref, o_ref, *, ktk, group):
    # d_ref : (G, KtK*4, M)  lane-dense displacements (rows 4j..4j+3 = dx,dy,dz,dt)
    # wt_ref: (C, 4)         conv_d weight, transposed
    # o_ref : (G, C, M)      lane-dense features
    wt = wt_ref[...]
    C = wt.shape[0]
    M = d_ref.shape[-1]
    # Hoist the 4 lane-broadcasts of W^T columns out of all loops.
    wb = [jnp.broadcast_to(wt[:, c:c + 1], (C, M)) for c in range(4)]

    for g in range(group):
        acc = None
        for j in range(ktk):
            r = 4 * j
            plane = (wb[0] * d_ref[g, r + 0:r + 1, :]
                     + wb[1] * d_ref[g, r + 1:r + 2, :]
                     + wb[2] * d_ref[g, r + 2:r + 3, :]
                     + wb[3] * d_ref[g, r + 3:r + 4, :])          # (C, M) VPU FMAs
            acc = plane if acc is None else jnp.maximum(acc, plane)
        o_ref[g] = acc


def p4d_embed(disp, w_d):
    """disp: (BL, KtK*4, M) lane-dense; w_d: (4, C) -> (BL, C, M)."""
    BL, ktk4, M = disp.shape
    ktk = ktk4 // 4
    C = w_d.shape[1]
    group = 1
    for cand in (8, 4, 2):                       # amortize grid-step overhead
        if BL % cand == 0:
            group = cand
            break
    return pl.pallas_call(
        functools.partial(_p4d_embed_kernel, ktk=ktk, group=group),
        out_shape=jax.ShapeDtypeStruct((BL, C, M), jnp.float32),
        grid=(BL // group,),
        in_specs=[
            pl.BlockSpec((group, ktk4, M), lambda i: (i, 0, 0)),
            pl.BlockSpec((C, 4), lambda i: (0, 0)),               # resident
        ],
        out_specs=pl.BlockSpec((group, C, M), lambda i: (i, 0, 0)),
        compiler_params=pltpu.CompilerParams(
            dimension_semantics=("parallel",),
            vmem_limit_bytes=_VMEM_LIMIT),
    )(disp, jnp.transpose(w_d))


# ----------------------------------------------------------------------------
# Pallas kernel: fused attention block (LN1 + to_qkv + attention + to_out + res)
# ----------------------------------------------------------------------------
def _attn_block_kernel(x_ref, xyz_ref, g_ref, b_ref, wqkv_ref, wsp_ref,
                       wout_ref, bout_ref, o_ref, *,
                       heads, dim_head, project_out, q_tile):
    x = x_ref[...]                                        # (Mt, C)
    mt = x.shape[0]
    dh = dim_head
    inner = heads * dh

    # LayerNorm (eps = 1e-5, biased variance, like nn.LayerNorm).
    mu = jnp.mean(x, axis=-1, keepdims=True)
    var = jnp.mean(jnp.square(x - mu), axis=-1, keepdims=True)
    xn = (x - mu) * lax.rsqrt(var + 1e-5) * g_ref[...] + b_ref[...]

    # qkv projection (q columns pre-scaled by dim_head**-0.5 in the wrapper).
    qkv = jnp.dot(xn, wqkv_ref[...], preferred_element_type=jnp.float32)

    # xw = xyz @ W_sp via 3 VPU broadcast-FMAs (a K=3 MXU dot would be wasted).
    xyz = xyz_ref[...]                                    # (Mt, 3)
    wsp = wsp_ref[...]                                    # (3, dh)
    xw = (xyz[:, 0:1] * wsp[0:1, :] + xyz[:, 1:2] * wsp[1:2, :]
          + xyz[:, 2:3] * wsp[2:3, :])                    # (Mt, dh)

    # Hoist per-head k, (v + xw), and to_out weight slices out of the q loop.
    k_h = [qkv[:, inner + h * dh: inner + (h + 1) * dh] for h in range(heads)]
    vx_h = [qkv[:, 2 * inner + h * dh: 2 * inner + (h + 1) * dh] + xw
            for h in range(heads)]
    if project_out:
        wout = wout_ref[...]
        wo_h = [wout[h * dh:(h + 1) * dh, :] for h in range(heads)]

    for q0 in range(0, mt, q_tile):
        cur = min(q_tile, mt - q0)
        xw_t = xw[q0:q0 + cur, :]
        acc = None
        for h in range(heads):
            qh = qkv[q0:q0 + cur, h * dh:(h + 1) * dh]
            dots = lax.dot_general(qh, k_h[h], (((1,), (1,)), ((), ())),
                                   preferred_element_type=jnp.float32)   # (cur, Mt)
            m = jnp.max(dots, axis=-1, keepdims=True)
            p = jnp.exp(dots - m)
            inv = 1.0 / jnp.sum(p, axis=-1, keepdims=True)   # exact divide on (cur,1)
            # attn@v + (attn@x - x)@Wsp  ==  attn@(v + x@Wsp) - x@Wsp  (rows sum to 1)
            out_h = jnp.dot(p, vx_h[h],
                            preferred_element_type=jnp.float32) * inv - xw_t
            if project_out:
                # Fold the head-concat into the to_out matmul: sum_h out_h @ Wout_h.
                y_h = jnp.dot(out_h, wo_h[h], preferred_element_type=jnp.float32)
                acc = y_h if acc is None else acc + y_h
            else:
                acc = out_h                                   # single head, inner == C
        if project_out:
            acc = _gelu(acc + bout_ref[...])
        o_ref[q0:q0 + cur, :] = acc + x[q0:q0 + cur, :]       # residual


def attn_block(x, xyz, gamma, beta, w_qkv, w_sp, w_out, b_out, *,
               batch, mt, heads, dim_head, project_out):
    C = x.shape[1]
    inner = heads * dim_head
    q_tile = mt if mt <= 1024 else 1024
    return pl.pallas_call(
        functools.partial(_attn_block_kernel, heads=heads, dim_head=dim_head,
                          project_out=project_out, q_tile=q_tile),
        out_shape=jax.ShapeDtypeStruct((batch * mt, C), jnp.float32),
        grid=(batch,),
        in_specs=[
            pl.BlockSpec((mt, C), lambda b: (b, 0)),
            pl.BlockSpec((None, mt, 3), lambda b: (b, 0, 0)),
            pl.BlockSpec((1, C), lambda b: (0, 0)),              # resident LN gamma
            pl.BlockSpec((1, C), lambda b: (0, 0)),              # resident LN beta
            pl.BlockSpec((C, 3 * inner), lambda b: (0, 0)),      # resident W_qkv
            pl.BlockSpec((3, dim_head), lambda b: (0, 0)),       # resident W_sp
            pl.BlockSpec((inner, C), lambda b: (0, 0)),          # resident W_out
            pl.BlockSpec((1, C), lambda b: (0, 0)),              # resident b_out
        ],
        out_specs=pl.BlockSpec((mt, C), lambda b: (b, 0)),
        compiler_params=pltpu.CompilerParams(
            dimension_semantics=("parallel",),
            vmem_limit_bytes=_VMEM_LIMIT),
    )(x, xyz, gamma.reshape(1, C), beta.reshape(1, C), w_qkv, w_sp,
      w_out, b_out.reshape(1, C))


# ----------------------------------------------------------------------------
# Pallas kernel: fused feed-forward block (LN2 + Linear + GELU + Linear + res)
# ----------------------------------------------------------------------------
def _ff_block_kernel(x_ref, g_ref, b_ref, w1_ref, b1_ref, w2_ref, b2_ref, o_ref):
    x = x_ref[...]
    mu = jnp.mean(x, axis=-1, keepdims=True)
    var = jnp.mean(jnp.square(x - mu), axis=-1, keepdims=True)
    xn = (x - mu) * lax.rsqrt(var + 1e-5) * g_ref[...] + b_ref[...]
    h = _gelu(jnp.dot(xn, w1_ref[...], preferred_element_type=jnp.float32)
              + b1_ref[...])
    y = jnp.dot(h, w2_ref[...], preferred_element_type=jnp.float32) + b2_ref[...]
    o_ref[...] = y + x


def ff_block(x, gamma, beta, w1, b1, w2, b2, *, row_tile=1024):
    R, D = x.shape
    Dh = w1.shape[1]
    tr = R if R <= row_tile else row_tile
    return pl.pallas_call(
        _ff_block_kernel,
        out_shape=jax.ShapeDtypeStruct((R, D), jnp.float32),
        grid=(pl.cdiv(R, tr),),
        in_specs=[
            pl.BlockSpec((tr, D), lambda i: (i, 0)),
            pl.BlockSpec((1, D), lambda i: (0, 0)),
            pl.BlockSpec((1, D), lambda i: (0, 0)),
            pl.BlockSpec((D, Dh), lambda i: (0, 0)),             # resident W_ff1
            pl.BlockSpec((1, Dh), lambda i: (0, 0)),
            pl.BlockSpec((Dh, D), lambda i: (0, 0)),             # resident W_ff2
            pl.BlockSpec((1, D), lambda i: (0, 0)),
        ],
        out_specs=pl.BlockSpec((tr, D), lambda i: (i, 0)),
        compiler_params=pltpu.CompilerParams(
            dimension_semantics=("parallel",),
            vmem_limit_bytes=_VMEM_LIMIT),
    )(x, gamma.reshape(1, D), beta.reshape(1, D), w1, b1.reshape(1, Dh),
      w2, b2.reshape(1, D))


# ----------------------------------------------------------------------------
# JAX glue: data-dependent point ops (FPS / ball query / gather)
# ----------------------------------------------------------------------------
def gather_points(points, idx):
    """points: (B, N, C), idx: (B, ...) int -> (B, ..., C)."""
    return jax.vmap(lambda p, i: p[i])(points, idx)


def furthest_point_sample(xyz, m):
    """xyz: (B, N, 3) -> (B, m) int32 indices (CUDA FPS semantics, seed = pt 0)."""
    B, N, _ = xyz.shape

    def body(i, state):
        idx, dists, farthest = state
        idx = idx.at[:, i].set(farthest)
        centroid = gather_points(xyz, farthest[:, None])          # (B, 1, 3)
        d = jnp.sum(jnp.square(xyz - centroid), axis=-1)          # (B, N)
        dists = jnp.minimum(dists, d)
        farthest = jnp.argmax(dists, axis=-1).astype(jnp.int32)
        return idx, dists, farthest

    idx0 = jnp.zeros((B, m), jnp.int32)
    dists0 = jnp.full((B, N), 1e10, jnp.float32)
    far0 = jnp.zeros((B,), jnp.int32)
    idx, _, _ = lax.fori_loop(0, m, body, (idx0, dists0, far0))
    return idx


def ball_query(radius, k, xyz, new_xyz):
    """xyz: (B,N,3) candidates, new_xyz: (B,M,3) anchors -> (B,M,k) int32.

    First k in-radius indices in ascending order, padded with the first valid
    index (zeros if none valid) — matches pointnet2 CUDA ball_query.
    """
    B, N, _ = xyz.shape
    d2 = jnp.sum(jnp.square(new_xyz[:, :, None, :] - xyz[:, None, :, :]), -1)
    mask = d2 < radius * radius                                   # (B, M, N)
    j = jnp.arange(N, dtype=jnp.int32)
    # Valid candidates score N-j (> 0, decreasing with index); invalid score 0.
    score = jnp.where(mask, N - j, 0)
    _, idx = lax.top_k(score, k)                                  # ascending valid idx
    cnt = jnp.sum(mask.astype(jnp.int32), axis=-1)                # (B, M)
    first = idx[:, :, :1]
    slot = jnp.arange(k)[None, None, :]
    return jnp.where(slot < cnt[:, :, None], idx, first).astype(jnp.int32)


# ----------------------------------------------------------------------------
# P4DConv (in_planes=0, mlp_planes=[dim], no BN / activation, replicate pad)
# PSTTransformer constructs it with temporal_padding=[1, 1].
# ----------------------------------------------------------------------------
def p4dconv_forward(xyzs, w_d, cfg):
    B, T, N, _ = xyzs.shape
    r, k = cfg.radius, cfg.nsamples
    half = cfg.temporal_kernel_size // 2
    frames = jnp.concatenate([xyzs[:, :1], xyzs, xyzs[:, -1:]], axis=1)  # pad [1,1]
    Tp = T + 2
    M = N // cfg.spatial_stride
    t_list = list(range(half, Tp - half, cfg.temporal_stride))

    anchors, disps = [], []
    for t in t_list:
        ref = frames[:, t]                                        # (B, N, 3)
        a_idx = furthest_point_sample(ref, M)                     # (B, M)
        a_xyz = gather_points(ref, a_idx)                         # (B, M, 3)
        window = []
        for i in range(t - half, t + half + 1):
            nb = frames[:, i]                                     # (B, N, 3)
            idx = ball_query(r, k, nb, a_xyz)                     # (B, M, k)
            grouped = gather_points(nb, idx)                      # (B, M, k, 3)
            xyz_disp = grouped - a_xyz[:, :, None, :]
            t_disp = jnp.full((B, M, k, 1), float(i - t), jnp.float32)
            d = jnp.concatenate([xyz_disp, t_disp], -1)           # (B, M, k, 4)
            window.append(jnp.transpose(d, (0, 2, 3, 1)))         # (B, k, 4, M) lane-dense
        disps.append(jnp.stack(window, axis=1))                   # (B, Kt, k, 4, M)
        anchors.append(a_xyz)

    anchors = jnp.stack(anchors, axis=1)                          # (B, L, M, 3)
    disp = jnp.stack(disps, axis=1)                               # (B, L, Kt, k, 4, M)
    Lout = disp.shape[1]
    disp = disp.reshape(B * Lout, -1, M)                          # (BL, Kt*k*4, M)
    feats_cm = p4d_embed(disp, w_d)                               # (BL, C, M)
    C = feats_cm.shape[1]
    feats = jnp.transpose(feats_cm.reshape(B, Lout, C, M), (0, 1, 3, 2))  # (B,L,M,C)
    return anchors, feats


# ----------------------------------------------------------------------------
# Transformer (Attention + FeedForward, residuals) — 2 pallas_calls per layer
# ----------------------------------------------------------------------------
def transformer_forward(xyzs, features, layers, cfg):
    B, L, M, C = features.shape
    H, dh = cfg.heads, cfg.dim_head
    inner = H * dh
    scale = float(dh) ** -0.5
    Mt = L * M
    project_out = not (H == 1 and dh == C)

    x = features.reshape(B * Mt, C)
    xyz_flat = xyzs.reshape(B, Mt, 3)

    for p in layers:
        # Fold the q scale into the q columns of W_qkv (free one-time transform).
        w_qkv = jnp.concatenate([p["w_qkv"][:, :inner] * scale,
                                 p["w_qkv"][:, inner:]], axis=1)
        x = attn_block(x, xyz_flat, p["ln1_g"], p["ln1_b"], w_qkv, p["w_sp"],
                       p["w_out"], p["b_out"], batch=B, mt=Mt, heads=H,
                       dim_head=dh, project_out=project_out)
        x = ff_block(x, p["ln2_g"], p["ln2_b"], p["w_ff1"], p["b_ff1"],
                     p["w_ff2"], p["b_ff2"])

    return x.reshape(B, L, M, C)


# ----------------------------------------------------------------------------
# PSTTransformer forward
# ----------------------------------------------------------------------------
def pst_transformer_forward(inp, params, cfg):
    xyzs = inp[..., :3]                                           # (B, T, N, 3)
    anchors, feats = p4dconv_forward(xyzs, params["w_d"], cfg)    # (B,L,M,3)/(B,L,M,C)
    feats = transformer_forward(anchors, feats, params["layers"], cfg)
    out_xyz = jnp.transpose(anchors, (0, 3, 1, 2))                # (B, 3, L, M)
    out_feats = jnp.transpose(feats, (0, 3, 1, 2))                # (B, C, L, M)
    return out_xyz, out_feats, None


# ----------------------------------------------------------------------------
# Deterministic parameter init (shapes per the module __init__)
# ----------------------------------------------------------------------------
def init_params(key, cfg):
    dim, H, dh, mlp = cfg.dim, cfg.heads, cfg.dim_head, cfg.mlp_dim
    inner = H * dh
    keys = jax.random.split(key, 1 + cfg.depths)

    def rnd(k, shape, fan_in):
        return (jax.random.normal(k, shape, jnp.float32) /
                jnp.sqrt(jnp.float32(fan_in)))

    params = {"w_d": rnd(keys[0], (4, dim), 4.0), "layers": []}
    for d in range(cfg.depths):
        lk = jax.random.split(keys[1 + d], 5)
        params["layers"].append({
            "ln1_g": jnp.ones((dim,), jnp.float32),
            "ln1_b": jnp.zeros((dim,), jnp.float32),
            "w_qkv": rnd(lk[0], (dim, 3 * inner), dim),
            "w_sp": rnd(lk[1], (3, dh), 3.0),
            "w_out": rnd(lk[2], (inner, dim), inner),
            "b_out": jnp.zeros((dim,), jnp.float32),
            "ln2_g": jnp.ones((dim,), jnp.float32),
            "ln2_b": jnp.zeros((dim,), jnp.float32),
            "w_ff1": rnd(lk[3], (dim, mlp), dim),
            "b_ff1": jnp.zeros((mlp,), jnp.float32),
            "w_ff2": rnd(lk[4], (mlp, dim), mlp),
            "b_ff2": jnp.zeros((dim,), jnp.float32),
        })
    return params


if __name__ == "__main__":
    cfg = SimpleNamespace(radius=0.9, nsamples=8, spatial_stride=2,
                          temporal_kernel_size=3, temporal_stride=2,
                          dim=32, depths=1, heads=2, dim_head=16,
                          mlp_dim=64, dropout1=0.0)
    key = jax.random.PRNGKey(0)
    kx, kp = jax.random.split(key)
    B, T, N = 2, 3, 16
    inp = jax.random.uniform(kx, (B, T, N, 3), jnp.float32)
    params = init_params(kp, cfg)

    fwd = jax.jit(functools.partial(pst_transformer_forward, cfg=cfg))
    out_xyz, out_feats, _ = fwd(inp, params)
    jax.block_until_ready((out_xyz, out_feats))

    Lout = (T + 2 - cfg.temporal_kernel_size) // cfg.temporal_stride + 1
    M = N // cfg.spatial_stride
    assert out_xyz.shape == (B, 3, Lout, M), out_xyz.shape
    assert out_feats.shape == (B, cfg.dim, Lout, M), out_feats.shape
    assert bool(jnp.all(jnp.isfinite(out_xyz))) and bool(jnp.all(jnp.isfinite(out_feats)))
    print("KERNEL_OK")
</pallas_src>

<mosaic_0001>
module attributes {stable_mosaic.version = 11 : i64} {
  func.func @_attn_block_kernel(%arg0: i32, %arg1: memref<16x32xf32, #tpu.memory_space<vmem>>, %arg2: memref<1x16x3xf32, #tpu.memory_space<vmem>>, %arg3: memref<1x32xf32, #tpu.memory_space<vmem>>, %arg4: memref<1x32xf32, #tpu.memory_space<vmem>>, %arg5: memref<32x96xf32, #tpu.memory_space<vmem>>, %arg6: memref<3x16xf32, #tpu.memory_space<vmem>>, %arg7: memref<32x32xf32, #tpu.memory_space<vmem>>, %arg8: memref<1x32xf32, #tpu.memory_space<vmem>>, %arg9: memref<16x32xf32, #tpu.memory_space<vmem>>) attributes {dimension_semantics = [#tpu.dimension_semantics<parallel>], iteration_bounds = array<i64: 2>, scalar_prefetch = 0 : i64, scratch_operands = 0 : i64, tpu.core_type = #tpu.core_type<tc>, window_params = [{transform_indices = @transform_0, window_bounds = array<i64: 16, 32>}, {transform_indices = @transform_1, window_bounds = array<i64: 1, 16, 3>}, {pipeline_mode = #tpu.pipeline_mode<synchronous>, transform_indices = @transform_2, window_bounds = array<i64: 1, 32>}, {pipeline_mode = #tpu.pipeline_mode<synchronous>, transform_indices = @transform_3, window_bounds = array<i64: 1, 32>}, {pipeline_mode = #tpu.pipeline_mode<synchronous>, transform_indices = @transform_4, window_bounds = array<i64: 32, 96>}, {pipeline_mode = #tpu.pipeline_mode<synchronous>, transform_indices = @transform_5, window_bounds = array<i64: 3, 16>}, {pipeline_mode = #tpu.pipeline_mode<synchronous>, transform_indices = @transform_6, window_bounds = array<i64: 32, 32>}, {pipeline_mode = #tpu.pipeline_mode<synchronous>, transform_indices = @transform_7, window_bounds = array<i64: 1, 32>}, {transform_indices = @transform_8, window_bounds = array<i64: 16, 32>}]} {
    %c0 = arith.constant 0 : index
    %c0_0 = arith.constant 0 : index
    %0 = vector.load %arg1[%c0, %c0_0] : memref<16x32xf32, #tpu.memory_space<vmem>>, vector<16x32xf32>
    %cst = arith.constant dense<0.000000e+00> : vector<16xf32>
    %1 = vector.multi_reduction <add>, %0, %cst [1] : vector<16x32xf32> to vector<16xf32>
    %2 = vector.shape_cast %1 : vector<16xf32> to vector<16x1xf32>
    %cst_1 = arith.constant 3.200000e+01 : f32
    %3 = vector.broadcast %cst_1 : f32 to vector<16x1xf32>
    %4 = arith.divf %2, %3 : vector<16x1xf32>
    %5 = vector.broadcast %4 : vector<16x1xf32> to vector<16x32xf32>
    %6 = arith.subf %0, %5 : vector<16x32xf32>
    %7 = arith.mulf %6, %6 : vector<16x32xf32>
    %cst_2 = arith.constant dense<0.000000e+00> : vector<16xf32>
    %8 = vector.multi_reduction <add>, %7, %cst_2 [1] : vector<16x32xf32> to vector<16xf32>
    %9 = vector.shape_cast %8 : vector<16xf32> to vector<16x1xf32>
    %cst_3 = arith.constant 3.200000e+01 : f32
    %10 = vector.broadcast %cst_3 : f32 to vector<16x1xf32>
    %11 = arith.divf %9, %10 : vector<16x1xf32>
    %12 = vector.broadcast %4 : vector<16x1xf32> to vector<16x32xf32>
    %13 = arith.subf %0, %12 : vector<16x32xf32>
    %cst_4 = arith.constant 9.99999974E-6 : f32
    %14 = vector.broadcast %cst_4 : f32 to vector<16x1xf32>
    %15 = arith.addf %11, %14 : vector<16x1xf32>
    %16 = math.rsqrt %15 : vector<16x1xf32>
    %17 = vector.broadcast %16 : vector<16x1xf32> to vector<16x32xf32>
    %18 = arith.mulf %13, %17 : vector<16x32xf32>
    %c0_5 = arith.constant 0 : index
    %c0_6 = arith.constant 0 : index
    %19 = vector.load %arg3[%c0_5, %c0_6] : memref<1x32xf32, #tpu.memory_space<vmem>>, vector<1x32xf32>
    %20 = vector.broadcast %19 : vector<1x32xf32> to vector<16x32xf32>
    %21 = arith.mulf %18, %20 : vector<16x32xf32>
    %c0_7 = arith.constant 0 : index
    %c0_8 = arith.constant 0 : index
    %22 = vector.load %arg4[%c0_7, %c0_8] : memref<1x32xf32, #tpu.memory_space<vmem>>, vector<1x32xf32>
    %23 = vector.broadcast %22 : vector<1x32xf32> to vector<16x32xf32>
    %24 = arith.addf %21, %23 : vector<16x32xf32>
    %c0_9 = arith.constant 0 : index
    %c0_10 = arith.constant 0 : index
    %25 = vector.load %arg5[%c0_9, %c0_10] : memref<32x96xf32, #tpu.memory_space<vmem>>, vector<32x96xf32>
    %cst_11 = arith.constant dense<0.000000e+00> : vector<16x96xf32>
    %26 = tpu.matmul %24, %25, %cst_11 {dimension_numbers = #tpu.dot_dimension_numbers<[1], [0], [0], [1], [0, 0, 1, 1], [], []>} : vector<16x32xf32>, vector<32x96xf32>, vector<16x96xf32> -> vector<16x96xf32>
    %c0_12 = arith.constant 0 : index
    %c0_13 = arith.constant 0 : index
    %c0_14 = arith.constant 0 : index
    %27 = vector.load %arg2[%c0_12, %c0_13, %c0_14] : memref<1x16x3xf32, #tpu.memory_space<vmem>>, vector<1x16x3xf32>
    %28 = vector.shape_cast %27 : vector<1x16x3xf32> to vector<16x3xf32>
    %c0_15 = arith.constant 0 : index
    %c0_16 = arith.constant 0 : index
    %29 = vector.load %arg6[%c0_15, %c0_16] : memref<3x16xf32, #tpu.memory_space<vmem>>, vector<3x16xf32>
    %30 = vector.extract_strided_slice %28 {offsets = [0, 0], sizes = [16, 1], strides = [1, 1]} : vector<16x3xf32> to vector<16x1xf32>
    %31 = vector.extract_strided_slice %29 {offsets = [0, 0], sizes = [1, 16], strides = [1, 1]} : vector<3x16xf32> to vector<1x16xf32>
    %32 = vector.broadcast %30 : vector<16x1xf32> to vector<16x16xf32>
    %33 = vector.broadcast %31 : vector<1x16xf32> to vector<16x16xf32>
    %34 = arith.mulf %32, %33 : vector<16x16xf32>
    %35 = vector.extract_strided_slice %28 {offsets = [0, 1], sizes = [16, 1], strides = [1, 1]} : vector<16x3xf32> to vector<16x1xf32>
    %36 = vector.extract_strided_slice %29 {offsets = [1, 0], sizes = [1, 16], strides = [1, 1]} : vector<3x16xf32> to vector<1x16xf32>
    %37 = vector.broadcast %35 : vector<16x1xf32> to vector<16x16xf32>
    %38 = vector.broadcast %36 : vector<1x16xf32> to vector<16x16xf32>
    %39 = arith.mulf %37, %38 : vector<16x16xf32>
    %40 = arith.addf %34, %39 : vector<16x16xf32>
    %41 = vector.extract_strided_slice %28 {offsets = [0, 2], sizes = [16, 1], strides = [1, 1]} : vector<16x3xf32> to vector<16x1xf32>
    %42 = vector.extract_strided_slice %29 {offsets = [2, 0], sizes = [1, 16], strides = [1, 1]} : vector<3x16xf32> to vector<1x16xf32>
    %43 = vector.broadcast %41 : vector<16x1xf32> to vector<16x16xf32>
    %44 = vector.broadcast %42 : vector<1x16xf32> to vector<16x16xf32>
    %45 = arith.mulf %43, %44 : vector<16x16xf32>
    %46 = arith.addf %40, %45 : vector<16x16xf32>
    %47 = vector.extract_strided_slice %26 {offsets = [0, 32], sizes = [16, 16], strides = [1, 1]} : vector<16x96xf32> to vector<16x16xf32>
    %48 = vector.extract_strided_slice %26 {offsets = [0, 48], sizes = [16, 16], strides = [1, 1]} : vector<16x96xf32> to vector<16x16xf32>
    %49 = vector.extract_strided_slice %26 {offsets = [0, 64], sizes = [16, 16], strides = [1, 1]} : vector<16x96xf32> to vector<16x16xf32>
    %50 = arith.addf %49, %46 : vector<16x16xf32>
    %51 = vector.extract_strided_slice %26 {offsets = [0, 80], sizes = [16, 16], strides = [1, 1]} : vector<16x96xf32> to vector<16x16xf32>
    %52 = arith.addf %51, %46 : vector<16x16xf32>
    %c0_17 = arith.constant 0 : index
    %c0_18 = arith.constant 0 : index
    %53 = vector.load %arg7[%c0_17, %c0_18] : memref<32x32xf32, #tpu.memory_space<vmem>>, vector<32x32xf32>
    %54 = vector.extract_strided_slice %53 {offsets = [0, 0], sizes = [16, 32], strides = [1, 1]} : vector<32x32xf32> to vector<16x32xf32>
    %55 = vector.extract_strided_slice %53 {offsets = [16, 0], sizes = [16, 32], strides = [1, 1]} : vector<32x32xf32> to vector<16x32xf32>
    %56 = vector.extract_strided_slice %26 {offsets = [0, 0], sizes = [16, 16], strides = [1, 1]} : vector<16x96xf32> to vector<16x16xf32>
    %cst_19 = arith.constant dense<0.000000e+00> : vector<16x16xf32>
    %57 = tpu.matmul %56, %47, %cst_19 {dimension_numbers = #tpu.dot_dimension_numbers<[1], [1], [0], [0], [0, 0, 1, 0], [], []>} : vector<16x16xf32>, vector<16x16xf32>, vector<16x16xf32> -> vector<16x16xf32>
    %cst_20 = arith.constant dense<0xFF800000> : vector<16xf32>
    %58 = vector.multi_reduction <maximumf>, %57, %cst_20 [1] : vector<16x16xf32> to vector<16xf32>
    %59 = vector.shape_cast %58 : vector<16xf32> to vector<16x1xf32>
    %60 = vector.broadcast %59 : vector<16x1xf32> to vector<16x16xf32>
    %61 = arith.subf %57, %60 : vector<16x16xf32>
    %62 = math.exp %61 : vector<16x16xf32>
    %cst_21 = arith.constant dense<0.000000e+00> : vector<16xf32>
    %63 = vector.multi_reduction <add>, %62, %cst_21 [1] : vector<16x16xf32> to vector<16xf32>
    %64 = vector.shape_cast %63 : vector<16xf32> to vector<16x1xf32>
    %cst_22 = arith.constant 1.000000e+00 : f32
    %65 = vector.broadcast %cst_22 : f32 to vector<16x1xf32>
    %66 = arith.divf %65, %64 : vector<16x1xf32>
    %cst_23 = arith.constant dense<0.000000e+00> : vector<16x16xf32>
    %67 = tpu.matmul %62, %50, %cst_23 {dimension_numbers = #tpu.dot_dimension_numbers<[1], [0], [0], [1], [0, 0, 1, 1], [], []>} : vector<16x16xf32>, vector<16x16xf32>, vector<16x16xf32> -> vector<16x16xf32>
    %68 = vector.broadcast %66 : vector<16x1xf32> to vector<16x16xf32>
    %69 = arith.mulf %67, %68 : vector<16x16xf32>
    %70 = arith.subf %69, %46 : vector<16x16xf32>
    %cst_24 = arith.constant dense<0.000000e+00> : vector<16x32xf32>
    %71 = tpu.matmul %70, %54, %cst_24 {dimension_numbers = #tpu.dot_dimension_numbers<[1], [0], [0], [1], [0, 0, 1, 1], [], []>} : vector<16x16xf32>, vector<16x32xf32>, vector<16x32xf32> -> vector<16x32xf32>
    %72 = vector.extract_strided_slice %26 {offsets = [0, 16], sizes = [16, 16], strides = [1, 1]} : vector<16x96xf32> to vector<16x16xf32>
    %cst_25 = arith.constant dense<0.000000e+00> : vector<16x16xf32>
    %73 = tpu.matmul %72, %48, %cst_25 {dimension_numbers = #tpu.dot_dimension_numbers<[1], [1], [0], [0], [0, 0, 1, 0], [], []>} : vector<16x16xf32>, vector<16x16xf32>, vector<16x16xf32> -> vector<16x16xf32>
    %cst_26 = arith.constant dense<0xFF800000> : vector<16xf32>
    %74 = vector.multi_reduction <maximumf>, %73, %cst_26 [1] : vector<16x16xf32> to vector<16xf32>
    %75 = vector.shape_cast %74 : vector<16xf32> to vector<16x1xf32>
    %76 = vector.broadcast %75 : vector<16x1xf32> to vector<16x16xf32>
    %77 = arith.subf %73, %76 : vector<16x16xf32>
    %78 = math.exp %77 : vector<16x16xf32>
    %cst_27 = arith.constant dense<0.000000e+00> : vector<16xf32>
    %79 = vector.multi_reduction <add>, %78, %cst_27 [1] : vector<16x16xf32> to vector<16xf32>
    %80 = vector.shape_cast %79 : vector<16xf32> to vector<16x1xf32>
    %cst_28 = arith.constant 1.000000e+00 : f32
    %81 = vector.broadcast %cst_28 : f32 to vector<16x1xf32>
    %82 = arith.divf %81, %80 : vector<16x1xf32>
    %cst_29 = arith.constant dense<0.000000e+00> : vector<16x16xf32>
    %83 = tpu.matmul %78, %52, %cst_29 {dimension_numbers = #tpu.dot_dimension_numbers<[1], [0], [0], [1], [0, 0, 1, 1], [], []>} : vector<16x16xf32>, vector<16x16xf32>, vector<16x16xf32> -> vector<16x16xf32>
    %84 = vector.broadcast %82 : vector<16x1xf32> to vector<16x16xf32>
    %85 = arith.mulf %83, %84 : vector<16x16xf32>
    %86 = arith.subf %85, %46 : vector<16x16xf32>
    %cst_30 = arith.constant dense<0.000000e+00> : vector<16x32xf32>
    %87 = tpu.matmul %86, %55, %cst_30 {dimension_numbers = #tpu.dot_dimension_numbers<[1], [0], [0], [1], [0, 0, 1, 1], [], []>} : vector<16x16xf32>, vector<16x32xf32>, vector<16x32xf32> -> vector<16x32xf32>
    %88 = arith.addf %71, %87 : vector<16x32xf32>
    %c0_31 = arith.constant 0 : index
    %c0_32 = arith.constant 0 : index
    %89 = vector.load %arg8[%c0_31, %c0_32] : memref<1x32xf32, #tpu.memory_space<vmem>>, vector<1x32xf32>
    %90 = vector.broadcast %89 : vector<1x32xf32> to vector<16x32xf32>
    %91 = arith.addf %88, %90 : vector<16x32xf32>
    %92 = math.absf %91 : vector<16x32xf32>
    %cst_33 = arith.constant 0.707106769 : f32
    %93 = vector.broadcast %cst_33 : f32 to vector<16x32xf32>
    %94 = arith.mulf %92, %93 : vector<16x32xf32>
    %cst_34 = arith.constant 0.327591091 : f32
    %95 = vector.broadcast %cst_34 : f32 to vector<16x32xf32>
    %96 = arith.mulf %95, %94 : vector<16x32xf32>
    %cst_35 = arith.constant 1.000000e+00 : f32
    %97 = vector.broadcast %cst_35 : f32 to vector<16x32xf32>
    %98 = arith.addf %97, %96 : vector<16x32xf32>
    %cst_36 = arith.constant 1.000000e+00 : f32
    %99 = vector.broadcast %cst_36 : f32 to vector<16x32xf32>
    %100 = arith.divf %99, %98 : vector<16x32xf32>
    %cst_37 = arith.constant 1.06140542 : f32
    %101 = vector.broadcast %cst_37 : f32 to vector<16x32xf32>
    %102 = arith.mulf %101, %100 : vector<16x32xf32>
    %cst_38 = arith.constant 1.45315206 : f32
    %103 = vector.broadcast %cst_38 : f32 to vector<16x32xf32>
    %104 = arith.subf %102, %103 : vector<16x32xf32>
    %105 = arith.mulf %104, %100 : vector<16x32xf32>
    %cst_39 = arith.constant 1.42141378 : f32
    %106 = vector.broadcast %cst_39 : f32 to vector<16x32xf32>
    %107 = arith.addf %105, %106 : vector<16x32xf32>
    %108 = arith.mulf %107, %100 : vector<16x32xf32>
    %cst_40 = arith.constant 0.284496725 : f32
    %109 = vector.broadcast %cst_40 : f32 to vector<16x32xf32>
    %110 = arith.subf %108, %109 : vector<16x32xf32>
    %111 = arith.mulf %110, %100 : vector<16x32xf32>
    %cst_41 = arith.constant 0.254829586 : f32
    %112 = vector.broadcast %cst_41 : f32 to vector<16x32xf32>
    %113 = arith.addf %111, %112 : vector<16x32xf32>
    %114 = arith.mulf %113, %100 : vector<16x32xf32>
    %cst_42 = arith.constant 0.000000e+00 : f32
    %115 = vector.broadcast %cst_42 : f32 to vector<16x32xf32>
    %116 = arith.subf %115, %94 : vector<16x32xf32>
    %117 = arith.mulf %116, %94 : vector<16x32xf32>
    %118 = math.exp %117 : vector<16x32xf32>
    %119 = arith.mulf %114, %118 : vector<16x32xf32>
    %cst_43 = arith.constant 1.000000e+00 : f32
    %120 = vector.broadcast %cst_43 : f32 to vector<16x32xf32>
    %121 = arith.subf %120, %119 : vector<16x32xf32>
    %cst_44 = arith.constant 0.000000e+00 : f32
    %122 = vector.broadcast %cst_44 : f32 to vector<16x32xf32>
    %123 = arith.cmpf oge, %91, %122 : vector<16x32xf32>
    %cst_45 = arith.constant 0.000000e+00 : f32
    %124 = vector.broadcast %cst_45 : f32 to vector<16x32xf32>
    %125 = arith.subf %124, %121 : vector<16x32xf32>
    %126 = arith.select %123, %121, %125 : vector<16x32xi1>, vector<16x32xf32>
    %cst_46 = arith.constant 5.000000e-01 : f32
    %127 = vector.broadcast %cst_46 : f32 to vector<16x32xf32>
    %128 = arith.mulf %127, %91 : vector<16x32xf32>
    %cst_47 = arith.constant 1.000000e+00 : f32
    %129 = vector.broadcast %cst_47 : f32 to vector<16x32xf32>
    %130 = arith.addf %129, %126 : vector<16x32xf32>
    %131 = arith.mulf %128, %130 : vector<16x32xf32>
    %132 = arith.addf %131, %0 : vector<16x32xf32>
    %c0_48 = arith.constant 0 : index
    %c0_49 = arith.constant 0 : index
    %133 = vector.load %arg9[%c0_48, %c0_49] : memref<16x32xf32, #tpu.memory_space<vmem>>, vector<16x32xf32>
    tpu.vector_store %arg9[%c0_48, %c0_49], %132 {strides = array<i32>} : memref<16x32xf32, #tpu.memory_space<vmem>>, vector<16x32xf32>,
    return
  }
  func.func @transform_0(%arg0: i32) -> (i32, i32) {
    %c0_i32 = arith.constant 0 : i32
    %c0_i32_0 = arith.constant 0 : i32
    return %arg0, %c0_i32 : i32, i32
  }
  func.func @transform_1(%arg0: i32) -> (i32, i32, i32) {
    %c0_i32 = arith.constant 0 : i32
    %c0_i32_0 = arith.constant 0 : i32
    %c0_i32_1 = arith.constant 0 : i32
    return %arg0, %c0_i32, %c0_i32_0 : i32, i32, i32
  }
  func.func @transform_2(%arg0: i32) -> (i32, i32) {
    %c0_i32 = arith.constant 0 : i32
    %c0_i32_0 = arith.constant 0 : i32
    %c0_i32_1 = arith.constant 0 : i32
    return %c0_i32, %c0_i32_0 : i32, i32
  }
  func.func @transform_3(%arg0: i32) -> (i32, i32) {
    %c0_i32 = arith.constant 0 : i32
    %c0_i32_0 = arith.constant 0 : i32
    %c0_i32_1 = arith.constant 0 : i32
    return %c0_i32, %c0_i32_0 : i32, i32
  }
  func.func @transform_4(%arg0: i32) -> (i32, i32) {
    %c0_i32 = arith.constant 0 : i32
    %c0_i32_0 = arith.constant 0 : i32
    %c0_i32_1 = arith.constant 0 : i32
    return %c0_i32, %c0_i32_0 : i32, i32
  }
  func.func @transform_5(%arg0: i32) -> (i32, i32) {
    %c0_i32 = arith.constant 0 : i32
    %c0_i32_0 = arith.constant 0 : i32
    %c0_i32_1 = arith.constant 0 : i32
    return %c0_i32, %c0_i32_0 : i32, i32
  }
  func.func @transform_6(%arg0: i32) -> (i32, i32) {
    %c0_i32 = arith.constant 0 : i32
    %c0_i32_0 = arith.constant 0 : i32
    %c0_i32_1 = arith.constant 0 : i32
    return %c0_i32, %c0_i32_0 : i32, i32
  }
  func.func @transform_7(%arg0: i32) -> (i32, i32) {
    %c0_i32 = arith.constant 0 : i32
    %c0_i32_0 = arith.constant 0 : i32
    %c0_i32_1 = arith.constant 0 : i32
    return %c0_i32, %c0_i32_0 : i32, i32
  }
  func.func @transform_8(%arg0: i32) -> (i32, i32) {
    %c0_i32 = arith.constant 0 : i32
    %c0_i32_0 = arith.constant 0 : i32
    return %arg0, %c0_i32 : i32, i32
  }
}

module attributes {stable_mosaic.version = 11 : i64} {
  func.func @_p4d_embed_kernel(%arg0: i32, %arg1: memref<4x96x8xf32, #tpu.memory_space<vmem>>, %arg2: memref<32x4xf32, #tpu.memory_space<vmem>>, %arg3: memref<4x32x8xf32, #tpu.memory_space<vmem>>) attributes {dimension_semantics = [#tpu.dimension_semantics<parallel>], iteration_bounds = array<i64: 1>, scalar_prefetch = 0 : i64, scratch_operands = 0 : i64, tpu.core_type = #tpu.core_type<tc>, window_params = [{transform_indices = @transform_0, window_bounds = array<i64: 4, 96, 8>}, {pipeline_mode = #tpu.pipeline_mode<synchronous>, transform_indices = @transform_1, window_bounds = array<i64: 32, 4>}, {transform_indices = @transform_2, window_bounds = array<i64: 4, 32, 8>}]} {
    %c0 = arith.constant 0 : index
    %c0_0 = arith.constant 0 : index
    %0 = vector.load %arg2[%c0, %c0_0] : memref<32x4xf32, #tpu.memory_space<vmem>>, vector<32x4xf32>
    %1 = vector.extract_strided_slice %0 {offsets = [0, 0], sizes = [32, 1], strides = [1, 1]} : vector<32x4xf32> to vector<32x1xf32>
    %2 = vector.shape_cast %1 : vector<32x1xf32> to vector<32x1xf32>
    %3 = vector.broadcast %2 : vector<32x1xf32> to vector<32x8xf32>
    %4 = vector.extract_strided_slice %0 {offsets = [0, 1], sizes = [32, 1], strides = [1, 1]} : vector<32x4xf32> to vector<32x1xf32>
    %5 = vector.shape_cast %4 : vector<32x1xf32> to vector<32x1xf32>
    %6 = vector.broadcast %5 : vector<32x1xf32> to vector<32x8xf32>
    %7 = vector.extract_strided_slice %0 {offsets = [0, 2], sizes = [32, 1], strides = [1, 1]} : vector<32x4xf32> to vector<32x1xf32>
    %8 = vector.shape_cast %7 : vector<32x1xf32> to vector<32x1xf32>
    %9 = vector.broadcast %8 : vector<32x1xf32> to vector<32x8xf32>
    %10 = vector.extract_strided_slice %0 {offsets = [0, 3], sizes = [32, 1], strides = [1, 1]} : vector<32x4xf32> to vector<32x1xf32>
    %11 = vector.shape_cast %10 : vector<32x1xf32> to vector<32x1xf32>
    %12 = vector.broadcast %11 : vector<32x1xf32> to vector<32x8xf32>
    %c0_1 = arith.constant 0 : index
    %c0_2 = arith.constant 0 : index
    %c0_3 = arith.constant 0 : index
    %13 = vector.load %arg1[%c0_1, %c0_2, %c0_3] : memref<4x96x8xf32, #tpu.memory_space<vmem>>, vector<1x1x8xf32>
    %14 = vector.shape_cast %13 : vector<1x1x8xf32> to vector<1x8xf32>
    %15 = vector.broadcast %14 : vector<1x8xf32> to vector<32x8xf32>
    %16 = arith.mulf %3, %15 : vector<32x8xf32>
    %c0_4 = arith.constant 0 : index
    %c1 = arith.constant 1 : index
    %c0_5 = arith.constant 0 : index
    %17 = vector.load %arg1[%c0_4, %c1, %c0_5] : memref<4x96x8xf32, #tpu.memory_space<vmem>>, vector<1x1x8xf32>
    %18 = vector.shape_cast %17 : vector<1x1x8xf32> to vector<1x8xf32>
    %19 = vector.broadcast %18 : vector<1x8xf32> to vector<32x8xf32>
    %20 = arith.mulf %6, %19 : vector<32x8xf32>
    %21 = arith.addf %16, %20 : vector<32x8xf32>
    %c0_6 = arith.constant 0 : index
    %c2 = arith.constant 2 : index
    %c0_7 = arith.constant 0 : index
    %22 = vector.load %arg1[%c0_6, %c2, %c0_7] : memref<4x96x8xf32, #tpu.memory_space<vmem>>, vector<1x1x8xf32>
    %23 = vector.shape_cast %22 : vector<1x1x8xf32> to vector<1x8xf32>
    %24 = vector.broadcast %23 : vector<1x8xf32> to vector<32x8xf32>
    %25 = arith.mulf %9, %24 : vector<32x8xf32>
    %26 = arith.addf %21, %25 : vector<32x8xf32>
    %c0_8 = arith.constant 0 : index
    %c3 = arith.constant 3 : index
    %c0_9 = arith.constant 0 : index
    %27 = vector.load %arg1[%c0_8, %c3, %c0_9] : memref<4x96x8xf32, #tpu.memory_space<vmem>>, vector<1x1x8xf32>
    %28 = vector.shape_cast %27 : vector<1x1x8xf32> to vector<1x8xf32>
    %29 = vector.broadcast %28 : vector<1x8xf32> to vector<32x8xf32>
    %30 = arith.mulf %12, %29 : vector<32x8xf32>
    %31 = arith.addf %26, %30 : vector<32x8xf32>
    %c0_10 = arith.constant 0 : index
    %c4 = arith.constant 4 : index
    %c0_11 = arith.constant 0 : index
    %32 = vector.load %arg1[%c0_10, %c4, %c0_11] : memref<4x96x8xf32, #tpu.memory_space<vmem>>, vector<1x1x8xf32>
    %33 = vector.shape_cast %32 : vector<1x1x8xf32> to vector<1x8xf32>
    %34 = vector.broadcast %33 : vector<1x8xf32> to vector<32x8xf32>
    %35 = arith.mulf %3, %34 : vector<32x8xf32>
    %c0_12 = arith.constant 0 : index
    %c5 = arith.constant 5 : index
    %c0_13 = arith.constant 0 : index
    %36 = vector.load %arg1[%c0_12, %c5, %c0_13] : memref<4x96x8xf32, #tpu.memory_space<vmem>>, vector<1x1x8xf32>
    %37 = vector.shape_cast %36 : vector<1x1x8xf32> to vector<1x8xf32>
    %38 = vector.broadcast %37 : vector<1x8xf32> to vector<32x8xf32>
    %39 = arith.mulf %6, %38 : vector<32x8xf32>
    %40 = arith.addf %35, %39 : vector<32x8xf32>
    %c0_14 = arith.constant 0 : index
    %c6 = arith.constant 6 : index
    %c0_15 = arith.constant 0 : index
    %41 = vector.load %arg1[%c0_14, %c6, %c0_15] : memref<4x96x8xf32, #tpu.memory_space<vmem>>, vector<1x1x8xf32>
    %42 = vector.shape_cast %41 : vector<1x1x8xf32> to vector<1x8xf32>
    %43 = vector.broadcast %42 : vector<1x8xf32> to vector<32x8xf32>
    %44 = arith.mulf %9, %43 : vector<32x8xf32>
    %45 = arith.addf %40, %44 : vector<32x8xf32>
    %c0_16 = arith.constant 0 : index
    %c7 = arith.constant 7 : index
    %c0_17 = arith.constant 0 : index
    %46 = vector.load %arg1[%c0_16, %c7, %c0_17] : memref<4x96x8xf32, #tpu.memory_space<vmem>>, vector<1x1x8xf32>
    %47 = vector.shape_cast %46 : vector<1x1x8xf32> to vector<1x8xf32>
    %48 = vector.broadcast %47 : vector<1x8xf32> to vector<32x8xf32>
    %49 = arith.mulf %12, %48 : vector<32x8xf32>
    %50 = arith.addf %45, %49 : vector<32x8xf32>
    %51 = arith.maximumf %31, %50 : vector<32x8xf32>
    %c0_18 = arith.constant 0 : index
    %c8 = arith.constant 8 : index
    %c0_19 = arith.constant 0 : index
    %52 = vector.load %arg1[%c0_18, %c8, %c0_19] : memref<4x96x8xf32, #tpu.memory_space<vmem>>, vector<1x1x8xf32>
    %53 = vector.shape_cast %52 : vector<1x1x8xf32> to vector<1x8xf32>
    %54 = vector.broadcast %53 : vector<1x8xf32> to vector<32x8xf32>
    %55 = arith.mulf %3, %54 : vector<32x8xf32>
    %c0_20 = arith.constant 0 : index
    %c9 = arith.constant 9 : index
    %c0_21 = arith.constant 0 : index
    %56 = vector.load %arg1[%c0_20, %c9, %c0_21] : memref<4x96x8xf32, #tpu.memory_space<vmem>>, vector<1x1x8xf32>
    %57 = vector.shape_cast %56 : vector<1x1x8xf32> to vector<1x8xf32>
    %58 = vector.broadcast %57 : vector<1x8xf32> to vector<32x8xf32>
    %59 = arith.mulf %6, %58 : vector<32x8xf32>
    %60 = arith.addf %55, %59 : vector<32x8xf32>
    %c0_22 = arith.constant 0 : index
    %c10 = arith.constant 10 : index
    %c0_23 = arith.constant 0 : index
    %61 = vector.load %arg1[%c0_22, %c10, %c0_23] : memref<4x96x8xf32, #tpu.memory_space<vmem>>, vector<1x1x8xf32>
    %62 = vector.shape_cast %61 : vector<1x1x8xf32> to vector<1x8xf32>
    %63 = vector.broadcast %62 : vector<1x8xf32> to vector<32x8xf32>
    %64 = arith.mulf %9, %63 : vector<32x8xf32>
    %65 = arith.addf %60, %64 : vector<32x8xf32>
    %c0_24 = arith.constant 0 : index
    %c11 = arith.constant 11 : index
    %c0_25 = arith.constant 0 : index
    %66 = vector.load %arg1[%c0_24, %c11, %c0_25] : memref<4x96x8xf32, #tpu.memory_space<vmem>>, vector<1x1x8xf32>
    %67 = vector.shape_cast %66 : vector<1x1x8xf32> to vector<1x8xf32>
    %68 = vector.broadcast %67 : vector<1x8xf32> to vector<32x8xf32>
    %69 = arith.mulf %12, %68 : vector<32x8xf32>
    %70 = arith.addf %65, %69 : vector<32x8xf32>
    %71 = arith.maximumf %51, %70 : vector<32x8xf32>
    %c0_26 = arith.constant 0 : index
    %c12 = arith.constant 12 : index
    %c0_27 = arith.constant 0 : index
    %72 = vector.load %arg1[%c0_26, %c12, %c0_27] : memref<4x96x8xf32, #tpu.memory_space<vmem>>, vector<1x1x8xf32>
    %73 = vector.shape_cast %72 : vector<1x1x8xf32> to vector<1x8xf32>
    %74 = vector.broadcast %73 : vector<1x8xf32> to vector<32x8xf32>
    %75 = arith.mulf %3, %74 : vector<32x8xf32>
    %c0_28 = arith.constant 0 : index
    %c13 = arith.constant 13 : index
    %c0_29 = arith.constant 0 : index
    %76 = vector.load %arg1[%c0_28, %c13, %c0_29] : memref<4x96x8xf32, #tpu.memory_space<vmem>>, vector<1x1x8xf32>
    %77 = vector.shape_cast %76 : vector<1x1x8xf32> to vector<1x8xf32>
    %78 = vector.broadcast %77 : vector<1x8xf32> to vector<32x8xf32>
    %79 = arith.mulf %6, %78 : vector<32x8xf32>
    %80 = arith.addf %75, %79 : vector<32x8xf32>
    %c0_30 = arith.constant 0 : index
    %c14 = arith.constant 14 : index
    %c0_31 = arith.constant 0 : index
    %81 = vector.load %arg1[%c0_30, %c14, %c0_31] : memref<4x96x8xf32, #tpu.memory_space<vmem>>, vector<1x1x8xf32>
    %82 = vector.shape_cast %81 : vector<1x1x8xf32> to vector<1x8xf32>
    %83 = vector.broadcast %82 : vector<1x8xf32> to vector<32x8xf32>
    %84 = arith.mulf %9, %83 : vector<32x8xf32>
    %85 = arith.addf %80, %84 : vector<32x8xf32>
    %c0_32 = arith.constant 0 : index
    %c15 = arith.constant 15 : index
    %c0_33 = arith.constant 0 : index
    %86 = vector.load %arg1[%c0_32, %c15, %c0_33] : memref<4x96x8xf32, #tpu.memory_space<vmem>>, vector<1x1x8xf32>
    %87 = vector.shape_cast %86 : vector<1x1x8xf32> to vector<1x8xf32>
    %88 = vector.broadcast %87 : vector<1x8xf32> to vector<32x8xf32>
    %89 = arith.mulf %12, %88 : vector<32x8xf32>
    %90 = arith.addf %85, %89 : vector<32x8xf32>
    %91 = arith.maximumf %71, %90 : vector<32x8xf32>
    %c0_34 = arith.constant 0 : index
    %c16 = arith.constant 16 : index
    %c0_35 = arith.constant 0 : index
    %92 = vector.load %arg1[%c0_34, %c16, %c0_35] : memref<4x96x8xf32, #tpu.memory_space<vmem>>, vector<1x1x8xf32>
    %93 = vector.shape_cast %92 : vector<1x1x8xf32> to vector<1x8xf32>
    %94 = vector.broadcast %93 : vector<1x8xf32> to vector<32x8xf32>
    %95 = arith.mulf %3, %94 : vector<32x8xf32>
    %c0_36 = arith.constant 0 : index
    %c17 = arith.constant 17 : index
    %c0_37 = arith.constant 0 : index
    %96 = vector.load %arg1[%c0_36, %c17, %c0_37] : memref<4x96x8xf32, #tpu.memory_space<vmem>>, vector<1x1x8xf32>
    %97 = vector.shape_cast %96 : vector<1x1x8xf32> to vector<1x8xf32>
    %98 = vector.broadcast %97 : vector<1x8xf32> to vector<32x8xf32>
    %99 = arith.mulf %6, %98 : vector<32x8xf32>
    %100 = arith.addf %95, %99 : vector<32x8xf32>
    %c0_38 = arith.constant 0 : index
    %c18 = arith.constant 18 : index
    %c0_39 = arith.constant 0 : index
    %101 = vector.load %arg1[%c0_38, %c18, %c0_39] : memref<4x96x8xf32, #tpu.memory_space<vmem>>, vector<1x1x8xf32>
    %102 = vector.shape_cast %101 : vector<1x1x8xf32> to vector<1x8xf32>
    %103 = vector.broadcast %102 : vector<1x8xf32> to vector<32x8xf32>
    %104 = arith.mulf %9, %103 : vector<32x8xf32>
    %105 = arith.addf %100, %104 : vector<32x8xf32>
    %c0_40 = arith.constant 0 : index
    %c19 = arith.constant 19 : index
    %c0_41 = arith.constant 0 : index
    %106 = vector.load %arg1[%c0_40, %c19, %c0_41] : memref<4x96x8xf32, #tpu.memory_space<vmem>>, vector<1x1x8xf32>
    %107 = vector.shape_cast %106 : vector<1x1x8xf32> to vector<1x8xf32>
    %108 = vector.broadcast %107 : vector<1x8xf32> to vector<32x8xf32>
    %109 = arith.mulf %12, %108 : vector<32x8xf32>
    %110 = arith.addf %105, %109 : vector<32x8xf32>
    %111 = arith.maximumf %91, %110 : vector<32x8xf32>
    %c0_42 = arith.constant 0 : index
    %c20 = arith.constant 20 : index
    %c0_43 = arith.constant 0 : index
    %112 = vector.load %arg1[%c0_42, %c20, %c0_43] : memref<4x96x8xf32, #tpu.memory_space<vmem>>, vector<1x1x8xf32>
    %113 = vector.shape_cast %112 : vector<1x1x8xf32> to vector<1x8xf32>
    %114 = vector.broadcast %113 : vector<1x8xf32> to vector<32x8xf32>
    %115 = arith.mulf %3, %114 : vector<32x8xf32>
    %c0_44 = arith.constant 0 : index
    %c21 = arith.constant 21 : index
    %c0_45 = arith.constant 0 : index
    %116 = vector.load %arg1[%c0_44, %c21, %c0_45] : memref<4x96x8xf32, #tpu.memory_space<vmem>>, vector<1x1x8xf32>
    %117 = vector.shape_cast %116 : vector<1x1x8xf32> to vector<1x8xf32>
    %118 = vector.broadcast %117 : vector<1x8xf32> to vector<32x8xf32>
    %119 = arith.mulf %6, %118 : vector<32x8xf32>
    %120 = arith.addf %115, %119 : vector<32x8xf32>
    %c0_46 = arith.constant 0 : index
    %c22 = arith.constant 22 : index
    %c0_47 = arith.constant 0 : index
    %121 = vector.load %arg1[%c0_46, %c22, %c0_47] : memref<4x96x8xf32, #tpu.memory_space<vmem>>, vector<1x1x8xf32>
    %122 = vector.shape_cast %121 : vector<1x1x8xf32> to vector<1x8xf32>
    %123 = vector.broadcast %122 : vector<1x8xf32> to vector<32x8xf32>
    %124 = arith.mulf %9, %123 : vector<32x8xf32>
    %125 = arith.addf %120, %124 : vector<32x8xf32>
    %c0_48 = arith.constant 0 : index
    %c23 = arith.constant 23 : index
    %c0_49 = arith.constant 0 : index
    %126 = vector.load %arg1[%c0_48, %c23, %c0_49] : memref<4x96x8xf32, #tpu.memory_space<vmem>>, vector<1x1x8xf32>
    %127 = vector.shape_cast %126 : vector<1x1x8xf32> to vector<1x8xf32>
    %128 = vector.broadcast %127 : vector<1x8xf32> to vector<32x8xf32>
    %129 = arith.mulf %12, %128 : vector<32x8xf32>
    %130 = arith.addf %125, %129 : vector<32x8xf32>
    %131 = arith.maximumf %111, %130 : vector<32x8xf32>
    %c0_50 = arith.constant 0 : index
    %c24 = arith.constant 24 : index
    %c0_51 = arith.constant 0 : index
    %132 = vector.load %arg1[%c0_50, %c24, %c0_51] : memref<4x96x8xf32, #tpu.memory_space<vmem>>, vector<1x1x8xf32>
    %133 = vector.shape_cast %132 : vector<1x1x8xf32> to vector<1x8xf32>
    %134 = vector.broadcast %133 : vector<1x8xf32> to vector<32x8xf32>
    %135 = arith.mulf %3, %134 : vector<32x8xf32>
    %c0_52 = arith.constant 0 : index
    %c25 = arith.constant 25 : index
    %c0_53 = arith.constant 0 : index
    %136 = vector.load %arg1[%c0_52, %c25, %c0_53] : memref<4x96x8xf32, #tpu.memory_space<vmem>>, vector<1x1x8xf32>
    %137 = vector.shape_cast %136 : vector<1x1x8xf32> to vector<1x8xf32>
    %138 = vector.broadcast %137 : vector<1x8xf32> to vector<32x8xf32>
    %139 = arith.mulf %6, %138 : vector<32x8xf32>
    %140 = arith.addf %135, %139 : vector<32x8xf32>
    %c0_54 = arith.constant 0 : index
    %c26 = arith.constant 26 : index
    %c0_55 = arith.constant 0 : index
    %141 = vector.load %arg1[%c0_54, %c26, %c0_55] : memref<4x96x8xf32, #tpu.memory_space<vmem>>, vector<1x1x8xf32>
    %142 = vector.shape_cast %141 : vector<1x1x8xf32> to vector<1x8xf32>
    %143 = vector.broadcast %142 : vector<1x8xf32> to vector<32x8xf32>
    %144 = arith.mulf %9, %143 : vector<32x8xf32>
    %145 = arith.addf %140, %144 : vector<32x8xf32>
    %c0_56 = arith.constant 0 : index
    %c27 = arith.constant 27 : index
    %c0_57 = arith.constant 0 : index
    %146 = vector.load %arg1[%c0_56, %c27, %c0_57] : memref<4x96x8xf32, #tpu.memory_space<vmem>>, vector<1x1x8xf32>
    %147 = vector.shape_cast %146 : vector<1x1x8xf32> to vector<1x8xf32>
    %148 = vector.broadcast %147 : vector<1x8xf32> to vector<32x8xf32>
    %149 = arith.mulf %12, %148 : vector<32x8xf32>
    %150 = arith.addf %145, %149 : vector<32x8xf32>
    %151 = arith.maximumf %131, %150 : vector<32x8xf32>
    %c0_58 = arith.constant 0 : index
    %c28 = arith.constant 28 : index
    %c0_59 = arith.constant 0 : index
    %152 = vector.load %arg1[%c0_58, %c28, %c0_59] : memref<4x96x8xf32, #tpu.memory_space<vmem>>, vector<1x1x8xf32>
    %153 = vector.shape_cast %152 : vector<1x1x8xf32> to vector<1x8xf32>
    %154 = vector.broadcast %153 : vector<1x8xf32> to vector<32x8xf32>
    %155 = arith.mulf %3, %154 : vector<32x8xf32>
    %c0_60 = arith.constant 0 : index
    %c29 = arith.constant 29 : index
    %c0_61 = arith.constant 0 : index
    %156 = vector.load %arg1[%c0_60, %c29, %c0_61] : memref<4x96x8xf32, #tpu.memory_space<vmem>>, vector<1x1x8xf32>
    %157 = vector.shape_cast %156 : vector<1x1x8xf32> to vector<1x8xf32>
    %158 = vector.broadcast %157 : vector<1x8xf32> to vector<32x8xf32>
    %159 = arith.mulf %6, %158 : vector<32x8xf32>
    %160 = arith.addf %155, %159 : vector<32x8xf32>
    %c0_62 = arith.constant 0 : index
    %c30 = arith.constant 30 : index
    %c0_63 = arith.constant 0 : index
    %161 = vector.load %arg1[%c0_62, %c30, %c0_63] : memref<4x96x8xf32, #tpu.memory_space<vmem>>, vector<1x1x8xf32>
    %162 = vector.shape_cast %161 : vector<1x1x8xf32> to vector<1x8xf32>
    %163 = vector.broadcast %162 : vector<1x8xf32> to vector<32x8xf32>
    %164 = arith.mulf %9, %163 : vector<32x8xf32>
    %165 = arith.addf %160, %164 : vector<32x8xf32>
    %c0_64 = arith.constant 0 : index
    %c31 = arith.constant 31 : index
    %c0_65 = arith.constant 0 : index
    %166 = vector.load %arg1[%c0_64, %c31, %c0_65] : memref<4x96x8xf32, #tpu.memory_space<vmem>>, vector<1x1x8xf32>
    %167 = vector.shape_cast %166 : vector<1x1x8xf32> to vector<1x8xf32>
    %168 = vector.broadcast %167 : vector<1x8xf32> to vector<32x8xf32>
    %169 = arith.mulf %12, %168 : vector<32x8xf32>
    %170 = arith.addf %165, %169 : vector<32x8xf32>
    %171 = arith.maximumf %151, %170 : vector<32x8xf32>
    %c0_66 = arith.constant 0 : index
    %c32 = arith.constant 32 : index
    %c0_67 = arith.constant 0 : index
    %172 = vector.load %arg1[%c0_66, %c32, %c0_67] : memref<4x96x8xf32, #tpu.memory_space<vmem>>, vector<1x1x8xf32>
    %173 = vector.shape_cast %172 : vector<1x1x8xf32> to vector<1x8xf32>
    %174 = vector.broadcast %173 : vector<1x8xf32> to vector<32x8xf32>
    %175 = arith.mulf %3, %174 : vector<32x8xf32>
    %c0_68 = arith.constant 0 : index
    %c33 = arith.constant 33 : index
    %c0_69 = arith.constant 0 : index
    %176 = vector.load %arg1[%c0_68, %c33, %c0_69] : memref<4x96x8xf32, #tpu.memory_space<vmem>>, vector<1x1x8xf32>
    %177 = vector.shape_cast %176 : vector<1x1x8xf32> to vector<1x8xf32>
    %178 = vector.broadcast %177 : vector<1x8xf32> to vector<32x8xf32>
    %179 = arith.mulf %6, %178 : vector<32x8xf32>
    %180 = arith.addf %175, %179 : vector<32x8xf32>
    %c0_70 = arith.constant 0 : index
    %c34 = arith.constant 34 : index
    %c0_71 = arith.constant 0 : index
    %181 = vector.load %arg1[%c0_70, %c34, %c0_71] : memref<4x96x8xf32, #tpu.memory_space<vmem>>, vector<1x1x8xf32>
    %182 = vector.shape_cast %181 : vector<1x1x8xf32> to vector<1x8xf32>
    %183 = vector.broadcast %182 : vector<1x8xf32> to vector<32x8xf32>
    %184 = arith.mulf %9, %183 : vector<32x8xf32>
    %185 = arith.addf %180, %184 : vector<32x8xf32>
    %c0_72 = arith.constant 0 : index
    %c35 = arith.constant 35 : index
    %c0_73 = arith.constant 0 : index
    %186 = vector.load %arg1[%c0_72, %c35, %c0_73] : memref<4x96x8xf32, #tpu.memory_space<vmem>>, vector<1x1x8xf32>
    %187 = vector.shape_cast %186 : vector<1x1x8xf32> to vector<1x8xf32>
    %188 = vector.broadcast %187 : vector<1x8xf32> to vector<32x8xf32>
    %189 = arith.mulf %12, %188 : vector<32x8xf32>
    %190 = arith.addf %185, %189 : vector<32x8xf32>
    %191 = arith.maximumf %171, %190 : vector<32x8xf32>
    %c0_74 = arith.constant 0 : index
    %c36 = arith.constant 36 : index
    %c0_75 = arith.constant 0 : index
    %192 = vector.load %arg1[%c0_74, %c36, %c0_75] : memref<4x96x8xf32, #tpu.memory_space<vmem>>, vector<1x1x8xf32>
    %193 = vector.shape_cast %192 : vector<1x1x8xf32> to vector<1x8xf32>
    %194 = vector.broadcast %193 : vector<1x8xf32> to vector<32x8xf32>
    %195 = arith.mulf %3, %194 : vector<32x8xf32>
    %c0_76 = arith.constant 0 : index
    %c37 = arith.constant 37 : index
    %c0_77 = arith.constant 0 : index
    %196 = vector.load %arg1[%c0_76, %c37, %c0_77] : memref<4x96x8xf32, #tpu.memory_space<vmem>>, vector<1x1x8xf32>
    %197 = vector.shape_cast %196 : vector<1x1x8xf32> to vector<1x8xf32>
    %198 = vector.broadcast %197 : vector<1x8xf32> to vector<32x8xf32>
    %199 = arith.mulf %6, %198 : vector<32x8xf32>
    %200 = arith.addf %195, %199 : vector<32x8xf32>
    %c0_78 = arith.constant 0 : index
    %c38 = arith.constant 38 : index
    %c0_79 = arith.constant 0 : index
    %201 = vector.load %arg1[%c0_78, %c38, %c0_79] : memref<4x96x8xf32, #tpu.memory_space<vmem>>, vector<1x1x8xf32>
    %202 = vector.shape_cast %201 : vector<1x1x8xf32> to vector<1x8xf32>
    %203 = vector.broadcast %202 : vector<1x8xf32> to vector<32x8xf32>
    %204 = arith.mulf %9, %203 : vector<32x8xf32>
    %205 = arith.addf %200, %204 : vector<32x8xf32>
    %c0_80 = arith.constant 0 : index
    %c39 = arith.constant 39 : index
    %c0_81 = arith.constant 0 : index
    %206 = vector.load %arg1[%c0_80, %c39, %c0_81] : memref<4x96x8xf32, #tpu.memory_space<vmem>>, vector<1x1x8xf32>
    %207 = vector.shape_cast %206 : vector<1x1x8xf32> to vector<1x8xf32>
    %208 = vector.broadcast %207 : vector<1x8xf32> to vector<32x8xf32>
    %209 = arith.mulf %12, %208 : vector<32x8xf32>
    %210 = arith.addf %205, %209 : vector<32x8xf32>
    %211 = arith.maximumf %191, %210 : vector<32x8xf32>
    %c0_82 = arith.constant 0 : index
    %c40 = arith.constant 40 : index
    %c0_83 = arith.constant 0 : index
    %212 = vector.load %arg1[%c0_82, %c40, %c0_83] : memref<4x96x8xf32, #tpu.memory_space<vmem>>, vector<1x1x8xf32>
    %213 = vector.shape_cast %212 : vector<1x1x8xf32> to vector<1x8xf32>
    %214 = vector.broadcast %213 : vector<1x8xf32> to vector<32x8xf32>
    %215 = arith.mulf %3, %214 : vector<32x8xf32>
    %c0_84 = arith.constant 0 : index
    %c41 = arith.constant 41 : index
    %c0_85 = arith.constant 0 : index
    %216 = vector.load %arg1[%c0_84, %c41, %c0_85] : memref<4x96x8xf32, #tpu.memory_space<vmem>>, vector<1x1x8xf32>
    %217 = vector.shape_cast %216 : vector<1x1x8xf32> to vector<1x8xf32>
    %218 = vector.broadcast %217 : vector<1x8xf32> to vector<32x8xf32>
    %219 = arith.mulf %6, %218 : vector<32x8xf32>
    %220 = arith.addf %215, %219 : vector<32x8xf32>
    %c0_86 = arith.constant 0 : index
    %c42 = arith.constant 42 : index
    %c0_87 = arith.constant 0 : index
    %221 = vector.load %arg1[%c0_86, %c42, %c0_87] : memref<4x96x8xf32, #tpu.memory_space<vmem>>, vector<1x1x8xf32>
    %222 = vector.shape_cast %221 : vector<1x1x8xf32> to vector<1x8xf32>
    %223 = vector.broadcast %222 : vector<1x8xf32> to vector<32x8xf32>
    %224 = arith.mulf %9, %223 : vector<32x8xf32>
    %225 = arith.addf %220, %224 : vector<32x8xf32>
    %c0_88 = arith.constant 0 : index
    %c43 = arith.constant 43 : index
    %c0_89 = arith.constant 0 : index
    %226 = vector.load %arg1[%c0_88, %c43, %c0_89] : memref<4x96x8xf32, #tpu.memory_space<vmem>>, vector<1x1x8xf32>
    %227 = vector.shape_cast %226 : vector<1x1x8xf32> to vector<1x8xf32>
    %228 = vector.broadcast %227 : vector<1x8xf32> to vector<32x8xf32>
    %229 = arith.mulf %12, %228 : vector<32x8xf32>
    %230 = arith.addf %225, %229 : vector<32x8xf32>
    %231 = arith.maximumf %211, %230 : vector<32x8xf32>
    %c0_90 = arith.constant 0 : index
    %c44 = arith.constant 44 : index
    %c0_91 = arith.constant 0 : index
    %232 = vector.load %arg1[%c0_90, %c44, %c0_91] : memref<4x96x8xf32, #tpu.memory_space<vmem>>, vector<1x1x8xf32>
    %233 = vector.shape_cast %232 : vector<1x1x8xf32> to vector<1x8xf32>
    %234 = vector.broadcast %233 : vector<1x8xf32> to vector<32x8xf32>
    %235 = arith.mulf %3, %234 : vector<32x8xf32>
    %c0_92 = arith.constant 0 : index
    %c45 = arith.constant 45 : index
    %c0_93 = arith.constant 0 : index
    %236 = vector.load %arg1[%c0_92, %c45, %c0_93] : memref<4x96x8xf32, #tpu.memory_space<vmem>>, vector<1x1x8xf32>
    %237 = vector.shape_cast %236 : vector<1x1x8xf32> to vector<1x8xf32>
    %238 = vector.broadcast %237 : vector<1x8xf32> to vector<32x8xf32>
    %239 = arith.mulf %6, %238 : vector<32x8xf32>
    %240 = arith.addf %235, %239 : vector<32x8xf32>
    %c0_94 = arith.constant 0 : index
    %c46 = arith.constant 46 : index
    %c0_95 = arith.constant 0 : index
    %241 = vector.load %arg1[%c0_94, %c46, %c0_95] : memref<4x96x8xf32, #tpu.memory_space<vmem>>, vector<1x1x8xf32>
    %242 = vector.shape_cast %241 : vector<1x1x8xf32> to vector<1x8xf32>
    %243 = vector.broadcast %242 : vector<1x8xf32> to vector<32x8xf32>
    %244 = arith.mulf %9, %243 : vector<32x8xf32>
    %245 = arith.addf %240, %244 : vector<32x8xf32>
    %c0_96 = arith.constant 0 : index
    %c47 = arith.constant 47 : index
    %c0_97 = arith.constant 0 : index
    %246 = vector.load %arg1[%c0_96, %c47, %c0_97] : memref<4x96x8xf32, #tpu.memory_space<vmem>>, vector<1x1x8xf32>
    %247 = vector.shape_cast %246 : vector<1x1x8xf32> to vector<1x8xf32>
    %248 = vector.broadcast %247 : vector<1x8xf32> to vector<32x8xf32>
    %249 = arith.mulf %12, %248 : vector<32x8xf32>
    %250 = arith.addf %245, %249 : vector<32x8xf32>
    %251 = arith.maximumf %231, %250 : vector<32x8xf32>
    %c0_98 = arith.constant 0 : index
    %c48 = arith.constant 48 : index
    %c0_99 = arith.constant 0 : index
    %252 = vector.load %arg1[%c0_98, %c48, %c0_99] : memref<4x96x8xf32, #tpu.memory_space<vmem>>, vector<1x1x8xf32>
    %253 = vector.shape_cast %252 : vector<1x1x8xf32> to vector<1x8xf32>
    %254 = vector.broadcast %253 : vector<1x8xf32> to vector<32x8xf32>
    %255 = arith.mulf %3, %254 : vector<32x8xf32>
    %c0_100 = arith.constant 0 : index
    %c49 = arith.constant 49 : index
    %c0_101 = arith.constant 0 : index
    %256 = vector.load %arg1[%c0_100, %c49, %c0_101] : memref<4x96x8xf32, #tpu.memory_space<vmem>>, vector<1x1x8xf32>
    %257 = vector.shape_cast %256 : vector<1x1x8xf32> to vector<1x8xf32>
    %258 = vector.broadcast %257 : vector<1x8xf32> to vector<32x8xf32>
    %259 = arith.mulf %6, %258 : vector<32x8xf32>
    %260 = arith.addf %255, %259 : vector<32x8xf32>
    %c0_102 = arith.constant 0 : index
    %c50 = arith.constant 50 : index
    %c0_103 = arith.constant 0 : index
    %261 = vector.load %arg1[%c0_102, %c50, %c0_103] : memref<4x96x8xf32, #tpu.memory_space<vmem>>, vector<1x1x8xf32>
    %262 = vector.shape_cast %261 : vector<1x1x8xf32> to vector<1x8xf32>
    %263 = vector.broadcast %262 : vector<1x8xf32> to vector<32x8xf32>
    %264 = arith.mulf %9, %263 : vector<32x8xf32>
    %265 = arith.addf %260, %264 : vector<32x8xf32>
    %c0_104 = arith.constant 0 : index
    %c51 = arith.constant 51 : index
    %c0_105 = arith.constant 0 : index
    %266 = vector.load %arg1[%c0_104, %c51, %c0_105] : memref<4x96x8xf32, #tpu.memory_space<vmem>>, vector<1x1x8xf32>
    %267 = vector.shape_cast %266 : vector<1x1x8xf32> to vector<1x8xf32>
    %268 = vector.broadcast %267 : vector<1x8xf32> to vector<32x8xf32>
    %269 = arith.mulf %12, %268 : vector<32x8xf32>
    %270 = arith.addf %265, %269 : vector<32x8xf32>
    %271 = arith.maximumf %251, %270 : vector<32x8xf32>
    %c0_106 = arith.constant 0 : index
    %c52 = arith.constant 52 : index
    %c0_107 = arith.constant 0 : index
    %272 = vector.load %arg1[%c0_106, %c52, %c0_107] : memref<4x96x8xf32, #tpu.memory_space<vmem>>, vector<1x1x8xf32>
    %273 = vector.shape_cast %272 : vector<1x1x8xf32> to vector<1x8xf32>
    %274 = vector.broadcast %273 : vector<1x8xf32> to vector<32x8xf32>
    %275 = arith.mulf %3, %274 : vector<32x8xf32>
    %c0_108 = arith.constant 0 : index
    %c53 = arith.constant 53 : index
    %c0_109 = arith.constant 0 : index
    %276 = vector.load %arg1[%c0_108, %c53, %c0_109] : memref<4x96x8xf32, #tpu.memory_space<vmem>>, vector<1x1x8xf32>
    %277 = vector.shape_cast %276 : vector<1x1x8xf32> to vector<1x8xf32>
    %278 = vector.broadcast %277 : vector<1x8xf32> to vector<32x8xf32>
    %279 = arith.mulf %6, %278 : vector<32x8xf32>
    %280 = arith.addf %275, %279 : vector<32x8xf32>
    %c0_110 = arith.constant 0 : index
    %c54 = arith.constant 54 : index
    %c0_111 = arith.constant 0 : index
    %281 = vector.load %arg1[%c0_110, %c54, %c0_111] : memref<4x96x8xf32, #tpu.memory_space<vmem>>, vector<1x1x8xf32>
    %282 = vector.shape_cast %281 : vector<1x1x8xf32> to vector<1x8xf32>
    %283 = vector.broadcast %282 : vector<1x8xf32> to vector<32x8xf32>
    %284 = arith.mulf %9, %283 : vector<32x8xf32>
    %285 = arith.addf %280, %284 : vector<32x8xf32>
    %c0_112 = arith.constant 0 : index
    %c55 = arith.constant 55 : index
    %c0_113 = arith.constant 0 : index
    %286 = vector.load %arg1[%c0_112, %c55, %c0_113] : memref<4x96x8xf32, #tpu.memory_space<vmem>>, vector<1x1x8xf32>
    %287 = vector.shape_cast %286 : vector<1x1x8xf32> to vector<1x8xf32>
    %288 = vector.broadcast %287 : vector<1x8xf32> to vector<32x8xf32>
    %289 = arith.mulf %12, %288 : vector<32x8xf32>
    %290 = arith.addf %285, %289 : vector<32x8xf32>
    %291 = arith.maximumf %271, %290 : vector<32x8xf32>
    %c0_114 = arith.constant 0 : index
    %c56 = arith.constant 56 : index
    %c0_115 = arith.constant 0 : index
    %292 = vector.load %arg1[%c0_114, %c56, %c0_115] : memref<4x96x8xf32, #tpu.memory_space<vmem>>, vector<1x1x8xf32>
    %293 = vector.shape_cast %292 : vector<1x1x8xf32> to vector<1x8xf32>
    %294 = vector.broadcast %293 : vector<1x8xf32> to vector<32x8xf32>
    %295 = arith.mulf %3, %294 : vector<32x8xf32>
    %c0_116 = arith.constant 0 : index
    %c57 = arith.constant 57 : index
    %c0_117 = arith.constant 0 : index
    %296 = vector.load %arg1[%c0_116, %c57, %c0_117] : memref<4x96x8xf32, #tpu.memory_space<vmem>>, vector<1x1x8xf32>
    %297 = vector.shape_cast %296 : vector<1x1x8xf32> to vector<1x8xf32>
    %298 = vector.broadcast %297 : vector<1x8xf32> to vector<32x8xf32>
    %299 = arith.mulf %6, %298 : vector<32x8xf32>
    %300 = arith.addf %295, %299 : vector<32x8xf32>
    %c0_118 = arith.constant 0 : index
    %c58 = arith.constant 58 : index
    %c0_119 = arith.constant 0 : index
    %301 = vector.load %arg1[%c0_118, %c58, %c0_119] : memref<4x96x8xf32, #tpu.memory_space<vmem>>, vector<1x1x8xf32>
    %302 = vector.shape_cast %301 : vector<1x1x8xf32> to vector<1x8xf32>
    %303 = vector.broadcast %302 : vector<1x8xf32> to vector<32x8xf32>
    %304 = arith.mulf %9, %303 : vector<32x8xf32>
    %305 = arith.addf %300, %304 : vector<32x8xf32>
    %c0_120 = arith.constant 0 : index
    %c59 = arith.constant 59 : index
    %c0_121 = arith.constant 0 : index
    %306 = vector.load %arg1[%c0_120, %c59, %c0_121] : memref<4x96x8xf32, #tpu.memory_space<vmem>>, vector<1x1x8xf32>
    %307 = vector.shape_cast %306 : vector<1x1x8xf32> to vector<1x8xf32>
    %308 = vector.broadcast %307 : vector<1x8xf32> to vector<32x8xf32>
    %309 = arith.mulf %12, %308 : vector<32x8xf32>
    %310 = arith.addf %305, %309 : vector<32x8xf32>
    %311 = arith.maximumf %291, %310 : vector<32x8xf32>
    %c0_122 = arith.constant 0 : index
    %c60 = arith.constant 60 : index
    %c0_123 = arith.constant 0 : index
    %312 = vector.load %arg1[%c0_122, %c60, %c0_123] : memref<4x96x8xf32, #tpu.memory_space<vmem>>, vector<1x1x8xf32>
    %313 = vector.shape_cast %312 : vector<1x1x8xf32> to vector<1x8xf32>
    %314 = vector.broadcast %313 : vector<1x8xf32> to vector<32x8xf32>
    %315 = arith.mulf %3, %314 : vector<32x8xf32>
    %c0_124 = arith.constant 0 : index
    %c61 = arith.constant 61 : index
    %c0_125 = arith.constant 0 : index
    %316 = vector.load %arg1[%c0_124, %c61, %c0_125] : memref<4x96x8xf32, #tpu.memory_space<vmem>>, vector<1x1x8xf32>
    %317 = vector.shape_cast %316 : vector<1x1x8xf32> to vector<1x8xf32>
    %318 = vector.broadcast %317 : vector<1x8xf32> to vector<32x8xf32>
    %319 = arith.mulf %6, %318 : vector<32x8xf32>
    %320 = arith.addf %315, %319 : vector<32x8xf32>
    %c0_126 = arith.constant 0 : index
    %c62 = arith.constant 62 : index
    %c0_127 = arith.constant 0 : index
    %321 = vector.load %arg1[%c0_126, %c62, %c0_127] : memref<4x96x8xf32, #tpu.memory_space<vmem>>, vector<1x1x8xf32>
    %322 = vector.shape_cast %321 : vector<1x1x8xf32> to vector<1x8xf32>
    %323 = vector.broadcast %322 : vector<1x8xf32> to vector<32x8xf32>
    %324 = arith.mulf %9, %323 : vector<32x8xf32>
    %325 = arith.addf %320, %324 : vector<32x8xf32>
    %c0_128 = arith.constant 0 : index
    %c63 = arith.constant 63 : index
    %c0_129 = arith.constant 0 : index
    %326 = vector.load %arg1[%c0_128, %c63, %c0_129] : memref<4x96x8xf32, #tpu.memory_space<vmem>>, vector<1x1x8xf32>
    %327 = vector.shape_cast %326 : vector<1x1x8xf32> to vector<1x8xf32>
    %328 = vector.broadcast %327 : vector<1x8xf32> to vector<32x8xf32>
    %329 = arith.mulf %12, %328 : vector<32x8xf32>
    %330 = arith.addf %325, %329 : vector<32x8xf32>
    %331 = arith.maximumf %311, %330 : vector<32x8xf32>
    %c0_130 = arith.constant 0 : index
    %c64 = arith.constant 64 : index
    %c0_131 = arith.constant 0 : index
    %332 = vector.load %arg1[%c0_130, %c64, %c0_131] : memref<4x96x8xf32, #tpu.memory_space<vmem>>, vector<1x1x8xf32>
    %333 = vector.shape_cast %332 : vector<1x1x8xf32> to vector<1x8xf32>
    %334 = vector.broadcast %333 : vector<1x8xf32> to vector<32x8xf32>
    %335 = arith.mulf %3, %334 : vector<32x8xf32>
    %c0_132 = arith.constant 0 : index
    %c65 = arith.constant 65 : index
    %c0_133 = arith.constant 0 : index
    %336 = vector.load %arg1[%c0_132, %c65, %c0_133] : memref<4x96x8xf32, #tpu.memory_space<vmem>>, vector<1x1x8xf32>
    %337 = vector.shape_cast %336 : vector<1x1x8xf32> to vector<1x8xf32>
    %338 = vector.broadcast %337 : vector<1x8xf32> to vector<32x8xf32>
    %339 = arith.mulf %6, %338 : vector<32x8xf32>
    %340 = arith.addf %335, %339 : vector<32x8xf32>
    %c0_134 = arith.constant 0 : index
    %c66 = arith.constant 66 : index
    %c0_135 = arith.constant 0 : index
    %341 = vector.load %arg1[%c0_134, %c66, %c0_135] : memref<4x96x8xf32, #tpu.memory_space<vmem>>, vector<1x1x8xf32>
    %342 = vector.shape_cast %341 : vector<1x1x8xf32> to vector<1x8xf32>
    %343 = vector.broadcast %342 : vector<1x8xf32> to vector<32x8xf32>
    %344 = arith.mulf %9, %343 : vector<32x8xf32>
    %345 = arith.addf %340, %344 : vector<32x8xf32>
    %c0_136 = arith.constant 0 : index
    %c67 = arith.constant 67 : index
    %c0_137 = arith.constant 0 : index
    %346 = vector.load %arg1[%c0_136, %c67, %c0_137] : memref<4x96x8xf32, #tpu.memory_space<vmem>>, vector<1x1x8xf32>
    %347 = vector.shape_cast %346 : vector<1x1x8xf32> to vector<1x8xf32>
    %348 = vector.broadcast %347 : vector<1x8xf32> to vector<32x8xf32>
    %349 = arith.mulf %12, %348 : vector<32x8xf32>
    %350 = arith.addf %345, %349 : vector<32x8xf32>
    %351 = arith.maximumf %331, %350 : vector<32x8xf32>
    %c0_138 = arith.constant 0 : index
    %c68 = arith.constant 68 : index
    %c0_139 = arith.constant 0 : index
    %352 = vector.load %arg1[%c0_138, %c68, %c0_139] : memref<4x96x8xf32, #tpu.memory_space<vmem>>, vector<1x1x8xf32>
    %353 = vector.shape_cast %352 : vector<1x1x8xf32> to vector<1x8xf32>
    %354 = vector.broadcast %353 : vector<1x8xf32> to vector<32x8xf32>
    %355 = arith.mulf %3, %354 : vector<32x8xf32>
    %c0_140 = arith.constant 0 : index
    %c69 = arith.constant 69 : index
    %c0_141 = arith.constant 0 : index
    %356 = vector.load %arg1[%c0_140, %c69, %c0_141] : memref<4x96x8xf32, #tpu.memory_space<vmem>>, vector<1x1x8xf32>
    %357 = vector.shape_cast %356 : vector<1x1x8xf32> to vector<1x8xf32>
    %358 = vector.broadcast %357 : vector<1x8xf32> to vector<32x8xf32>
    %359 = arith.mulf %6, %358 : vector<32x8xf32>
    %360 = arith.addf %355, %359 : vector<32x8xf32>
    %c0_142 = arith.constant 0 : index
    %c70 = arith.constant 70 : index
    %c0_143 = arith.constant 0 : index
    %361 = vector.load %arg1[%c0_142, %c70, %c0_143] : memref<4x96x8xf32, #tpu.memory_space<vmem>>, vector<1x1x8xf32>
    %362 = vector.shape_cast %361 : vector<1x1x8xf32> to vector<1x8xf32>
    %363 = vector.broadcast %362 : vector<1x8xf32> to vector<32x8xf32>
    %364 = arith.mulf %9, %363 : vector<32x8xf32>
    %365 = arith.addf %360, %364 : vector<32x8xf32>
    %c0_144 = arith.constant 0 : index
    %c71 = arith.constant 71 : index
    %c0_145 = arith.constant 0 : index
    %366 = vector.load %arg1[%c0_144, %c71, %c0_145] : memref<4x96x8xf32, #tpu.memory_space<vmem>>, vector<1x1x8xf32>
    %367 = vector.shape_cast %366 : vector<1x1x8xf32> to vector<1x8xf32>
    %368 = vector.broadcast %367 : vector<1x8xf32> to vector<32x8xf32>
    %369 = arith.mulf %12, %368 : vector<32x8xf32>
    %370 = arith.addf %365, %369 : vector<32x8xf32>
    %371 = arith.maximumf %351, %370 : vector<32x8xf32>
    %c0_146 = arith.constant 0 : index
    %c72 = arith.constant 72 : index
    %c0_147 = arith.constant 0 : index
    %372 = vector.load %arg1[%c0_146, %c72, %c0_147] : memref<4x96x8xf32, #tpu.memory_space<vmem>>, vector<1x1x8xf32>
    %373 = vector.shape_cast %372 : vector<1x1x8xf32> to vector<1x8xf32>
    %374 = vector.broadcast %373 : vector<1x8xf32> to vector<32x8xf32>
    %375 = arith.mulf %3, %374 : vector<32x8xf32>
    %c0_148 = arith.constant 0 : index
    %c73 = arith.constant 73 : index
    %c0_149 = arith.constant 0 : index
    %376 = vector.load %arg1[%c0_148, %c73, %c0_149] : memref<4x96x8xf32, #tpu.memory_space<vmem>>, vector<1x1x8xf32>
    %377 = vector.shape_cast %376 : vector<1x1x8xf32> to vector<1x8xf32>
    %378 = vector.broadcast %377 : vector<1x8xf32> to vector<32x8xf32>
    %379 = arith.mulf %6, %378 : vector<32x8xf32>
    %380 = arith.addf %375, %379 : vector<32x8xf32>
    %c0_150 = arith.constant 0 : index
    %c74 = arith.constant 74 : index
    %c0_151 = arith.constant 0 : index
    %381 = vector.load %arg1[%c0_150, %c74, %c0_151] : memref<4x96x8xf32, #tpu.memory_space<vmem>>, vector<1x1x8xf32>
    %382 = vector.shape_cast %381 : vector<1x1x8xf32> to vector<1x8xf32>
    %383 = vector.broadcast %382 : vector<1x8xf32> to vector<32x8xf32>
    %384 = arith.mulf %9, %383 : vector<32x8xf32>
    %385 = arith.addf %380, %384 : vector<32x8xf32>
    %c0_152 = arith.constant 0 : index
    %c75 = arith.constant 75 : index
    %c0_153 = arith.constant 0 : index
    %386 = vector.load %arg1[%c0_152, %c75, %c0_153] : memref<4x96x8xf32, #tpu.memory_space<vmem>>, vector<1x1x8xf32>
    %387 = vector.shape_cast %386 : vector<1x1x8xf32> to vector<1x8xf32>
    %388 = vector.broadcast %387 : vector<1x8xf32> to vector<32x8xf32>
    %389 = arith.mulf %12, %388 : vector<32x8xf32>
    %390 = arith.addf %385, %389 : vector<32x8xf32>
    %391 = arith.maximumf %371, %390 : vector<32x8xf32>
    %c0_154 = arith.constant 0 : index
    %c76 = arith.constant 76 : index
    %c0_155 = arith.constant 0 : index
    %392 = vector.load %arg1[%c0_154, %c76, %c0_155] : memref<4x96x8xf32, #tpu.memory_space<vmem>>, vector<1x1x8xf32>
    %393 = vector.shape_cast %392 : vector<1x1x8xf32> to vector<1x8xf32>
    %394 = vector.broadcast %393 : vector<1x8xf32> to vector<32x8xf32>
    %395 = arith.mulf %3, %394 : vector<32x8xf32>
    %c0_156 = arith.constant 0 : index
    %c77 = arith.constant 77 : index
    %c0_157 = arith.constant 0 : index
    %396 = vector.load %arg1[%c0_156, %c77, %c0_157] : memref<4x96x8xf32, #tpu.memory_space<vmem>>, vector<1x1x8xf32>
    %397 = vector.shape_cast %396 : vector<1x1x8xf32> to vector<1x8xf32>
    %398 = vector.broadcast %397 : vector<1x8xf32> to vector<32x8xf32>
    %399 = arith.mulf %6, %398 : vector<32x8xf32>
    %400 = arith.addf %395, %399 : vector<32x8xf32>
    %c0_158 = arith.constant 0 : index
    %c78 = arith.constant 78 : index
    %c0_159 = arith.constant 0 : index
    %401 = vector.load %arg1[%c0_158, %c78, %c0_159] : memref<4x96x8xf32, #tpu.memory_space<vmem>>, vector<1x1x8xf32>
    %402 = vector.shape_cast %401 : vector<1x1x8xf32> to vector<1x8xf32>
    %403 = vector.broadcast %402 : vector<1x8xf32> to vector<32x8xf32>
    %404 = arith.mulf %9, %403 : vector<32x8xf32>
    %405 = arith.addf %400, %404 : vector<32x8xf32>
    %c0_160 = arith.constant 0 : index
    %c79 = arith.constant 79 : index
    %c0_161 = arith.constant 0 : index
    %406 = vector.load %arg1[%c0_160, %c79, %c0_161] : memref<4x96x8xf32, #tpu.memory_space<vmem>>, vector<1x1x8xf32>
    %407 = vector.shape_cast %406 : vector<1x1x8xf32> to vector<1x8xf32>
    %408 = vector.broadcast %407 : vector<1x8xf32> to vector<32x8xf32>
    %409 = arith.mulf %12, %408 : vector<32x8xf32>
    %410 = arith.addf %405, %409 : vector<32x8xf32>
    %411 = arith.maximumf %391, %410 : vector<32x8xf32>
    %c0_162 = arith.constant 0 : index
    %c80 = arith.constant 80 : index
    %c0_163 = arith.constant 0 : index
    %412 = vector.load %arg1[%c0_162, %c80, %c0_163] : memref<4x96x8xf32, #tpu.memory_space<vmem>>, vector<1x1x8xf32>
    %413 = vector.shape_cast %412 : vector<1x1x8xf32> to vector<1x8xf32>
    %414 = vector.broadcast %413 : vector<1x8xf32> to vector<32x8xf32>
    %415 = arith.mulf %3, %414 : vector<32x8xf32>
    %c0_164 = arith.constant 0 : index
    %c81 = arith.constant 81 : index
    %c0_165 = arith.constant 0 : index
    %416 = vector.load %arg1[%c0_164, %c81, %c0_165] : memref<4x96x8xf32, #tpu.memory_space<vmem>>, vector<1x1x8xf32>
    %417 = vector.shape_cast %416 : vector<1x1x8xf32> to vector<1x8xf32>
    %418 = vector.broadcast %417 : vector<1x8xf32> to vector<32x8xf32>
    %419 = arith.mulf %6, %418 : vector<32x8xf32>
    %420 = arith.addf %415, %419 : vector<32x8xf32>
    %c0_166 = arith.constant 0 : index
    %c82 = arith.constant 82 : index
    %c0_167 = arith.constant 0 : index
    %421 = vector.load %arg1[%c0_166, %c82, %c0_167] : memref<4x96x8xf32, #tpu.memory_space<vmem>>, vector<1x1x8xf32>
    %422 = vector.shape_cast %421 : vector<1x1x8xf32> to vector<1x8xf32>
    %423 = vector.broadcast %422 : vector<1x8xf32> to vector<32x8xf32>
    %424 = arith.mulf %9, %423 : vector<32x8xf32>
    %425 = arith.addf %420, %424 : vector<32x8xf32>
    %c0_168 = arith.constant 0 : index
    %c83 = arith.constant 83 : index
    %c0_169 = arith.constant 0 : index
    %426 = vector.load %arg1[%c0_168, %c83, %c0_169] : memref<4x96x8xf32, #tpu.memory_space<vmem>>, vector<1x1x8xf32>
    %427 = vector.shape_cast %426 : vector<1x1x8xf32> to vector<1x8xf32>
    %428 = vector.broadcast %427 : vector<1x8xf32> to vector<32x8xf32>
    %429 = arith.mulf %12, %428 : vector<32x8xf32>
    %430 = arith.addf %425, %429 : vector<32x8xf32>
    %431 = arith.maximumf %411, %430 : vector<32x8xf32>
    %c0_170 = arith.constant 0 : index
    %c84 = arith.constant 84 : index
    %c0_171 = arith.constant 0 : index
    %432 = vector.load %arg1[%c0_170, %c84, %c0_171] : memref<4x96x8xf32, #tpu.memory_space<vmem>>, vector<1x1x8xf32>
    %433 = vector.shape_cast %432 : vector<1x1x8xf32> to vector<1x8xf32>
    %434 = vector.broadcast %433 : vector<1x8xf32> to vector<32x8xf32>
    %435 = arith.mulf %3, %434 : vector<32x8xf32>
    %c0_172 = arith.constant 0 : index
    %c85 = arith.constant 85 : index
    %c0_173 = arith.constant 0 : index
    %436 = vector.load %arg1[%c0_172, %c85, %c0_173] : memref<4x96x8xf32, #tpu.memory_space<vmem>>, vector<1x1x8xf32>
    %437 = vector.shape_cast %436 : vector<1x1x8xf32> to vector<1x8xf32>
    %438 = vector.broadcast %437 : vector<1x8xf32> to vector<32x8xf32>
    %439 = arith.mulf %6, %438 : vector<32x8xf32>
    %440 = arith.addf %435, %439 : vector<32x8xf32>
    %c0_174 = arith.constant 0 : index
    %c86 = arith.constant 86 : index
    %c0_175 = arith.constant 0 : index
    %441 = vector.load %arg1[%c0_174, %c86, %c0_175] : memref<4x96x8xf32, #tpu.memory_space<vmem>>, vector<1x1x8xf32>
    %442 = vector.shape_cast %441 : vector<1x1x8xf32> to vector<1x8xf32>
    %443 = vector.broadcast %442 : vector<1x8xf32> to vector<32x8xf32>
    %444 = arith.mulf %9, %443 : vector<32x8xf32>
    %445 = arith.addf %440, %444 : vector<32x8xf32>
    %c0_176 = arith.constant 0 : index
    %c87 = arith.constant 87 : index
    %c0_177 = arith.constant 0 : index
    %446 = vector.load %arg1[%c0_176, %c87, %c0_177] : memref<4x96x8xf32, #tpu.memory_space<vmem>>, vector<1x1x8xf32>
    %447 = vector.shape_cast %446 : vector<1x1x8xf32> to vector<1x8xf32>
    %448 = vector.broadcast %447 : vector<1x8xf32> to vector<32x8xf32>
    %449 = arith.mulf %12, %448 : vector<32x8xf32>
    %450 = arith.addf %445, %449 : vector<32x8xf32>
    %451 = arith.maximumf %431, %450 : vector<32x8xf32>
    %c0_178 = arith.constant 0 : index
    %c88 = arith.constant 88 : index
    %c0_179 = arith.constant 0 : index
    %452 = vector.load %arg1[%c0_178, %c88, %c0_179] : memref<4x96x8xf32, #tpu.memory_space<vmem>>, vector<1x1x8xf32>
    %453 = vector.shape_cast %452 : vector<1x1x8xf32> to vector<1x8xf32>
    %454 = vector.broadcast %453 : vector<1x8xf32> to vector<32x8xf32>
    %455 = arith.mulf %3, %454 : vector<32x8xf32>
    %c0_180 = arith.constant 0 : index
    %c89 = arith.constant 89 : index
    %c0_181 = arith.constant 0 : index
    %456 = vector.load %arg1[%c0_180, %c89, %c0_181] : memref<4x96x8xf32, #tpu.memory_space<vmem>>, vector<1x1x8xf32>
    %457 = vector.shape_cast %456 : vector<1x1x8xf32> to vector<1x8xf32>
    %458 = vector.broadcast %457 : vector<1x8xf32> to vector<32x8xf32>
    %459 = arith.mulf %6, %458 : vector<32x8xf32>
    %460 = arith.addf %455, %459 : vector<32x8xf32>
    %c0_182 = arith.constant 0 : index
    %c90 = arith.constant 90 : index
    %c0_183 = arith.constant 0 : index
    %461 = vector.load %arg1[%c0_182, %c90, %c0_183] : memref<4x96x8xf32, #tpu.memory_space<vmem>>, vector<1x1x8xf32>
    %462 = vector.shape_cast %461 : vector<1x1x8xf32> to vector<1x8xf32>
    %463 = vector.broadcast %462 : vector<1x8xf32> to vector<32x8xf32>
    %464 = arith.mulf %9, %463 : vector<32x8xf32>
    %465 = arith.addf %460, %464 : vector<32x8xf32>
    %c0_184 = arith.constant 0 : index
    %c91 = arith.constant 91 : index
    %c0_185 = arith.constant 0 : index
    %466 = vector.load %arg1[%c0_184, %c91, %c0_185] : memref<4x96x8xf32, #tpu.memory_space<vmem>>, vector<1x1x8xf32>
    %467 = vector.shape_cast %466 : vector<1x1x8xf32> to vector<1x8xf32>
    %468 = vector.broadcast %467 : vector<1x8xf32> to vector<32x8xf32>
    %469 = arith.mulf %12, %468 : vector<32x8xf32>
    %470 = arith.addf %465, %469 : vector<32x8xf32>
    %471 = arith.maximumf %451, %470 : vector<32x8xf32>
    %c0_186 = arith.constant 0 : index
    %c92 = arith.constant 92 : index
    %c0_187 = arith.constant 0 : index
    %472 = vector.load %arg1[%c0_186, %c92, %c0_187] : memref<4x96x8xf32, #tpu.memory_space<vmem>>, vector<1x1x8xf32>
    %473 = vector.shape_cast %472 : vector<1x1x8xf32> to vector<1x8xf32>
    %474 = vector.broadcast %473 : vector<1x8xf32> to vector<32x8xf32>
    %475 = arith.mulf %3, %474 : vector<32x8xf32>
    %c0_188 = arith.constant 0 : index
    %c93 = arith.constant 93 : index
    %c0_189 = arith.constant 0 : index
    %476 = vector.load %arg1[%c0_188, %c93, %c0_189] : memref<4x96x8xf32, #tpu.memory_space<vmem>>, vector<1x1x8xf32>
    %477 = vector.shape_cast %476 : vector<1x1x8xf32> to vector<1x8xf32>
    %478 = vector.broadcast %477 : vector<1x8xf32> to vector<32x8xf32>
    %479 = arith.mulf %6, %478 : vector<32x8xf32>
    %480 = arith.addf %475, %479 : vector<32x8xf32>
    %c0_190 = arith.constant 0 : index
    %c94 = arith.constant 94 : index
    %c0_191 = arith.constant 0 : index
    %481 = vector.load %arg1[%c0_190, %c94, %c0_191] : memref<4x96x8xf32, #tpu.memory_space<vmem>>, vector<1x1x8xf32>
    %482 = vector.shape_cast %481 : vector<1x1x8xf32> to vector<1x8xf32>
    %483 = vector.broadcast %482 : vector<1x8xf32> to vector<32x8xf32>
    %484 = arith.mulf %9, %483 : vector<32x8xf32>
    %485 = arith.addf %480, %484 : vector<32x8xf32>
    %c0_192 = arith.constant 0 : index
    %c95 = arith.constant 95 : index
    %c0_193 = arith.constant 0 : index
    %486 = vector.load %arg1[%c0_192, %c95, %c0_193] : memref<4x96x8xf32, #tpu.memory_space<vmem>>, vector<1x1x8xf32>
    %487 = vector.shape_cast %486 : vector<1x1x8xf32> to vector<1x8xf32>
    %488 = vector.broadcast %487 : vector<1x8xf32> to vector<32x8xf32>
    %489 = arith.mulf %12, %488 : vector<32x8xf32>
    %490 = arith.addf %485, %489 : vector<32x8xf32>
    %491 = arith.maximumf %471, %490 : vector<32x8xf32>
    %c0_194 = arith.constant 0 : index
    %c0_195 = arith.constant 0 : index
    %c0_196 = arith.constant 0 : index
    %492 = vector.load %arg3[%c0_194, %c0_195, %c0_196] : memref<4x32x8xf32, #tpu.memory_space<vmem>>, vector<1x32x8xf32>
    %493 = vector.shape_cast %492 : vector<1x32x8xf32> to vector<32x8xf32>
    %494 = vector.shape_cast %491 : vector<32x8xf32> to vector<1x32x8xf32>
    tpu.vector_store %arg3[%c0_194, %c0_195, %c0_196], %494 {strides = array<i32>} : memref<4x32x8xf32, #tpu.memory_space<vmem>>, vector<1x32x8xf32>,
    %c1_197 = arith.constant 1 : index
    %c0_198 = arith.constant 0 : index
    %c0_199 = arith.constant 0 : index
    %495 = vector.load %arg1[%c1_197, %c0_198, %c0_199] : memref<4x96x8xf32, #tpu.memory_space<vmem>>, vector<1x1x8xf32>
    %496 = vector.shape_cast %495 : vector<1x1x8xf32> to vector<1x8xf32>
    %497 = vector.broadcast %496 : vector<1x8xf32> to vector<32x8xf32>
    %498 = arith.mulf %3, %497 : vector<32x8xf32>
    %c1_200 = arith.constant 1 : index
    %c1_201 = arith.constant 1 : index
    %c0_202 = arith.constant 0 : index
    %499 = vector.load %arg1[%c1_200, %c1_201, %c0_202] : memref<4x96x8xf32, #tpu.memory_space<vmem>>, vector<1x1x8xf32>
    %500 = vector.shape_cast %499 : vector<1x1x8xf32> to vector<1x8xf32>
    %501 = vector.broadcast %500 : vector<1x8xf32> to vector<32x8xf32>
    %502 = arith.mulf %6, %501 : vector<32x8xf32>
    %503 = arith.addf %498, %502 : vector<32x8xf32>
    %c1_203 = arith.constant 1 : index
    %c2_204 = arith.constant 2 : index
    %c0_205 = arith.constant 0 : index
    %504 = vector.load %arg1[%c1_203, %c2_204, %c0_205] : memref<4x96x8xf32, #tpu.memory_space<vmem>>, vector<1x1x8xf32>
    %505 = vector.shape_cast %504 : vector<1x1x8xf32> to vector<1x8xf32>
    %506 = vector.broadcast %505 : vector<1x8xf32> to vector<32x8xf32>
    %507 = arith.mulf %9, %506 : vector<32x8xf32>
    %508 = arith.addf %503, %507 : vector<32x8xf32>
    %c1_206 = arith.constant 1 : index
    %c3_207 = arith.constant 3 : index
    %c0_208 = arith.constant 0 : index
    %509 = vector.load %arg1[%c1_206, %c3_207, %c0_208] : memref<4x96x8xf32, #tpu.memory_space<vmem>>, vector<1x1x8xf32>
    %510 = vector.shape_cast %509 : vector<1x1x8xf32> to vector<1x8xf32>
    %511 = vector.broadcast %510 : vector<1x8xf32> to vector<32x8xf32>
    %512 = arith.mulf %12, %511 : vector<32x8xf32>
    %513 = arith.addf %508, %512 : vector<32x8xf32>
    %c1_209 = arith.constant 1 : index
    %c4_210 = arith.constant 4 : index
    %c0_211 = arith.constant 0 : index
    %514 = vector.load %arg1[%c1_209, %c4_210, %c0_211] : memref<4x96x8xf32, #tpu.memory_space<vmem>>, vector<1x1x8xf32>
    %515 = vector.shape_cast %514 : vector<1x1x8xf32> to vector<1x8xf32>
    %516 = vector.broadcast %515 : vector<1x8xf32> to vector<32x8xf32>
    %517 = arith.mulf %3, %516 : vector<32x8xf32>
    %c1_212 = arith.constant 1 : index
    %c5_213 = arith.constant 5 : index
    %c0_214 = arith.constant 0 : index
    %518 = vector.load %arg1[%c1_212, %c5_213, %c0_214] : memref<4x96x8xf32, #tpu.memory_space<vmem>>, vector<1x1x8xf32>
    %519 = vector.shape_cast %518 : vector<1x1x8xf32> to vector<1x8xf32>
    %520 = vector.broadcast %519 : vector<1x8xf32> to vector<32x8xf32>
    %521 = arith.mulf %6, %520 : vector<32x8xf32>
    %522 = arith.addf %517, %521 : vector<32x8xf32>
    %c1_215 = arith.constant 1 : index
    %c6_216 = arith.constant 6 : index
    %c0_217 = arith.constant 0 : index
    %523 = vector.load %arg1[%c1_215, %c6_216, %c0_217] : memref<4x96x8xf32, #tpu.memory_space<vmem>>, vector<1x1x8xf32>
    %524 = vector.shape_cast %523 : vector<1x1x8xf32> to vector<1x8xf32>
    %525 = vector.broadcast %524 : vector<1x8xf32> to vector<32x8xf32>
    %526 = arith.mulf %9, %525 : vector<32x8xf32>
    %527 = arith.addf %522, %526 : vector<32x8xf32>
    %c1_218 = arith.constant 1 : index
    %c7_219 = arith.constant 7 : index
    %c0_220 = arith.constant 0 : index
    %528 = vector.load %arg1[%c1_218, %c7_219, %c0_220] : memref<4x96x8xf32, #tpu.memory_space<vmem>>, vector<1x1x8xf32>
    %529 = vector.shape_cast %528 : vector<1x1x8xf32> to vector<1x8xf32>
    %530 = vector.broadcast %529 : vector<1x8xf32> to vector<32x8xf32>
    %531 = arith.mulf %12, %530 : vector<32x8xf32>
    %532 = arith.addf %527, %531 : vector<32x8xf32>
    %533 = arith.maximumf %513, %532 : vector<32x8xf32>
    %c1_221 = arith.constant 1 : index
    %c8_222 = arith.constant 8 : index
    %c0_223 = arith.constant 0 : index
    %534 = vector.load %arg1[%c1_221, %c8_222, %c0_223] : memref<4x96x8xf32, #tpu.memory_space<vmem>>, vector<1x1x8xf32>
    %535 = vector.shape_cast %534 : vector<1x1x8xf32> to vector<1x8xf32>
    %536 = vector.broadcast %535 : vector<1x8xf32> to vector<32x8xf32>
    %537 = arith.mulf %3, %536 : vector<32x8xf32>
    %c1_224 = arith.constant 1 : index
    %c9_225 = arith.constant 9 : index
    %c0_226 = arith.constant 0 : index
    %538 = vector.load %arg1[%c1_224, %c9_225, %c0_226] : memref<4x96x8xf32, #tpu.memory_space<vmem>>, vector<1x1x8xf32>
    %539 = vector.shape_cast %538 : vector<1x1x8xf32> to vector<1x8xf32>
    %540 = vector.broadcast %539 : vector<1x8xf32> to vector<32x8xf32>
    %541 = arith.mulf %6, %540 : vector<32x8xf32>
    %542 = arith.addf %537, %541 : vector<32x8xf32>
    %c1_227 = arith.constant 1 : index
    %c10_228 = arith.constant 10 : index
    %c0_229 = arith.constant 0 : index
    %543 = vector.load %arg1[%c1_227, %c10_228, %c0_229] : memref<4x96x8xf32, #tpu.memory_space<vmem>>, vector<1x1x8xf32>
    %544 = vector.shape_cast %543 : vector<1x1x8xf32> to vector<1x8xf32>
    %545 = vector.broadcast %544 : vector<1x8xf32> to vector<32x8xf32>
    %546 = arith.mulf %9, %545 : vector<32x8xf32>
    %547 = arith.addf %542, %546 : vector<32x8xf32>
    %c1_230 = arith.constant 1 : index
    %c11_231 = arith.constant 11 : index
    %c0_232 = arith.constant 0 : index
    %548 = vector.load %arg1[%c1_230, %c11_231, %c0_232] : memref<4x96x8xf32, #tpu.memory_space<vmem>>, vector<1x1x8xf32>
    %549 = vector.shape_cast %548 : vector<1x1x8xf32> to vector<1x8xf32>
    %550 = vector.broadcast %549 : vector<1x8xf32> to vector<32x8xf32>
    %551 = arith.mulf %12, %550 : vector<32x8xf32>
    %552 = arith.addf %547, %551 : vector<32x8xf32>
    %553 = arith.maximumf %533, %552 : vector<32x8xf32>
    %c1_233 = arith.constant 1 : index
    %c12_234 = arith.constant 12 : index
    %c0_235 = arith.constant 0 : index
    %554 = vector.load %arg1[%c1_233, %c12_234, %c0_235] : memref<4x96x8xf32, #tpu.memory_space<vmem>>, vector<1x1x8xf32>
    %555 = vector.shape_cast %554 : vector<1x1x8xf32> to vector<1x8xf32>
    %556 = vector.broadcast %555 : vector<1x8xf32> to vector<32x8xf32>
    %557 = arith.mulf %3, %556 : vector<32x8xf32>
    %c1_236 = arith.constant 1 : index
    %c13_237 = arith.constant 13 : index
    %c0_238 = arith.constant 0 : index
    %558 = vector.load %arg1[%c1_236, %c13_237, %c0_238] : memref<4x96x8xf32, #tpu.memory_space<vmem>>, vector<1x1x8xf32>
    %559 = vector.shape_cast %558 : vector<1x1x8xf32> to vector<1x8xf32>
    %560 = vector.broadcast %559 : vector<1x8xf32> to vector<32x8xf32>
    %561 = arith.mulf %6, %560 : vector<32x8xf32>
    %562 = arith.addf %557, %561 : vector<32x8xf32>
    %c1_239 = arith.constant 1 : index
    %c14_240 = arith.constant 14 : index
    %c0_241 = arith.constant 0 : index
    %563 = vector.load %arg1[%c1_239, %c14_240, %c0_241] : memref<4x96x8xf32, #tpu.memory_space<vmem>>, vector<1x1x8xf32>
    %564 = vector.shape_cast %563 : vector<1x1x8xf32> to vector<1x8xf32>
    %565 = vector.broadcast %564 : vector<1x8xf32> to vector<32x8xf32>
    %566 = arith.mulf %9, %565 : vector<32x8xf32>
    %567 = arith.addf %562, %566 : vector<32x8xf32>
    %c1_242 = arith.constant 1 : index
    %c15_243 = arith.constant 15 : index
    %c0_244 = arith.constant 0 : index
    %568 = vector.load %arg1[%c1_242, %c15_243, %c0_244] : memref<4x96x8xf32, #tpu.memory_space<vmem>>, vector<1x1x8xf32>
    %569 = vector.shape_cast %568 : vector<1x1x8xf32> to vector<1x8xf32>
    %570 = vector.broadcast %569 : vector<1x8xf32> to vector<32x8xf32>
    %571 = arith.mulf %12, %570 : vector<32x8xf32>
    %572 = arith.addf %567, %571 : vector<32x8xf32>
    %573 = arith.maximumf %553, %572 : vector<32x8xf32>
    %c1_245 = arith.constant 1 : index
    %c16_246 = arith.constant 16 : index
    %c0_247 = arith.constant 0 : index
    %574 = vector.load %arg1[%c1_245, %c16_246, %c0_247] : memref<4x96x8xf32, #tpu.memory_space<vmem>>, vector<1x1x8xf32>
    %575 = vector.shape_cast %574 : vector<1x1x8xf32> to vector<1x8xf32>
    %576 = vector.broadcast %575 : vector<1x8xf32> to vector<32x8xf32>
    %577 = arith.mulf %3, %576 : vector<32x8xf32>
    %c1_248 = arith.constant 1 : index
    %c17_249 = arith.constant 17 : index
    %c0_250 = arith.constant 0 : index
    %578 = vector.load %arg1[%c1_248, %c17_249, %c0_250] : memref<4x96x8xf32, #tpu.memory_space<vmem>>, vector<1x1x8xf32>
    %579 = vector.shape_cast %578 : vector<1x1x8xf32> to vector<1x8xf32>
    %580 = vector.broadcast %579 : vector<1x8xf32> to vector<32x8xf32>
    %581 = arith.mulf %6, %580 : vector<32x8xf32>
    %582 = arith.addf %577, %581 : vector<32x8xf32>
    %c1_251 = arith.constant 1 : index
    %c18_252 = arith.constant 18 : index
    %c0_253 = arith.constant 0 : index
    %583 = vector.load %arg1[%c1_251, %c18_252, %c0_253] : memref<4x96x8xf32, #tpu.memory_space<vmem>>, vector<1x1x8xf32>
    %584 = vector.shape_cast %583 : vector<1x1x8xf32> to vector<1x8xf32>
    %585 = vector.broadcast %584 : vector<1x8xf32> to vector<32x8xf32>
    %586 = arith.mulf %9, %585 : vector<32x8xf32>
    %587 = arith.addf %582, %586 : vector<32x8xf32>
    %c1_254 = arith.constant 1 : index
    %c19_255 = arith.constant 19 : index
    %c0_256 = arith.constant 0 : index
    %588 = vector.load %arg1[%c1_254, %c19_255, %c0_256] : memref<4x96x8xf32, #tpu.memory_space<vmem>>, vector<1x1x8xf32>
    %589 = vector.shape_cast %588 : vector<1x1x8xf32> to vector<1x8xf32>
    %590 = vector.broadcast %589 : vector<1x8xf32> to vector<32x8xf32>
    %591 = arith.mulf %12, %590 : vector<32x8xf32>
    %592 = arith.addf %587, %591 : vector<32x8xf32>
    %593 = arith.maximumf %573, %592 : vector<32x8xf32>
    %c1_257 = arith.constant 1 : index
    %c20_258 = arith.constant 20 : index
    %c0_259 = arith.constant 0 : index
    %594 = vector.load %arg1[%c1_257, %c20_258, %c0_259] : memref<4x96x8xf32, #tpu.memory_space<vmem>>, vector<1x1x8xf32>
    %595 = vector.shape_cast %594 : vector<1x1x8xf32> to vector<1x8xf32>
    %596 = vector.broadcast %595 : vector<1x8xf32> to vector<32x8xf32>
    %597 = arith.mulf %3, %596 : vector<32x8xf32>
    %c1_260 = arith.constant 1 : index
    %c21_261 = arith.constant 21 : index
    %c0_262 = arith.constant 0 : index
    %598 = vector.load %arg1[%c1_260, %c21_261, %c0_262] : memref<4x96x8xf32, #tpu.memory_space<vmem>>, vector<1x1x8xf32>
    %599 = vector.shape_cast %598 : vector<1x1x8xf32> to vector<1x8xf32>
    %600 = vector.broadcast %599 : vector<1x8xf32> to vector<32x8xf32>
    %601 = arith.mulf %6, %600 : vector<32x8xf32>
    %602 = arith.addf %597, %601 : vector<32x8xf32>
    %c1_263 = arith.constant 1 : index
    %c22_264 = arith.constant 22 : index
    %c0_265 = arith.constant 0 : index
    %603 = vector.load %arg1[%c1_263, %c22_264, %c0_265] : memref<4x96x8xf32, #tpu.memory_space<vmem>>, vector<1x1x8xf32>
    %604 = vector.shape_cast %603 : vector<1x1x8xf32> to vector<1x8xf32>
    %605 = vector.broadcast %604 : vector<1x8xf32> to vector<32x8xf32>
    %606 = arith.mulf %9, %605 : vector<32x8xf32>
    %607 = arith.addf %602, %606 : vector<32x8xf32>
    %c1_266 = arith.constant 1 : index
    %c23_267 = arith.constant 23 : index
    %c0_268 = arith.constant 0 : index
    %608 = vector.load %arg1[%c1_266, %c23_267, %c0_268] : memref<4x96x8xf32, #tpu.memory_space<vmem>>, vector<1x1x8xf32>
    %609 = vector.shape_cast %608 : vector<1x1x8xf32> to vector<1x8xf32>
    %610 = vector.broadcast %609 : vector<1x8xf32> to vector<32x8xf32>
    %611 = arith.mulf %12, %610 : vector<32x8xf32>
    %612 = arith.addf %607, %611 : vector<32x8xf32>
    %613 = arith.maximumf %593, %612 : vector<32x8xf32>
    %c1_269 = arith.constant 1 : index
    %c24_270 = arith.constant 24 : index
    %c0_271 = arith.constant 0 : index
    %614 = vector.load %arg1[%c1_269, %c24_270, %c0_271] : memref<4x96x8xf32, #tpu.memory_space<vmem>>, vector<1x1x8xf32>
    %615 = vector.shape_cast %614 : vector<1x1x8xf32> to vector<1x8xf32>
    %616 = vector.broadcast %615 : vector<1x8xf32> to vector<32x8xf32>
    %617 = arith.mulf %3, %616 : vector<32x8xf32>
    %c1_272 = arith.constant 1 : index
    %c25_273 = arith.constant 25 : index
    %c0_274 = arith.constant 0 : index
    %618 = vector.load %arg1[%c1_272, %c25_273, %c0_274] : memref<4x96x8xf32, #tpu.memory_space<vmem>>, vector<1x1x8xf32>
    %619 = vector.shape_cast %618 : vector<1x1x8xf32> to vector<1x8xf32>
    %620 = vector.broadcast %619 : vector<1x8xf32> to vector<32x8xf32>
    %621 = arith.mulf %6, %620 : vector<32x8xf32>
    %622 = arith.addf %617, %621 : vector<32x8xf32>
    %c1_275 = arith.constant 1 : index
    %c26_276 = arith.constant 26 : index
    %c0_277 = arith.constant 0 : index
    %623 = vector.load %arg1[%c1_275, %c26_276, %c0_277] : memref<4x96x8xf32, #tpu.memory_space<vmem>>, vector<1x1x8xf32>
    %624 = vector.shape_cast %623 : vector<1x1x8xf32> to vector<1x8xf32>
    %625 = vector.broadcast %624 : vector<1x8xf32> to vector<32x8xf32>
    %626 = arith.mulf %9, %625 : vector<32x8xf32>
    %627 = arith.addf %622, %626 : vector<32x8xf32>
    %c1_278 = arith.constant 1 : index
    %c27_279 = arith.constant 27 : index
    %c0_280 = arith.constant 0 : index
    %628 = vector.load %arg1[%c1_278, %c27_279, %c0_280] : memref<4x96x8xf32, #tpu.memory_space<vmem>>, vector<1x1x8xf32>
    %629 = vector.shape_cast %628 : vector<1x1x8xf32> to vector<1x8xf32>
    %630 = vector.broadcast %629 : vector<1x8xf32> to vector<32x8xf32>
    %631 = arith.mulf %12, %630 : vector<32x8xf32>
    %632 = arith.addf %627, %631 : vector<32x8xf32>
    %633 = arith.maximumf %613, %632 : vector<32x8xf32>
    %c1_281 = arith.constant 1 : index
    %c28_282 = arith.constant 28 : index
    %c0_283 = arith.constant 0 : index
    %634 = vector.load %arg1[%c1_281, %c28_282, %c0_283] : memref<4x96x8xf32, #tpu.memory_space<vmem>>, vector<1x1x8xf32>
    %635 = vector.shape_cast %634 : vector<1x1x8xf32> to vector<1x8xf32>
    %636 = vector.broadcast %635 : vector<1x8xf32> to vector<32x8xf32>
    %637 = arith.mulf %3, %636 : vector<32x8xf32>
    %c1_284 = arith.constant 1 : index
    %c29_285 = arith.constant 29 : index
    %c0_286 = arith.constant 0 : index
    %638 = vector.load %arg1[%c1_284, %c29_285, %c0_286] : memref<4x96x8xf32, #tpu.memory_space<vmem>>, vector<1x1x8xf32>
    %639 = vector.shape_cast %638 : vector<1x1x8xf32> to vector<1x8xf32>
    %640 = vector.broadcast %639 : vector<1x8xf32> to vector<32x8xf32>
    %641 = arith.mulf %6, %640 : vector<32x8xf32>
    %642 = arith.addf %637, %641 : vector<32x8xf32>
    %c1_287 = arith.constant 1 : index
    %c30_288 = arith.constant 30 : index
    %c0_289 = arith.constant 0 : index
    %643 = vector.load %arg1[%c1_287, %c30_288, %c0_289] : memref<4x96x8xf32, #tpu.memory_space<vmem>>, vector<1x1x8xf32>
    %644 = vector.shape_cast %643 : vector<1x1x8xf32> to vector<1x8xf32>
    %645 = vector.broadcast %644 : vector<1x8xf32> to vector<32x8xf32>
    %646 = arith.mulf %9, %645 : vector<32x8xf32>
    %647 = arith.addf %642, %646 : vector<32x8xf32>
    %c1_290 = arith.constant 1 : index
    %c31_291 = arith.constant 31 : index
    %c0_292 = arith.constant 0 : index
    %648 = vector.load %arg1[%c1_290, %c31_291, %c0_292] : memref<4x96x8xf32, #tpu.memory_space<vmem>>, vector<1x1x8xf32>
    %649 = vector.shape_cast %648 : vector<1x1x8xf32> to vector<1x8xf32>
    %650 = vector.broadcast %649 : vector<1x8xf32> to vector<32x8xf32>
    %651 = arith.mulf %12, %650 : vector<32x8xf32>
    %652 = arith.addf %647, %651 : vector<32x8xf32>
    %653 = arith.maximumf %633, %652 : vector<32x8xf32>
    %c1_293 = arith.constant 1 : index
    %c32_294 = arith.constant 32 : index
    %c0_295 = arith.constant 0 : index
    %654 = vector.load %arg1[%c1_293, %c32_294, %c0_295] : memref<4x96x8xf32, #tpu.memory_space<vmem>>, vector<1x1x8xf32>
    %655 = vector.shape_cast %654 : vector<1x1x8xf32> to vector<1x8xf32>
    %656 = vector.broadcast %655 : vector<1x8xf32> to vector<32x8xf32>
    %657 = arith.mulf %3, %656 : vector<32x8xf32>
    %c1_296 = arith.constant 1 : index
    %c33_297 = arith.constant 33 : index
    %c0_298 = arith.constant 0 : index
    %658 = vector.load %arg1[%c1_296, %c33_297, %c0_298] : memref<4x96x8xf32, #tpu.memory_space<vmem>>, vector<1x1x8xf32>
    %659 = vector.shape_cast %658 : vector<1x1x8xf32> to vector<1x8xf32>
    %660 = vector.broadcast %659 : vector<1x8xf32> to vector<32x8xf32>
    %661 = arith.mulf %6, %660 : vector<32x8xf32>
    %662 = arith.addf %657, %661 : vector<32x8xf32>
    %c1_299 = arith.constant 1 : index
    %c34_300 = arith.constant 34 : index
    %c0_301 = arith.constant 0 : index
    %663 = vector.load %arg1[%c1_299, %c34_300, %c0_301] : memref<4x96x8xf32, #tpu.memory_space<vmem>>, vector<1x1x8xf32>
    %664 = vector.shape_cast %663 : vector<1x1x8xf32> to vector<1x8xf32>
    %665 = vector.broadcast %664 : vector<1x8xf32> to vector<32x8xf32>
    %666 = arith.mulf %9, %665 : vector<32x8xf32>
    %667 = arith.addf %662, %666 : vector<32x8xf32>
    %c1_302 = arith.constant 1 : index
    %c35_303 = arith.constant 35 : index
    %c0_304 = arith.constant 0 : index
    %668 = vector.load %arg1[%c1_302, %c35_303, %c0_304] : memref<4x96x8xf32, #tpu.memory_space<vmem>>, vector<1x1x8xf32>
    %669 = vector.shape_cast %668 : vector<1x1x8xf32> to vector<1x8xf32>
    %670 = vector.broadcast %669 : vector<1x8xf32> to vector<32x8xf32>
    %671 = arith.mulf %12, %670 : vector<32x8xf32>
    %672 = arith.addf %667, %671 : vector<32x8xf32>
    %673 = arith.maximumf %653, %672 : vector<32x8xf32>
    %c1_305 = arith.constant 1 : index
    %c36_306 = arith.constant 36 : index
    %c0_307 = arith.constant 0 : index
    %674 = vector.load %arg1[%c1_305, %c36_306, %c0_307] : memref<4x96x8xf32, #tpu.memory_space<vmem>>, vector<1x1x8xf32>
    %675 = vector.shape_cast %674 : vector<1x1x8xf32> to vector<1x8xf32>
    %676 = vector.broadcast %675 : vector<1x8xf32> to vector<32x8xf32>
    %677 = arith.mulf %3, %676 : vector<32x8xf32>
    %c1_308 = arith.constant 1 : index
    %c37_309 = arith.constant 37 : index
    %c0_310 = arith.constant 0 : index
    %678 = vector.load %arg1[%c1_308, %c37_309, %c0_310] : memref<4x96x8xf32, #tpu.memory_space<vmem>>, vector<1x1x8xf32>
    %679 = vector.shape_cast %678 : vector<1x1x8xf32> to vector<1x8xf32>
    %680 = vector.broadcast %679 : vector<1x8xf32> to vector<32x8xf32>
    %681 = arith.mulf %6, %680 : vector<32x8xf32>
    %682 = arith.addf %677, %681 : vector<32x8xf32>
    %c1_311 = arith.constant 1 : index
    %c38_312 = arith.constant 38 : index
    %c0_313 = arith.constant 0 : index
    %683 = vector.load %arg1[%c1_311, %c38_312, %c0_313] : memref<4x96x8xf32, #tpu.memory_space<vmem>>, vector<1x1x8xf32>
    %684 = vector.shape_cast %683 : vector<1x1x8xf32> to vector<1x8xf32>
    %685 = vector.broadcast %684 : vector<1x8xf32> to vector<32x8xf32>
    %686 = arith.mulf %9, %685 : vector<32x8xf32>
    %687 = arith.addf %682, %686 : vector<32x8xf32>
    %c1_314 = arith.constant 1 : index
    %c39_315 = arith.constant 39 : index
    %c0_316 = arith.constant 0 : index
    %688 = vector.load %arg1[%c1_314, %c39_315, %c0_316] : memref<4x96x8xf32, #tpu.memory_space<vmem>>, vector<1x1x8xf32>
    %689 = vector.shape_cast %688 : vector<1x1x8xf32> to vector<1x8xf32>
    %690 = vector.broadcast %689 : vector<1x8xf32> to vector<32x8xf32>
    %691 = arith.mulf %12, %690 : vector<32x8xf32>
    %692 = arith.addf %687, %691 : vector<32x8xf32>
    %693 = arith.maximumf %673, %692 : vector<32x8xf32>
    %c1_317 = arith.constant 1 : index
    %c40_318 = arith.constant 40 : index
    %c0_319 = arith.constant 0 : index
    %694 = vector.load %arg1[%c1_317, %c40_318, %c0_319] : memref<4x96x8xf32, #tpu.memory_space<vmem>>, vector<1x1x8xf32>
    %695 = vector.shape_cast %694 : vector<1x1x8xf32> to vector<1x8xf32>
    %696 = vector.broadcast %695 : vector<1x8xf32> to vector<32x8xf32>
    %697 = arith.mulf %3, %696 : vector<32x8xf32>
    %c1_320 = arith.constant 1 : index
    %c41_321 = arith.constant 41 : index
    %c0_322 = arith.constant 0 : index
    %698 = vector.load %arg1[%c1_320, %c41_321, %c0_322] : memref<4x96x8xf32, #tpu.memory_space<vmem>>, vector<1x1x8xf32>
    %699 = vector.shape_cast %698 : vector<1x1x8xf32> to vector<1x8xf32>
    %700 = vector.broadcast %699 : vector<1x8xf32> to vector<32x8xf32>
    %701 = arith.mulf %6, %700 : vector<32x8xf32>
    %702 = arith.addf %697, %701 : vector<32x8xf32>
    %c1_323 = arith.constant 1 : index
    %c42_324 = arith.constant 42 : index
    %c0_325 = arith.constant 0 : index
    %703 = vector.load %arg1[%c1_323, %c42_324, %c0_325] : memref<4x96x8xf32, #tpu.memory_space<vmem>>, vector<1x1x8xf32>
    %704 = vector.shape_cast %703 : vector<1x1x8xf32> to vector<1x8xf32>
    %705 = vector.broadcast %704 : vector<1x8xf32> to vector<32x8xf32>
    %706 = arith.mulf %9, %705 : vector<32x8xf32>
    %707 = arith.addf %702, %706 : vector<32x8xf32>
    %c1_326 = arith.constant 1 : index
    %c43_327 = arith.constant 43 : index
    %c0_328 = arith.constant 0 : index
    %708 = vector.load %arg1[%c1_326, %c43_327, %c0_328] : memref<4x96x8xf32, #tpu.memory_space<vmem>>, vector<1x1x8xf32>
    %709 = vector.shape_cast %708 : vector<1x1x8xf32> to vector<1x8xf32>
    %710 = vector.broadcast %709 : vector<1x8xf32> to vector<32x8xf32>
    %711 = arith.mulf %12, %710 : vector<32x8xf32>
    %712 = arith.addf %707, %711 : vector<32x8xf32>
    %713 = arith.maximumf %693, %712 : vector<32x8xf32>
    %c1_329 = arith.constant 1 : index
    %c44_330 = arith.constant 44 : index
    %c0_331 = arith.constant 0 : index
    %714 = vector.load %arg1[%c1_329, %c44_330, %c0_331] : memref<4x96x8xf32, #tpu.memory_space<vmem>>, vector<1x1x8xf32>
    %715 = vector.shape_cast %714 : vector<1x1x8xf32> to vector<1x8xf32>
    %716 = vector.broadcast %715 : vector<1x8xf32> to vector<32x8xf32>
    %717 = arith.mulf %3, %716 : vector<32x8xf32>
    %c1_332 = arith.constant 1 : index
    %c45_333 = arith.constant 45 : index
    %c0_334 = arith.constant 0 : index
    %718 = vector.load %arg1[%c1_332, %c45_333, %c0_334] : memref<4x96x8xf32, #tpu.memory_space<vmem>>, vector<1x1x8xf32>
    %719 = vector.shape_cast %718 : vector<1x1x8xf32> to vector<1x8xf32>
    %720 = vector.broadcast %719 : vector<1x8xf32> to vector<32x8xf32>
    %721 = arith.mulf %6, %720 : vector<32x8xf32>
    %722 = arith.addf %717, %721 : vector<32x8xf32>
    %c1_335 = arith.constant 1 : index
    %c46_336 = arith.constant 46 : index
    %c0_337 = arith.constant 0 : index
    %723 = vector.load %arg1[%c1_335, %c46_336, %c0_337] : memref<4x96x8xf32, #tpu.memory_space<vmem>>, vector<1x1x8xf32>
    %724 = vector.shape_cast %723 : vector<1x1x8xf32> to vector<1x8xf32>
    %725 = vector.broadcast %724 : vector<1x8xf32> to vector<32x8xf32>
    %726 = arith.mulf %9, %725 : vector<32x8xf32>
    %727 = arith.addf %722, %726 : vector<32x8xf32>
    %c1_338 = arith.constant 1 : index
    %c47_339 = arith.constant 47 : index
    %c0_340 = arith.constant 0 : index
    %728 = vector.load %arg1[%c1_338, %c47_339, %c0_340] : memref<4x96x8xf32, #tpu.memory_space<vmem>>, vector<1x1x8xf32>
    %729 = vector.shape_cast %728 : vector<1x1x8xf32> to vector<1x8xf32>
    %730 = vector.broadcast %729 : vector<1x8xf32> to vector<32x8xf32>
    %731 = arith.mulf %12, %730 : vector<32x8xf32>
    %732 = arith.addf %727, %731 : vector<32x8xf32>
    %733 = arith.maximumf %713, %732 : vector<32x8xf32>
    %c1_341 = arith.constant 1 : index
    %c48_342 = arith.constant 48 : index
    %c0_343 = arith.constant 0 : index
    %734 = vector.load %arg1[%c1_341, %c48_342, %c0_343] : memref<4x96x8xf32, #tpu.memory_space<vmem>>, vector<1x1x8xf32>
    %735 = vector.shape_cast %734 : vector<1x1x8xf32> to vector<1x8xf32>
    %736 = vector.broadcast %735 : vector<1x8xf32> to vector<32x8xf32>
    %737 = arith.mulf %3, %736 : vector<32x8xf32>
    %c1_344 = arith.constant 1 : index
    %c49_345 = arith.constant 49 : index
    %c0_346 = arith.constant 0 : index
    %738 = vector.load %arg1[%c1_344, %c49_345, %c0_346] : memref<4x96x8xf32, #tpu.memory_space<vmem>>, vector<1x1x8xf32>
    %739 = vector.shape_cast %738 : vector<1x1x8xf32> to vector<1x8xf32>
    %740 = vector.broadcast %739 : vector<1x8xf32> to vector<32x8xf32>
    %741 = arith.mulf %6, %740 : vector<32x8xf32>
    %742 = arith.addf %737, %741 : vector<32x8xf32>
    %c1_347 = arith.constant 1 : index
    %c50_348 = arith.constant 50 : index
    %c0_349 = arith.constant 0 : index
    %743 = vector.load %arg1[%c1_347, %c50_348, %c0_349] : memref<4x96x8xf32, #tpu.memory_space<vmem>>, vector<1x1x8xf32>
    %744 = vector.shape_cast %743 : vector<1x1x8xf32> to vector<1x8xf32>
    %745 = vector.broadcast %744 : vector<1x8xf32> to vector<32x8xf32>
    %746 = arith.mulf %9, %745 : vector<32x8xf32>
    %747 = arith.addf %742, %746 : vector<32x8xf32>
    %c1_350 = arith.constant 1 : index
    %c51_351 = arith.constant 51 : index
    %c0_352 = arith.constant 0 : index
    %748 = vector.load %arg1[%c1_350, %c51_351, %c0_352] : memref<4x96x8xf32, #tpu.memory_space<vmem>>, vector<1x1x8xf32>
    %749 = vector.shape_cast %748 : vector<1x1x8xf32> to vector<1x8xf32>
    %750 = vector.broadcast %749 : vector<1x8xf32> to vector<32x8xf32>
    %751 = arith.mulf %12, %750 : vector<32x8xf32>
    %752 = arith.addf %747, %751 : vector<32x8xf32>
    %753 = arith.maximumf %733, %752 : vector<32x8xf32>
    %c1_353 = arith.constant 1 : index
    %c52_354 = arith.constant 52 : index
    %c0_355 = arith.constant 0 : index
    %754 = vector.load %arg1[%c1_353, %c52_354, %c0_355] : memref<4x96x8xf32, #tpu.memory_space<vmem>>, vector<1x1x8xf32>
    %755 = vector.shape_cast %754 : vector<1x1x8xf32> to vector<1x8xf32>
    %756 = vector.broadcast %755 : vector<1x8xf32> to vector<32x8xf32>
    %757 = arith.mulf %3, %756 : vector<32x8xf32>
    %c1_356 = arith.constant 1 : index
    %c53_357 = arith.constant 53 : index
    %c0_358 = arith.constant 0 : index
    %758 = vector.load %arg1[%c1_356, %c53_357, %c0_358] : memref<4x96x8xf32, #tpu.memory_space<vmem>>, vector<1x1x8xf32>
    %759 = vector.shape_cast %758 : vector<1x1x8xf32> to vector<1x8xf32>
    %760 = vector.broadcast %759 : vector<1x8xf32> to vector<32x8xf32>
    %761 = arith.mulf %6, %760 : vector<32x8xf32>
    %762 = arith.addf %757, %761 : vector<32x8xf32>
    %c1_359 = arith.constant 1 : index
    %c54_360 = arith.constant 54 : index
    %c0_361 = arith.constant 0 : index
    %763 = vector.load %arg1[%c1_359, %c54_360, %c0_361] : memref<4x96x8xf32, #tpu.memory_space<vmem>>, vector<1x1x8xf32>
    %764 = vector.shape_cast %763 : vector<1x1x8xf32> to vector<1x8xf32>
    %765 = vector.broadcast %764 : vector<1x8xf32> to vector<32x8xf32>
    %766 = arith.mulf %9, %765 : vector<32x8xf32>
    %767 = arith.addf %762, %766 : vector<32x8xf32>
    %c1_362 = arith.constant 1 : index
    %c55_363 = arith.constant 55 : index
    %c0_364 = arith.constant 0 : index
    %768 = vector.load %arg1[%c1_362, %c55_363, %c0_364] : memref<4x96x8xf32, #tpu.memory_space<vmem>>, vector<1x1x8xf32>
    %769 = vector.shape_cast %768 : vector<1x1x8xf32> to vector<1x8xf32>
    %770 = vector.broadcast %769 : vector<1x8xf32> to vector<32x8xf32>
    %771 = arith.mulf %12, %770 : vector<32x8xf32>
    %772 = arith.addf %767, %771 : vector<32x8xf32>
    %773 = arith.maximumf %753, %772 : vector<32x8xf32>
    %c1_365 = arith.constant 1 : index
    %c56_366 = arith.constant 56 : index
    %c0_367 = arith.constant 0 : index
    %774 = vector.load %arg1[%c1_365, %c56_366, %c0_367] : memref<4x96x8xf32, #tpu.memory_space<vmem>>, vector<1x1x8xf32>
    %775 = vector.shape_cast %774 : vector<1x1x8xf32> to vector<1x8xf32>
    %776 = vector.broadcast %775 : vector<1x8xf32> to vector<32x8xf32>
    %777 = arith.mulf %3, %776 : vector<32x8xf32>
    %c1_368 = arith.constant 1 : index
    %c57_369 = arith.constant 57 : index
    %c0_370 = arith.constant 0 : index
    %778 = vector.load %arg1[%c1_368, %c57_369, %c0_370] : memref<4x96x8xf32, #tpu.memory_space<vmem>>, vector<1x1x8xf32>
    %779 = vector.shape_cast %778 : vector<1x1x8xf32> to vector<1x8xf32>
    %780 = vector.broadcast %779 : vector<1x8xf32> to vector<32x8xf32>
    %781 = arith.mulf %6, %780 : vector<32x8xf32>
    %782 = arith.addf %777, %781 : vector<32x8xf32>
    %c1_371 = arith.constant 1 : index
    %c58_372 = arith.constant 58 : index
    %c0_373 = arith.constant 0 : index
    %783 = vector.load %arg1[%c1_371, %c58_372, %c0_373] : memref<4x96x8xf32, #tpu.memory_space<vmem>>, vector<1x1x8xf32>
    %784 = vector.shape_cast %783 : vector<1x1x8xf32> to vector<1x8xf32>
    %785 = vector.broadcast %784 : vector<1x8xf32> to vector<32x8xf32>
    %786 = arith.mulf %9, %785 : vector<32x8xf32>
    %787 = arith.addf %782, %786 : vector<32x8xf32>
    %c1_374 = arith.constant 1 : index
    %c59_375 = arith.constant 59 : index
    %c0_376 = arith.constant 0 : index
    %788 = vector.load %arg1[%c1_374, %c59_375, %c0_376] : memref<4x96x8xf32, #tpu.memory_space<vmem>>, vector<1x1x8xf32>
    %789 = vector.shape_cast %788 : vector<1x1x8xf32> to vector<1x8xf32>
    %790 = vector.broadcast %789 : vector<1x8xf32> to vector<32x8xf32>
    %791 = arith.mulf %12, %790 : vector<32x8xf32>
    %792 = arith.addf %787, %791 : vector<32x8xf32>
    %793 = arith.maximumf %773, %792 : vector<32x8xf32>
    %c1_377 = arith.constant 1 : index
    %c60_378 = arith.constant 60 : index
    %c0_379 = arith.constant 0 : index
    %794 = vector.load %arg1[%c1_377, %c60_378, %c0_379] : memref<4x96x8xf32, #tpu.memory_space<vmem>>, vector<1x1x8xf32>
    %795 = vector.shape_cast %794 : vector<1x1x8xf32> to vector<1x8xf32>
    %796 = vector.broadcast %795 : vector<1x8xf32> to vector<32x8xf32>
    %797 = arith.mulf %3, %796 : vector<32x8xf32>
    %c1_380 = arith.constant 1 : index
    %c61_381 = arith.constant 61 : index
    %c0_382 = arith.constant 0 : index
    %798 = vector.load %arg1[%c1_380, %c61_381, %c0_382] : memref<4x96x8xf32, #tpu.memory_space<vmem>>, vector<1x1x8xf32>
    %799 = vector.shape_cast %798 : vector<1x1x8xf32> to vector<1x8xf32>
    %800 = vector.broadcast %799 : vector<1x8xf32> to vector<32x8xf32>
    %801 = arith.mulf %6, %800 : vector<32x8xf32>
    %802 = arith.addf %797, %801 : vector<32x8xf32>
    %c1_383 = arith.constant 1 : index
    %c62_384 = arith.constant 62 : index
    %c0_385 = arith.constant 0 : index
    %803 = vector.load %arg1[%c1_383, %c62_384, %c0_385] : memref<4x96x8xf32, #tpu.memory_space<vmem>>, vector<1x1x8xf32>
    %804 = vector.shape_cast %803 : vector<1x1x8xf32> to vector<1x8xf32>
    %805 = vector.broadcast %804 : vector<1x8xf32> to vector<32x8xf32>
    %806 = arith.mulf %9, %805 : vector<32x8xf32>
    %807 = arith.addf %802, %806 : vector<32x8xf32>
    %c1_386 = arith.constant 1 : index
    %c63_387 = arith.constant 63 : index
    %c0_388 = arith.constant 0 : index
    %808 = vector.load %arg1[%c1_386, %c63_387, %c0_388] : memref<4x96x8xf32, #tpu.memory_space<vmem>>, vector<1x1x8xf32>
    %809 = vector.shape_cast %808 : vector<1x1x8xf32> to vector<1x8xf32>
    %810 = vector.broadcast %809 : vector<1x8xf32> to vector<32x8xf32>
    %811 = arith.mulf %12, %810 : vector<32x8xf32>
    %812 = arith.addf %807, %811 : vector<32x8xf32>
    %813 = arith.maximumf %793, %812 : vector<32x8xf32>
    %c1_389 = arith.constant 1 : index
    %c64_390 = arith.constant 64 : index
    %c0_391 = arith.constant 0 : index
    %814 = vector.load %arg1[%c1_389, %c64_390, %c0_391] : memref<4x96x8xf32, #tpu.memory_space<vmem>>, vector<1x1x8xf32>
    %815 = vector.shape_cast %814 : vector<1x1x8xf32> to vector<1x8xf32>
    %816 = vector.broadcast %815 : vector<1x8xf32> to vector<32x8xf32>
    %817 = arith.mulf %3, %816 : vector<32x8xf32>
    %c1_392 = arith.constant 1 : index
    %c65_393 = arith.constant 65 : index
    %c0_394 = arith.constant 0 : index
    %818 = vector.load %arg1[%c1_392, %c65_393, %c0_394] : memref<4x96x8xf32, #tpu.memory_space<vmem>>, vector<1x1x8xf32>
    %819 = vector.shape_cast %818 : vector<1x1x8xf32> to vector<1x8xf32>
    %820 = vector.broadcast %819 : vector<1x8xf32> to vector<32x8xf32>
    %821 = arith.mulf %6, %820 : vector<32x8xf32>
    %822 = arith.addf %817, %821 : vector<32x8xf32>
    %c1_395 = arith.constant 1 : index
    %c66_396 = arith.constant 66 : index
    %c0_397 = arith.constant 0 : index
    %823 = vector.load %arg1[%c1_395, %c66_396, %c0_397] : memref<4x96x8xf32, #tpu.memory_space<vmem>>, vector<1x1x8xf32>
    %824 = vector.shape_cast %823 : vector<1x1x8xf32> to vector<1x8xf32>
    %825 = vector.broadcast %824 : vector<1x8xf32> to vector<32x8xf32>
    %826 = arith.mulf %9, %825 : vector<32x8xf32>
    %827 = arith.addf %822, %826 : vector<32x8xf32>
    %c1_398 = arith.constant 1 : index
    %c67_399 = arith.constant 67 : index
    %c0_400 = arith.constant 0 : index
    %828 = vector.load %arg1[%c1_398, %c67_399, %c0_400] : memref<4x96x8xf32, #tpu.memory_space<vmem>>, vector<1x1x8xf32>
    %829 = vector.shape_cast %828 : vector<1x1x8xf32> to vector<1x8xf32>
    %830 = vector.broadcast %829 : vector<1x8xf32> to vector<32x8xf32>
    %831 = arith.mulf %12, %830 : vector<32x8xf32>
    %832 = arith.addf %827, %831 : vector<32x8xf32>
    %833 = arith.maximumf %813, %832 : vector<32x8xf32>
    %c1_401 = arith.constant 1 : index
    %c68_402 = arith.constant 68 : index
    %c0_403 = arith.constant 0 : index
    %834 = vector.load %arg1[%c1_401, %c68_402, %c0_403] : memref<4x96x8xf32, #tpu.memory_space<vmem>>, vector<1x1x8xf32>
    %835 = vector.shape_cast %834 : vector<1x1x8xf32> to vector<1x8xf32>
    %836 = vector.broadcast %835 : vector<1x8xf32> to vector<32x8xf32>
    %837 = arith.mulf %3, %836 : vector<32x8xf32>
    %c1_404 = arith.constant 1 : index
    %c69_405 = arith.constant 69 : index
    %c0_406 = arith.constant 0 : index
    %838 = vector.load %arg1[%c1_404, %c69_405, %c0_406] : memref<4x96x8xf32, #tpu.memory_space<vmem>>, vector<1x1x8xf32>
    %839 = vector.shape_cast %838 : vector<1x1x8xf32> to vector<1x8xf32>
    %840 = vector.broadcast %839 : vector<1x8xf32> to vector<32x8xf32>
    %841 = arith.mulf %6, %840 : vector<32x8xf32>
    %842 = arith.addf %837, %841 : vector<32x8xf32>
    %c1_407 = arith.constant 1 : index
    %c70_408 = arith.constant 70 : index
    %c0_409 = arith.constant 0 : index
    %843 = vector.load %arg1[%c1_407, %c70_408, %c0_409] : memref<4x96x8xf32, #tpu.memory_space<vmem>>, vector<1x1x8xf32>
    %844 = vector.shape_cast %843 : vector<1x1x8xf32> to vector<1x8xf32>
    %845 = vector.broadcast %844 : vector<1x8xf32> to vector<32x8xf32>
    %846 = arith.mulf %9, %845 : vector<32x8xf32>
    %847 = arith.addf %842, %846 : vector<32x8xf32>
    %c1_410 = arith.constant 1 : index
    %c71_411 = arith.constant 71 : index
    %c0_412 = arith.constant 0 : index
    %848 = vector.load %arg1[%c1_410, %c71_411, %c0_412] : memref<4x96x8xf32, #tpu.memory_space<vmem>>, vector<1x1x8xf32>
    %849 = vector.shape_cast %848 : vector<1x1x8xf32> to vector<1x8xf32>
    %850 = vector.broadcast %849 : vector<1x8xf32> to vector<32x8xf32>
    %851 = arith.mulf %12, %850 : vector<32x8xf32>
    %852 = arith.addf %847, %851 : vector<32x8xf32>
    %853 = arith.maximumf %833, %852 : vector<32x8xf32>
    %c1_413 = arith.constant 1 : index
    %c72_414 = arith.constant 72 : index
    %c0_415 = arith.constant 0 : index
    %854 = vector.load %arg1[%c1_413, %c72_414, %c0_415] : memref<4x96x8xf32, #tpu.memory_space<vmem>>, vector<1x1x8xf32>
    %855 = vector.shape_cast %854 : vector<1x1x8xf32> to vector<1x8xf32>
    %856 = vector.broadcast %855 : vector<1x8xf32> to vector<32x8xf32>
    %857 = arith.mulf %3, %856 : vector<32x8xf32>
    %c1_416 = arith.constant 1 : index
    %c73_417 = arith.constant 73 : index
    %c0_418 = arith.constant 0 : index
    %858 = vector.load %arg1[%c1_416, %c73_417, %c0_418] : memref<4x96x8xf32, #tpu.memory_space<vmem>>, vector<1x1x8xf32>
    %859 = vector.shape_cast %858 : vector<1x1x8xf32> to vector<1x8xf32>
    %860 = vector.broadcast %859 : vector<1x8xf32> to vector<32x8xf32>
    %861 = arith.mulf %6, %860 : vector<32x8xf32>
    %862 = arith.addf %857, %861 : vector<32x8xf32>
    %c1_419 = arith.constant 1 : index
    %c74_420 = arith.constant 74 : index
    %c0_421 = arith.constant 0 : index
    %863 = vector.load %arg1[%c1_419, %c74_420, %c0_421] : memref<4x96x8xf32, #tpu.memory_space<vmem>>, vector<1x1x8xf32>
    %864 = vector.shape_cast %863 : vector<1x1x8xf32> to vector<1x8xf32>
    %865 = vector.broadcast %864 : vector<1x8xf32> to vector<32x8xf32>
    %866 = arith.mulf %9, %865 : vector<32x8xf32>
    %867 = arith.addf %862, %866 : vector<32x8xf32>
    %c1_422 = arith.constant 1 : index
    %c75_423 = arith.constant 75 : index
    %c0_424 = arith.constant 0 : index
    %868 = vector.load %arg1[%c1_422, %c75_423, %c0_424] : memref<4x96x8xf32, #tpu.memory_space<vmem>>, vector<1x1x8xf32>
    %869 = vector.shape_cast %868 : vector<1x1x8xf32> to vector<1x8xf32>
    %870 = vector.broadcast %869 : vector<1x8xf32> to vector<32x8xf32>
    %871 = arith.mulf %12, %870 : vector<32x8xf32>
    %872 = arith.addf %867, %871 : vector<32x8xf32>
    %873 = arith.maximumf %853, %872 : vector<32x8xf32>
    %c1_425 = arith.constant 1 : index
    %c76_426 = arith.constant 76 : index
    %c0_427 = arith.constant 0 : index
    %874 = vector.load %arg1[%c1_425, %c76_426, %c0_427] : memref<4x96x8xf32, #tpu.memory_space<vmem>>, vector<1x1x8xf32>
    %875 = vector.shape_cast %874 : vector<1x1x8xf32> to vector<1x8xf32>
    %876 = vector.broadcast %875 : vector<1x8xf32> to vector<32x8xf32>
    %877 = arith.mulf %3, %876 : vector<32x8xf32>
    %c1_428 = arith.constant 1 : index
    %c77_429 = arith.constant 77 : index
    %c0_430 = arith.constant 0 : index
    %878 = vector.load %arg1[%c1_428, %c77_429, %c0_430] : memref<4x96x8xf32, #tpu.memory_space<vmem>>, vector<1x1x8xf32>
    %879 = vector.shape_cast %878 : vector<1x1x8xf32> to vector<1x8xf32>
    %880 = vector.broadcast %879 : vector<1x8xf32> to vector<32x8xf32>
    %881 = arith.mulf %6, %880 : vector<32x8xf32>
    %882 = arith.addf %877, %881 : vector<32x8xf32>
    %c1_431 = arith.constant 1 : index
    %c78_432 = arith.constant 78 : index
    %c0_433 = arith.constant 0 : index
    %883 = vector.load %arg1[%c1_431, %c78_432, %c0_433] : memref<4x96x8xf32, #tpu.memory_space<vmem>>, vector<1x1x8xf32>
    %884 = vector.shape_cast %883 : vector<1x1x8xf32> to vector<1x8xf32>
    %885 = vector.broadcast %884 : vector<1x8xf32> to vector<32x8xf32>
    %886 = arith.mulf %9, %885 : vector<32x8xf32>
    %887 = arith.addf %882, %886 : vector<32x8xf32>
    %c1_434 = arith.constant 1 : index
    %c79_435 = arith.constant 79 : index
    %c0_436 = arith.constant 0 : index
    %888 = vector.load %arg1[%c1_434, %c79_435, %c0_436] : memref<4x96x8xf32, #tpu.memory_space<vmem>>, vector<1x1x8xf32>
    %889 = vector.shape_cast %888 : vector<1x1x8xf32> to vector<1x8xf32>
    %890 = vector.broadcast %889 : vector<1x8xf32> to vector<32x8xf32>
    %891 = arith.mulf %12, %890 : vector<32x8xf32>
    %892 = arith.addf %887, %891 : vector<32x8xf32>
    %893 = arith.maximumf %873, %892 : vector<32x8xf32>
    %c1_437 = arith.constant 1 : index
    %c80_438 = arith.constant 80 : index
    %c0_439 = arith.constant 0 : index
    %894 = vector.load %arg1[%c1_437, %c80_438, %c0_439] : memref<4x96x8xf32, #tpu.memory_space<vmem>>, vector<1x1x8xf32>
    %895 = vector.shape_cast %894 : vector<1x1x8xf32> to vector<1x8xf32>
    %896 = vector.broadcast %895 : vector<1x8xf32> to vector<32x8xf32>
    %897 = arith.mulf %3, %896 : vector<32x8xf32>
    %c1_440 = arith.constant 1 : index
    %c81_441 = arith.constant 81 : index
    %c0_442 = arith.constant 0 : index
    %898 = vector.load %arg1[%c1_440, %c81_441, %c0_442] : memref<4x96x8xf32, #tpu.memory_space<vmem>>, vector<1x1x8xf32>
    %899 = vector.shape_cast %898 : vector<1x1x8xf32> to vector<1x8xf32>
    %900 = vector.broadcast %899 : vector<1x8xf32> to vector<32x8xf32>
    %901 = arith.mulf %6, %900 : vector<32x8xf32>
    %902 = arith.addf %897, %901 : vector<32x8xf32>
    %c1_443 = arith.constant 1 : index
    %c82_444 = arith.constant 82 : index
    %c0_445 = arith.constant 0 : index
    %903 = vector.load %arg1[%c1_443, %c82_444, %c0_445] : memref<4x96x8xf32, #tpu.memory_space<vmem>>, vector<1x1x8xf32>
    %904 = vector.shape_cast %903 : vector<1x1x8xf32> to vector<1x8xf32>
    %905 = vector.broadcast %904 : vector<1x8xf32> to vector<32x8xf32>
    %906 = arith.mulf %9, %905 : vector<32x8xf32>
    %907 = arith.addf %902, %906 : vector<32x8xf32>
    %c1_446 = arith.constant 1 : index
    %c83_447 = arith.constant 83 : index
    %c0_448 = arith.constant 0 : index
    %908 = vector.load %arg1[%c1_446, %c83_447, %c0_448] : memref<4x96x8xf32, #tpu.memory_space<vmem>>, vector<1x1x8xf32>
    %909 = vector.shape_cast %908 : vector<1x1x8xf32> to vector<1x8xf32>
    %910 = vector.broadcast %909 : vector<1x8xf32> to vector<32x8xf32>
    %911 = arith.mulf %12, %910 : vector<32x8xf32>
    %912 = arith.addf %907, %911 : vector<32x8xf32>
    %913 = arith.maximumf %893, %912 : vector<32x8xf32>
    %c1_449 = arith.constant 1 : index
    %c84_450 = arith.constant 84 : index
    %c0_451 = arith.constant 0 : index
    %914 = vector.load %arg1[%c1_449, %c84_450, %c0_451] : memref<4x96x8xf32, #tpu.memory_space<vmem>>, vector<1x1x8xf32>
    %915 = vector.shape_cast %914 : vector<1x1x8xf32> to vector<1x8xf32>
    %916 = vector.broadcast %915 : vector<1x8xf32> to vector<32x8xf32>
    %917 = arith.mulf %3, %916 : vector<32x8xf32>
    %c1_452 = arith.constant 1 : index
    %c85_453 = arith.constant 85 : index
    %c0_454 = arith.constant 0 : index
    %918 = vector.load %arg1[%c1_452, %c85_453, %c0_454] : memref<4x96x8xf32, #tpu.memory_space<vmem>>, vector<1x1x8xf32>
    %919 = vector.shape_cast %918 : vector<1x1x8xf32> to vector<1x8xf32>
    %920 = vector.broadcast %919 : vector<1x8xf32> to vector<32x8xf32>
    %921 = arith.mulf %6, %920 : vector<32x8xf32>
    %922 = arith.addf %917, %921 : vector<32x8xf32>
    %c1_455 = arith.constant 1 : index
    %c86_456 = arith.constant 86 : index
    %c0_457 = arith.constant 0 : index
    %923 = vector.load %arg1[%c1_455, %c86_456, %c0_457] : memref<4x96x8xf32, #tpu.memory_space<vmem>>, vector<1x1x8xf32>
    %924 = vector.shape_cast %923 : vector<1x1x8xf32> to vector<1x8xf32>
    %925 = vector.broadcast %924 : vector<1x8xf32> to vector<32x8xf32>
    %926 = arith.mulf %9, %925 : vector<32x8xf32>
    %927 = arith.addf %922, %926 : vector<32x8xf32>
    %c1_458 = arith.constant 1 : index
    %c87_459 = arith.constant 87 : index
    %c0_460 = arith.constant 0 : index
    %928 = vector.load %arg1[%c1_458, %c87_459, %c0_460] : memref<4x96x8xf32, #tpu.memory_space<vmem>>, vector<1x1x8xf32>
    %929 = vector.shape_cast %928 : vector<1x1x8xf32> to vector<1x8xf32>
    %930 = vector.broadcast %929 : vector<1x8xf32> to vector<32x8xf32>
    %931 = arith.mulf %12, %930 : vector<32x8xf32>
    %932 = arith.addf %927, %931 : vector<32x8xf32>
    %933 = arith.maximumf %913, %932 : vector<32x8xf32>
    %c1_461 = arith.constant 1 : index
    %c88_462 = arith.constant 88 : index
    %c0_463 = arith.constant 0 : index
    %934 = vector.load %arg1[%c1_461, %c88_462, %c0_463] : memref<4x96x8xf32, #tpu.memory_space<vmem>>, vector<1x1x8xf32>
    %935 = vector.shape_cast %934 : vector<1x1x8xf32> to vector<1x8xf32>
    %936 = vector.broadcast %935 : vector<1x8xf32> to vector<32x8xf32>
    %937 = arith.mulf %3, %936 : vector<32x8xf32>
    %c1_464 = arith.constant 1 : index
    %c89_465 = arith.constant 89 : index
    %c0_466 = arith.constant 0 : index
    %938 = vector.load %arg1[%c1_464, %c89_465, %c0_466] : memref<4x96x8xf32, #tpu.memory_space<vmem>>, vector<1x1x8xf32>
    %939 = vector.shape_cast %938 : vector<1x1x8xf32> to vector<1x8xf32>
    %940 = vector.broadcast %939 : vector<1x8xf32> to vector<32x8xf32>
    %941 = arith.mulf %6, %940 : vector<32x8xf32>
    %942 = arith.addf %937, %941 : vector<32x8xf32>
    %c1_467 = arith.constant 1 : index
    %c90_468 = arith.constant 90 : index
    %c0_469 = arith.constant 0 : index
    %943 = vector.load %arg1[%c1_467, %c90_468, %c0_469] : memref<4x96x8xf32, #tpu.memory_space<vmem>>, vector<1x1x8xf32>
    %944 = vector.shape_cast %943 : vector<1x1x8xf32> to vector<1x8xf32>
    %945 = vector.broadcast %944 : vector<1x8xf32> to vector<32x8xf32>
    %946 = arith.mulf %9, %945 : vector<32x8xf32>
    %947 = arith.addf %942, %946 : vector<32x8xf32>
    %c1_470 = arith.constant 1 : index
    %c91_471 = arith.constant 91 : index
    %c0_472 = arith.constant 0 : index
    %948 = vector.load %arg1[%c1_470, %c91_471, %c0_472] : memref<4x96x8xf32, #tpu.memory_space<vmem>>, vector<1x1x8xf32>
    %949 = vector.shape_cast %948 : vector<1x1x8xf32> to vector<1x8xf32>
    %950 = vector.broadcast %949 : vector<1x8xf32> to vector<32x8xf32>
    %951 = arith.mulf %12, %950 : vector<32x8xf32>
    %952 = arith.addf %947, %951 : vector<32x8xf32>
    %953 = arith.maximumf %933, %952 : vector<32x8xf32>
    %c1_473 = arith.constant 1 : index
    %c92_474 = arith.constant 92 : index
    %c0_475 = arith.constant 0 : index
    %954 = vector.load %arg1[%c1_473, %c92_474, %c0_475] : memref<4x96x8xf32, #tpu.memory_space<vmem>>, vector<1x1x8xf32>
    %955 = vector.shape_cast %954 : vector<1x1x8xf32> to vector<1x8xf32>
    %956 = vector.broadcast %955 : vector<1x8xf32> to vector<32x8xf32>
    %957 = arith.mulf %3, %956 : vector<32x8xf32>
    %c1_476 = arith.constant 1 : index
    %c93_477 = arith.constant 93 : index
    %c0_478 = arith.constant 0 : index
    %958 = vector.load %arg1[%c1_476, %c93_477, %c0_478] : memref<4x96x8xf32, #tpu.memory_space<vmem>>, vector<1x1x8xf32>
    %959 = vector.shape_cast %958 : vector<1x1x8xf32> to vector<1x8xf32>
    %960 = vector.broadcast %959 : vector<1x8xf32> to vector<32x8xf32>
    %961 = arith.mulf %6, %960 : vector<32x8xf32>
    %962 = arith.addf %957, %961 : vector<32x8xf32>
    %c1_479 = arith.constant 1 : index
    %c94_480 = arith.constant 94 : index
    %c0_481 = arith.constant 0 : index
    %963 = vector.load %arg1[%c1_479, %c94_480, %c0_481] : memref<4x96x8xf32, #tpu.memory_space<vmem>>, vector<1x1x8xf32>
    %964 = vector.shape_cast %963 : vector<1x1x8xf32> to vector<1x8xf32>
    %965 = vector.broadcast %964 : vector<1x8xf32> to vector<32x8xf32>
    %966 = arith.mulf %9, %965 : vector<32x8xf32>
    %967 = arith.addf %962, %966 : vector<32x8xf32>
    %c1_482 = arith.constant 1 : index
    %c95_483 = arith.constant 95 : index
    %c0_484 = arith.constant 0 : index
    %968 = vector.load %arg1[%c1_482, %c95_483, %c0_484] : memref<4x96x8xf32, #tpu.memory_space<vmem>>, vector<1x1x8xf32>
    %969 = vector.shape_cast %968 : vector<1x1x8xf32> to vector<1x8xf32>
    %970 = vector.broadcast %969 : vector<1x8xf32> to vector<32x8xf32>
    %971 = arith.mulf %12, %970 : vector<32x8xf32>
    %972 = arith.addf %967, %971 : vector<32x8xf32>
    %973 = arith.maximumf %953, %972 : vector<32x8xf32>
    %c1_485 = arith.constant 1 : index
    %c0_486 = arith.constant 0 : index
    %c0_487 = arith.constant 0 : index
    %974 = vector.load %arg3[%c1_485, %c0_486, %c0_487] : memref<4x32x8xf32, #tpu.memory_space<vmem>>, vector<1x32x8xf32>
    %975 = vector.shape_cast %974 : vector<1x32x8xf32> to vector<32x8xf32>
    %976 = vector.shape_cast %973 : vector<32x8xf32> to vector<1x32x8xf32>
    tpu.vector_store %arg3[%c1_485, %c0_486, %c0_487], %976 {strides = array<i32>} : memref<4x32x8xf32, #tpu.memory_space<vmem>>, vector<1x32x8xf32>,
    %c2_488 = arith.constant 2 : index
    %c0_489 = arith.constant 0 : index
    %c0_490 = arith.constant 0 : index
    %977 = vector.load %arg1[%c2_488, %c0_489, %c0_490] : memref<4x96x8xf32, #tpu.memory_space<vmem>>, vector<1x1x8xf32>
    %978 = vector.shape_cast %977 : vector<1x1x8xf32> to vector<1x8xf32>
    %979 = vector.broadcast %978 : vector<1x8xf32> to vector<32x8xf32>
    %980 = arith.mulf %3, %979 : vector<32x8xf32>
    %c2_491 = arith.constant 2 : index
    %c1_492 = arith.constant 1 : index
    %c0_493 = arith.constant 0 : index
    %981 = vector.load %arg1[%c2_491, %c1_492, %c0_493] : memref<4x96x8xf32, #tpu.memory_space<vmem>>, vector<1x1x8xf32>
    %982 = vector.shape_cast %981 : vector<1x1x8xf32> to vector<1x8xf32>
    %983 = vector.broadcast %982 : vector<1x8xf32> to vector<32x8xf32>
    %984 = arith.mulf %6, %983 : vector<32x8xf32>
    %985 = arith.addf %980, %984 : vector<32x8xf32>
    %c2_494 = arith.constant 2 : index
    %c2_495 = arith.constant 2 : index
    %c0_496 = arith.constant 0 : index
    %986 = vector.load %arg1[%c2_494, %c2_495, %c0_496] : memref<4x96x8xf32, #tpu.memory_space<vmem>>, vector<1x1x8xf32>
    %987 = vector.shape_cast %986 : vector<1x1x8xf32> to vector<1x8xf32>
    %988 = vector.broadcast %987 : vector<1x8xf32> to vector<32x8xf32>
    %989 = arith.mulf %9, %988 : vector<32x8xf32>
    %990 = arith.addf %985, %989 : vector<32x8xf32>
    %c2_497 = arith.constant 2 : index
    %c3_498 = arith.constant 3 : index
    %c0_499 = arith.constant 0 : index
    %991 = vector.load %arg1[%c2_497, %c3_498, %c0_499] : memref<4x96x8xf32, #tpu.memory_space<vmem>>, vector<1x1x8xf32>
    %992 = vector.shape_cast %991 : vector<1x1x8xf32> to vector<1x8xf32>
    %993 = vector.broadcast %992 : vector<1x8xf32> to vector<32x8xf32>
    %994 = arith.mulf %12, %993 : vector<32x8xf32>
    %995 = arith.addf %990, %994 : vector<32x8xf32>
    %c2_500 = arith.constant 2 : index
    %c4_501 = arith.constant 4 : index
    %c0_502 = arith.constant 0 : index
    %996 = vector.load %arg1[%c2_500, %c4_501, %c0_502] : memref<4x96x8xf32, #tpu.memory_space<vmem>>, vector<1x1x8xf32>
    %997 = vector.shape_cast %996 : vector<1x1x8xf32> to vector<1x8xf32>
    %998 = vector.broadcast %997 : vector<1x8xf32> to vector<32x8xf32>
    %999 = arith.mulf %3, %998 : vector<32x8xf32>
    %c2_503 = arith.constant 2 : index
    %c5_504 = arith.constant 5 : index
    %c0_505 = arith.constant 0 : index
    %1000 = vector.load %arg1[%c2_503, %c5_504, %c0_505] : memref<4x96x8xf32, #tpu.memory_space<vmem>>, vector<1x1x8xf32>
    %1001 = vector.shape_cast %1000 : vector<1x1x8xf32> to vector<1x8xf32>
    %1002 = vector.broadcast %1001 : vector<1x8xf32> to vector<32x8xf32>
    %1003 = arith.mulf %6, %1002 : vector<32x8xf32>
    %1004 = arith.addf %999, %1003 : vector<32x8xf32>
    %c2_506 = arith.constant 2 : index
    %c6_507 = arith.constant 6 : index
    %c0_508 = arith.constant 0 : index
    %1005 = vector.load %arg1[%c2_506, %c6_507, %c0_508] : memref<4x96x8xf32, #tpu.memory_space<vmem>>, vector<1x1x8xf32>
    %1006 = vector.shape_cast %1005 : vector<1x1x8xf32> to vector<1x8xf32>
    %1007 = vector.broadcast %1006 : vector<1x8xf32> to vector<32x8xf32>
    %1008 = arith.mulf %9, %1007 : vector<32x8xf32>
    %1009 = arith.addf %1004, %1008 : vector<32x8xf32>
    %c2_509 = arith.constant 2 : index
    %c7_510 = arith.constant 7 : index
    %c0_511 = arith.constant 0 : index
    %1010 = vector.load %arg1[%c2_509, %c7_510, %c0_511] : memref<4x96x8xf32, #tpu.memory_space<vmem>>, vector<1x1x8xf32>
    %1011 = vector.shape_cast %1010 : vector<1x1x8xf32> to vector<1x8xf32>
    %1012 = vector.broadcast %1011 : vector<1x8xf32> to vector<32x8xf32>
    %1013 = arith.mulf %12, %1012 : vector<32x8xf32>
    %1014 = arith.addf %1009, %1013 : vector<32x8xf32>
    %1015 = arith.maximumf %995, %1014 : vector<32x8xf32>
    %c2_512 = arith.constant 2 : index
    %c8_513 = arith.constant 8 : index
    %c0_514 = arith.constant 0 : index
    %1016 = vector.load %arg1[%c2_512, %c8_513, %c0_514] : memref<4x96x8xf32, #tpu.memory_space<vmem>>, vector<1x1x8xf32>
    %1017 = vector.shape_cast %1016 : vector<1x1x8xf32> to vector<1x8xf32>
    %1018 = vector.broadcast %1017 : vector<1x8xf32> to vector<32x8xf32>
    %1019 = arith.mulf %3, %1018 : vector<32x8xf32>
    %c2_515 = arith.constant 2 : index
    %c9_516 = arith.constant 9 : index
    %c0_517 = arith.constant 0 : index
    %1020 = vector.load %arg1[%c2_515, %c9_516, %c0_517] : memref<4x96x8xf32, #tpu.memory_space<vmem>>, vector<1x1x8xf32>
    %1021 = vector.shape_cast %1020 : vector<1x1x8xf32> to vector<1x8xf32>
    %1022 = vector.broadcast %1021 : vector<1x8xf32> to vector<32x8xf32>
    %1023 = arith.mulf %6, %1022 : vector<32x8xf32>
    %1024 = arith.addf %1019, %1023 : vector<32x8xf32>
    %c2_518 = arith.constant 2 : index
    %c10_519 = arith.constant 10 : index
    %c0_520 = arith.constant 0 : index
    %1025 = vector.load %arg1[%c2_518, %c10_519, %c0_520] : memref<4x96x8xf32, #tpu.memory_space<vmem>>, vector<1x1x8xf32>
    %1026 = vector.shape_cast %1025 : vector<1x1x8xf32> to vector<1x8xf32>
    %1027 = vector.broadcast %1026 : vector<1x8xf32> to vector<32x8xf32>
    %1028 = arith.mulf %9, %1027 : vector<32x8xf32>
    %1029 = arith.addf %1024, %1028 : vector<32x8xf32>
    %c2_521 = arith.constant 2 : index
    %c11_522 = arith.constant 11 : index
    %c0_523 = arith.constant 0 : index
    %1030 = vector.load %arg1[%c2_521, %c11_522, %c0_523] : memref<4x96x8xf32, #tpu.memory_space<vmem>>, vector<1x1x8xf32>
    %1031 = vector.shape_cast %1030 : vector<1x1x8xf32> to vector<1x8xf32>
    %1032 = vector.broadcast %1031 : vector<1x8xf32> to vector<32x8xf32>
    %1033 = arith.mulf %12, %1032 : vector<32x8xf32>
    %1034 = arith.addf %1029, %1033 : vector<32x8xf32>
    %1035 = arith.maximumf %1015, %1034 : vector<32x8xf32>
    %c2_524 = arith.constant 2 : index
    %c12_525 = arith.constant 12 : index
    %c0_526 = arith.constant 0 : index
    %1036 = vector.load %arg1[%c2_524, %c12_525, %c0_526] : memref<4x96x8xf32, #tpu.memory_space<vmem>>, vector<1x1x8xf32>
    %1037 = vector.shape_cast %1036 : vector<1x1x8xf32> to vector<1x8xf32>
    %1038 = vector.broadcast %1037 : vector<1x8xf32> to vector<32x8xf32>
    %1039 = arith.mulf %3, %1038 : vector<32x8xf32>
    %c2_527 = arith.constant 2 : index
    %c13_528 = arith.constant 13 : index
    %c0_529 = arith.constant 0 : index
    %1040 = vector.load %arg1[%c2_527, %c13_528, %c0_529] : memref<4x96x8xf32, #tpu.memory_space<vmem>>, vector<1x1x8xf32>
    %1041 = vector.shape_cast %1040 : vector<1x1x8xf32> to vector<1x8xf32>
    %1042 = vector.broadcast %1041 : vector<1x8xf32> to vector<32x8xf32>
    %1043 = arith.mulf %6, %1042 : vector<32x8xf32>
    %1044 = arith.addf %1039, %1043 : vector<32x8xf32>
    %c2_530 = arith.constant 2 : index
    %c14_531 = arith.constant 14 : index
    %c0_532 = arith.constant 0 : index
    %1045 = vector.load %arg1[%c2_530, %c14_531, %c0_532] : memref<4x96x8xf32, #tpu.memory_space<vmem>>, vector<1x1x8xf32>
    %1046 = vector.shape_cast %1045 : vector<1x1x8xf32> to vector<1x8xf32>
    %1047 = vector.broadcast %1046 : vector<1x8xf32> to vector<32x8xf32>
    %1048 = arith.mulf %9, %1047 : vector<32x8xf32>
    %1049 = arith.addf %1044, %1048 : vector<32x8xf32>
    %c2_533 = arith.constant 2 : index
    %c15_534 = arith.constant 15 : index
    %c0_535 = arith.constant 0 : index
    %1050 = vector.load %arg1[%c2_533, %c15_534, %c0_535] : memref<4x96x8xf32, #tpu.memory_space<vmem>>, vector<1x1x8xf32>
    %1051 = vector.shape_cast %1050 : vector<1x1x8xf32> to vector<1x8xf32>
    %1052 = vector.broadcast %1051 : vector<1x8xf32> to vector<32x8xf32>
    %1053 = arith.mulf %12, %1052 : vector<32x8xf32>
    %1054 = arith.addf %1049, %1053 : vector<32x8xf32>
    %1055 = arith.maximumf %1035, %1054 : vector<32x8xf32>
    %c2_536 = arith.constant 2 : index
    %c16_537 = arith.constant 16 : index
    %c0_538 = arith.constant 0 : index
    %1056 = vector.load %arg1[%c2_536, %c16_537, %c0_538] : memref<4x96x8xf32, #tpu.memory_space<vmem>>, vector<1x1x8xf32>
    %1057 = vector.shape_cast %1056 : vector<1x1x8xf32> to vector<1x8xf32>
    %1058 = vector.broadcast %1057 : vector<1x8xf32> to vector<32x8xf32>
    %1059 = arith.mulf %3, %1058 : vector<32x8xf32>
    %c2_539 = arith.constant 2 : index
    %c17_540 = arith.constant 17 : index
    %c0_541 = arith.constant 0 : index
    %1060 = vector.load %arg1[%c2_539, %c17_540, %c0_541] : memref<4x96x8xf32, #tpu.memory_space<vmem>>, vector<1x1x8xf32>
    %1061 = vector.shape_cast %1060 : vector<1x1x8xf32> to vector<1x8xf32>
    %1062 = vector.broadcast %1061 : vector<1x8xf32> to vector<32x8xf32>
    %1063 = arith.mulf %6, %1062 : vector<32x8xf32>
    %1064 = arith.addf %1059, %1063 : vector<32x8xf32>
    %c2_542 = arith.constant 2 : index
    %c18_543 = arith.constant 18 : index
    %c0_544 = arith.constant 0 : index
    %1065 = vector.load %arg1[%c2_542, %c18_543, %c0_544] : memref<4x96x8xf32, #tpu.memory_space<vmem>>, vector<1x1x8xf32>
    %1066 = vector.shape_cast %1065 : vector<1x1x8xf32> to vector<1x8xf32>
    %1067 = vector.broadcast %1066 : vector<1x8xf32> to vector<32x8xf32>
    %1068 = arith.mulf %9, %1067 : vector<32x8xf32>
    %1069 = arith.addf %1064, %1068 : vector<32x8xf32>
    %c2_545 = arith.constant 2 : index
    %c19_546 = arith.constant 19 : index
    %c0_547 = arith.constant 0 : index
    %1070 = vector.load %arg1[%c2_545, %c19_546, %c0_547] : memref<4x96x8xf32, #tpu.memory_space<vmem>>, vector<1x1x8xf32>
    %1071 = vector.shape_cast %1070 : vector<1x1x8xf32> to vector<1x8xf32>
    %1072 = vector.broadcast %1071 : vector<1x8xf32> to vector<32x8xf32>
    %1073 = arith.mulf %12, %1072 : vector<32x8xf32>
    %1074 = arith.addf %1069, %1073 : vector<32x8xf32>
    %1075 = arith.maximumf %1055, %1074 : vector<32x8xf32>
    %c2_548 = arith.constant 2 : index
    %c20_549 = arith.constant 20 : index
    %c0_550 = arith.constant 0 : index
    %1076 = vector.load %arg1[%c2_548, %c20_549, %c0_550] : memref<4x96x8xf32, #tpu.memory_space<vmem>>, vector<1x1x8xf32>
    %1077 = vector.shape_cast %1076 : vector<1x1x8xf32> to vector<1x8xf32>
    %1078 = vector.broadcast %1077 : vector<1x8xf32> to vector<32x8xf32>
    %1079 = arith.mulf %3, %1078 : vector<32x8xf32>
    %c2_551 = arith.constant 2 : index
    %c21_552 = arith.constant 21 : index
    %c0_553 = arith.constant 0 : index
    %1080 = vector.load %arg1[%c2_551, %c21_552, %c0_553] : memref<4x96x8xf32, #tpu.memory_space<vmem>>, vector<1x1x8xf32>
    %1081 = vector.shape_cast %1080 : vector<1x1x8xf32> to vector<1x8xf32>
    %1082 = vector.broadcast %1081 : vector<1x8xf32> to vector<32x8xf32>
    %1083 = arith.mulf %6, %1082 : vector<32x8xf32>
    %1084 = arith.addf %1079, %1083 : vector<32x8xf32>
    %c2_554 = arith.constant 2 : index
    %c22_555 = arith.constant 22 : index
    %c0_556 = arith.constant 0 : index
    %1085 = vector.load %arg1[%c2_554, %c22_555, %c0_556] : memref<4x96x8xf32, #tpu.memory_space<vmem>>, vector<1x1x8xf32>
    %1086 = vector.shape_cast %1085 : vector<1x1x8xf32> to vector<1x8xf32>
    %1087 = vector.broadcast %1086 : vector<1x8xf32> to vector<32x8xf32>
    %1088 = arith.mulf %9, %1087 : vector<32x8xf32>
    %1089 = arith.addf %1084, %1088 : vector<32x8xf32>
    %c2_557 = arith.constant 2 : index
    %c23_558 = arith.constant 23 : index
    %c0_559 = arith.constant 0 : index
    %1090 = vector.load %arg1[%c2_557, %c23_558, %c0_559] : memref<4x96x8xf32, #tpu.memory_space<vmem>>, vector<1x1x8xf32>
    %1091 = vector.shape_cast %1090 : vector<1x1x8xf32> to vector<1x8xf32>
    %1092 = vector.broadcast %1091 : vector<1x8xf32> to vector<32x8xf32>
    %1093 = arith.mulf %12, %1092 : vector<32x8xf32>
    %1094 = arith.addf %1089, %1093 : vector<32x8xf32>
    %1095 = arith.maximumf %1075, %1094 : vector<32x8xf32>
    %c2_560 = arith.constant 2 : index
    %c24_561 = arith.constant 24 : index
    %c0_562 = arith.constant 0 : index
    %1096 = vector.load %arg1[%c2_560, %c24_561, %c0_562] : memref<4x96x8xf32, #tpu.memory_space<vmem>>, vector<1x1x8xf32>
    %1097 = vector.shape_cast %1096 : vector<1x1x8xf32> to vector<1x8xf32>
    %1098 = vector.broadcast %1097 : vector<1x8xf32> to vector<32x8xf32>
    %1099 = arith.mulf %3, %1098 : vector<32x8xf32>
    %c2_563 = arith.constant 2 : index
    %c25_564 = arith.constant 25 : index
    %c0_565 = arith.constant 0 : index
    %1100 = vector.load %arg1[%c2_563, %c25_564, %c0_565] : memref<4x96x8xf32, #tpu.memory_space<vmem>>, vector<1x1x8xf32>
    %1101 = vector.shape_cast %1100 : vector<1x1x8xf32> to vector<1x8xf32>
    %1102 = vector.broadcast %1101 : vector<1x8xf32> to vector<32x8xf32>
    %1103 = arith.mulf %6, %1102 : vector<32x8xf32>
    %1104 = arith.addf %1099, %1103 : vector<32x8xf32>
    %c2_566 = arith.constant 2 : index
    %c26_567 = arith.constant 26 : index
    %c0_568 = arith.constant 0 : index
    %1105 = vector.load %arg1[%c2_566, %c26_567, %c0_568] : memref<4x96x8xf32, #tpu.memory_space<vmem>>, vector<1x1x8xf32>
    %1106 = vector.shape_cast %1105 : vector<1x1x8xf32> to vector<1x8xf32>
    %1107 = vector.broadcast %1106 : vector<1x8xf32> to vector<32x8xf32>
    %1108 = arith.mulf %9, %1107 : vector<32x8xf32>
    %1109 = arith.addf %1104, %1108 : vector<32x8xf32>
    %c2_569 = arith.constant 2 : index
    %c27_570 = arith.constant 27 : index
    %c0_571 = arith.constant 0 : index
    %1110 = vector.load %arg1[%c2_569, %c27_570, %c0_571] : memref<4x96x8xf32, #tpu.memory_space<vmem>>, vector<1x1x8xf32>
    %1111 = vector.shape_cast %1110 : vector<1x1x8xf32> to vector<1x8xf32>
    %1112 = vector.broadcast %1111 : vector<1x8xf32> to vector<32x8xf32>
    %1113 = arith.mulf %12, %1112 : vector<32x8xf32>
    %1114 = arith.addf %1109, %1113 : vector<32x8xf32>
    %1115 = arith.maximumf %1095, %1114 : vector<32x8xf32>
    %c2_572 = arith.constant 2 : index
    %c28_573 = arith.constant 28 : index
    %c0_574 = arith.constant 0 : index
    %1116 = vector.load %arg1[%c2_572, %c28_573, %c0_574] : memref<4x96x8xf32, #tpu.memory_space<vmem>>, vector<1x1x8xf32>
    %1117 = vector.shape_cast %1116 : vector<1x1x8xf32> to vector<1x8xf32>
    %1118 = vector.broadcast %1117 : vector<1x8xf32> to vector<32x8xf32>
    %1119 = arith.mulf %3, %1118 : vector<32x8xf32>
    %c2_575 = arith.constant 2 : index
    %c29_576 = arith.constant 29 : index
    %c0_577 = arith.constant 0 : index
    %1120 = vector.load %arg1[%c2_575, %c29_576, %c0_577] : memref<4x96x8xf32, #tpu.memory_space<vmem>>, vector<1x1x8xf32>
    %1121 = vector.shape_cast %1120 : vector<1x1x8xf32> to vector<1x8xf32>
    %1122 = vector.broadcast %1121 : vector<1x8xf32> to vector<32x8xf32>
    %1123 = arith.mulf %6, %1122 : vector<32x8xf32>
    %1124 = arith.addf %1119, %1123 : vector<32x8xf32>
    %c2_578 = arith.constant 2 : index
    %c30_579 = arith.constant 30 : index
    %c0_580 = arith.constant 0 : index
    %1125 = vector.load %arg1[%c2_578, %c30_579, %c0_580] : memref<4x96x8xf32, #tpu.memory_space<vmem>>, vector<1x1x8xf32>
    %1126 = vector.shape_cast %1125 : vector<1x1x8xf32> to vector<1x8xf32>
    %1127 = vector.broadcast %1126 : vector<1x8xf32> to vector<32x8xf32>
    %1128 = arith.mulf %9, %1127 : vector<32x8xf32>
    %1129 = arith.addf %1124, %1128 : vector<32x8xf32>
    %c2_581 = arith.constant 2 : index
    %c31_582 = arith.constant 31 : index
    %c0_583 = arith.constant 0 : index
    %1130 = vector.load %arg1[%c2_581, %c31_582, %c0_583] : memref<4x96x8xf32, #tpu.memory_space<vmem>>, vector<1x1x8xf32>
    %1131 = vector.shape_cast %1130 : vector<1x1x8xf32> to vector<1x8xf32>
    %1132 = vector.broadcast %1131 : vector<1x8xf32> to vector<32x8xf32>
    %1133 = arith.mulf %12, %1132 : vector<32x8xf32>
    %1134 = arith.addf %1129, %1133 : vector<32x8xf32>
    %1135 = arith.maximumf %1115, %1134 : vector<32x8xf32>
    %c2_584 = arith.constant 2 : index
    %c32_585 = arith.constant 32 : index
    %c0_586 = arith.constant 0 : index
    %1136 = vector.load %arg1[%c2_584, %c32_585, %c0_586] : memref<4x96x8xf32, #tpu.memory_space<vmem>>, vector<1x1x8xf32>
    %1137 = vector.shape_cast %1136 : vector<1x1x8xf32> to vector<1x8xf32>
    %1138 = vector.broadcast %1137 : vector<1x8xf32> to vector<32x8xf32>
    %1139 = arith.mulf %3, %1138 : vector<32x8xf32>
    %c2_587 = arith.constant 2 : index
    %c33_588 = arith.constant 33 : index
    %c0_589 = arith.constant 0 : index
    %1140 = vector.load %arg1[%c2_587, %c33_588, %c0_589] : memref<4x96x8xf32, #tpu.memory_space<vmem>>, vector<1x1x8xf32>
    %1141 = vector.shape_cast %1140 : vector<1x1x8xf32> to vector<1x8xf32>
    %1142 = vector.broadcast %1141 : vector<1x8xf32> to vector<32x8xf32>
    %1143 = arith.mulf %6, %1142 : vector<32x8xf32>
    %1144 = arith.addf %1139, %1143 : vector<32x8xf32>
    %c2_590 = arith.constant 2 : index
    %c34_591 = arith.constant 34 : index
    %c0_592 = arith.constant 0 : index
    %1145 = vector.load %arg1[%c2_590, %c34_591, %c0_592] : memref<4x96x8xf32, #tpu.memory_space<vmem>>, vector<1x1x8xf32>
    %1146 = vector.shape_cast %1145 : vector<1x1x8xf32> to vector<1x8xf32>
    %1147 = vector.broadcast %1146 : vector<1x8xf32> to vector<32x8xf32>
    %1148 = arith.mulf %9, %1147 : vector<32x8xf32>
    %1149 = arith.addf %1144, %1148 : vector<32x8xf32>
    %c2_593 = arith.constant 2 : index
    %c35_594 = arith.constant 35 : index
    %c0_595 = arith.constant 0 : index
    %1150 = vector.load %arg1[%c2_593, %c35_594, %c0_595] : memref<4x96x8xf32, #tpu.memory_space<vmem>>, vector<1x1x8xf32>
    %1151 = vector.shape_cast %1150 : vector<1x1x8xf32> to vector<1x8xf32>
    %1152 = vector.broadcast %1151 : vector<1x8xf32> to vector<32x8xf32>
    %1153 = arith.mulf %12, %1152 : vector<32x8xf32>
    %1154 = arith.addf %1149, %1153 : vector<32x8xf32>
    %1155 = arith.maximumf %1135, %1154 : vector<32x8xf32>
    %c2_596 = arith.constant 2 : index
    %c36_597 = arith.constant 36 : index
    %c0_598 = arith.constant 0 : index
    %1156 = vector.load %arg1[%c2_596, %c36_597, %c0_598] : memref<4x96x8xf32, #tpu.memory_space<vmem>>, vector<1x1x8xf32>
    %1157 = vector.shape_cast %1156 : vector<1x1x8xf32> to vector<1x8xf32>
    %1158 = vector.broadcast %1157 : vector<1x8xf32> to vector<32x8xf32>
    %1159 = arith.mulf %3, %1158 : vector<32x8xf32>
    %c2_599 = arith.constant 2 : index
    %c37_600 = arith.constant 37 : index
    %c0_601 = arith.constant 0 : index
    %1160 = vector.load %arg1[%c2_599, %c37_600, %c0_601] : memref<4x96x8xf32, #tpu.memory_space<vmem>>, vector<1x1x8xf32>
    %1161 = vector.shape_cast %1160 : vector<1x1x8xf32> to vector<1x8xf32>
    %1162 = vector.broadcast %1161 : vector<1x8xf32> to vector<32x8xf32>
    %1163 = arith.mulf %6, %1162 : vector<32x8xf32>
    %1164 = arith.addf %1159, %1163 : vector<32x8xf32>
    %c2_602 = arith.constant 2 : index
    %c38_603 = arith.constant 38 : index
    %c0_604 = arith.constant 0 : index
    %1165 = vector.load %arg1[%c2_602, %c38_603, %c0_604] : memref<4x96x8xf32, #tpu.memory_space<vmem>>, vector<1x1x8xf32>
    %1166 = vector.shape_cast %1165 : vector<1x1x8xf32> to vector<1x8xf32>
    %1167 = vector.broadcast %1166 : vector<1x8xf32> to vector<32x8xf32>
    %1168 = arith.mulf %9, %1167 : vector<32x8xf32>
    %1169 = arith.addf %1164, %1168 : vector<32x8xf32>
    %c2_605 = arith.constant 2 : index
    %c39_606 = arith.constant 39 : index
    %c0_607 = arith.constant 0 : index
    %1170 = vector.load %arg1[%c2_605, %c39_606, %c0_607] : memref<4x96x8xf32, #tpu.memory_space<vmem>>, vector<1x1x8xf32>
    %1171 = vector.shape_cast %1170 : vector<1x1x8xf32> to vector<1x8xf32>
    %1172 = vector.broadcast %1171 : vector<1x8xf32> to vector<32x8xf32>
    %1173 = arith.mulf %12, %1172 : vector<32x8xf32>
    %1174 = arith.addf %1169, %1173 : vector<32x8xf32>
    %1175 = arith.maximumf %1155, %1174 : vector<32x8xf32>
    %c2_608 = arith.constant 2 : index
    %c40_609 = arith.constant 40 : index
    %c0_610 = arith.constant 0 : index
    %1176 = vector.load %arg1[%c2_608, %c40_609, %c0_610] : memref<4x96x8xf32, #tpu.memory_space<vmem>>, vector<1x1x8xf32>
    %1177 = vector.shape_cast %1176 : vector<1x1x8xf32> to vector<1x8xf32>
    %1178 = vector.broadcast %1177 : vector<1x8xf32> to vector<32x8xf32>
    %1179 = arith.mulf %3, %1178 : vector<32x8xf32>
    %c2_611 = arith.constant 2 : index
    %c41_612 = arith.constant 41 : index
    %c0_613 = arith.constant 0 : index
    %1180 = vector.load %arg1[%c2_611, %c41_612, %c0_613] : memref<4x96x8xf32, #tpu.memory_space<vmem>>, vector<1x1x8xf32>
    %1181 = vector.shape_cast %1180 : vector<1x1x8xf32> to vector<1x8xf32>
    %1182 = vector.broadcast %1181 : vector<1x8xf32> to vector<32x8xf32>
    %1183 = arith.mulf %6, %1182 : vector<32x8xf32>
    %1184 = arith.addf %1179, %1183 : vector<32x8xf32>
    %c2_614 = arith.constant 2 : index
    %c42_615 = arith.constant 42 : index
    %c0_616 = arith.constant 0 : index
    %1185 = vector.load %arg1[%c2_614, %c42_615, %c0_616] : memref<4x96x8xf32, #tpu.memory_space<vmem>>, vector<1x1x8xf32>
    %1186 = vector.shape_cast %1185 : vector<1x1x8xf32> to vector<1x8xf32>
    %1187 = vector.broadcast %1186 : vector<1x8xf32> to vector<32x8xf32>
    %1188 = arith.mulf %9, %1187 : vector<32x8xf32>
    %1189 = arith.addf %1184, %1188 : vector<32x8xf32>
    %c2_617 = arith.constant 2 : index
    %c43_618 = arith.constant 43 : index
    %c0_619 = arith.constant 0 : index
    %1190 = vector.load %arg1[%c2_617, %c43_618, %c0_619] : memref<4x96x8xf32, #tpu.memory_space<vmem>>, vector<1x1x8xf32>
    %1191 = vector.shape_cast %1190 : vector<1x1x8xf32> to vector<1x8xf32>
    %1192 = vector.broadcast %1191 : vector<1x8xf32> to vector<32x8xf32>
    %1193 = arith.mulf %12, %1192 : vector<32x8xf32>
    %1194 = arith.addf %1189, %1193 : vector<32x8xf32>
    %1195 = arith.maximumf %1175, %1194 : vector<32x8xf32>
    %c2_620 = arith.constant 2 : index
    %c44_621 = arith.constant 44 : index
    %c0_622 = arith.constant 0 : index
    %1196 = vector.load %arg1[%c2_620, %c44_621, %c0_622] : memref<4x96x8xf32, #tpu.memory_space<vmem>>, vector<1x1x8xf32>
    %1197 = vector.shape_cast %1196 : vector<1x1x8xf32> to vector<1x8xf32>
    %1198 = vector.broadcast %1197 : vector<1x8xf32> to vector<32x8xf32>
    %1199 = arith.mulf %3, %1198 : vector<32x8xf32>
    %c2_623 = arith.constant 2 : index
    %c45_624 = arith.constant 45 : index
    %c0_625 = arith.constant 0 : index
    %1200 = vector.load %arg1[%c2_623, %c45_624, %c0_625] : memref<4x96x8xf32, #tpu.memory_space<vmem>>, vector<1x1x8xf32>
    %1201 = vector.shape_cast %1200 : vector<1x1x8xf32> to vector<1x8xf32>
    %1202 = vector.broadcast %1201 : vector<1x8xf32> to vector<32x8xf32>
    %1203 = arith.mulf %6, %1202 : vector<32x8xf32>
    %1204 = arith.addf %1199, %1203 : vector<32x8xf32>
    %c2_626 = arith.constant 2 : index
    %c46_627 = arith.constant 46 : index
    %c0_628 = arith.constant 0 : index
    %1205 = vector.load %arg1[%c2_626, %c46_627, %c0_628] : memref<4x96x8xf32, #tpu.memory_space<vmem>>, vector<1x1x8xf32>
    %1206 = vector.shape_cast %1205 : vector<1x1x8xf32> to vector<1x8xf32>
    %1207 = vector.broadcast %1206 : vector<1x8xf32> to vector<32x8xf32>
    %1208 = arith.mulf %9, %1207 : vector<32x8xf32>
    %1209 = arith.addf %1204, %1208 : vector<32x8xf32>
    %c2_629 = arith.constant 2 : index
    %c47_630 = arith.constant 47 : index
    %c0_631 = arith.constant 0 : index
    %1210 = vector.load %arg1[%c2_629, %c47_630, %c0_631] : memref<4x96x8xf32, #tpu.memory_space<vmem>>, vector<1x1x8xf32>
    %1211 = vector.shape_cast %1210 : vector<1x1x8xf32> to vector<1x8xf32>
    %1212 = vector.broadcast %1211 : vector<1x8xf32> to vector<32x8xf32>
    %1213 = arith.mulf %12, %1212 : vector<32x8xf32>
    %1214 = arith.addf %1209, %1213 : vector<32x8xf32>
    %1215 = arith.maximumf %1195, %1214 : vector<32x8xf32>
    %c2_632 = arith.constant 2 : index
    %c48_633 = arith.constant 48 : index
    %c0_634 = arith.constant 0 : index
    %1216 = vector.load %arg1[%c2_632, %c48_633, %c0_634] : memref<4x96x8xf32, #tpu.memory_space<vmem>>, vector<1x1x8xf32>
    %1217 = vector.shape_cast %1216 : vector<1x1x8xf32> to vector<1x8xf32>
    %1218 = vector.broadcast %1217 : vector<1x8xf32> to vector<32x8xf32>
    %1219 = arith.mulf %3, %1218 : vector<32x8xf32>
    %c2_635 = arith.constant 2 : index
    %c49_636 = arith.constant 49 : index
    %c0_637 = arith.constant 0 : index
    %1220 = vector.load %arg1[%c2_635, %c49_636, %c0_637] : memref<4x96x8xf32, #tpu.memory_space<vmem>>, vector<1x1x8xf32>
    %1221 = vector.shape_cast %1220 : vector<1x1x8xf32> to vector<1x8xf32>
    %1222 = vector.broadcast %1221 : vector<1x8xf32> to vector<32x8xf32>
    %1223 = arith.mulf %6, %1222 : vector<32x8xf32>
    %1224 = arith.addf %1219, %1223 : vector<32x8xf32>
    %c2_638 = arith.constant 2 : index
    %c50_639 = arith.constant 50 : index
    %c0_640 = arith.constant 0 : index
    %1225 = vector.load %arg1[%c2_638, %c50_639, %c0_640] : memref<4x96x8xf32, #tpu.memory_space<vmem>>, vector<1x1x8xf32>
    %1226 = vector.shape_cast %1225 : vector<1x1x8xf32> to vector<1x8xf32>
    %1227 = vector.broadcast %1226 : vector<1x8xf32> to vector<32x8xf32>
    %1228 = arith.mulf %9, %1227 : vector<32x8xf32>
    %1229 = arith.addf %1224, %1228 : vector<32x8xf32>
    %c2_641 = arith.constant 2 : index
    %c51_642 = arith.constant 51 : index
    %c0_643 = arith.constant 0 : index
    %1230 = vector.load %arg1[%c2_641, %c51_642, %c0_643] : memref<4x96x8xf32, #tpu.memory_space<vmem>>, vector<1x1x8xf32>
    %1231 = vector.shape_cast %1230 : vector<1x1x8xf32> to vector<1x8xf32>
    %1232 = vector.broadcast %1231 : vector<1x8xf32> to vector<32x8xf32>
    %1233 = arith.mulf %12, %1232 : vector<32x8xf32>
    %1234 = arith.addf %1229, %1233 : vector<32x8xf32>
    %1235 = arith.maximumf %1215, %1234 : vector<32x8xf32>
    %c2_644 = arith.constant 2 : index
    %c52_645 = arith.constant 52 : index
    %c0_646 = arith.constant 0 : index
    %1236 = vector.load %arg1[%c2_644, %c52_645, %c0_646] : memref<4x96x8xf32, #tpu.memory_space<vmem>>, vector<1x1x8xf32>
    %1237 = vector.shape_cast %1236 : vector<1x1x8xf32> to vector<1x8xf32>
    %1238 = vector.broadcast %1237 : vector<1x8xf32> to vector<32x8xf32>
    %1239 = arith.mulf %3, %1238 : vector<32x8xf32>
    %c2_647 = arith.constant 2 : index
    %c53_648 = arith.constant 53 : index
    %c0_649 = arith.constant 0 : index
    %1240 = vector.load %arg1[%c2_647, %c53_648, %c0_649] : memref<4x96x8xf32, #tpu.memory_space<vmem>>, vector<1x1x8xf32>
    %1241 = vector.shape_cast %1240 : vector<1x1x8xf32> to vector<1x8xf32>
    %1242 = vector.broadcast %1241 : vector<1x8xf32> to vector<32x8xf32>
    %1243 = arith.mulf %6, %1242 : vector<32x8xf32>
    %1244 = arith.addf %1239, %1243 : vector<32x8xf32>
    %c2_650 = arith.constant 2 : index
    %c54_651 = arith.constant 54 : index
    %c0_652 = arith.constant 0 : index
    %1245 = vector.load %arg1[%c2_650, %c54_651, %c0_652] : memref<4x96x8xf32, #tpu.memory_space<vmem>>, vector<1x1x8xf32>
    %1246 = vector.shape_cast %1245 : vector<1x1x8xf32> to vector<1x8xf32>
    %1247 = vector.broadcast %1246 : vector<1x8xf32> to vector<32x8xf32>
    %1248 = arith.mulf %9, %1247 : vector<32x8xf32>
    %1249 = arith.addf %1244, %1248 : vector<32x8xf32>
    %c2_653 = arith.constant 2 : index
    %c55_654 = arith.constant 55 : index
    %c0_655 = arith.constant 0 : index
    %1250 = vector.load %arg1[%c2_653, %c55_654, %c0_655] : memref<4x96x8xf32, #tpu.memory_space<vmem>>, vector<1x1x8xf32>
    %1251 = vector.shape_cast %1250 : vector<1x1x8xf32> to vector<1x8xf32>
    %1252 = vector.broadcast %1251 : vector<1x8xf32> to vector<32x8xf32>
    %1253 = arith.mulf %12, %1252 : vector<32x8xf32>
    %1254 = arith.addf %1249, %1253 : vector<32x8xf32>
    %1255 = arith.maximumf %1235, %1254 : vector<32x8xf32>
    %c2_656 = arith.constant 2 : index
    %c56_657 = arith.constant 56 : index
    %c0_658 = arith.constant 0 : index
    %1256 = vector.load %arg1[%c2_656, %c56_657, %c0_658] : memref<4x96x8xf32, #tpu.memory_space<vmem>>, vector<1x1x8xf32>
    %1257 = vector.shape_cast %1256 : vector<1x1x8xf32> to vector<1x8xf32>
    %1258 = vector.broadcast %1257 : vector<1x8xf32> to vector<32x8xf32>
    %1259 = arith.mulf %3, %1258 : vector<32x8xf32>
    %c2_659 = arith.constant 2 : index
    %c57_660 = arith.constant 57 : index
    %c0_661 = arith.constant 0 : index
    %1260 = vector.load %arg1[%c2_659, %c57_660, %c0_661] : memref<4x96x8xf32, #tpu.memory_space<vmem>>, vector<1x1x8xf32>
    %1261 = vector.shape_cast %1260 : vector<1x1x8xf32> to vector<1x8xf32>
    %1262 = vector.broadcast %1261 : vector<1x8xf32> to vector<32x8xf32>
    %1263 = arith.mulf %6, %1262 : vector<32x8xf32>
    %1264 = arith.addf %1259, %1263 : vector<32x8xf32>
    %c2_662 = arith.constant 2 : index
    %c58_663 = arith.constant 58 : index
    %c0_664 = arith.constant 0 : index
    %1265 = vector.load %arg1[%c2_662, %c58_663, %c0_664] : memref<4x96x8xf32, #tpu.memory_space<vmem>>, vector<1x1x8xf32>
    %1266 = vector.shape_cast %1265 : vector<1x1x8xf32> to vector<1x8xf32>
    %1267 = vector.broadcast %1266 : vector<1x8xf32> to vector<32x8xf32>
    %1268 = arith.mulf %9, %1267 : vector<32x8xf32>
    %1269 = arith.addf %1264, %1268 : vector<32x8xf32>
    %c2_665 = arith.constant 2 : index
    %c59_666 = arith.constant 59 : index
    %c0_667 = arith.constant 0 : index
    %1270 = vector.load %arg1[%c2_665, %c59_666, %c0_667] : memref<4x96x8xf32, #tpu.memory_space<vmem>>, vector<1x1x8xf32>
    %1271 = vector.shape_cast %1270 : vector<1x1x8xf32> to vector<1x8xf32>
    %1272 = vector.broadcast %1271 : vector<1x8xf32> to vector<32x8xf32>
    %1273 = arith.mulf %12, %1272 : vector<32x8xf32>
    %1274 = arith.addf %1269, %1273 : vector<32x8xf32>
    %1275 = arith.maximumf %1255, %1274 : vector<32x8xf32>
    %c2_668 = arith.constant 2 : index
    %c60_669 = arith.constant 60 : index
    %c0_670 = arith.constant 0 : index
    %1276 = vector.load %arg1[%c2_668, %c60_669, %c0_670] : memref<4x96x8xf32, #tpu.memory_space<vmem>>, vector<1x1x8xf32>
    %1277 = vector.shape_cast %1276 : vector<1x1x8xf32> to vector<1x8xf32>
    %1278 = vector.broadcast %1277 : vector<1x8xf32> to vector<32x8xf32>
    %1279 = arith.mulf %3, %1278 : vector<32x8xf32>
    %c2_671 = arith.constant 2 : index
    %c61_672 = arith.constant 61 : index
    %c0_673 = arith.constant 0 : index
    %1280 = vector.load %arg1[%c2_671, %c61_672, %c0_673] : memref<4x96x8xf32, #tpu.memory_space<vmem>>, vector<1x1x8xf32>
    %1281 = vector.shape_cast %1280 : vector<1x1x8xf32> to vector<1x8xf32>
    %1282 = vector.broadcast %1281 : vector<1x8xf32> to vector<32x8xf32>
    %1283 = arith.mulf %6, %1282 : vector<32x8xf32>
    %1284 = arith.addf %1279, %1283 : vector<32x8xf32>
    %c2_674 = arith.constant 2 : index
    %c62_675 = arith.constant 62 : index
    %c0_676 = arith.constant 0 : index
    %1285 = vector.load %arg1[%c2_674, %c62_675, %c0_676] : memref<4x96x8xf32, #tpu.memory_space<vmem>>, vector<1x1x8xf32>
    %1286 = vector.shape_cast %1285 : vector<1x1x8xf32> to vector<1x8xf32>
    %1287 = vector.broadcast %1286 : vector<1x8xf32> to vector<32x8xf32>
    %1288 = arith.mulf %9, %1287 : vector<32x8xf32>
    %1289 = arith.addf %1284, %1288 : vector<32x8xf32>
    %c2_677 = arith.constant 2 : index
    %c63_678 = arith.constant 63 : index
    %c0_679 = arith.constant 0 : index
    %1290 = vector.load %arg1[%c2_677, %c63_678, %c0_679] : memref<4x96x8xf32, #tpu.memory_space<vmem>>, vector<1x1x8xf32>
    %1291 = vector.shape_cast %1290 : vector<1x1x8xf32> to vector<1x8xf32>
    %1292 = vector.broadcast %1291 : vector<1x8xf32> to vector<32x8xf32>
    %1293 = arith.mulf %12, %1292 : vector<32x8xf32>
    %1294 = arith.addf %1289, %1293 : vector<32x8xf32>
    %1295 = arith.maximumf %1275, %1294 : vector<32x8xf32>
    %c2_680 = arith.constant 2 : index
    %c64_681 = arith.constant 64 : index
    %c0_682 = arith.constant 0 : index
    %1296 = vector.load %arg1[%c2_680, %c64_681, %c0_682] : memref<4x96x8xf32, #tpu.memory_space<vmem>>, vector<1x1x8xf32>
    %1297 = vector.shape_cast %1296 : vector<1x1x8xf32> to vector<1x8xf32>
    %1298 = vector.broadcast %1297 : vector<1x8xf32> to vector<32x8xf32>
    %1299 = arith.mulf %3, %1298 : vector<32x8xf32>
    %c2_683 = arith.constant 2 : index
    %c65_684 = arith.constant 65 : index
    %c0_685 = arith.constant 0 : index
    %1300 = vector.load %arg1[%c2_683, %c65_684, %c0_685] : memref<4x96x8xf32, #tpu.memory_space<vmem>>, vector<1x1x8xf32>
    %1301 = vector.shape_cast %1300 : vector<1x1x8xf32> to vector<1x8xf32>
    %1302 = vector.broadcast %1301 : vector<1x8xf32> to vector<32x8xf32>
    %1303 = arith.mulf %6, %1302 : vector<32x8xf32>
    %1304 = arith.addf %1299, %1303 : vector<32x8xf32>
    %c2_686 = arith.constant 2 : index
    %c66_687 = arith.constant 66 : index
    %c0_688 = arith.constant 0 : index
    %1305 = vector.load %arg1[%c2_686, %c66_687, %c0_688] : memref<4x96x8xf32, #tpu.memory_space<vmem>>, vector<1x1x8xf32>
    %1306 = vector.shape_cast %1305 : vector<1x1x8xf32> to vector<1x8xf32>
    %1307 = vector.broadcast %1306 : vector<1x8xf32> to vector<32x8xf32>
    %1308 = arith.mulf %9, %1307 : vector<32x8xf32>
    %1309 = arith.addf %1304, %1308 : vector<32x8xf32>
    %c2_689 = arith.constant 2 : index
    %c67_690 = arith.constant 67 : index
    %c0_691 = arith.constant 0 : index
    %1310 = vector.load %arg1[%c2_689, %c67_690, %c0_691] : memref<4x96x8xf32, #tpu.memory_space<vmem>>, vector<1x1x8xf32>
    %1311 = vector.shape_cast %1310 : vector<1x1x8xf32> to vector<1x8xf32>
    %1312 = vector.broadcast %1311 : vector<1x8xf32> to vector<32x8xf32>
    %1313 = arith.mulf %12, %1312 : vector<32x8xf32>
    %1314 = arith.addf %1309, %1313 : vector<32x8xf32>
    %1315 = arith.maximumf %1295, %1314 : vector<32x8xf32>
    %c2_692 = arith.constant 2 : index
    %c68_693 = arith.constant 68 : index
    %c0_694 = arith.constant 0 : index
    %1316 = vector.load %arg1[%c2_692, %c68_693, %c0_694] : memref<4x96x8xf32, #tpu.memory_space<vmem>>, vector<1x1x8xf32>
    %1317 = vector.shape_cast %1316 : vector<1x1x8xf32> to vector<1x8xf32>
    %1318 = vector.broadcast %1317 : vector<1x8xf32> to vector<32x8xf32>
    %1319 = arith.mulf %3, %1318 : vector<32x8xf32>
    %c2_695 = arith.constant 2 : index
    %c69_696 = arith.constant 69 : index
    %c0_697 = arith.constant 0 : index
    %1320 = vector.load %arg1[%c2_695, %c69_696, %c0_697] : memref<4x96x8xf32, #tpu.memory_space<vmem>>, vector<1x1x8xf32>
    %1321 = vector.shape_cast %1320 : vector<1x1x8xf32> to vector<1x8xf32>
    %1322 = vector.broadcast %1321 : vector<1x8xf32> to vector<32x8xf32>
    %1323 = arith.mulf %6, %1322 : vector<32x8xf32>
    %1324 = arith.addf %1319, %1323 : vector<32x8xf32>
    %c2_698 = arith.constant 2 : index
    %c70_699 = arith.constant 70 : index
    %c0_700 = arith.constant 0 : index
    %1325 = vector.load %arg1[%c2_698, %c70_699, %c0_700] : memref<4x96x8xf32, #tpu.memory_space<vmem>>, vector<1x1x8xf32>
    %1326 = vector.shape_cast %1325 : vector<1x1x8xf32> to vector<1x8xf32>
    %1327 = vector.broadcast %1326 : vector<1x8xf32> to vector<32x8xf32>
    %1328 = arith.mulf %9, %1327 : vector<32x8xf32>
    %1329 = arith.addf %1324, %1328 : vector<32x8xf32>
    %c2_701 = arith.constant 2 : index
    %c71_702 = arith.constant 71 : index
    %c0_703 = arith.constant 0 : index
    %1330 = vector.load %arg1[%c2_701, %c71_702, %c0_703] : memref<4x96x8xf32, #tpu.memory_space<vmem>>, vector<1x1x8xf32>
    %1331 = vector.shape_cast %1330 : vector<1x1x8xf32> to vector<1x8xf32>
    %1332 = vector.broadcast %1331 : vector<1x8xf32> to vector<32x8xf32>
    %1333 = arith.mulf %12, %1332 : vector<32x8xf32>
    %1334 = arith.addf %1329, %1333 : vector<32x8xf32>
    %1335 = arith.maximumf %1315, %1334 : vector<32x8xf32>
    %c2_704 = arith.constant 2 : index
    %c72_705 = arith.constant 72 : index
    %c0_706 = arith.constant 0 : index
    %1336 = vector.load %arg1[%c2_704, %c72_705, %c0_706] : memref<4x96x8xf32, #tpu.memory_space<vmem>>, vector<1x1x8xf32>
    %1337 = vector.shape_cast %1336 : vector<1x1x8xf32> to vector<1x8xf32>
    %1338 = vector.broadcast %1337 : vector<1x8xf32> to vector<32x8xf32>
    %1339 = arith.mulf %3, %1338 : vector<32x8xf32>
    %c2_707 = arith.constant 2 : index
    %c73_708 = arith.constant 73 : index
    %c0_709 = arith.constant 0 : index
    %1340 = vector.load %arg1[%c2_707, %c73_708, %c0_709] : memref<4x96x8xf32, #tpu.memory_space<vmem>>, vector<1x1x8xf32>
    %1341 = vector.shape_cast %1340 : vector<1x1x8xf32> to vector<1x8xf32>
    %1342 = vector.broadcast %1341 : vector<1x8xf32> to vector<32x8xf32>
    %1343 = arith.mulf %6, %1342 : vector<32x8xf32>
    %1344 = arith.addf %1339, %1343 : vector<32x8xf32>
    %c2_710 = arith.constant 2 : index
    %c74_711 = arith.constant 74 : index
    %c0_712 = arith.constant 0 : index
    %1345 = vector.load %arg1[%c2_710, %c74_711, %c0_712] : memref<4x96x8xf32, #tpu.memory_space<vmem>>, vector<1x1x8xf32>
    %1346 = vector.shape_cast %1345 : vector<1x1x8xf32> to vector<1x8xf32>
    %1347 = vector.broadcast %1346 : vector<1x8xf32> to vector<32x8xf32>
    %1348 = arith.mulf %9, %1347 : vector<32x8xf32>
    %1349 = arith.addf %1344, %1348 : vector<32x8xf32>
    %c2_713 = arith.constant 2 : index
    %c75_714 = arith.constant 75 : index
    %c0_715 = arith.constant 0 : index
    %1350 = vector.load %arg1[%c2_713, %c75_714, %c0_715] : memref<4x96x8xf32, #tpu.memory_space<vmem>>, vector<1x1x8xf32>
    %1351 = vector.shape_cast %1350 : vector<1x1x8xf32> to vector<1x8xf32>
    %1352 = vector.broadcast %1351 : vector<1x8xf32> to vector<32x8xf32>
    %1353 = arith.mulf %12, %1352 : vector<32x8xf32>
    %1354 = arith.addf %1349, %1353 : vector<32x8xf32>
    %1355 = arith.maximumf %1335, %1354 : vector<32x8xf32>
    %c2_716 = arith.constant 2 : index
    %c76_717 = arith.constant 76 : index
    %c0_718 = arith.constant 0 : index
    %1356 = vector.load %arg1[%c2_716, %c76_717, %c0_718] : memref<4x96x8xf32, #tpu.memory_space<vmem>>, vector<1x1x8xf32>
    %1357 = vector.shape_cast %1356 : vector<1x1x8xf32> to vector<1x8xf32>
    %1358 = vector.broadcast %1357 : vector<1x8xf32> to vector<32x8xf32>
    %1359 = arith.mulf %3, %1358 : vector<32x8xf32>
    %c2_719 = arith.constant 2 : index
    %c77_720 = arith.constant 77 : index
    %c0_721 = arith.constant 0 : index
    %1360 = vector.load %arg1[%c2_719, %c77_720, %c0_721] : memref<4x96x8xf32, #tpu.memory_space<vmem>>, vector<1x1x8xf32>
    %1361 = vector.shape_cast %1360 : vector<1x1x8xf32> to vector<1x8xf32>
    %1362 = vector.broadcast %1361 : vector<1x8xf32> to vector<32x8xf32>
    %1363 = arith.mulf %6, %1362 : vector<32x8xf32>
    %1364 = arith.addf %1359, %1363 : vector<32x8xf32>
    %c2_722 = arith.constant 2 : index
    %c78_723 = arith.constant 78 : index
    %c0_724 = arith.constant 0 : index
    %1365 = vector.load %arg1[%c2_722, %c78_723, %c0_724] : memref<4x96x8xf32, #tpu.memory_space<vmem>>, vector<1x1x8xf32>
    %1366 = vector.shape_cast %1365 : vector<1x1x8xf32> to vector<1x8xf32>
    %1367 = vector.broadcast %1366 : vector<1x8xf32> to vector<32x8xf32>
    %1368 = arith.mulf %9, %1367 : vector<32x8xf32>
    %1369 = arith.addf %1364, %1368 : vector<32x8xf32>
    %c2_725 = arith.constant 2 : index
    %c79_726 = arith.constant 79 : index
    %c0_727 = arith.constant 0 : index
    %1370 = vector.load %arg1[%c2_725, %c79_726, %c0_727] : memref<4x96x8xf32, #tpu.memory_space<vmem>>, vector<1x1x8xf32>
    %1371 = vector.shape_cast %1370 : vector<1x1x8xf32> to vector<1x8xf32>
    %1372 = vector.broadcast %1371 : vector<1x8xf32> to vector<32x8xf32>
    %1373 = arith.mulf %12, %1372 : vector<32x8xf32>
    %1374 = arith.addf %1369, %1373 : vector<32x8xf32>
    %1375 = arith.maximumf %1355, %1374 : vector<32x8xf32>
    %c2_728 = arith.constant 2 : index
    %c80_729 = arith.constant 80 : index
    %c0_730 = arith.constant 0 : index
    %1376 = vector.load %arg1[%c2_728, %c80_729, %c0_730] : memref<4x96x8xf32, #tpu.memory_space<vmem>>, vector<1x1x8xf32>
    %1377 = vector.shape_cast %1376 : vector<1x1x8xf32> to vector<1x8xf32>
    %1378 = vector.broadcast %1377 : vector<1x8xf32> to vector<32x8xf32>
    %1379 = arith.mulf %3, %1378 : vector<32x8xf32>
    %c2_731 = arith.constant 2 : index
    %c81_732 = arith.constant 81 : index
    %c0_733 = arith.constant 0 : index
    %1380 = vector.load %arg1[%c2_731, %c81_732, %c0_733] : memref<4x96x8xf32, #tpu.memory_space<vmem>>, vector<1x1x8xf32>
    %1381 = vector.shape_cast %1380 : vector<1x1x8xf32> to vector<1x8xf32>
    %1382 = vector.broadcast %1381 : vector<1x8xf32> to vector<32x8xf32>
    %1383 = arith.mulf %6, %1382 : vector<32x8xf32>
    %1384 = arith.addf %1379, %1383 : vector<32x8xf32>
    %c2_734 = arith.constant 2 : index
    %c82_735 = arith.constant 82 : index
    %c0_736 = arith.constant 0 : index
    %1385 = vector.load %arg1[%c2_734, %c82_735, %c0_736] : memref<4x96x8xf32, #tpu.memory_space<vmem>>, vector<1x1x8xf32>
    %1386 = vector.shape_cast %1385 : vector<1x1x8xf32> to vector<1x8xf32>
    %1387 = vector.broadcast %1386 : vector<1x8xf32> to vector<32x8xf32>
    %1388 = arith.mulf %9, %1387 : vector<32x8xf32>
    %1389 = arith.addf %1384, %1388 : vector<32x8xf32>
    %c2_737 = arith.constant 2 : index
    %c83_738 = arith.constant 83 : index
    %c0_739 = arith.constant 0 : index
    %1390 = vector.load %arg1[%c2_737, %c83_738, %c0_739] : memref<4x96x8xf32, #tpu.memory_space<vmem>>, vector<1x1x8xf32>
    %1391 = vector.shape_cast %1390 : vector<1x1x8xf32> to vector<1x8xf32>
    %1392 = vector.broadcast %1391 : vector<1x8xf32> to vector<32x8xf32>
    %1393 = arith.mulf %12, %1392 : vector<32x8xf32>
    %1394 = arith.addf %1389, %1393 : vector<32x8xf32>
    %1395 = arith.maximumf %1375, %1394 : vector<32x8xf32>
    %c2_740 = arith.constant 2 : index
    %c84_741 = arith.constant 84 : index
    %c0_742 = arith.constant 0 : index
    %1396 = vector.load %arg1[%c2_740, %c84_741, %c0_742] : memref<4x96x8xf32, #tpu.memory_space<vmem>>, vector<1x1x8xf32>
    %1397 = vector.shape_cast %1396 : vector<1x1x8xf32> to vector<1x8xf32>
    %1398 = vector.broadcast %1397 : vector<1x8xf32> to vector<32x8xf32>
    %1399 = arith.mulf %3, %1398 : vector<32x8xf32>
    %c2_743 = arith.constant 2 : index
    %c85_744 = arith.constant 85 : index
    %c0_745 = arith.constant 0 : index
    %1400 = vector.load %arg1[%c2_743, %c85_744, %c0_745] : memref<4x96x8xf32, #tpu.memory_space<vmem>>, vector<1x1x8xf32>
    %1401 = vector.shape_cast %1400 : vector<1x1x8xf32> to vector<1x8xf32>
    %1402 = vector.broadcast %1401 : vector<1x8xf32> to vector<32x8xf32>
    %1403 = arith.mulf %6, %1402 : vector<32x8xf32>
    %1404 = arith.addf %1399, %1403 : vector<32x8xf32>
    %c2_746 = arith.constant 2 : index
    %c86_747 = arith.constant 86 : index
    %c0_748 = arith.constant 0 : index
    %1405 = vector.load %arg1[%c2_746, %c86_747, %c0_748] : memref<4x96x8xf32, #tpu.memory_space<vmem>>, vector<1x1x8xf32>
    %1406 = vector.shape_cast %1405 : vector<1x1x8xf32> to vector<1x8xf32>
    %1407 = vector.broadcast %1406 : vector<1x8xf32> to vector<32x8xf32>
    %1408 = arith.mulf %9, %1407 : vector<32x8xf32>
    %1409 = arith.addf %1404, %1408 : vector<32x8xf32>
    %c2_749 = arith.constant 2 : index
    %c87_750 = arith.constant 87 : index
    %c0_751 = arith.constant 0 : index
    %1410 = vector.load %arg1[%c2_749, %c87_750, %c0_751] : memref<4x96x8xf32, #tpu.memory_space<vmem>>, vector<1x1x8xf32>
    %1411 = vector.shape_cast %1410 : vector<1x1x8xf32> to vector<1x8xf32>
    %1412 = vector.broadcast %1411 : vector<1x8xf32> to vector<32x8xf32>
    %1413 = arith.mulf %12, %1412 : vector<32x8xf32>
    %1414 = arith.addf %1409, %1413 : vector<32x8xf32>
    %1415 = arith.maximumf %1395, %1414 : vector<32x8xf32>
    %c2_752 = arith.constant 2 : index
    %c88_753 = arith.constant 88 : index
    %c0_754 = arith.constant 0 : index
    %1416 = vector.load %arg1[%c2_752, %c88_753, %c0_754] : memref<4x96x8xf32, #tpu.memory_space<vmem>>, vector<1x1x8xf32>
    %1417 = vector.shape_cast %1416 : vector<1x1x8xf32> to vector<1x8xf32>
    %1418 = vector.broadcast %1417 : vector<1x8xf32> to vector<32x8xf32>
    %1419 = arith.mulf %3, %1418 : vector<32x8xf32>
    %c2_755 = arith.constant 2 : index
    %c89_756 = arith.constant 89 : index
    %c0_757 = arith.constant 0 : index
    %1420 = vector.load %arg1[%c2_755, %c89_756, %c0_757] : memref<4x96x8xf32, #tpu.memory_space<vmem>>, vector<1x1x8xf32>
    %1421 = vector.shape_cast %1420 : vector<1x1x8xf32> to vector<1x8xf32>
    %1422 = vector.broadcast %1421 : vector<1x8xf32> to vector<32x8xf32>
    %1423 = arith.mulf %6, %1422 : vector<32x8xf32>
    %1424 = arith.addf %1419, %1423 : vector<32x8xf32>
    %c2_758 = arith.constant 2 : index
    %c90_759 = arith.constant 90 : index
    %c0_760 = arith.constant 0 : index
    %1425 = vector.load %arg1[%c2_758, %c90_759, %c0_760] : memref<4x96x8xf32, #tpu.memory_space<vmem>>, vector<1x1x8xf32>
    %1426 = vector.shape_cast %1425 : vector<1x1x8xf32> to vector<1x8xf32>
    %1427 = vector.broadcast %1426 : vector<1x8xf32> to vector<32x8xf32>
    %1428 = arith.mulf %9, %1427 : vector<32x8xf32>
    %1429 = arith.addf %1424, %1428 : vector<32x8xf32>
    %c2_761 = arith.constant 2 : index
    %c91_762 = arith.constant 91 : index
    %c0_763 = arith.constant 0 : index
    %1430 = vector.load %arg1[%c2_761, %c91_762, %c0_763] : memref<4x96x8xf32, #tpu.memory_space<vmem>>, vector<1x1x8xf32>
    %1431 = vector.shape_cast %1430 : vector<1x1x8xf32> to vector<1x8xf32>
    %1432 = vector.broadcast %1431 : vector<1x8xf32> to vector<32x8xf32>
    %1433 = arith.mulf %12, %1432 : vector<32x8xf32>
    %1434 = arith.addf %1429, %1433 : vector<32x8xf32>
    %1435 = arith.maximumf %1415, %1434 : vector<32x8xf32>
    %c2_764 = arith.constant 2 : index
    %c92_765 = arith.constant 92 : index
    %c0_766 = arith.constant 0 : index
    %1436 = vector.load %arg1[%c2_764, %c92_765, %c0_766] : memref<4x96x8xf32, #tpu.memory_space<vmem>>, vector<1x1x8xf32>
    %1437 = vector.shape_cast %1436 : vector<1x1x8xf32> to vector<1x8xf32>
    %1438 = vector.broadcast %1437 : vector<1x8xf32> to vector<32x8xf32>
    %1439 = arith.mulf %3, %1438 : vector<32x8xf32>
    %c2_767 = arith.constant 2 : index
    %c93_768 = arith.constant 93 : index
    %c0_769 = arith.constant 0 : index
    %1440 = vector.load %arg1[%c2_767, %c93_768, %c0_769] : memref<4x96x8xf32, #tpu.memory_space<vmem>>, vector<1x1x8xf32>
    %1441 = vector.shape_cast %1440 : vector<1x1x8xf32> to vector<1x8xf32>
    %1442 = vector.broadcast %1441 : vector<1x8xf32> to vector<32x8xf32>
    %1443 = arith.mulf %6, %1442 : vector<32x8xf32>
    %1444 = arith.addf %1439, %1443 : vector<32x8xf32>
    %c2_770 = arith.constant 2 : index
    %c94_771 = arith.constant 94 : index
    %c0_772 = arith.constant 0 : index
    %1445 = vector.load %arg1[%c2_770, %c94_771, %c0_772] : memref<4x96x8xf32, #tpu.memory_space<vmem>>, vector<1x1x8xf32>
    %1446 = vector.shape_cast %1445 : vector<1x1x8xf32> to vector<1x8xf32>
    %1447 = vector.broadcast %1446 : vector<1x8xf32> to vector<32x8xf32>
    %1448 = arith.mulf %9, %1447 : vector<32x8xf32>
    %1449 = arith.addf %1444, %1448 : vector<32x8xf32>
    %c2_773 = arith.constant 2 : index
    %c95_774 = arith.constant 95 : index
    %c0_775 = arith.constant 0 : index
    %1450 = vector.load %arg1[%c2_773, %c95_774, %c0_775] : memref<4x96x8xf32, #tpu.memory_space<vmem>>, vector<1x1x8xf32>
    %1451 = vector.shape_cast %1450 : vector<1x1x8xf32> to vector<1x8xf32>
    %1452 = vector.broadcast %1451 : vector<1x8xf32> to vector<32x8xf32>
    %1453 = arith.mulf %12, %1452 : vector<32x8xf32>
    %1454 = arith.addf %1449, %1453 : vector<32x8xf32>
    %1455 = arith.maximumf %1435, %1454 : vector<32x8xf32>
    %c2_776 = arith.constant 2 : index
    %c0_777 = arith.constant 0 : index
    %c0_778 = arith.constant 0 : index
    %1456 = vector.load %arg3[%c2_776, %c0_777, %c0_778] : memref<4x32x8xf32, #tpu.memory_space<vmem>>, vector<1x32x8xf32>
    %1457 = vector.shape_cast %1456 : vector<1x32x8xf32> to vector<32x8xf32>
    %1458 = vector.shape_cast %1455 : vector<32x8xf32> to vector<1x32x8xf32>
    tpu.vector_store %arg3[%c2_776, %c0_777, %c0_778], %1458 {strides = array<i32>} : memref<4x32x8xf32, #tpu.memory_space<vmem>>, vector<1x32x8xf32>,
    %c3_779 = arith.constant 3 : index
    %c0_780 = arith.constant 0 : index
    %c0_781 = arith.constant 0 : index
    %1459 = vector.load %arg1[%c3_779, %c0_780, %c0_781] : memref<4x96x8xf32, #tpu.memory_space<vmem>>, vector<1x1x8xf32>
    %1460 = vector.shape_cast %1459 : vector<1x1x8xf32> to vector<1x8xf32>
    %1461 = vector.broadcast %1460 : vector<1x8xf32> to vector<32x8xf32>
    %1462 = arith.mulf %3, %1461 : vector<32x8xf32>
    %c3_782 = arith.constant 3 : index
    %c1_783 = arith.constant 1 : index
    %c0_784 = arith.constant 0 : index
    %1463 = vector.load %arg1[%c3_782, %c1_783, %c0_784] : memref<4x96x8xf32, #tpu.memory_space<vmem>>, vector<1x1x8xf32>
    %1464 = vector.shape_cast %1463 : vector<1x1x8xf32> to vector<1x8xf32>
    %1465 = vector.broadcast %1464 : vector<1x8xf32> to vector<32x8xf32>
    %1466 = arith.mulf %6, %1465 : vector<32x8xf32>
    %1467 = arith.addf %1462, %1466 : vector<32x8xf32>
    %c3_785 = arith.constant 3 : index
    %c2_786 = arith.constant 2 : index
    %c0_787 = arith.constant 0 : index
    %1468 = vector.load %arg1[%c3_785, %c2_786, %c0_787] : memref<4x96x8xf32, #tpu.memory_space<vmem>>, vector<1x1x8xf32>
    %1469 = vector.shape_cast %1468 : vector<1x1x8xf32> to vector<1x8xf32>
    %1470 = vector.broadcast %1469 : vector<1x8xf32> to vector<32x8xf32>
    %1471 = arith.mulf %9, %1470 : vector<32x8xf32>
    %1472 = arith.addf %1467, %1471 : vector<32x8xf32>
    %c3_788 = arith.constant 3 : index
    %c3_789 = arith.constant 3 : index
    %c0_790 = arith.constant 0 : index
    %1473 = vector.load %arg1[%c3_788, %c3_789, %c0_790] : memref<4x96x8xf32, #tpu.memory_space<vmem>>, vector<1x1x8xf32>
    %1474 = vector.shape_cast %1473 : vector<1x1x8xf32> to vector<1x8xf32>
    %1475 = vector.broadcast %1474 : vector<1x8xf32> to vector<32x8xf32>
    %1476 = arith.mulf %12, %1475 : vector<32x8xf32>
    %1477 = arith.addf %1472, %1476 : vector<32x8xf32>
    %c3_791 = arith.constant 3 : index
    %c4_792 = arith.constant 4 : index
    %c0_793 = arith.constant 0 : index
    %1478 = vector.load %arg1[%c3_791, %c4_792, %c0_793] : memref<4x96x8xf32, #tpu.memory_space<vmem>>, vector<1x1x8xf32>
    %1479 = vector.shape_cast %1478 : vector<1x1x8xf32> to vector<1x8xf32>
    %1480 = vector.broadcast %1479 : vector<1x8xf32> to vector<32x8xf32>
    %1481 = arith.mulf %3, %1480 : vector<32x8xf32>
    %c3_794 = arith.constant 3 : index
    %c5_795 = arith.constant 5 : index
    %c0_796 = arith.constant 0 : index
    %1482 = vector.load %arg1[%c3_794, %c5_795, %c0_796] : memref<4x96x8xf32, #tpu.memory_space<vmem>>, vector<1x1x8xf32>
    %1483 = vector.shape_cast %1482 : vector<1x1x8xf32> to vector<1x8xf32>
    %1484 = vector.broadcast %1483 : vector<1x8xf32> to vector<32x8xf32>
    %1485 = arith.mulf %6, %1484 : vector<32x8xf32>
    %1486 = arith.addf %1481, %1485 : vector<32x8xf32>
    %c3_797 = arith.constant 3 : index
    %c6_798 = arith.constant 6 : index
    %c0_799 = arith.constant 0 : index
    %1487 = vector.load %arg1[%c3_797, %c6_798, %c0_799] : memref<4x96x8xf32, #tpu.memory_space<vmem>>, vector<1x1x8xf32>
    %1488 = vector.shape_cast %1487 : vector<1x1x8xf32> to vector<1x8xf32>
    %1489 = vector.broadcast %1488 : vector<1x8xf32> to vector<32x8xf32>
    %1490 = arith.mulf %9, %1489 : vector<32x8xf32>
    %1491 = arith.addf %1486, %1490 : vector<32x8xf32>
    %c3_800 = arith.constant 3 : index
    %c7_801 = arith.constant 7 : index
    %c0_802 = arith.constant 0 : index
    %1492 = vector.load %arg1[%c3_800, %c7_801, %c0_802] : memref<4x96x8xf32, #tpu.memory_space<vmem>>, vector<1x1x8xf32>
    %1493 = vector.shape_cast %1492 : vector<1x1x8xf32> to vector<1x8xf32>
    %1494 = vector.broadcast %1493 : vector<1x8xf32> to vector<32x8xf32>
    %1495 = arith.mulf %12, %1494 : vector<32x8xf32>
    %1496 = arith.addf %1491, %1495 : vector<32x8xf32>
    %1497 = arith.maximumf %1477, %1496 : vector<32x8xf32>
    %c3_803 = arith.constant 3 : index
    %c8_804 = arith.constant 8 : index
    %c0_805 = arith.constant 0 : index
    %1498 = vector.load %arg1[%c3_803, %c8_804, %c0_805] : memref<4x96x8xf32, #tpu.memory_space<vmem>>, vector<1x1x8xf32>
    %1499 = vector.shape_cast %1498 : vector<1x1x8xf32> to vector<1x8xf32>
    %1500 = vector.broadcast %1499 : vector<1x8xf32> to vector<32x8xf32>
    %1501 = arith.mulf %3, %1500 : vector<32x8xf32>
    %c3_806 = arith.constant 3 : index
    %c9_807 = arith.constant 9 : index
    %c0_808 = arith.constant 0 : index
    %1502 = vector.load %arg1[%c3_806, %c9_807, %c0_808] : memref<4x96x8xf32, #tpu.memory_space<vmem>>, vector<1x1x8xf32>
    %1503 = vector.shape_cast %1502 : vector<1x1x8xf32> to vector<1x8xf32>
    %1504 = vector.broadcast %1503 : vector<1x8xf32> to vector<32x8xf32>
    %1505 = arith.mulf %6, %1504 : vector<32x8xf32>
    %1506 = arith.addf %1501, %1505 : vector<32x8xf32>
    %c3_809 = arith.constant 3 : index
    %c10_810 = arith.constant 10 : index
    %c0_811 = arith.constant 0 : index
    %1507 = vector.load %arg1[%c3_809, %c10_810, %c0_811] : memref<4x96x8xf32, #tpu.memory_space<vmem>>, vector<1x1x8xf32>
    %1508 = vector.shape_cast %1507 : vector<1x1x8xf32> to vector<1x8xf32>
    %1509 = vector.broadcast %1508 : vector<1x8xf32> to vector<32x8xf32>
    %1510 = arith.mulf %9, %1509 : vector<32x8xf32>
    %1511 = arith.addf %1506, %1510 : vector<32x8xf32>
    %c3_812 = arith.constant 3 : index
    %c11_813 = arith.constant 11 : index
    %c0_814 = arith.constant 0 : index
    %1512 = vector.load %arg1[%c3_812, %c11_813, %c0_814] : memref<4x96x8xf32, #tpu.memory_space<vmem>>, vector<1x1x8xf32>
    %1513 = vector.shape_cast %1512 : vector<1x1x8xf32> to vector<1x8xf32>
    %1514 = vector.broadcast %1513 : vector<1x8xf32> to vector<32x8xf32>
    %1515 = arith.mulf %12, %1514 : vector<32x8xf32>
    %1516 = arith.addf %1511, %1515 : vector<32x8xf32>
    %1517 = arith.maximumf %1497, %1516 : vector<32x8xf32>
    %c3_815 = arith.constant 3 : index
    %c12_816 = arith.constant 12 : index
    %c0_817 = arith.constant 0 : index
    %1518 = vector.load %arg1[%c3_815, %c12_816, %c0_817] : memref<4x96x8xf32, #tpu.memory_space<vmem>>, vector<1x1x8xf32>
    %1519 = vector.shape_cast %1518 : vector<1x1x8xf32> to vector<1x8xf32>
    %1520 = vector.broadcast %1519 : vector<1x8xf32> to vector<32x8xf32>
    %1521 = arith.mulf %3, %1520 : vector<32x8xf32>
    %c3_818 = arith.constant 3 : index
    %c13_819 = arith.constant 13 : index
    %c0_820 = arith.constant 0 : index
    %1522 = vector.load %arg1[%c3_818, %c13_819, %c0_820] : memref<4x96x8xf32, #tpu.memory_space<vmem>>, vector<1x1x8xf32>
    %1523 = vector.shape_cast %1522 : vector<1x1x8xf32> to vector<1x8xf32>
    %1524 = vector.broadcast %1523 : vector<1x8xf32> to vector<32x8xf32>
    %1525 = arith.mulf %6, %1524 : vector<32x8xf32>
    %1526 = arith.addf %1521, %1525 : vector<32x8xf32>
    %c3_821 = arith.constant 3 : index
    %c14_822 = arith.constant 14 : index
    %c0_823 = arith.constant 0 : index
    %1527 = vector.load %arg1[%c3_821, %c14_822, %c0_823] : memref<4x96x8xf32, #tpu.memory_space<vmem>>, vector<1x1x8xf32>
    %1528 = vector.shape_cast %1527 : vector<1x1x8xf32> to vector<1x8xf32>
    %1529 = vector.broadcast %1528 : vector<1x8xf32> to vector<32x8xf32>
    %1530 = arith.mulf %9, %1529 : vector<32x8xf32>
    %1531 = arith.addf %1526, %1530 : vector<32x8xf32>
    %c3_824 = arith.constant 3 : index
    %c15_825 = arith.constant 15 : index
    %c0_826 = arith.constant 0 : index
    %1532 = vector.load %arg1[%c3_824, %c15_825, %c0_826] : memref<4x96x8xf32, #tpu.memory_space<vmem>>, vector<1x1x8xf32>
    %1533 = vector.shape_cast %1532 : vector<1x1x8xf32> to vector<1x8xf32>
    %1534 = vector.broadcast %1533 : vector<1x8xf32> to vector<32x8xf32>
    %1535 = arith.mulf %12, %1534 : vector<32x8xf32>
    %1536 = arith.addf %1531, %1535 : vector<32x8xf32>
    %1537 = arith.maximumf %1517, %1536 : vector<32x8xf32>
    %c3_827 = arith.constant 3 : index
    %c16_828 = arith.constant 16 : index
    %c0_829 = arith.constant 0 : index
    %1538 = vector.load %arg1[%c3_827, %c16_828, %c0_829] : memref<4x96x8xf32, #tpu.memory_space<vmem>>, vector<1x1x8xf32>
    %1539 = vector.shape_cast %1538 : vector<1x1x8xf32> to vector<1x8xf32>
    %1540 = vector.broadcast %1539 : vector<1x8xf32> to vector<32x8xf32>
    %1541 = arith.mulf %3, %1540 : vector<32x8xf32>
    %c3_830 = arith.constant 3 : index
    %c17_831 = arith.constant 17 : index
    %c0_832 = arith.constant 0 : index
    %1542 = vector.load %arg1[%c3_830, %c17_831, %c0_832] : memref<4x96x8xf32, #tpu.memory_space<vmem>>, vector<1x1x8xf32>
    %1543 = vector.shape_cast %1542 : vector<1x1x8xf32> to vector<1x8xf32>
    %1544 = vector.broadcast %1543 : vector<1x8xf32> to vector<32x8xf32>
    %1545 = arith.mulf %6, %1544 : vector<32x8xf32>
    %1546 = arith.addf %1541, %1545 : vector<32x8xf32>
    %c3_833 = arith.constant 3 : index
    %c18_834 = arith.constant 18 : index
    %c0_835 = arith.constant 0 : index
    %1547 = vector.load %arg1[%c3_833, %c18_834, %c0_835] : memref<4x96x8xf32, #tpu.memory_space<vmem>>, vector<1x1x8xf32>
    %1548 = vector.shape_cast %1547 : vector<1x1x8xf32> to vector<1x8xf32>
    %1549 = vector.broadcast %1548 : vector<1x8xf32> to vector<32x8xf32>
    %1550 = arith.mulf %9, %1549 : vector<32x8xf32>
    %1551 = arith.addf %1546, %1550 : vector<32x8xf32>
    %c3_836 = arith.constant 3 : index
    %c19_837 = arith.constant 19 : index
    %c0_838 = arith.constant 0 : index
    %1552 = vector.load %arg1[%c3_836, %c19_837, %c0_838] : memref<4x96x8xf32, #tpu.memory_space<vmem>>, vector<1x1x8xf32>
    %1553 = vector.shape_cast %1552 : vector<1x1x8xf32> to vector<1x8xf32>
    %1554 = vector.broadcast %1553 : vector<1x8xf32> to vector<32x8xf32>
    %1555 = arith.mulf %12, %1554 : vector<32x8xf32>
    %1556 = arith.addf %1551, %1555 : vector<32x8xf32>
    %1557 = arith.maximumf %1537, %1556 : vector<32x8xf32>
    %c3_839 = arith.constant 3 : index
    %c20_840 = arith.constant 20 : index
    %c0_841 = arith.constant 0 : index
    %1558 = vector.load %arg1[%c3_839, %c20_840, %c0_841] : memref<4x96x8xf32, #tpu.memory_space<vmem>>, vector<1x1x8xf32>
    %1559 = vector.shape_cast %1558 : vector<1x1x8xf32> to vector<1x8xf32>
    %1560 = vector.broadcast %1559 : vector<1x8xf32> to vector<32x8xf32>
    %1561 = arith.mulf %3, %1560 : vector<32x8xf32>
    %c3_842 = arith.constant 3 : index
    %c21_843 = arith.constant 21 : index
    %c0_844 = arith.constant 0 : index
    %1562 = vector.load %arg1[%c3_842, %c21_843, %c0_844] : memref<4x96x8xf32, #tpu.memory_space<vmem>>, vector<1x1x8xf32>
    %1563 = vector.shape_cast %1562 : vector<1x1x8xf32> to vector<1x8xf32>
    %1564 = vector.broadcast %1563 : vector<1x8xf32> to vector<32x8xf32>
    %1565 = arith.mulf %6, %1564 : vector<32x8xf32>
    %1566 = arith.addf %1561, %1565 : vector<32x8xf32>
    %c3_845 = arith.constant 3 : index
    %c22_846 = arith.constant 22 : index
    %c0_847 = arith.constant 0 : index
    %1567 = vector.load %arg1[%c3_845, %c22_846, %c0_847] : memref<4x96x8xf32, #tpu.memory_space<vmem>>, vector<1x1x8xf32>
    %1568 = vector.shape_cast %1567 : vector<1x1x8xf32> to vector<1x8xf32>
    %1569 = vector.broadcast %1568 : vector<1x8xf32> to vector<32x8xf32>
    %1570 = arith.mulf %9, %1569 : vector<32x8xf32>
    %1571 = arith.addf %1566, %1570 : vector<32x8xf32>
    %c3_848 = arith.constant 3 : index
    %c23_849 = arith.constant 23 : index
    %c0_850 = arith.constant 0 : index
    %1572 = vector.load %arg1[%c3_848, %c23_849, %c0_850] : memref<4x96x8xf32, #tpu.memory_space<vmem>>, vector<1x1x8xf32>
    %1573 = vector.shape_cast %1572 : vector<1x1x8xf32> to vector<1x8xf32>
    %1574 = vector.broadcast %1573 : vector<1x8xf32> to vector<32x8xf32>
    %1575 = arith.mulf %12, %1574 : vector<32x8xf32>
    %1576 = arith.addf %1571, %1575 : vector<32x8xf32>
    %1577 = arith.maximumf %1557, %1576 : vector<32x8xf32>
    %c3_851 = arith.constant 3 : index
    %c24_852 = arith.constant 24 : index
    %c0_853 = arith.constant 0 : index
    %1578 = vector.load %arg1[%c3_851, %c24_852, %c0_853] : memref<4x96x8xf32, #tpu.memory_space<vmem>>, vector<1x1x8xf32>
    %1579 = vector.shape_cast %1578 : vector<1x1x8xf32> to vector<1x8xf32>
    %1580 = vector.broadcast %1579 : vector<1x8xf32> to vector<32x8xf32>
    %1581 = arith.mulf %3, %1580 : vector<32x8xf32>
    %c3_854 = arith.constant 3 : index
    %c25_855 = arith.constant 25 : index
    %c0_856 = arith.constant 0 : index
    %1582 = vector.load %arg1[%c3_854, %c25_855, %c0_856] : memref<4x96x8xf32, #tpu.memory_space<vmem>>, vector<1x1x8xf32>
    %1583 = vector.shape_cast %1582 : vector<1x1x8xf32> to vector<1x8xf32>
    %1584 = vector.broadcast %1583 : vector<1x8xf32> to vector<32x8xf32>
    %1585 = arith.mulf %6, %1584 : vector<32x8xf32>
    %1586 = arith.addf %1581, %1585 : vector<32x8xf32>
    %c3_857 = arith.constant 3 : index
    %c26_858 = arith.constant 26 : index
    %c0_859 = arith.constant 0 : index
    %1587 = vector.load %arg1[%c3_857, %c26_858, %c0_859] : memref<4x96x8xf32, #tpu.memory_space<vmem>>, vector<1x1x8xf32>
    %1588 = vector.shape_cast %1587 : vector<1x1x8xf32> to vector<1x8xf32>
    %1589 = vector.broadcast %1588 : vector<1x8xf32> to vector<32x8xf32>
    %1590 = arith.mulf %9, %1589 : vector<32x8xf32>
    %1591 = arith.addf %1586, %1590 : vector<32x8xf32>
    %c3_860 = arith.constant 3 : index
    %c27_861 = arith.constant 27 : index
    %c0_862 = arith.constant 0 : index
    %1592 = vector.load %arg1[%c3_860, %c27_861, %c0_862] : memref<4x96x8xf32, #tpu.memory_space<vmem>>, vector<1x1x8xf32>
    %1593 = vector.shape_cast %1592 : vector<1x1x8xf32> to vector<1x8xf32>
    %1594 = vector.broadcast %1593 : vector<1x8xf32> to vector<32x8xf32>
    %1595 = arith.mulf %12, %1594 : vector<32x8xf32>
    %1596 = arith.addf %1591, %1595 : vector<32x8xf32>
    %1597 = arith.maximumf %1577, %1596 : vector<32x8xf32>
    %c3_863 = arith.constant 3 : index
    %c28_864 = arith.constant 28 : index
    %c0_865 = arith.constant 0 : index
    %1598 = vector.load %arg1[%c3_863, %c28_864, %c0_865] : memref<4x96x8xf32, #tpu.memory_space<vmem>>, vector<1x1x8xf32>
    %1599 = vector.shape_cast %1598 : vector<1x1x8xf32> to vector<1x8xf32>
    %1600 = vector.broadcast %1599 : vector<1x8xf32> to vector<32x8xf32>
    %1601 = arith.mulf %3, %1600 : vector<32x8xf32>
    %c3_866 = arith.constant 3 : index
    %c29_867 = arith.constant 29 : index
    %c0_868 = arith.constant 0 : index
    %1602 = vector.load %arg1[%c3_866, %c29_867, %c0_868] : memref<4x96x8xf32, #tpu.memory_space<vmem>>, vector<1x1x8xf32>
    %1603 = vector.shape_cast %1602 : vector<1x1x8xf32> to vector<1x8xf32>
    %1604 = vector.broadcast %1603 : vector<1x8xf32> to vector<32x8xf32>
    %1605 = arith.mulf %6, %1604 : vector<32x8xf32>
    %1606 = arith.addf %1601, %1605 : vector<32x8xf32>
    %c3_869 = arith.constant 3 : index
    %c30_870 = arith.constant 30 : index
    %c0_871 = arith.constant 0 : index
    %1607 = vector.load %arg1[%c3_869, %c30_870, %c0_871] : memref<4x96x8xf32, #tpu.memory_space<vmem>>, vector<1x1x8xf32>
    %1608 = vector.shape_cast %1607 : vector<1x1x8xf32> to vector<1x8xf32>
    %1609 = vector.broadcast %1608 : vector<1x8xf32> to vector<32x8xf32>
    %1610 = arith.mulf %9, %1609 : vector<32x8xf32>
    %1611 = arith.addf %1606, %1610 : vector<32x8xf32>
    %c3_872 = arith.constant 3 : index
    %c31_873 = arith.constant 31 : index
    %c0_874 = arith.constant 0 : index
    %1612 = vector.load %arg1[%c3_872, %c31_873, %c0_874] : memref<4x96x8xf32, #tpu.memory_space<vmem>>, vector<1x1x8xf32>
    %1613 = vector.shape_cast %1612 : vector<1x1x8xf32> to vector<1x8xf32>
    %1614 = vector.broadcast %1613 : vector<1x8xf32> to vector<32x8xf32>
    %1615 = arith.mulf %12, %1614 : vector<32x8xf32>
    %1616 = arith.addf %1611, %1615 : vector<32x8xf32>
    %1617 = arith.maximumf %1597, %1616 : vector<32x8xf32>
    %c3_875 = arith.constant 3 : index
    %c32_876 = arith.constant 32 : index
    %c0_877 = arith.constant 0 : index
    %1618 = vector.load %arg1[%c3_875, %c32_876, %c0_877] : memref<4x96x8xf32, #tpu.memory_space<vmem>>, vector<1x1x8xf32>
    %1619 = vector.shape_cast %1618 : vector<1x1x8xf32> to vector<1x8xf32>
    %1620 = vector.broadcast %1619 : vector<1x8xf32> to vector<32x8xf32>
    %1621 = arith.mulf %3, %1620 : vector<32x8xf32>
    %c3_878 = arith.constant 3 : index
    %c33_879 = arith.constant 33 : index
    %c0_880 = arith.constant 0 : index
    %1622 = vector.load %arg1[%c3_878, %c33_879, %c0_880] : memref<4x96x8xf32, #tpu.memory_space<vmem>>, vector<1x1x8xf32>
    %1623 = vector.shape_cast %1622 : vector<1x1x8xf32> to vector<1x8xf32>
    %1624 = vector.broadcast %1623 : vector<1x8xf32> to vector<32x8xf32>
    %1625 = arith.mulf %6, %1624 : vector<32x8xf32>
    %1626 = arith.addf %1621, %1625 : vector<32x8xf32>
    %c3_881 = arith.constant 3 : index
    %c34_882 = arith.constant 34 : index
    %c0_883 = arith.constant 0 : index
    %1627 = vector.load %arg1[%c3_881, %c34_882, %c0_883] : memref<4x96x8xf32, #tpu.memory_space<vmem>>, vector<1x1x8xf32>
    %1628 = vector.shape_cast %1627 : vector<1x1x8xf32> to vector<1x8xf32>
    %1629 = vector.broadcast %1628 : vector<1x8xf32> to vector<32x8xf32>
    %1630 = arith.mulf %9, %1629 : vector<32x8xf32>
    %1631 = arith.addf %1626, %1630 : vector<32x8xf32>
    %c3_884 = arith.constant 3 : index
    %c35_885 = arith.constant 35 : index
    %c0_886 = arith.constant 0 : index
    %1632 = vector.load %arg1[%c3_884, %c35_885, %c0_886] : memref<4x96x8xf32, #tpu.memory_space<vmem>>, vector<1x1x8xf32>
    %1633 = vector.shape_cast %1632 : vector<1x1x8xf32> to vector<1x8xf32>
    %1634 = vector.broadcast %1633 : vector<1x8xf32> to vector<32x8xf32>
    %1635 = arith.mulf %12, %1634 : vector<32x8xf32>
    %1636 = arith.addf %1631, %1635 : vector<32x8xf32>
    %1637 = arith.maximumf %1617, %1636 : vector<32x8xf32>
    %c3_887 = arith.constant 3 : index
    %c36_888 = arith.constant 36 : index
    %c0_889 = arith.constant 0 : index
    %1638 = vector.load %arg1[%c3_887, %c36_888, %c0_889] : memref<4x96x8xf32, #tpu.memory_space<vmem>>, vector<1x1x8xf32>
    %1639 = vector.shape_cast %1638 : vector<1x1x8xf32> to vector<1x8xf32>
    %1640 = vector.broadcast %1639 : vector<1x8xf32> to vector<32x8xf32>
    %1641 = arith.mulf %3, %1640 : vector<32x8xf32>
    %c3_890 = arith.constant 3 : index
    %c37_891 = arith.constant 37 : index
    %c0_892 = arith.constant 0 : index
    %1642 = vector.load %arg1[%c3_890, %c37_891, %c0_892] : memref<4x96x8xf32, #tpu.memory_space<vmem>>, vector<1x1x8xf32>
    %1643 = vector.shape_cast %1642 : vector<1x1x8xf32> to vector<1x8xf32>
    %1644 = vector.broadcast %1643 : vector<1x8xf32> to vector<32x8xf32>
    %1645 = arith.mulf %6, %1644 : vector<32x8xf32>
    %1646 = arith.addf %1641, %1645 : vector<32x8xf32>
    %c3_893 = arith.constant 3 : index
    %c38_894 = arith.constant 38 : index
    %c0_895 = arith.constant 0 : index
    %1647 = vector.load %arg1[%c3_893, %c38_894, %c0_895] : memref<4x96x8xf32, #tpu.memory_space<vmem>>, vector<1x1x8xf32>
    %1648 = vector.shape_cast %1647 : vector<1x1x8xf32> to vector<1x8xf32>
    %1649 = vector.broadcast %1648 : vector<1x8xf32> to vector<32x8xf32>
    %1650 = arith.mulf %9, %1649 : vector<32x8xf32>
    %1651 = arith.addf %1646, %1650 : vector<32x8xf32>
    %c3_896 = arith.constant 3 : index
    %c39_897 = arith.constant 39 : index
    %c0_898 = arith.constant 0 : index
    %1652 = vector.load %arg1[%c3_896, %c39_897, %c0_898] : memref<4x96x8xf32, #tpu.memory_space<vmem>>, vector<1x1x8xf32>
    %1653 = vector.shape_cast %1652 : vector<1x1x8xf32> to vector<1x8xf32>
    %1654 = vector.broadcast %1653 : vector<1x8xf32> to vector<32x8xf32>
    %1655 = arith.mulf %12, %1654 : vector<32x8xf32>
    %1656 = arith.addf %1651, %1655 : vector<32x8xf32>
    %1657 = arith.maximumf %1637, %1656 : vector<32x8xf32>
    %c3_899 = arith.constant 3 : index
    %c40_900 = arith.constant 40 : index
    %c0_901 = arith.constant 0 : index
    %1658 = vector.load %arg1[%c3_899, %c40_900, %c0_901] : memref<4x96x8xf32, #tpu.memory_space<vmem>>, vector<1x1x8xf32>
    %1659 = vector.shape_cast %1658 : vector<1x1x8xf32> to vector<1x8xf32>
    %1660 = vector.broadcast %1659 : vector<1x8xf32> to vector<32x8xf32>
    %1661 = arith.mulf %3, %1660 : vector<32x8xf32>
    %c3_902 = arith.constant 3 : index
    %c41_903 = arith.constant 41 : index
    %c0_904 = arith.constant 0 : index
    %1662 = vector.load %arg1[%c3_902, %c41_903, %c0_904] : memref<4x96x8xf32, #tpu.memory_space<vmem>>, vector<1x1x8xf32>
    %1663 = vector.shape_cast %1662 : vector<1x1x8xf32> to vector<1x8xf32>
    %1664 = vector.broadcast %1663 : vector<1x8xf32> to vector<32x8xf32>
    %1665 = arith.mulf %6, %1664 : vector<32x8xf32>
    %1666 = arith.addf %1661, %1665 : vector<32x8xf32>
    %c3_905 = arith.constant 3 : index
    %c42_906 = arith.constant 42 : index
    %c0_907 = arith.constant 0 : index
    %1667 = vector.load %arg1[%c3_905, %c42_906, %c0_907] : memref<4x96x8xf32, #tpu.memory_space<vmem>>, vector<1x1x8xf32>
    %1668 = vector.shape_cast %1667 : vector<1x1x8xf32> to vector<1x8xf32>
    %1669 = vector.broadcast %1668 : vector<1x8xf32> to vector<32x8xf32>
    %1670 = arith.mulf %9, %1669 : vector<32x8xf32>
    %1671 = arith.addf %1666, %1670 : vector<32x8xf32>
    %c3_908 = arith.constant 3 : index
    %c43_909 = arith.constant 43 : index
    %c0_910 = arith.constant 0 : index
    %1672 = vector.load %arg1[%c3_908, %c43_909, %c0_910] : memref<4x96x8xf32, #tpu.memory_space<vmem>>, vector<1x1x8xf32>
    %1673 = vector.shape_cast %1672 : vector<1x1x8xf32> to vector<1x8xf32>
    %1674 = vector.broadcast %1673 : vector<1x8xf32> to vector<32x8xf32>
    %1675 = arith.mulf %12, %1674 : vector<32x8xf32>
    %1676 = arith.addf %1671, %1675 : vector<32x8xf32>
    %1677 = arith.maximumf %1657, %1676 : vector<32x8xf32>
    %c3_911 = arith.constant 3 : index
    %c44_912 = arith.constant 44 : index
    %c0_913 = arith.constant 0 : index
    %1678 = vector.load %arg1[%c3_911, %c44_912, %c0_913] : memref<4x96x8xf32, #tpu.memory_space<vmem>>, vector<1x1x8xf32>
    %1679 = vector.shape_cast %1678 : vector<1x1x8xf32> to vector<1x8xf32>
    %1680 = vector.broadcast %1679 : vector<1x8xf32> to vector<32x8xf32>
    %1681 = arith.mulf %3, %1680 : vector<32x8xf32>
    %c3_914 = arith.constant 3 : index
    %c45_915 = arith.constant 45 : index
    %c0_916 = arith.constant 0 : index
    %1682 = vector.load %arg1[%c3_914, %c45_915, %c0_916] : memref<4x96x8xf32, #tpu.memory_space<vmem>>, vector<1x1x8xf32>
    %1683 = vector.shape_cast %1682 : vector<1x1x8xf32> to vector<1x8xf32>
    %1684 = vector.broadcast %1683 : vector<1x8xf32> to vector<32x8xf32>
    %1685 = arith.mulf %6, %1684 : vector<32x8xf32>
    %1686 = arith.addf %1681, %1685 : vector<32x8xf32>
    %c3_917 = arith.constant 3 : index
    %c46_918 = arith.constant 46 : index
    %c0_919 = arith.constant 0 : index
    %1687 = vector.load %arg1[%c3_917, %c46_918, %c0_919] : memref<4x96x8xf32, #tpu.memory_space<vmem>>, vector<1x1x8xf32>
    %1688 = vector.shape_cast %1687 : vector<1x1x8xf32> to vector<1x8xf32>
    %1689 = vector.broadcast %1688 : vector<1x8xf32> to vector<32x8xf32>
    %1690 = arith.mulf %9, %1689 : vector<32x8xf32>
    %1691 = arith.addf %1686, %1690 : vector<32x8xf32>
    %c3_920 = arith.constant 3 : index
    %c47_921 = arith.constant 47 : index
    %c0_922 = arith.constant 0 : index
    %1692 = vector.load %arg1[%c3_920, %c47_921, %c0_922] : memref<4x96x8xf32, #tpu.memory_space<vmem>>, vector<1x1x8xf32>
    %1693 = vector.shape_cast %1692 : vector<1x1x8xf32> to vector<1x8xf32>
    %1694 = vector.broadcast %1693 : vector<1x8xf32> to vector<32x8xf32>
    %1695 = arith.mulf %12, %1694 : vector<32x8xf32>
    %1696 = arith.addf %1691, %1695 : vector<32x8xf32>
    %1697 = arith.maximumf %1677, %1696 : vector<32x8xf32>
    %c3_923 = arith.constant 3 : index
    %c48_924 = arith.constant 48 : index
    %c0_925 = arith.constant 0 : index
    %1698 = vector.load %arg1[%c3_923, %c48_924, %c0_925] : memref<4x96x8xf32, #tpu.memory_space<vmem>>, vector<1x1x8xf32>
    %1699 = vector.shape_cast %1698 : vector<1x1x8xf32> to vector<1x8xf32>
    %1700 = vector.broadcast %1699 : vector<1x8xf32> to vector<32x8xf32>
    %1701 = arith.mulf %3, %1700 : vector<32x8xf32>
    %c3_926 = arith.constant 3 : index
    %c49_927 = arith.constant 49 : index
    %c0_928 = arith.constant 0 : index
    %1702 = vector.load %arg1[%c3_926, %c49_927, %c0_928] : memref<4x96x8xf32, #tpu.memory_space<vmem>>, vector<1x1x8xf32>
    %1703 = vector.shape_cast %1702 : vector<1x1x8xf32> to vector<1x8xf32>
    %1704 = vector.broadcast %1703 : vector<1x8xf32> to vector<32x8xf32>
    %1705 = arith.mulf %6, %1704 : vector<32x8xf32>
    %1706 = arith.addf %1701, %1705 : vector<32x8xf32>
    %c3_929 = arith.constant 3 : index
    %c50_930 = arith.constant 50 : index
    %c0_931 = arith.constant 0 : index
    %1707 = vector.load %arg1[%c3_929, %c50_930, %c0_931] : memref<4x96x8xf32, #tpu.memory_space<vmem>>, vector<1x1x8xf32>
    %1708 = vector.shape_cast %1707 : vector<1x1x8xf32> to vector<1x8xf32>
    %1709 = vector.broadcast %1708 : vector<1x8xf32> to vector<32x8xf32>
    %1710 = arith.mulf %9, %1709 : vector<32x8xf32>
    %1711 = arith.addf %1706, %1710 : vector<32x8xf32>
    %c3_932 = arith.constant 3 : index
    %c51_933 = arith.constant 51 : index
    %c0_934 = arith.constant 0 : index
    %1712 = vector.load %arg1[%c3_932, %c51_933, %c0_934] : memref<4x96x8xf32, #tpu.memory_space<vmem>>, vector<1x1x8xf32>
    %1713 = vector.shape_cast %1712 : vector<1x1x8xf32> to vector<1x8xf32>
    %1714 = vector.broadcast %1713 : vector<1x8xf32> to vector<32x8xf32>
    %1715 = arith.mulf %12, %1714 : vector<32x8xf32>
    %1716 = arith.addf %1711, %1715 : vector<32x8xf32>
    %1717 = arith.maximumf %1697, %1716 : vector<32x8xf32>
    %c3_935 = arith.constant 3 : index
    %c52_936 = arith.constant 52 : index
    %c0_937 = arith.constant 0 : index
    %1718 = vector.load %arg1[%c3_935, %c52_936, %c0_937] : memref<4x96x8xf32, #tpu.memory_space<vmem>>, vector<1x1x8xf32>
    %1719 = vector.shape_cast %1718 : vector<1x1x8xf32> to vector<1x8xf32>
    %1720 = vector.broadcast %1719 : vector<1x8xf32> to vector<32x8xf32>
    %1721 = arith.mulf %3, %1720 : vector<32x8xf32>
    %c3_938 = arith.constant 3 : index
    %c53_939 = arith.constant 53 : index
    %c0_940 = arith.constant 0 : index
    %1722 = vector.load %arg1[%c3_938, %c53_939, %c0_940] : memref<4x96x8xf32, #tpu.memory_space<vmem>>, vector<1x1x8xf32>
    %1723 = vector.shape_cast %1722 : vector<1x1x8xf32> to vector<1x8xf32>
    %1724 = vector.broadcast %1723 : vector<1x8xf32> to vector<32x8xf32>
    %1725 = arith.mulf %6, %1724 : vector<32x8xf32>
    %1726 = arith.addf %1721, %1725 : vector<32x8xf32>
    %c3_941 = arith.constant 3 : index
    %c54_942 = arith.constant 54 : index
    %c0_943 = arith.constant 0 : index
    %1727 = vector.load %arg1[%c3_941, %c54_942, %c0_943] : memref<4x96x8xf32, #tpu.memory_space<vmem>>, vector<1x1x8xf32>
    %1728 = vector.shape_cast %1727 : vector<1x1x8xf32> to vector<1x8xf32>
    %1729 = vector.broadcast %1728 : vector<1x8xf32> to vector<32x8xf32>
    %1730 = arith.mulf %9, %1729 : vector<32x8xf32>
    %1731 = arith.addf %1726, %1730 : vector<32x8xf32>
    %c3_944 = arith.constant 3 : index
    %c55_945 = arith.constant 55 : index
    %c0_946 = arith.constant 0 : index
    %1732 = vector.load %arg1[%c3_944, %c55_945, %c0_946] : memref<4x96x8xf32, #tpu.memory_space<vmem>>, vector<1x1x8xf32>
    %1733 = vector.shape_cast %1732 : vector<1x1x8xf32> to vector<1x8xf32>
    %1734 = vector.broadcast %1733 : vector<1x8xf32> to vector<32x8xf32>
    %1735 = arith.mulf %12, %1734 : vector<32x8xf32>
    %1736 = arith.addf %1731, %1735 : vector<32x8xf32>
    %1737 = arith.maximumf %1717, %1736 : vector<32x8xf32>
    %c3_947 = arith.constant 3 : index
    %c56_948 = arith.constant 56 : index
    %c0_949 = arith.constant 0 : index
    %1738 = vector.load %arg1[%c3_947, %c56_948, %c0_949] : memref<4x96x8xf32, #tpu.memory_space<vmem>>, vector<1x1x8xf32>
    %1739 = vector.shape_cast %1738 : vector<1x1x8xf32> to vector<1x8xf32>
    %1740 = vector.broadcast %1739 : vector<1x8xf32> to vector<32x8xf32>
    %1741 = arith.mulf %3, %1740 : vector<32x8xf32>
    %c3_950 = arith.constant 3 : index
    %c57_951 = arith.constant 57 : index
    %c0_952 = arith.constant 0 : index
    %1742 = vector.load %arg1[%c3_950, %c57_951, %c0_952] : memref<4x96x8xf32, #tpu.memory_space<vmem>>, vector<1x1x8xf32>
    %1743 = vector.shape_cast %1742 : vector<1x1x8xf32> to vector<1x8xf32>
    %1744 = vector.broadcast %1743 : vector<1x8xf32> to vector<32x8xf32>
    %1745 = arith.mulf %6, %1744 : vector<32x8xf32>
    %1746 = arith.addf %1741, %1745 : vector<32x8xf32>
    %c3_953 = arith.constant 3 : index
    %c58_954 = arith.constant 58 : index
    %c0_955 = arith.constant 0 : index
    %1747 = vector.load %arg1[%c3_953, %c58_954, %c0_955] : memref<4x96x8xf32, #tpu.memory_space<vmem>>, vector<1x1x8xf32>
    %1748 = vector.shape_cast %1747 : vector<1x1x8xf32> to vector<1x8xf32>
    %1749 = vector.broadcast %1748 : vector<1x8xf32> to vector<32x8xf32>
    %1750 = arith.mulf %9, %1749 : vector<32x8xf32>
    %1751 = arith.addf %1746, %1750 : vector<32x8xf32>
    %c3_956 = arith.constant 3 : index
    %c59_957 = arith.constant 59 : index
    %c0_958 = arith.constant 0 : index
    %1752 = vector.load %arg1[%c3_956, %c59_957, %c0_958] : memref<4x96x8xf32, #tpu.memory_space<vmem>>, vector<1x1x8xf32>
    %1753 = vector.shape_cast %1752 : vector<1x1x8xf32> to vector<1x8xf32>
    %1754 = vector.broadcast %1753 : vector<1x8xf32> to vector<32x8xf32>
    %1755 = arith.mulf %12, %1754 : vector<32x8xf32>
    %1756 = arith.addf %1751, %1755 : vector<32x8xf32>
    %1757 = arith.maximumf %1737, %1756 : vector<32x8xf32>
    %c3_959 = arith.constant 3 : index
    %c60_960 = arith.constant 60 : index
    %c0_961 = arith.constant 0 : index
    %1758 = vector.load %arg1[%c3_959, %c60_960, %c0_961] : memref<4x96x8xf32, #tpu.memory_space<vmem>>, vector<1x1x8xf32>
    %1759 = vector.shape_cast %1758 : vector<1x1x8xf32> to vector<1x8xf32>
    %1760 = vector.broadcast %1759 : vector<1x8xf32> to vector<32x8xf32>
    %1761 = arith.mulf %3, %1760 : vector<32x8xf32>
    %c3_962 = arith.constant 3 : index
    %c61_963 = arith.constant 61 : index
    %c0_964 = arith.constant 0 : index
    %1762 = vector.load %arg1[%c3_962, %c61_963, %c0_964] : memref<4x96x8xf32, #tpu.memory_space<vmem>>, vector<1x1x8xf32>
    %1763 = vector.shape_cast %1762 : vector<1x1x8xf32> to vector<1x8xf32>
    %1764 = vector.broadcast %1763 : vector<1x8xf32> to vector<32x8xf32>
    %1765 = arith.mulf %6, %1764 : vector<32x8xf32>
    %1766 = arith.addf %1761, %1765 : vector<32x8xf32>
    %c3_965 = arith.constant 3 : index
    %c62_966 = arith.constant 62 : index
    %c0_967 = arith.constant 0 : index
    %1767 = vector.load %arg1[%c3_965, %c62_966, %c0_967] : memref<4x96x8xf32, #tpu.memory_space<vmem>>, vector<1x1x8xf32>
    %1768 = vector.shape_cast %1767 : vector<1x1x8xf32> to vector<1x8xf32>
    %1769 = vector.broadcast %1768 : vector<1x8xf32> to vector<32x8xf32>
    %1770 = arith.mulf %9, %1769 : vector<32x8xf32>
    %1771 = arith.addf %1766, %1770 : vector<32x8xf32>
    %c3_968 = arith.constant 3 : index
    %c63_969 = arith.constant 63 : index
    %c0_970 = arith.constant 0 : index
    %1772 = vector.load %arg1[%c3_968, %c63_969, %c0_970] : memref<4x96x8xf32, #tpu.memory_space<vmem>>, vector<1x1x8xf32>
    %1773 = vector.shape_cast %1772 : vector<1x1x8xf32> to vector<1x8xf32>
    %1774 = vector.broadcast %1773 : vector<1x8xf32> to vector<32x8xf32>
    %1775 = arith.mulf %12, %1774 : vector<32x8xf32>
    %1776 = arith.addf %1771, %1775 : vector<32x8xf32>
    %1777 = arith.maximumf %1757, %1776 : vector<32x8xf32>
    %c3_971 = arith.constant 3 : index
    %c64_972 = arith.constant 64 : index
    %c0_973 = arith.constant 0 : index
    %1778 = vector.load %arg1[%c3_971, %c64_972, %c0_973] : memref<4x96x8xf32, #tpu.memory_space<vmem>>, vector<1x1x8xf32>
    %1779 = vector.shape_cast %1778 : vector<1x1x8xf32> to vector<1x8xf32>
    %1780 = vector.broadcast %1779 : vector<1x8xf32> to vector<32x8xf32>
    %1781 = arith.mulf %3, %1780 : vector<32x8xf32>
    %c3_974 = arith.constant 3 : index
    %c65_975 = arith.constant 65 : index
    %c0_976 = arith.constant 0 : index
    %1782 = vector.load %arg1[%c3_974, %c65_975, %c0_976] : memref<4x96x8xf32, #tpu.memory_space<vmem>>, vector<1x1x8xf32>
    %1783 = vector.shape_cast %1782 : vector<1x1x8xf32> to vector<1x8xf32>
    %1784 = vector.broadcast %1783 : vector<1x8xf32> to vector<32x8xf32>
    %1785 = arith.mulf %6, %1784 : vector<32x8xf32>
    %1786 = arith.addf %1781, %1785 : vector<32x8xf32>
    %c3_977 = arith.constant 3 : index
    %c66_978 = arith.constant 66 : index
    %c0_979 = arith.constant 0 : index
    %1787 = vector.load %arg1[%c3_977, %c66_978, %c0_979] : memref<4x96x8xf32, #tpu.memory_space<vmem>>, vector<1x1x8xf32>
    %1788 = vector.shape_cast %1787 : vector<1x1x8xf32> to vector<1x8xf32>
    %1789 = vector.broadcast %1788 : vector<1x8xf32> to vector<32x8xf32>
    %1790 = arith.mulf %9, %1789 : vector<32x8xf32>
    %1791 = arith.addf %1786, %1790 : vector<32x8xf32>
    %c3_980 = arith.constant 3 : index
    %c67_981 = arith.constant 67 : index
    %c0_982 = arith.constant 0 : index
    %1792 = vector.load %arg1[%c3_980, %c67_981, %c0_982] : memref<4x96x8xf32, #tpu.memory_space<vmem>>, vector<1x1x8xf32>
    %1793 = vector.shape_cast %1792 : vector<1x1x8xf32> to vector<1x8xf32>
    %1794 = vector.broadcast %1793 : vector<1x8xf32> to vector<32x8xf32>
    %1795 = arith.mulf %12, %1794 : vector<32x8xf32>
    %1796 = arith.addf %1791, %1795 : vector<32x8xf32>
    %1797 = arith.maximumf %1777, %1796 : vector<32x8xf32>
    %c3_983 = arith.constant 3 : index
    %c68_984 = arith.constant 68 : index
    %c0_985 = arith.constant 0 : index
    %1798 = vector.load %arg1[%c3_983, %c68_984, %c0_985] : memref<4x96x8xf32, #tpu.memory_space<vmem>>, vector<1x1x8xf32>
    %1799 = vector.shape_cast %1798 : vector<1x1x8xf32> to vector<1x8xf32>
    %1800 = vector.broadcast %1799 : vector<1x8xf32> to vector<32x8xf32>
    %1801 = arith.mulf %3, %1800 : vector<32x8xf32>
    %c3_986 = arith.constant 3 : index
    %c69_987 = arith.constant 69 : index
    %c0_988 = arith.constant 0 : index
    %1802 = vector.load %arg1[%c3_986, %c69_987, %c0_988] : memref<4x96x8xf32, #tpu.memory_space<vmem>>, vector<1x1x8xf32>
    %1803 = vector.shape_cast %1802 : vector<1x1x8xf32> to vector<1x8xf32>
    %1804 = vector.broadcast %1803 : vector<1x8xf32> to vector<32x8xf32>
    %1805 = arith.mulf %6, %1804 : vector<32x8xf32>
    %1806 = arith.addf %1801, %1805 : vector<32x8xf32>
    %c3_989 = arith.constant 3 : index
    %c70_990 = arith.constant 70 : index
    %c0_991 = arith.constant 0 : index
    %1807 = vector.load %arg1[%c3_989, %c70_990, %c0_991] : memref<4x96x8xf32, #tpu.memory_space<vmem>>, vector<1x1x8xf32>
    %1808 = vector.shape_cast %1807 : vector<1x1x8xf32> to vector<1x8xf32>
    %1809 = vector.broadcast %1808 : vector<1x8xf32> to vector<32x8xf32>
    %1810 = arith.mulf %9, %1809 : vector<32x8xf32>
    %1811 = arith.addf %1806, %1810 : vector<32x8xf32>
    %c3_992 = arith.constant 3 : index
    %c71_993 = arith.constant 71 : index
    %c0_994 = arith.constant 0 : index
    %1812 = vector.load %arg1[%c3_992, %c71_993, %c0_994] : memref<4x96x8xf32, #tpu.memory_space<vmem>>, vector<1x1x8xf32>
    %1813 = vector.shape_cast %1812 : vector<1x1x8xf32> to vector<1x8xf32>
    %1814 = vector.broadcast %1813 : vector<1x8xf32> to vector<32x8xf32>
    %1815 = arith.mulf %12, %1814 : vector<32x8xf32>
    %1816 = arith.addf %1811, %1815 : vector<32x8xf32>
    %1817 = arith.maximumf %1797, %1816 : vector<32x8xf32>
    %c3_995 = arith.constant 3 : index
    %c72_996 = arith.constant 72 : index
    %c0_997 = arith.constant 0 : index
    %1818 = vector.load %arg1[%c3_995, %c72_996, %c0_997] : memref<4x96x8xf32, #tpu.memory_space<vmem>>, vector<1x1x8xf32>
    %1819 = vector.shape_cast %1818 : vector<1x1x8xf32> to vector<1x8xf32>
    %1820 = vector.broadcast %1819 : vector<1x8xf32> to vector<32x8xf32>
    %1821 = arith.mulf %3, %1820 : vector<32x8xf32>
    %c3_998 = arith.constant 3 : index
    %c73_999 = arith.constant 73 : index
    %c0_1000 = arith.constant 0 : index
    %1822 = vector.load %arg1[%c3_998, %c73_999, %c0_1000] : memref<4x96x8xf32, #tpu.memory_space<vmem>>, vector<1x1x8xf32>
    %1823 = vector.shape_cast %1822 : vector<1x1x8xf32> to vector<1x8xf32>
    %1824 = vector.broadcast %1823 : vector<1x8xf32> to vector<32x8xf32>
    %1825 = arith.mulf %6, %1824 : vector<32x8xf32>
    %1826 = arith.addf %1821, %1825 : vector<32x8xf32>
    %c3_1001 = arith.constant 3 : index
    %c74_1002 = arith.constant 74 : index
    %c0_1003 = arith.constant 0 : index
    %1827 = vector.load %arg1[%c3_1001, %c74_1002, %c0_1003] : memref<4x96x8xf32, #tpu.memory_space<vmem>>, vector<1x1x8xf32>
    %1828 = vector.shape_cast %1827 : vector<1x1x8xf32> to vector<1x8xf32>
    %1829 = vector.broadcast %1828 : vector<1x8xf32> to vector<32x8xf32>
    %1830 = arith.mulf %9, %1829 : vector<32x8xf32>
    %1831 = arith.addf %1826, %1830 : vector<32x8xf32>
    %c3_1004 = arith.constant 3 : index
    %c75_1005 = arith.constant 75 : index
    %c0_1006 = arith.constant 0 : index
    %1832 = vector.load %arg1[%c3_1004, %c75_1005, %c0_1006] : memref<4x96x8xf32, #tpu.memory_space<vmem>>, vector<1x1x8xf32>
    %1833 = vector.shape_cast %1832 : vector<1x1x8xf32> to vector<1x8xf32>
    %1834 = vector.broadcast %1833 : vector<1x8xf32> to vector<32x8xf32>
    %1835 = arith.mulf %12, %1834 : vector<32x8xf32>
    %1836 = arith.addf %1831, %1835 : vector<32x8xf32>
    %1837 = arith.maximumf %1817, %1836 : vector<32x8xf32>
    %c3_1007 = arith.constant 3 : index
    %c76_1008 = arith.constant 76 : index
    %c0_1009 = arith.constant 0 : index
    %1838 = vector.load %arg1[%c3_1007, %c76_1008, %c0_1009] : memref<4x96x8xf32, #tpu.memory_space<vmem>>, vector<1x1x8xf32>
    %1839 = vector.shape_cast %1838 : vector<1x1x8xf32> to vector<1x8xf32>
    %1840 = vector.broadcast %1839 : vector<1x8xf32> to vector<32x8xf32>
    %1841 = arith.mulf %3, %1840 : vector<32x8xf32>
    %c3_1010 = arith.constant 3 : index
    %c77_1011 = arith.constant 77 : index
    %c0_1012 = arith.constant 0 : index
    %1842 = vector.load %arg1[%c3_1010, %c77_1011, %c0_1012] : memref<4x96x8xf32, #tpu.memory_space<vmem>>, vector<1x1x8xf32>
    %1843 = vector.shape_cast %1842 : vector<1x1x8xf32> to vector<1x8xf32>
    %1844 = vector.broadcast %1843 : vector<1x8xf32> to vector<32x8xf32>
    %1845 = arith.mulf %6, %1844 : vector<32x8xf32>
    %1846 = arith.addf %1841, %1845 : vector<32x8xf32>
    %c3_1013 = arith.constant 3 : index
    %c78_1014 = arith.constant 78 : index
    %c0_1015 = arith.constant 0 : index
    %1847 = vector.load %arg1[%c3_1013, %c78_1014, %c0_1015] : memref<4x96x8xf32, #tpu.memory_space<vmem>>, vector<1x1x8xf32>
    %1848 = vector.shape_cast %1847 : vector<1x1x8xf32> to vector<1x8xf32>
    %1849 = vector.broadcast %1848 : vector<1x8xf32> to vector<32x8xf32>
    %1850 = arith.mulf %9, %1849 : vector<32x8xf32>
    %1851 = arith.addf %1846, %1850 : vector<32x8xf32>
    %c3_1016 = arith.constant 3 : index
    %c79_1017 = arith.constant 79 : index
    %c0_1018 = arith.constant 0 : index
    %1852 = vector.load %arg1[%c3_1016, %c79_1017, %c0_1018] : memref<4x96x8xf32, #tpu.memory_space<vmem>>, vector<1x1x8xf32>
    %1853 = vector.shape_cast %1852 : vector<1x1x8xf32> to vector<1x8xf32>
    %1854 = vector.broadcast %1853 : vector<1x8xf32> to vector<32x8xf32>
    %1855 = arith.mulf %12, %1854 : vector<32x8xf32>
    %1856 = arith.addf %1851, %1855 : vector<32x8xf32>
    %1857 = arith.maximumf %1837, %1856 : vector<32x8xf32>
    %c3_1019 = arith.constant 3 : index
    %c80_1020 = arith.constant 80 : index
    %c0_1021 = arith.constant 0 : index
    %1858 = vector.load %arg1[%c3_1019, %c80_1020, %c0_1021] : memref<4x96x8xf32, #tpu.memory_space<vmem>>, vector<1x1x8xf32>
    %1859 = vector.shape_cast %1858 : vector<1x1x8xf32> to vector<1x8xf32>
    %1860 = vector.broadcast %1859 : vector<1x8xf32> to vector<32x8xf32>
    %1861 = arith.mulf %3, %1860 : vector<32x8xf32>
    %c3_1022 = arith.constant 3 : index
    %c81_1023 = arith.constant 81 : index
    %c0_1024 = arith.constant 0 : index
    %1862 = vector.load %arg1[%c3_1022, %c81_1023, %c0_1024] : memref<4x96x8xf32, #tpu.memory_space<vmem>>, vector<1x1x8xf32>
    %1863 = vector.shape_cast %1862 : vector<1x1x8xf32> to vector<1x8xf32>
    %1864 = vector.broadcast %1863 : vector<1x8xf32> to vector<32x8xf32>
    %1865 = arith.mulf %6, %1864 : vector<32x8xf32>
    %1866 = arith.addf %1861, %1865 : vector<32x8xf32>
    %c3_1025 = arith.constant 3 : index
    %c82_1026 = arith.constant 82 : index
    %c0_1027 = arith.constant 0 : index
    %1867 = vector.load %arg1[%c3_1025, %c82_1026, %c0_1027] : memref<4x96x8xf32, #tpu.memory_space<vmem>>, vector<1x1x8xf32>
    %1868 = vector.shape_cast %1867 : vector<1x1x8xf32> to vector<1x8xf32>
    %1869 = vector.broadcast %1868 : vector<1x8xf32> to vector<32x8xf32>
    %1870 = arith.mulf %9, %1869 : vector<32x8xf32>
    %1871 = arith.addf %1866, %1870 : vector<32x8xf32>
    %c3_1028 = arith.constant 3 : index
    %c83_1029 = arith.constant 83 : index
    %c0_1030 = arith.constant 0 : index
    %1872 = vector.load %arg1[%c3_1028, %c83_1029, %c0_1030] : memref<4x96x8xf32, #tpu.memory_space<vmem>>, vector<1x1x8xf32>
    %1873 = vector.shape_cast %1872 : vector<1x1x8xf32> to vector<1x8xf32>
    %1874 = vector.broadcast %1873 : vector<1x8xf32> to vector<32x8xf32>
    %1875 = arith.mulf %12, %1874 : vector<32x8xf32>
    %1876 = arith.addf %1871, %1875 : vector<32x8xf32>
    %1877 = arith.maximumf %1857, %1876 : vector<32x8xf32>
    %c3_1031 = arith.constant 3 : index
    %c84_1032 = arith.constant 84 : index
    %c0_1033 = arith.constant 0 : index
    %1878 = vector.load %arg1[%c3_1031, %c84_1032, %c0_1033] : memref<4x96x8xf32, #tpu.memory_space<vmem>>, vector<1x1x8xf32>
    %1879 = vector.shape_cast %1878 : vector<1x1x8xf32> to vector<1x8xf32>
    %1880 = vector.broadcast %1879 : vector<1x8xf32> to vector<32x8xf32>
    %1881 = arith.mulf %3, %1880 : vector<32x8xf32>
    %c3_1034 = arith.constant 3 : index
    %c85_1035 = arith.constant 85 : index
    %c0_1036 = arith.constant 0 : index
    %1882 = vector.load %arg1[%c3_1034, %c85_1035, %c0_1036] : memref<4x96x8xf32, #tpu.memory_space<vmem>>, vector<1x1x8xf32>
    %1883 = vector.shape_cast %1882 : vector<1x1x8xf32> to vector<1x8xf32>
    %1884 = vector.broadcast %1883 : vector<1x8xf32> to vector<32x8xf32>
    %1885 = arith.mulf %6, %1884 : vector<32x8xf32>
    %1886 = arith.addf %1881, %1885 : vector<32x8xf32>
    %c3_1037 = arith.constant 3 : index
    %c86_1038 = arith.constant 86 : index
    %c0_1039 = arith.constant 0 : index
    %1887 = vector.load %arg1[%c3_1037, %c86_1038, %c0_1039] : memref<4x96x8xf32, #tpu.memory_space<vmem>>, vector<1x1x8xf32>
    %1888 = vector.shape_cast %1887 : vector<1x1x8xf32> to vector<1x8xf32>
    %1889 = vector.broadcast %1888 : vector<1x8xf32> to vector<32x8xf32>
    %1890 = arith.mulf %9, %1889 : vector<32x8xf32>
    %1891 = arith.addf %1886, %1890 : vector<32x8xf32>
    %c3_1040 = arith.constant 3 : index
    %c87_1041 = arith.constant 87 : index
    %c0_1042 = arith.constant 0 : index
    %1892 = vector.load %arg1[%c3_1040, %c87_1041, %c0_1042] : memref<4x96x8xf32, #tpu.memory_space<vmem>>, vector<1x1x8xf32>
    %1893 = vector.shape_cast %1892 : vector<1x1x8xf32> to vector<1x8xf32>
    %1894 = vector.broadcast %1893 : vector<1x8xf32> to vector<32x8xf32>
    %1895 = arith.mulf %12, %1894 : vector<32x8xf32>
    %1896 = arith.addf %1891, %1895 : vector<32x8xf32>
    %1897 = arith.maximumf %1877, %1896 : vector<32x8xf32>
    %c3_1043 = arith.constant 3 : index
    %c88_1044 = arith.constant 88 : index
    %c0_1045 = arith.constant 0 : index
    %1898 = vector.load %arg1[%c3_1043, %c88_1044, %c0_1045] : memref<4x96x8xf32, #tpu.memory_space<vmem>>, vector<1x1x8xf32>
    %1899 = vector.shape_cast %1898 : vector<1x1x8xf32> to vector<1x8xf32>
    %1900 = vector.broadcast %1899 : vector<1x8xf32> to vector<32x8xf32>
    %1901 = arith.mulf %3, %1900 : vector<32x8xf32>
    %c3_1046 = arith.constant 3 : index
    %c89_1047 = arith.constant 89 : index
    %c0_1048 = arith.constant 0 : index
    %1902 = vector.load %arg1[%c3_1046, %c89_1047, %c0_1048] : memref<4x96x8xf32, #tpu.memory_space<vmem>>, vector<1x1x8xf32>
    %1903 = vector.shape_cast %1902 : vector<1x1x8xf32> to vector<1x8xf32>
    %1904 = vector.broadcast %1903 : vector<1x8xf32> to vector<32x8xf32>
    %1905 = arith.mulf %6, %1904 : vector<32x8xf32>
    %1906 = arith.addf %1901, %1905 : vector<32x8xf32>
    %c3_1049 = arith.constant 3 : index
    %c90_1050 = arith.constant 90 : index
    %c0_1051 = arith.constant 0 : index
    %1907 = vector.load %arg1[%c3_1049, %c90_1050, %c0_1051] : memref<4x96x8xf32, #tpu.memory_space<vmem>>, vector<1x1x8xf32>
    %1908 = vector.shape_cast %1907 : vector<1x1x8xf32> to vector<1x8xf32>
    %1909 = vector.broadcast %1908 : vector<1x8xf32> to vector<32x8xf32>
    %1910 = arith.mulf %9, %1909 : vector<32x8xf32>
    %1911 = arith.addf %1906, %1910 : vector<32x8xf32>
    %c3_1052 = arith.constant 3 : index
    %c91_1053 = arith.constant 91 : index
    %c0_1054 = arith.constant 0 : index
    %1912 = vector.load %arg1[%c3_1052, %c91_1053, %c0_1054] : memref<4x96x8xf32, #tpu.memory_space<vmem>>, vector<1x1x8xf32>
    %1913 = vector.shape_cast %1912 : vector<1x1x8xf32> to vector<1x8xf32>
    %1914 = vector.broadcast %1913 : vector<1x8xf32> to vector<32x8xf32>
    %1915 = arith.mulf %12, %1914 : vector<32x8xf32>
    %1916 = arith.addf %1911, %1915 : vector<32x8xf32>
    %1917 = arith.maximumf %1897, %1916 : vector<32x8xf32>
    %c3_1055 = arith.constant 3 : index
    %c92_1056 = arith.constant 92 : index
    %c0_1057 = arith.constant 0 : index
    %1918 = vector.load %arg1[%c3_1055, %c92_1056, %c0_1057] : memref<4x96x8xf32, #tpu.memory_space<vmem>>, vector<1x1x8xf32>
    %1919 = vector.shape_cast %1918 : vector<1x1x8xf32> to vector<1x8xf32>
    %1920 = vector.broadcast %1919 : vector<1x8xf32> to vector<32x8xf32>
    %1921 = arith.mulf %3, %1920 : vector<32x8xf32>
    %c3_1058 = arith.constant 3 : index
    %c93_1059 = arith.constant 93 : index
    %c0_1060 = arith.constant 0 : index
    %1922 = vector.load %arg1[%c3_1058, %c93_1059, %c0_1060] : memref<4x96x8xf32, #tpu.memory_space<vmem>>, vector<1x1x8xf32>
    %1923 = vector.shape_cast %1922 : vector<1x1x8xf32> to vector<1x8xf32>
    %1924 = vector.broadcast %1923 : vector<1x8xf32> to vector<32x8xf32>
    %1925 = arith.mulf %6, %1924 : vector<32x8xf32>
    %1926 = arith.addf %1921, %1925 : vector<32x8xf32>
    %c3_1061 = arith.constant 3 : index
    %c94_1062 = arith.constant 94 : index
    %c0_1063 = arith.constant 0 : index
    %1927 = vector.load %arg1[%c3_1061, %c94_1062, %c0_1063] : memref<4x96x8xf32, #tpu.memory_space<vmem>>, vector<1x1x8xf32>
    %1928 = vector.shape_cast %1927 : vector<1x1x8xf32> to vector<1x8xf32>
    %1929 = vector.broadcast %1928 : vector<1x8xf32> to vector<32x8xf32>
    %1930 = arith.mulf %9, %1929 : vector<32x8xf32>
    %1931 = arith.addf %1926, %1930 : vector<32x8xf32>
    %c3_1064 = arith.constant 3 : index
    %c95_1065 = arith.constant 95 : index
    %c0_1066 = arith.constant 0 : index
    %1932 = vector.load %arg1[%c3_1064, %c95_1065, %c0_1066] : memref<4x96x8xf32, #tpu.memory_space<vmem>>, vector<1x1x8xf32>
    %1933 = vector.shape_cast %1932 : vector<1x1x8xf32> to vector<1x8xf32>
    %1934 = vector.broadcast %1933 : vector<1x8xf32> to vector<32x8xf32>
    %1935 = arith.mulf %12, %1934 : vector<32x8xf32>
    %1936 = arith.addf %1931, %1935 : vector<32x8xf32>
    %1937 = arith.maximumf %1917, %1936 : vector<32x8xf32>
    %c3_1067 = arith.constant 3 : index
    %c0_1068 = arith.constant 0 : index
    %c0_1069 = arith.constant 0 : index
    %1938 = vector.load %arg3[%c3_1067, %c0_1068, %c0_1069] : memref<4x32x8xf32, #tpu.memory_space<vmem>>, vector<1x32x8xf32>
    %1939 = vector.shape_cast %1938 : vector<1x32x8xf32> to vector<32x8xf32>
    %1940 = vector.shape_cast %1937 : vector<32x8xf32> to vector<1x32x8xf32>
    tpu.vector_store %arg3[%c3_1067, %c0_1068, %c0_1069], %1940 {strides = array<i32>} : memref<4x32x8xf32, #tpu.memory_space<vmem>>, vector<1x32x8xf32>,
    return
  }
  func.func @transform_0(%arg0: i32) -> (i32, i32, i32) {
    %c0_i32 = arith.constant 0 : i32
    %c0_i32_0 = arith.constant 0 : i32
    %c0_i32_1 = arith.constant 0 : i32
    return %arg0, %c0_i32, %c0_i32_0 : i32, i32, i32
  }
  func.func @transform_1(%arg0: i32) -> (i32, i32) {
    %c0_i32 = arith.constant 0 : i32
    %c0_i32_0 = arith.constant 0 : i32
    %c0_i32_1 = arith.constant 0 : i32
    return %c0_i32, %c0_i32_0 : i32, i32
  }
  func.func @transform_2(%arg0: i32) -> (i32, i32, i32) {
    %c0_i32 = arith.constant 0 : i32
    %c0_i32_0 = arith.constant 0 : i32
    %c0_i32_1 = arith.constant 0 : i32
    return %arg0, %c0_i32, %c0_i32_0 : i32, i32, i32
  }
}

module attributes {stable_mosaic.version = 11 : i64} {
  func.func @_ff_block_kernel(%arg0: i32, %arg1: memref<32x32xf32, #tpu.memory_space<vmem>>, %arg2: memref<1x32xf32, #tpu.memory_space<vmem>>, %arg3: memref<1x32xf32, #tpu.memory_space<vmem>>, %arg4: memref<32x64xf32, #tpu.memory_space<vmem>>, %arg5: memref<1x64xf32, #tpu.memory_space<vmem>>, %arg6: memref<64x32xf32, #tpu.memory_space<vmem>>, %arg7: memref<1x32xf32, #tpu.memory_space<vmem>>, %arg8: memref<32x32xf32, #tpu.memory_space<vmem>>) attributes {dimension_semantics = [#tpu.dimension_semantics<parallel>], iteration_bounds = array<i64: 1>, scalar_prefetch = 0 : i64, scratch_operands = 0 : i64, tpu.core_type = #tpu.core_type<tc>, window_params = [{transform_indices = @transform_0, window_bounds = array<i64: 32, 32>}, {pipeline_mode = #tpu.pipeline_mode<synchronous>, transform_indices = @transform_1, window_bounds = array<i64: 1, 32>}, {pipeline_mode = #tpu.pipeline_mode<synchronous>, transform_indices = @transform_2, window_bounds = array<i64: 1, 32>}, {pipeline_mode = #tpu.pipeline_mode<synchronous>, transform_indices = @transform_3, window_bounds = array<i64: 32, 64>}, {pipeline_mode = #tpu.pipeline_mode<synchronous>, transform_indices = @transform_4, window_bounds = array<i64: 1, 64>}, {pipeline_mode = #tpu.pipeline_mode<synchronous>, transform_indices = @transform_5, window_bounds = array<i64: 64, 32>}, {pipeline_mode = #tpu.pipeline_mode<synchronous>, transform_indices = @transform_6, window_bounds = array<i64: 1, 32>}, {transform_indices = @transform_7, window_bounds = array<i64: 32, 32>}]} {
    %c0 = arith.constant 0 : index
    %c0_0 = arith.constant 0 : index
    %0 = vector.load %arg1[%c0, %c0_0] : memref<32x32xf32, #tpu.memory_space<vmem>>, vector<32x32xf32>
    %cst = arith.constant dense<0.000000e+00> : vector<32xf32>
    %1 = vector.multi_reduction <add>, %0, %cst [1] : vector<32x32xf32> to vector<32xf32>
    %2 = vector.shape_cast %1 : vector<32xf32> to vector<32x1xf32>
    %cst_1 = arith.constant 3.200000e+01 : f32
    %3 = vector.broadcast %cst_1 : f32 to vector<32x1xf32>
    %4 = arith.divf %2, %3 : vector<32x1xf32>
    %5 = vector.broadcast %4 : vector<32x1xf32> to vector<32x32xf32>
    %6 = arith.subf %0, %5 : vector<32x32xf32>
    %7 = arith.mulf %6, %6 : vector<32x32xf32>
    %cst_2 = arith.constant dense<0.000000e+00> : vector<32xf32>
    %8 = vector.multi_reduction <add>, %7, %cst_2 [1] : vector<32x32xf32> to vector<32xf32>
    %9 = vector.shape_cast %8 : vector<32xf32> to vector<32x1xf32>
    %cst_3 = arith.constant 3.200000e+01 : f32
    %10 = vector.broadcast %cst_3 : f32 to vector<32x1xf32>
    %11 = arith.divf %9, %10 : vector<32x1xf32>
    %12 = vector.broadcast %4 : vector<32x1xf32> to vector<32x32xf32>
    %13 = arith.subf %0, %12 : vector<32x32xf32>
    %cst_4 = arith.constant 9.99999974E-6 : f32
    %14 = vector.broadcast %cst_4 : f32 to vector<32x1xf32>
    %15 = arith.addf %11, %14 : vector<32x1xf32>
    %16 = math.rsqrt %15 : vector<32x1xf32>
    %17 = vector.broadcast %16 : vector<32x1xf32> to vector<32x32xf32>
    %18 = arith.mulf %13, %17 : vector<32x32xf32>
    %c0_5 = arith.constant 0 : index
    %c0_6 = arith.constant 0 : index
    %19 = vector.load %arg2[%c0_5, %c0_6] : memref<1x32xf32, #tpu.memory_space<vmem>>, vector<1x32xf32>
    %20 = vector.broadcast %19 : vector<1x32xf32> to vector<32x32xf32>
    %21 = arith.mulf %18, %20 : vector<32x32xf32>
    %c0_7 = arith.constant 0 : index
    %c0_8 = arith.constant 0 : index
    %22 = vector.load %arg3[%c0_7, %c0_8] : memref<1x32xf32, #tpu.memory_space<vmem>>, vector<1x32xf32>
    %23 = vector.broadcast %22 : vector<1x32xf32> to vector<32x32xf32>
    %24 = arith.addf %21, %23 : vector<32x32xf32>
    %c0_9 = arith.constant 0 : index
    %c0_10 = arith.constant 0 : index
    %25 = vector.load %arg4[%c0_9, %c0_10] : memref<32x64xf32, #tpu.memory_space<vmem>>, vector<32x64xf32>
    %cst_11 = arith.constant dense<0.000000e+00> : vector<32x64xf32>
    %26 = tpu.matmul %24, %25, %cst_11 {dimension_numbers = #tpu.dot_dimension_numbers<[1], [0], [0], [1], [0, 0, 1, 1], [], []>} : vector<32x32xf32>, vector<32x64xf32>, vector<32x64xf32> -> vector<32x64xf32>
    %c0_12 = arith.constant 0 : index
    %c0_13 = arith.constant 0 : index
    %27 = vector.load %arg5[%c0_12, %c0_13] : memref<1x64xf32, #tpu.memory_space<vmem>>, vector<1x64xf32>
    %28 = vector.broadcast %27 : vector<1x64xf32> to vector<32x64xf32>
    %29 = arith.addf %26, %28 : vector<32x64xf32>
    %30 = math.absf %29 : vector<32x64xf32>
    %cst_14 = arith.constant 0.707106769 : f32
    %31 = vector.broadcast %cst_14 : f32 to vector<32x64xf32>
    %32 = arith.mulf %30, %31 : vector<32x64xf32>
    %cst_15 = arith.constant 0.327591091 : f32
    %33 = vector.broadcast %cst_15 : f32 to vector<32x64xf32>
    %34 = arith.mulf %33, %32 : vector<32x64xf32>
    %cst_16 = arith.constant 1.000000e+00 : f32
    %35 = vector.broadcast %cst_16 : f32 to vector<32x64xf32>
    %36 = arith.addf %35, %34 : vector<32x64xf32>
    %cst_17 = arith.constant 1.000000e+00 : f32
    %37 = vector.broadcast %cst_17 : f32 to vector<32x64xf32>
    %38 = arith.divf %37, %36 : vector<32x64xf32>
    %cst_18 = arith.constant 1.06140542 : f32
    %39 = vector.broadcast %cst_18 : f32 to vector<32x64xf32>
    %40 = arith.mulf %39, %38 : vector<32x64xf32>
    %cst_19 = arith.constant 1.45315206 : f32
    %41 = vector.broadcast %cst_19 : f32 to vector<32x64xf32>
    %42 = arith.subf %40, %41 : vector<32x64xf32>
    %43 = arith.mulf %42, %38 : vector<32x64xf32>
    %cst_20 = arith.constant 1.42141378 : f32
    %44 = vector.broadcast %cst_20 : f32 to vector<32x64xf32>
    %45 = arith.addf %43, %44 : vector<32x64xf32>
    %46 = arith.mulf %45, %38 : vector<32x64xf32>
    %cst_21 = arith.constant 0.284496725 : f32
    %47 = vector.broadcast %cst_21 : f32 to vector<32x64xf32>
    %48 = arith.subf %46, %47 : vector<32x64xf32>
    %49 = arith.mulf %48, %38 : vector<32x64xf32>
    %cst_22 = arith.constant 0.254829586 : f32
    %50 = vector.broadcast %cst_22 : f32 to vector<32x64xf32>
    %51 = arith.addf %49, %50 : vector<32x64xf32>
    %52 = arith.mulf %51, %38 : vector<32x64xf32>
    %cst_23 = arith.constant 0.000000e+00 : f32
    %53 = vector.broadcast %cst_23 : f32 to vector<32x64xf32>
    %54 = arith.subf %53, %32 : vector<32x64xf32>
    %55 = arith.mulf %54, %32 : vector<32x64xf32>
    %56 = math.exp %55 : vector<32x64xf32>
    %57 = arith.mulf %52, %56 : vector<32x64xf32>
    %cst_24 = arith.constant 1.000000e+00 : f32
    %58 = vector.broadcast %cst_24 : f32 to vector<32x64xf32>
    %59 = arith.subf %58, %57 : vector<32x64xf32>
    %cst_25 = arith.constant 0.000000e+00 : f32
    %60 = vector.broadcast %cst_25 : f32 to vector<32x64xf32>
    %61 = arith.cmpf oge, %29, %60 : vector<32x64xf32>
    %cst_26 = arith.constant 0.000000e+00 : f32
    %62 = vector.broadcast %cst_26 : f32 to vector<32x64xf32>
    %63 = arith.subf %62, %59 : vector<32x64xf32>
    %64 = arith.select %61, %59, %63 : vector<32x64xi1>, vector<32x64xf32>
    %cst_27 = arith.constant 5.000000e-01 : f32
    %65 = vector.broadcast %cst_27 : f32 to vector<32x64xf32>
    %66 = arith.mulf %65, %29 : vector<32x64xf32>
    %cst_28 = arith.constant 1.000000e+00 : f32
    %67 = vector.broadcast %cst_28 : f32 to vector<32x64xf32>
    %68 = arith.addf %67, %64 : vector<32x64xf32>
    %69 = arith.mulf %66, %68 : vector<32x64xf32>
    %c0_29 = arith.constant 0 : index
    %c0_30 = arith.constant 0 : index
    %70 = vector.load %arg6[%c0_29, %c0_30] : memref<64x32xf32, #tpu.memory_space<vmem>>, vector<64x32xf32>
    %cst_31 = arith.constant dense<0.000000e+00> : vector<32x32xf32>
    %71 = tpu.matmul %69, %70, %cst_31 {dimension_numbers = #tpu.dot_dimension_numbers<[1], [0], [0], [1], [0, 0, 1, 1], [], []>} : vector<32x64xf32>, vector<64x32xf32>, vector<32x32xf32> -> vector<32x32xf32>
    %c0_32 = arith.constant 0 : index
    %c0_33 = arith.constant 0 : index
    %72 = vector.load %arg7[%c0_32, %c0_33] : memref<1x32xf32, #tpu.memory_space<vmem>>, vector<1x32xf32>
    %73 = vector.broadcast %72 : vector<1x32xf32> to vector<32x32xf32>
    %74 = arith.addf %71, %73 : vector<32x32xf32>
    %75 = arith.addf %74, %0 : vector<32x32xf32>
    %c0_34 = arith.constant 0 : index
    %c0_35 = arith.constant 0 : index
    %76 = vector.load %arg8[%c0_34, %c0_35] : memref<32x32xf32, #tpu.memory_space<vmem>>, vector<32x32xf32>
    tpu.vector_store %arg8[%c0_34, %c0_35], %75 {strides = array<i32>} : memref<32x32xf32, #tpu.memory_space<vmem>>, vector<32x32xf32>,
    return
  }
  func.func @transform_0(%arg0: i32) -> (i32, i32) {
    %c0_i32 = arith.constant 0 : i32
    %c0_i32_0 = arith.constant 0 : i32
    return %arg0, %c0_i32 : i32, i32
  }
  func.func @transform_1(%arg0: i32) -> (i32, i32) {
    %c0_i32 = arith.constant 0 : i32
    %c0_i32_0 = arith.constant 0 : i32
    %c0_i32_1 = arith.constant 0 : i32
    return %c0_i32, %c0_i32_0 : i32, i32
  }
  func.func @transform_2(%arg0: i32) -> (i32, i32) {
    %c0_i32 = arith.constant 0 : i32
    %c0_i32_0 = arith.constant 0 : i32
    %c0_i32_1 = arith.constant 0 : i32
    return %c0_i32, %c0_i32_0 : i32, i32
  }
  func.func @transform_3(%arg0: i32) -> (i32, i32) {
    %c0_i32 = arith.constant 0 : i32
    %c0_i32_0 = arith.constant 0 : i32
    %c0_i32_1 = arith.constant 0 : i32
    return %c0_i32, %c0_i32_0 : i32, i32
  }
  func.func @transform_4(%arg0: i32) -> (i32, i32) {
    %c0_i32 = arith.constant 0 : i32
    %c0_i32_0 = arith.constant 0 : i32
    %c0_i32_1 = arith.constant 0 : i32
    return %c0_i32, %c0_i32_0 : i32, i32
  }
  func.func @transform_5(%arg0: i32) -> (i32, i32) {
    %c0_i32 = arith.constant 0 : i32
    %c0_i32_0 = arith.constant 0 : i32
    %c0_i32_1 = arith.constant 0 : i32
    return %c0_i32, %c0_i32_0 : i32, i32
  }
  func.func @transform_6(%arg0: i32) -> (i32, i32) {
    %c0_i32 = arith.constant 0 : i32
    %c0_i32_0 = arith.constant 0 : i32
    %c0_i32_1 = arith.constant 0 : i32
    return %c0_i32, %c0_i32_0 : i32, i32
  }
  func.func @transform_7(%arg0: i32) -> (i32, i32) {
    %c0_i32 = arith.constant 0 : i32
    %c0_i32_0 = arith.constant 0 : i32
    return %arg0, %c0_i32 : i32, i32
  }
}

</mosaic_0001>

<llo_original>
// kernel: custom-call.17
$region0: #{custom-call.17}
  %s0 = inlined_call_operand.vmem [shape: f32[2,16], index: 0, kind: output, shape index: {}]

// kernel: pst_transformer_forward.5
$region0: #{pst_transformer_forward.5}
  #allocation0 [shape = 'u32[]', space=smem, size = 0x4, offset = 0x4, fixed_abs, tag = 'smem constant byte address 0x4 - core index']
  #allocation1 [shape = 'u32[144,128]{1,0:T(1,128)}', space=vmem, size = 0x12000, scoped, tag = 'internal scratch']
  %s0 = inlined_call_operand.vmem [shape: f32[32,32], index: 0, kind: input, shape index: {}]
  %s1 = inlined_call_operand.vmem [shape: f32[1,32], index: 1, kind: input, shape index: {}]
  %s2 = inlined_call_operand.vmem [shape: f32[1,32], index: 2, kind: input, shape index: {}]
  %s3 = inlined_call_operand.vmem [shape: f32[32,64], index: 3, kind: input, shape index: {}]
  %s4 = inlined_call_operand.vmem [shape: f32[1,64], index: 4, kind: input, shape index: {}]
  %s5 = inlined_call_operand.vmem [shape: f32[64,32], index: 5, kind: input, shape index: {}]
  %s6 = inlined_call_operand.vmem [shape: f32[1,32], index: 6, kind: input, shape index: {}]
  %s7 = inlined_call_operand.hbm [shape: f32[32,32], index: 7, kind: output, shape index: {}]
  %s8 = sld [smem:[#allocation0]]
  $region38: #{pst_transformer_forward.5} parent=0
    _
  %s10 = ssub.s32 1, %s8
  %s11 = scalar_select 0, %s10, %s8
  $region1: #{pst_transformer_forward.5} parent=0
    #allocation2 [shape = 'u8[16384]{0}', space=vmem, size = 0x4000, scoped, tag = 'output window, operand 0, single buffered']
    #allocation3 [shape = 's32[1]{0}', space=sflag, size = 0x4, scoped, tag = 'scoped memory for pst_transformer_forward.5']
    %12 = vsyncpa [#allocation3], 0
    // Predicated region
    $region2: #{pst_transformer_forward.5} parent=1 // pred_check
      _
    $region3: #{pst_transformer_forward.5} parent=1 // pred_check_branch
      %14 = sbr.rel (0) target = $region5
    $region4: #{pst_transformer_forward.5} parent=1 // pred_region
      _
    $region5: #{pst_transformer_forward.5} parent=1 // pred_fallthru
      _
    // Predicated region
    $region6: #{pst_transformer_forward.5} parent=1 // pred_check
      _
    $region7: #{pst_transformer_forward.5} parent=1 // pred_check_branch
      %16 = sbr.rel (0) target = $region9
    $region8: #{pst_transformer_forward.5} parent=1 // pred_region
      _
    $region9: #{pst_transformer_forward.5} parent=1 // pred_fallthru
      _
    // Predicated region
    $region10: #{pst_transformer_forward.5} parent=1 // pred_check
      _
    $region11: #{pst_transformer_forward.5} parent=1 // pred_check_branch
      %18 = sbr.rel (0) target = $region13
    $region12: #{pst_transformer_forward.5} parent=1 // pred_region
      _
    $region13: #{pst_transformer_forward.5} parent=1 // pred_fallthru
      _
    // Predicated region
    $region14: #{pst_transformer_forward.5} parent=1 // pred_check
      _
    $region15: #{pst_transformer_forward.5} parent=1 // pred_check_branch
      %20 = sbr.rel (0) target = $region17
    $region16: #{pst_transformer_forward.5} parent=1 // pred_region
      _
    $region17: #{pst_transformer_forward.5} parent=1 // pred_fallthru
      _
    // Predicated region
    $region18: #{pst_transformer_forward.5} parent=1 // pred_check
      _
    $region19: #{pst_transformer_forward.5} parent=1 // pred_check_branch
      %22 = sbr.rel (0) target = $region21
    $region20: #{pst_transformer_forward.5} parent=1 // pred_region
      _
    $region21: #{pst_transformer_forward.5} parent=1 // pred_fallthru
      _
    // Predicated region
    $region22: #{pst_transformer_forward.5} parent=1 // pred_check
      _
    $region23: #{pst_transformer_forward.5} parent=1 // pred_check_branch
      %24 = sbr.rel (0) target = $region25
    $region24: #{pst_transformer_forward.5} parent=1 // pred_region
      _
    $region25: #{pst_transformer_forward.5} parent=1 // pred_fallthru
      _
    // Predicated region
    $region26: #{pst_transformer_forward.5} parent=1 // pred_check
      _
    $region27: #{pst_transformer_forward.5} parent=1 // pred_check_branch
      %26 = sbr.rel (0) target = $region29
    $region28: #{pst_transformer_forward.5} parent=1 // pred_region
      _
    $region29: #{pst_transformer_forward.5} parent=1 // pred_fallthru
      _
    %v27 = vld [vmem:[%s0] sm:$0xff]
    %v28 = vld [vmem:[%s0 + $0x8] sm:$0xff]
    %v29 = vld [vmem:[%s0 + $0x10] sm:$0xff]
    %v30 = vld [vmem:[%s0 + $0x18] sm:$0xff]
    %vm31 = vcmask 261120
    %v32 = vsel %vm31, %v27, 0.0
    %33 = vadd.xlane.f32.xlu0 %v32
    %v34 = vpop.xlane.xlu0 %33
    %v35 = vsel %vm31, %v28, 0.0
    %36 = vadd.xlane.f32.xlu0 %v35
    %v37 = vpop.xlane.xlu0 %36
    %v38 = vsel %vm31, %v29, 0.0
    %39 = vadd.xlane.f32.xlu0 %v38
    %v40 = vpop.xlane.xlu0 %39
    %v41 = vsel %vm31, %v30, 0.0
    %42 = vadd.xlane.f32.xlu0 %v41
    %v43 = vpop.xlane.xlu0 %42
    %v44 = vrcp.pop 32.0
    %v45 = vmul.f32 %v34, %v44
    %v46 = vmul.f32 %v37, %v44
    %v47 = vmul.f32 %v40, %v44
    %v48 = vmul.f32 %v43, %v44
    %v49 = vsub.f32 %v27, %v45
    %v50 = vsub.f32 %v28, %v46
    %v51 = vsub.f32 %v29, %v47
    %v52 = vsub.f32 %v30, %v48
    %v53 = vmul.f32 %v49, %v49
    %v54 = vmul.f32 %v50, %v50
    %v55 = vmul.f32 %v51, %v51
    %v56 = vmul.f32 %v52, %v52
    %v57 = vsel %vm31, %v53, 0.0
    %58 = vadd.xlane.f32.xlu0 %v57
    %v59 = vpop.xlane.xlu0 %58
    %v60 = vsel %vm31, %v54, 0.0
    %61 = vadd.xlane.f32.xlu0 %v60
    %v62 = vpop.xlane.xlu0 %61
    %v63 = vsel %vm31, %v55, 0.0
    %64 = vadd.xlane.f32.xlu0 %v63
    %v65 = vpop.xlane.xlu0 %64
    %v66 = vsel %vm31, %v56, 0.0
    %67 = vadd.xlane.f32.xlu0 %v66
    %v68 = vpop.xlane.xlu0 %67
    %v69 = vmul.f32 %v59, %v44
    %v70 = vmul.f32 %v62, %v44
    %v71 = vmul.f32 %v65, %v44
    %v72 = vmul.f32 %v68, %v44
    %v73 = vadd.f32 %v69, 1e-05
    %v74 = vadd.f32 %v70, 1e-05
    %v75 = vadd.f32 %v71, 1e-05
    %v76 = vadd.f32 %v72, 1e-05
    %v77 = vrsqrt.pop %v73
    %v78 = vrsqrt.pop %v74
    %v79 = vrsqrt.pop %v75
    %v80 = vrsqrt.pop %v76
    %v81 = vmul.f32 %v49, %v77
    %v82 = vmul.f32 %v50, %v78
    %v83 = vmul.f32 %v51, %v79
    %v84 = vmul.f32 %v52, %v80
    %v85 = vld [vmem:[%s1] sm:$0x1]
    %v87 = vlaneseq
    %v88 = vshrl.u32 %v87, 7
    %v89 = vsub.s32 0, %v88
    %v90 = vrot.slane %v85, %v89
    %v92 = vmul.f32 %v81, %v90
    %v93 = vmul.f32 %v82, %v90
    %v94 = vmul.f32 %v83, %v90
    %v95 = vmul.f32 %v84, %v90
    %v96 = vld [vmem:[%s2] sm:$0x1]
    %v98 = vlaneseq
    %v99 = vshrl.u32 %v98, 7
    %v100 = vsub.s32 0, %v99
    %v101 = vrot.slane %v96, %v100
    %v103 = vadd.f32 %v92, %v101
    %v104 = vadd.f32 %v93, %v101
    %v105 = vadd.f32 %v94, %v101
    %v106 = vadd.f32 %v95, %v101
    %v107 = vld [vmem:[%s3] sm:$0xff]
    %v108 = vld [vmem:[%s3 + $0x8] sm:$0xff]
    %v109 = vld [vmem:[%s3 + $0x10] sm:$0xff]
    %v110 = vld [vmem:[%s3 + $0x18] sm:$0xff]
    %v111 = vld [vmem:[%s4] sm:$0x1]
    %v113 = vlaneseq
    %v114 = vshrl.u32 %v113, 7
    %v115 = vsub.s32 0, %v114
    %v116 = vrot.slane %v111, %v115
    %v119 = vsel %vm31, %v103, 0
    %v122 = vsel %vm31, %v104, 0
    %v125 = vsel %vm31, %v105, 0
    %v128 = vsel %vm31, %v106, 0
    %130 = vmatprep.subr.mxu0 0.0
    %131 = vmatpush1.msra.mxu0 %v107
    %132 = vmatprep.subr.mxu0 0.0
    %133 = vmatpush1.msra.mxu0 %v108
    %134 = vmatprep.subr.mxu0 0.0
    %135 = vmatpush1.msra.mxu0 %v109
    %136 = vmatprep.subr.mxu0 0.0
    %137 = vmatpush1.msra.mxu0 %v110
    %138 = vmatprep.subr.mxu0 0.0
    %139 = vmatpush1.msra.mxu0 0.0
    %140 = vmatprep.subr.mxu0 0.0
    %141 = vmatpush1.msra.mxu0 0.0
    %142 = vmatprep.subr.mxu0 0.0
    %143 = vmatpush1.msra.mxu0 0.0
    %144 = vmatprep.subr.mxu0 0.0
    %145 = vmatpush1.msra.mxu0 0.0
    %146 = vmatprep.subr.mxu0 0.0
    %147 = vmatpush1.msra.mxu0 0.0
    %148 = vmatprep.subr.mxu0 0.0
    %149 = vmatpush1.msra.mxu0 0.0
    %150 = vmatprep.subr.mxu0 0.0
    %151 = vmatpush1.msra.mxu0 0.0
    %152 = vmatprep.subr.mxu0 0.0
    %153 = vmatpush1.msra.mxu0 0.0
    %154 = vmatprep.subr.mxu0 0.0
    %155 = vmatpush1.msra.mxu0 0.0
    %156 = vmatprep.subr.mxu0 0.0
    %157 = vmatpush1.msra.mxu0 0.0
    %158 = vmatprep.subr.mxu0 0.0
    %159 = vmatpush1.msra.mxu0 0.0
    %160 = vmatprep.subr.mxu0 0.0
    %161 = vmatpush1.msra.mxu0 0.0
    %162 = vmatprep.subr.mxu0 0.0
    %163 = vmatpush1.msra.mxu0 0.0
    %164 = vmatprep.subr.mxu0 0.0
    %165 = vmatpush1.msra.mxu0 0.0
    %166 = vmatprep.subr.mxu0 0.0
    %167 = vmatpush1.msra.mxu0 0.0
    %168 = vmatprep.subr.mxu0 0.0
    %169 = vmatpush1.msra.mxu0 0.0
    %170 = vmatprep.subr.mxu0 0.0
    %171 = vmatpush1.msra.mxu0 0.0
    %172 = vmatprep.subr.mxu0 0.0
    %173 = vmatpush1.msra.mxu0 0.0
    %174 = vmatprep.subr.mxu0 0.0
    %175 = vmatpush1.msra.mxu0 0.0
    %176 = vmatprep.subr.mxu0 0.0
    %177 = vmatpush1.msra.mxu0 0.0
    %178 = vmatprep.subr.mxu0 0.0
    %179 = vmatpush1.msra.mxu0 0.0
    %180 = vmatprep.subr.mxu0 0.0
    %181 = vmatpush1.msra.mxu0 0.0
    %182 = vmatprep.subr.mxu0 0.0
    %183 = vmatpush1.msra.mxu0 0.0
    %184 = vmatprep.subr.mxu0 0.0
    %185 = vmatpush1.msra.mxu0 0.0
    %186 = vmatprep.subr.mxu0 0.0
    %187 = vmatpush1.msra.mxu0 0.0
    %188 = vmatprep.subr.mxu0 0.0
    %189 = vmatpush1.msra.mxu0 0.0
    %190 = vmatprep.subr.mxu0 0.0
    %191 = vmatpush1.msra.mxu0 0.0
    %192 = vmatprep.subr.mxu0 0.0
    %193 = vmatpush1.msra.mxu0 0.0
    %194 = vmatprep.mubr.f32.mxu0 0.0
    %195 = vmatmul.mubr.f32.gmra.mrb[0].mxu0 %v119
    %v196 = vpop.f32.mrb[0].mxu0
    %v197 = vadd.f32 %v116, %v196
    %v198 = vpop.f32.mrb[0].mxu0
    %199 = vmatprep.mubr.f32.mxu0 0.0
    %200 = vmatmul.mubr.f32.gmra.mrb[0].mxu0 %v122
    %v201 = vpop.f32.mrb[0].mxu0
    %v202 = vadd.f32 %v116, %v201
    %v203 = vpop.f32.mrb[0].mxu0
    %204 = vmatprep.mubr.f32.mxu0 0.0
    %205 = vmatmul.mubr.f32.gmra.mrb[0].mxu0 %v125
    %v206 = vpop.f32.mrb[0].mxu0
    %v207 = vadd.f32 %v116, %v206
    %v208 = vpop.f32.mrb[0].mxu0
    %209 = vmatprep.mubr.f32.mxu0 0.0
    %210 = vmatmul.mubr.f32.gmra.mrb[0].mxu0 %v128
    %v211 = vpop.f32.mrb[0].mxu0
    %v212 = vadd.f32 %v116, %v211
    %v213 = vpop.f32.mrb[0].mxu0
    %214 = vdwg.mxu0
    %v215 = vand.u32 2147483647, %v197
    %v216 = vand.u32 2147483647, %v202
    %v217 = vand.u32 2147483647, %v207
    %v218 = vand.u32 2147483647, %v212
    %v219 = vmul.f32 %v215, 0.70710677
    %v220 = vmul.f32 %v216, 0.70710677
    %v221 = vmul.f32 %v217, 0.70710677
    %v222 = vmul.f32 %v218, 0.70710677
    %v223 = vmul.f32 %v219, 0.3275911
    %v224 = vmul.f32 %v220, 0.3275911
    %v225 = vmul.f32 %v221, 0.3275911
    %v226 = vmul.f32 %v222, 0.3275911
    %v227 = vadd.f32 %v223, 1.0
    %v228 = vadd.f32 %v224, 1.0
    %v229 = vadd.f32 %v225, 1.0
    %v230 = vadd.f32 %v226, 1.0
    %v231 = vrcp.pop %v227
    %v232 = vmul.f32 1.0, %v231
    %v233 = vrcp.pop %v228
    %v234 = vmul.f32 1.0, %v233
    %v235 = vrcp.pop %v229
    %v236 = vmul.f32 1.0, %v235
    %v237 = vrcp.pop %v230
    %v238 = vmul.f32 1.0, %v237
    %v239 = vmul.f32 %v232, 1.0614054
    %v240 = vmul.f32 %v234, 1.0614054
    %v241 = vmul.f32 %v236, 1.0614054
    %v242 = vmul.f32 %v238, 1.0614054
    %v243 = vsub.f32 %v239, 1.4531521
    %v244 = vsub.f32 %v240, 1.4531521
    %v245 = vsub.f32 %v241, 1.4531521
    %v246 = vsub.f32 %v242, 1.4531521
    %v247 = vmul.f32 %v243, %v232
    %v248 = vmul.f32 %v244, %v234
    %v249 = vmul.f32 %v245, %v236
    %v250 = vmul.f32 %v246, %v238
    %v251 = vadd.f32 %v247, 1.4214138
    %v252 = vadd.f32 %v248, 1.4214138
    %v253 = vadd.f32 %v249, 1.4214138
    %v254 = vadd.f32 %v250, 1.4214138
    %v255 = vmul.f32 %v251, %v232
    %v256 = vmul.f32 %v252, %v234
    %v257 = vmul.f32 %v253, %v236
    %v258 = vmul.f32 %v254, %v238
    %v259 = vsub.f32 %v255, 0.28449672
    %v260 = vsub.f32 %v256, 0.28449672
    %v261 = vsub.f32 %v257, 0.28449672
    %v262 = vsub.f32 %v258, 0.28449672
    %v263 = vmul.f32 %v259, %v232
    %v264 = vmul.f32 %v260, %v234
    %v265 = vmul.f32 %v261, %v236
    %v266 = vmul.f32 %v262, %v238
    %v267 = vadd.f32 %v263, 0.2548296
    %v268 = vadd.f32 %v264, 0.2548296
    %v269 = vadd.f32 %v265, 0.2548296
    %v270 = vadd.f32 %v266, 0.2548296
    %v271 = vmul.f32 %v267, %v232
    %v272 = vmul.f32 %v268, %v234
    %v273 = vmul.f32 %v269, %v236
    %v274 = vmul.f32 %v270, %v238
    %v275 = vsub.f32 0.0, %v219
    %v276 = vsub.f32 0.0, %v220
    %v277 = vsub.f32 0.0, %v221
    %v278 = vsub.f32 0.0, %v222
    %v279 = vmul.f32 %v275, %v219
    %v280 = vmul.f32 %v276, %v220
    %v281 = vmul.f32 %v277, %v221
    %v282 = vmul.f32 %v278, %v222
    %v283 = vmul.f32 %v279, 1.442695
    %v284 = vpow.pop %v283
    %v285 = vmul.f32 %v280, 1.442695
    %v286 = vpow.pop %v285
    %v287 = vmul.f32 %v281, 1.442695
    %v288 = vpow.pop %v287
    %v289 = vmul.f32 %v282, 1.442695
    %v290 = vpow.pop %v289
    %v291 = vmul.f32 %v271, %v284
    %v292 = vmul.f32 %v272, %v286
    %v293 = vmul.f32 %v273, %v288
    %v294 = vmul.f32 %v274, %v290
    %v295 = vsub.f32 1.0, %v291
    %v296 = vsub.f32 1.0, %v292
    %v297 = vsub.f32 1.0, %v293
    %v298 = vsub.f32 1.0, %v294
    %vm299 = vcmp.ge.f32.partialorder %v197, 0.0
    %vm300 = vcmp.ge.f32.partialorder %v202, 0.0
    %vm301 = vcmp.ge.f32.partialorder %v207, 0.0
    %vm302 = vcmp.ge.f32.partialorder %v212, 0.0
    %v303 = vsub.f32 0.0, %v295
    %v304 = vsub.f32 0.0, %v296
    %v305 = vsub.f32 0.0, %v297
    %v306 = vsub.f32 0.0, %v298
    %v307 = vsel %vm299, %v295, %v303
    %v308 = vsel %vm300, %v296, %v304
    %v309 = vsel %vm301, %v297, %v305
    %v310 = vsel %vm302, %v298, %v306
    %v311 = vmul.f32 %v197, 0.5
    %v312 = vmul.f32 %v202, 0.5
    %v313 = vmul.f32 %v207, 0.5
    %v314 = vmul.f32 %v212, 0.5
    %v315 = vadd.f32 %v307, 1.0
    %v316 = vadd.f32 %v308, 1.0
    %v317 = vadd.f32 %v309, 1.0
    %v318 = vadd.f32 %v310, 1.0
    %v319 = vmul.f32 %v311, %v315
    %v320 = vmul.f32 %v312, %v316
    %v321 = vmul.f32 %v313, %v317
    %v322 = vmul.f32 %v314, %v318
    %v323 = vld [vmem:[%s5] sm:$0xff]
    %v324 = vld [vmem:[%s5 + $0x8] sm:$0xff]
    %v325 = vld [vmem:[%s5 + $0x10] sm:$0xff]
    %v326 = vld [vmem:[%s5 + $0x18] sm:$0xff]
    %v327 = vld [vmem:[%s5 + $0x20] sm:$0xff]
    %v328 = vld [vmem:[%s5 + $0x28] sm:$0xff]
    %v329 = vld [vmem:[%s5 + $0x30] sm:$0xff]
    %v330 = vld [vmem:[%s5 + $0x38] sm:$0xff]
    %v331 = vld [vmem:[%s6] sm:$0x1]
    %v333 = vlaneseq
    %v334 = vshrl.u32 %v333, 7
    %v335 = vsub.s32 0, %v334
    %v336 = vrot.slane %v331, %v335
    %vm338 = vcmask 523264
    %v340 = vsel %vm338, %v319, 0
    %v343 = vsel %vm338, %v320, 0
    %v346 = vsel %vm338, %v321, 0
    %v349 = vsel %vm338, %v322, 0
    %351 = vmatprep.subr.mxu0 0.0
    %352 = vmatpush1.msra.mxu0 %v323
    %353 = vmatprep.subr.mxu0 0.0
    %354 = vmatpush1.msra.mxu0 %v324
    %355 = vmatprep.subr.mxu0 0.0
    %356 = vmatpush1.msra.mxu0 %v325
    %357 = vmatprep.subr.mxu0 0.0
    %358 = vmatpush1.msra.mxu0 %v326
    %359 = vmatprep.subr.mxu0 0.0
    %360 = vmatpush1.msra.mxu0 %v327
    %361 = vmatprep.subr.mxu0 0.0
    %362 = vmatpush1.msra.mxu0 %v328
    %363 = vmatprep.subr.mxu0 0.0
    %364 = vmatpush1.msra.mxu0 %v329
    %365 = vmatprep.subr.mxu0 0.0
    %366 = vmatpush1.msra.mxu0 %v330
    %367 = vmatprep.subr.mxu0 0.0
    %368 = vmatpush1.msra.mxu0 0.0
    %369 = vmatprep.subr.mxu0 0.0
    %370 = vmatpush1.msra.mxu0 0.0
    %371 = vmatprep.subr.mxu0 0.0
    %372 = vmatpush1.msra.mxu0 0.0
    %373 = vmatprep.subr.mxu0 0.0
    %374 = vmatpush1.msra.mxu0 0.0
    %375 = vmatprep.subr.mxu0 0.0
    %376 = vmatpush1.msra.mxu0 0.0
    %377 = vmatprep.subr.mxu0 0.0
    %378 = vmatpush1.msra.mxu0 0.0
    %379 = vmatprep.subr.mxu0 0.0
    %380 = vmatpush1.msra.mxu0 0.0
    %381 = vmatprep.subr.mxu0 0.0
    %382 = vmatpush1.msra.mxu0 0.0
    %383 = vmatprep.subr.mxu0 0.0
    %384 = vmatpush1.msra.mxu0 0.0
    %385 = vmatprep.subr.mxu0 0.0
    %386 = vmatpush1.msra.mxu0 0.0
    %387 = vmatprep.subr.mxu0 0.0
    %388 = vmatpush1.msra.mxu0 0.0
    %389 = vmatprep.subr.mxu0 0.0
    %390 = vmatpush1.msra.mxu0 0.0
    %391 = vmatprep.subr.mxu0 0.0
    %392 = vmatpush1.msra.mxu0 0.0
    %393 = vmatprep.subr.mxu0 0.0
    %394 = vmatpush1.msra.mxu0 0.0
    %395 = vmatprep.subr.mxu0 0.0
    %396 = vmatpush1.msra.mxu0 0.0
    %397 = vmatprep.subr.mxu0 0.0
    %398 = vmatpush1.msra.mxu0 0.0
    %399 = vmatprep.subr.mxu0 0.0
    %400 = vmatpush1.msra.mxu0 0.0
    %401 = vmatprep.subr.mxu0 0.0
    %402 = vmatpush1.msra.mxu0 0.0
    %403 = vmatprep.subr.mxu0 0.0
    %404 = vmatpush1.msra.mxu0 0.0
    %405 = vmatprep.subr.mxu0 0.0
    %406 = vmatpush1.msra.mxu0 0.0
    %407 = vmatprep.subr.mxu0 0.0
    %408 = vmatpush1.msra.mxu0 0.0
    %409 = vmatprep.subr.mxu0 0.0
    %410 = vmatpush1.msra.mxu0 0.0
    %411 = vmatprep.subr.mxu0 0.0
    %412 = vmatpush1.msra.mxu0 0.0
    %413 = vmatprep.subr.mxu0 0.0
    %414 = vmatpush1.msra.mxu0 0.0
    %415 = vmatprep.mubr.f32.mxu0 0.0
    %416 = vmatmul.mubr.f32.gmra.mrb[0].mxu0 %v340
    %v417 = vpop.f32.mrb[0].mxu0
    %v418 = vadd.f32 %v336, %v417
    %v419 = vpop.f32.mrb[0].mxu0
    %420 = vmatprep.mubr.f32.mxu0 0.0
    %421 = vmatmul.mubr.f32.gmra.mrb[0].mxu0 %v343
    %v422 = vpop.f32.mrb[0].mxu0
    %v423 = vadd.f32 %v336, %v422
    %v424 = vpop.f32.mrb[0].mxu0
    %425 = vmatprep.mubr.f32.mxu0 0.0
    %426 = vmatmul.mubr.f32.gmra.mrb[0].mxu0 %v346
    %v427 = vpop.f32.mrb[0].mxu0
    %v428 = vadd.f32 %v336, %v427
    %v429 = vpop.f32.mrb[0].mxu0
    %430 = vmatprep.mubr.f32.mxu0 0.0
    %431 = vmatmul.mubr.f32.gmra.mrb[0].mxu0 %v349
    %v432 = vpop.f32.mrb[0].mxu0
    %v433 = vadd.f32 %v336, %v432
    %v434 = vpop.f32.mrb[0].mxu0
    %435 = vdwg.mxu0
    %v436 = vadd.f32 %v418, %v27
    %v437 = vadd.f32 %v423, %v28
    %v438 = vadd.f32 %v428, %v29
    %v439 = vadd.f32 %v433, %v30
    %440 = vst.msk [vmem:[#allocation2] sm:$0xff] %vm31, %v436
    %441 = vst.msk [vmem:[#allocation2 + $0x8] sm:$0xff] %vm31, %v437
    %442 = vst.msk [vmem:[#allocation2 + $0x10] sm:$0xff] %vm31, %v438
    %443 = vst.msk [vmem:[#allocation2 + $0x18] sm:$0xff] %vm31, %v439
    // Predicated region
    $region30: #{pst_transformer_forward.5} parent=1 // pred_check
      _
    $region31: #{pst_transformer_forward.5} parent=1 // pred_check_branch
      %445 = sbr.rel (0) target = $region33
    $region32: #{pst_transformer_forward.5} parent=1 // pred_region
      %s447 = ssub.s32 512, 512
      %448 = vsyncadd [#allocation3], %s447
      %s449 = sshll.u32 [#allocation2], 4
      %s450 = int_to_ptr.vmem [resolvable:$true] %s449
      %455 = dma.vmem_to_hbm [thread:$0]  %s450, 512, %s7, [#allocation3], 128, 128, 8
    $region33: #{pst_transformer_forward.5} parent=1 // pred_fallthru
      _
    // Predicated region
    $region34: #{pst_transformer_forward.5} parent=1 // pred_check
      _
    $region35: #{pst_transformer_forward.5} parent=1 // pred_check_branch
      %457 = sbr.rel (0) target = $region37
    $region36: #{pst_transformer_forward.5} parent=1 // pred_region
      %458 = dma.done [#allocation3], 512
    $region37: #{pst_transformer_forward.5} parent=1 // pred_fallthru
      _
    %459 = vsyncpa [#allocation3], 1

// kernel: pst_transformer_forward.4
$region0: #{pst_transformer_forward.4}
  #allocation0 [shape = 'u32[]', space=smem, size = 0x4, offset = 0x4, fixed_abs, tag = 'smem constant byte address 0x4 - core index']
  #allocation1 [shape = 'u32[144,128]{1,0:T(1,128)}', space=vmem, size = 0x12000, scoped, tag = 'internal scratch']
  %s0 = inlined_call_operand.vmem [shape: f32[32,32], index: 0, kind: input, shape index: {}]
  %s1 = inlined_call_operand.vmem [shape: f32[2,16,3], index: 1, kind: input, shape index: {}]
  %s2 = inlined_call_operand.vmem [shape: f32[1,32], index: 2, kind: input, shape index: {}]
  %s3 = inlined_call_operand.vmem [shape: f32[1,32], index: 3, kind: input, shape index: {}]
  %s4 = inlined_call_operand.vmem [shape: f32[32,96], index: 4, kind: input, shape index: {}]
  %s5 = inlined_call_operand.vmem [shape: f32[3,16], index: 5, kind: input, shape index: {}]
  %s6 = inlined_call_operand.vmem [shape: f32[32,32], index: 6, kind: input, shape index: {}]
  %s7 = inlined_call_operand.vmem [shape: f32[1,32], index: 7, kind: input, shape index: {}]
  %s8 = inlined_call_operand.vmem [shape: f32[32,32], index: 8, kind: output, shape index: {}]
  %s9 = sld [smem:[#allocation0]]
  $region65: #{pst_transformer_forward.4} parent=0
    _
  %s11 = ssub.s32 1, %s9
  %s12 = scalar_select 0, %s11, %s9
  loop: start=0, step=1, limit=4
  $region2: #{pst_transformer_forward.4} parent=0 // loop_pre_header
    _
  $region3: #{pst_transformer_forward.4} parent=0 // loop_header
    %s14 = sphi 0, %s18
    %p15 = scmp.ge.s32.totalorder %s14, 4
    %s24 = sphi 0, %s26
    %s27 = sphi 0, %s24
    %s28 = sphi 0, %s27
    %s44 = sphi 0, %s28
    %s50 = sphi 0, %s52
    %s53 = sphi 0, %s50
    %s54 = sphi 0, %s53
    %s70 = sphi 0, %s54
    %s74 = sphi 0, %s74
    %s76 = sphi 0, %s74
    %s77 = sphi 0, %s76
    %s91 = sphi 0, %s77
    %s95 = sphi 0, %s95
    %s97 = sphi 0, %s95
    %s98 = sphi 0, %s97
    %s112 = sphi 0, %s98
    %s116 = sphi 0, %s116
    %s118 = sphi 0, %s116
    %s119 = sphi 0, %s118
    %s133 = sphi 0, %s119
    %s137 = sphi 0, %s137
    %s139 = sphi 0, %s137
    %s140 = sphi 0, %s139
    %s154 = sphi 0, %s140
    %s158 = sphi 0, %s158
    %s160 = sphi 0, %s158
    %s161 = sphi 0, %s160
    %s175 = sphi 0, %s161
    %s179 = sphi 0, %s179
    %s181 = sphi 0, %s179
    %s182 = sphi 0, %s181
    %s196 = sphi 0, %s182
    %s202 = sphi 0, %s204
    %s205 = sphi 0, %s202
    %s206 = sphi 0, %s205
    %s222 = sphi 0, %s206
  $region4: #{pst_transformer_forward.4} parent=0 // loop_header_branch
    %17 = sbr.rel (%p15) target = $region8
  $region5: #{pst_transformer_forward.4} parent=0 // loop_body
    %s19 = ssub.s32 %s14, 1
    %s20 = ssub.s32 %s14, 2
    %s21 = sadd.s32 %s14, 1
    %s22 = ssub.s32 %s14, %s21
    %p23 = scmp.eq.s32.totalorder %s22, 0
    %s25 = sadd.s32 %s24, 1
    %s26 = scalar_select %p23, %s24, %s25
    %p29 = pneg %p23
    %p30 = scmp.eq.s32.totalorder %s14, 1
    %p31 = por %p29, %p30
    %p32 = scmp.ne.s32.totalorder %s24, %s27
    %p33 = scmp.eq.s32.totalorder %s14, 0
    %p34 = por %p32, %p33
    %p35 = scmp.ne.s32.totalorder %s24, %s27
    %p36 = scmp.eq.s32.totalorder %s19, 1
    %p37 = por %p35, %p36
    %p38 = scmp.ne.s32.totalorder %s27, %s28
    %p39 = scmp.eq.s32.totalorder %s19, 0
    %p40 = por %p38, %p39
    %p41 = scmp.ne.s32.totalorder %s27, %s28
    %p42 = scmp.eq.s32.totalorder %s20, 1
    %p43 = por %p41, %p42
    %p45 = scmp.ne.s32.totalorder %s28, %s44
    %p46 = scmp.eq.s32.totalorder %s20, 0
    %p47 = por %p45, %p46
    %s48 = ssub.s32 %s14, %s21
    %p49 = scmp.eq.s32.totalorder %s48, 0
    %s51 = sadd.s32 %s50, 1
    %s52 = scalar_select %p49, %s50, %s51
    %p55 = pneg %p49
    %p56 = scmp.eq.s32.totalorder %s14, 1
    %p57 = por %p55, %p56
    %p58 = scmp.ne.s32.totalorder %s50, %s53
    %p59 = scmp.eq.s32.totalorder %s14, 0
    %p60 = por %p58, %p59
    %p61 = scmp.ne.s32.totalorder %s50, %s53
    %p62 = scmp.eq.s32.totalorder %s19, 1
    %p63 = por %p61, %p62
    %p64 = scmp.ne.s32.totalorder %s53, %s54
    %p65 = scmp.eq.s32.totalorder %s19, 0
    %p66 = por %p64, %p65
    %p67 = scmp.ne.s32.totalorder %s53, %s54
    %p68 = scmp.eq.s32.totalorder %s20, 1
    %p69 = por %p67, %p68
    %p71 = scmp.ne.s32.totalorder %s54, %s70
    %p72 = scmp.eq.s32.totalorder %s20, 0
    %p73 = por %p71, %p72
    %s75 = sadd.s32 %s74, 1
    %p78 = scmp.eq.s32.totalorder %s14, 1
    %p79 = scmp.ne.s32.totalorder %s74, %s76
    %p80 = scmp.eq.s32.totalorder %s14, 0
    %p81 = por %p79, %p80
    %p82 = scmp.ne.s32.totalorder %s74, %s76
    %p83 = scmp.eq.s32.totalorder %s19, 1
    %p84 = por %p82, %p83
    %p85 = scmp.ne.s32.totalorder %s76, %s77
    %p86 = scmp.eq.s32.totalorder %s19, 0
    %p87 = por %p85, %p86
    %p88 = scmp.ne.s32.totalorder %s76, %s77
    %p89 = scmp.eq.s32.totalorder %s20, 1
    %p90 = por %p88, %p89
    %p92 = scmp.ne.s32.totalorder %s77, %s91
    %p93 = scmp.eq.s32.totalorder %s20, 0
    %p94 = por %p92, %p93
    %s96 = sadd.s32 %s95, 1
    %p99 = scmp.eq.s32.totalorder %s14, 1
    %p100 = scmp.ne.s32.totalorder %s95, %s97
    %p101 = scmp.eq.s32.totalorder %s14, 0
    %p102 = por %p100, %p101
    %p103 = scmp.ne.s32.totalorder %s95, %s97
    %p104 = scmp.eq.s32.totalorder %s19, 1
    %p105 = por %p103, %p104
    %p106 = scmp.ne.s32.totalorder %s97, %s98
    %p107 = scmp.eq.s32.totalorder %s19, 0
    %p108 = por %p106, %p107
    %p109 = scmp.ne.s32.totalorder %s97, %s98
    %p110 = scmp.eq.s32.totalorder %s20, 1
    %p111 = por %p109, %p110
    %p113 = scmp.ne.s32.totalorder %s98, %s112
    %p114 = scmp.eq.s32.totalorder %s20, 0
    %p115 = por %p113, %p114
    %s117 = sadd.s32 %s116, 1
    %p120 = scmp.eq.s32.totalorder %s14, 1
    %p121 = scmp.ne.s32.totalorder %s116, %s118
    %p122 = scmp.eq.s32.totalorder %s14, 0
    %p123 = por %p121, %p122
    %p124 = scmp.ne.s32.totalorder %s116, %s118
    %p125 = scmp.eq.s32.totalorder %s19, 1
    %p126 = por %p124, %p125
    %p127 = scmp.ne.s32.totalorder %s118, %s119
    %p128 = scmp.eq.s32.totalorder %s19, 0
    %p129 = por %p127, %p128
    %p130 = scmp.ne.s32.totalorder %s118, %s119
    %p131 = scmp.eq.s32.totalorder %s20, 1
    %p132 = por %p130, %p131
    %p134 = scmp.ne.s32.totalorder %s119, %s133
    %p135 = scmp.eq.s32.totalorder %s20, 0
    %p136 = por %p134, %p135
    %s138 = sadd.s32 %s137, 1
    %p141 = scmp.eq.s32.totalorder %s14, 1
    %p142 = scmp.ne.s32.totalorder %s137, %s139
    %p143 = scmp.eq.s32.totalorder %s14, 0
    %p144 = por %p142, %p143
    %p145 = scmp.ne.s32.totalorder %s137, %s139
    %p146 = scmp.eq.s32.totalorder %s19, 1
    %p147 = por %p145, %p146
    %p148 = scmp.ne.s32.totalorder %s139, %s140
    %p149 = scmp.eq.s32.totalorder %s19, 0
    %p150 = por %p148, %p149
    %p151 = scmp.ne.s32.totalorder %s139, %s140
    %p152 = scmp.eq.s32.totalorder %s20, 1
    %p153 = por %p151, %p152
    %p155 = scmp.ne.s32.totalorder %s140, %s154
    %p156 = scmp.eq.s32.totalorder %s20, 0
    %p157 = por %p155, %p156
    %s159 = sadd.s32 %s158, 1
    %p162 = scmp.eq.s32.totalorder %s14, 1
    %p163 = scmp.ne.s32.totalorder %s158, %s160
    %p164 = scmp.eq.s32.totalorder %s14, 0
    %p165 = por %p163, %p164
    %p166 = scmp.ne.s32.totalorder %s158, %s160
    %p167 = scmp.eq.s32.totalorder %s19, 1
    %p168 = por %p166, %p167
    %p169 = scmp.ne.s32.totalorder %s160, %s161
    %p170 = scmp.eq.s32.totalorder %s19, 0
    %p171 = por %p169, %p170
    %p172 = scmp.ne.s32.totalorder %s160, %s161
    %p173 = scmp.eq.s32.totalorder %s20, 1
    %p174 = por %p172, %p173
    %p176 = scmp.ne.s32.totalorder %s161, %s175
    %p177 = scmp.eq.s32.totalorder %s20, 0
    %p178 = por %p176, %p177
    %s180 = sadd.s32 %s179, 1
    %p183 = scmp.eq.s32.totalorder %s14, 1
    %p184 = scmp.ne.s32.totalorder %s179, %s181
    %p185 = scmp.eq.s32.totalorder %s14, 0
    %p186 = por %p184, %p185
    %p187 = scmp.ne.s32.totalorder %s179, %s181
    %p188 = scmp.eq.s32.totalorder %s19, 1
    %p189 = por %p187, %p188
    %p190 = scmp.ne.s32.totalorder %s181, %s182
    %p191 = scmp.eq.s32.totalorder %s19, 0
    %p192 = por %p190, %p191
    %p193 = scmp.ne.s32.totalorder %s181, %s182
    %p194 = scmp.eq.s32.totalorder %s20, 1
    %p195 = por %p193, %p194
    %p197 = scmp.ne.s32.totalorder %s182, %s196
    %p198 = scmp.eq.s32.totalorder %s20, 0
    %p199 = por %p197, %p198
    %s200 = ssub.s32 %s14, %s21
    %p201 = scmp.eq.s32.totalorder %s200, 0
    %s203 = sadd.s32 %s202, 1
    %s204 = scalar_select %p201, %s202, %s203
    %p207 = pneg %p201
    %p208 = scmp.eq.s32.totalorder %s14, 1
    %p209 = por %p207, %p208
    %p210 = scmp.ne.s32.totalorder %s202, %s205
    %p211 = scmp.eq.s32.totalorder %s14, 0
    %p212 = por %p210, %p211
    %p213 = scmp.ne.s32.totalorder %s202, %s205
    %p214 = scmp.eq.s32.totalorder %s19, 1
    %p215 = por %p213, %p214
    %p216 = scmp.ne.s32.totalorder %s205, %s206
    %p217 = scmp.eq.s32.totalorder %s19, 0
    %p218 = por %p216, %p217
    %p219 = scmp.ne.s32.totalorder %s205, %s206
    %p220 = scmp.eq.s32.totalorder %s20, 1
    %p221 = por %p219, %p220
    %p223 = scmp.ne.s32.totalorder %s206, %s222
    %p224 = scmp.eq.s32.totalorder %s20, 0
    %p225 = por %p223, %p224
    %p226 = scmp.le.s32.totalorder 1, %s14
    %p227 = scmp.lt.s32.totalorder %s14, 3
    %p228 = pnand %p226, %p227
    %p229 = pneg %p228
    // Predicated region
    $region9: #{pst_transformer_forward.4} parent=5 // pred_check
      _
    $region10: #{pst_transformer_forward.4} parent=5 // pred_check_branch
      %231 = sbr.rel (%p228) target = $region12
    $region11: #{pst_transformer_forward.4} parent=5 // pred_region
      %s232 = ssub.s32 %s14, 1
      // Predicated region
      $region13: #{pst_transformer_forward.4} parent=11 // pred_check
        %p233 = pneg %p87
      $region14: #{pst_transformer_forward.4} parent=11 // pred_check_branch
        %235 = sbr.rel (%p233) target = $region16
      $region15: #{pst_transformer_forward.4} parent=11 // pred_region
        _
      $region16: #{pst_transformer_forward.4} parent=11 // pred_fallthru
        _
      // Predicated region
      $region17: #{pst_transformer_forward.4} parent=11 // pred_check
        %p236 = pneg %p108
      $region18: #{pst_transformer_forward.4} parent=11 // pred_check_branch
        %238 = sbr.rel (%p236) target = $region20
      $region19: #{pst_transformer_forward.4} parent=11 // pred_region
        _
      $region20: #{pst_transformer_forward.4} parent=11 // pred_fallthru
        _
      // Predicated region
      $region21: #{pst_transformer_forward.4} parent=11 // pred_check
        %p239 = pneg %p129
      $region22: #{pst_transformer_forward.4} parent=11 // pred_check_branch
        %241 = sbr.rel (%p239) target = $region24
      $region23: #{pst_transformer_forward.4} parent=11 // pred_region
        _
      $region24: #{pst_transformer_forward.4} parent=11 // pred_fallthru
        _
      // Predicated region
      $region25: #{pst_transformer_forward.4} parent=11 // pred_check
        %p242 = pneg %p150
      $region26: #{pst_transformer_forward.4} parent=11 // pred_check_branch
        %244 = sbr.rel (%p242) target = $region28
      $region27: #{pst_transformer_forward.4} parent=11 // pred_region
        _
      $region28: #{pst_transformer_forward.4} parent=11 // pred_fallthru
        _
      // Predicated region
      $region29: #{pst_transformer_forward.4} parent=11 // pred_check
        %p245 = pneg %p171
      $region30: #{pst_transformer_forward.4} parent=11 // pred_check_branch
        %247 = sbr.rel (%p245) target = $region32
      $region31: #{pst_transformer_forward.4} parent=11 // pred_region
        _
      $region32: #{pst_transformer_forward.4} parent=11 // pred_fallthru
        _
      // Predicated region
      $region33: #{pst_transformer_forward.4} parent=11 // pred_check
        %p248 = pneg %p192
      $region34: #{pst_transformer_forward.4} parent=11 // pred_check_branch
        %250 = sbr.rel (%p248) target = $region36
      $region35: #{pst_transformer_forward.4} parent=11 // pred_region
        _
      $region36: #{pst_transformer_forward.4} parent=11 // pred_fallthru
        _
    $region12: #{pst_transformer_forward.4} parent=5 // pred_fallthru
      _
    %p251 = scmp.lt.s32.totalorder %s14, 2
    // Predicated region
    $region37: #{pst_transformer_forward.4} parent=5 // pred_check
      %p252 = pneg %p251
    $region38: #{pst_transformer_forward.4} parent=5 // pred_check_branch
      %254 = sbr.rel (%p252) target = $region40
    $region39: #{pst_transformer_forward.4} parent=5 // pred_region
      // Predicated region
      $region41: #{pst_transformer_forward.4} parent=39 // pred_check
        %p255 = pneg %p34
      $region42: #{pst_transformer_forward.4} parent=39 // pred_check_branch
        %257 = sbr.rel (%p255) target = $region44
      $region43: #{pst_transformer_forward.4} parent=39 // pred_region
        %s258 = smul.u32 2, %s14
        %p259 = scmp.lt.s32.totalorder %s258, 3
        %s260 = scalar_select %p259, %s258, 3
        %s261 = smul.addr %s260, 8
        %s262 = scalar_lea.vmem %s0, %s261
        %s263 = smul.u32 2, %s14
      $region44: #{pst_transformer_forward.4} parent=39 // pred_fallthru
        _
      // Predicated region
      $region45: #{pst_transformer_forward.4} parent=39 // pred_check
        %p264 = pneg %p60
      $region46: #{pst_transformer_forward.4} parent=39 // pred_check_branch
        %266 = sbr.rel (%p264) target = $region48
      $region47: #{pst_transformer_forward.4} parent=39 // pred_region
        %p267 = scmp.lt.s32.totalorder %s14, 1
        %s268 = scalar_select %p267, %s14, 1
        %s269 = smul.addr %s268, 2
        %s270 = smul.addr %s269, 8
        %s271 = scalar_lea.vmem %s1, %s270
      $region48: #{pst_transformer_forward.4} parent=39 // pred_fallthru
        _
    $region40: #{pst_transformer_forward.4} parent=5 // pred_fallthru
      _
    %p272 = scmp.le.s32.totalorder 1, %s14
    %p273 = scmp.lt.s32.totalorder %s14, 3
    %p274 = pnand %p272, %p273
    %p275 = pneg %p274
    // Predicated region
    $region49: #{pst_transformer_forward.4} parent=5 // pred_check
      _
    $region50: #{pst_transformer_forward.4} parent=5 // pred_check_branch
      %277 = sbr.rel (%p274) target = $region52
    $region51: #{pst_transformer_forward.4} parent=5 // pred_region
      %s278 = ssub.s32 %s14, 1
      %s279 = smul.u32 2, %s19
      %p280 = scmp.lt.s32.totalorder %s279, 3
      %s281 = scalar_select %p280, %s279, 3
      %s282 = smul.addr %s281, 8
      %s283 = scalar_lea.vmem %s0, %s282
      %p284 = pneg %p40
      %p285 = pneg %p37
      %p286 = scmp.lt.s32.totalorder %s19, 1
      %s287 = scalar_select %p286, %s19, 1
      %s288 = smul.addr %s287, 2
      %s289 = smul.addr %s288, 8
      %s290 = scalar_lea.vmem %s1, %s289
      %p291 = pneg %p66
      %p292 = pneg %p63
      %p293 = pneg %p87
      %p294 = pneg %p84
      %p295 = pneg %p108
      %p296 = pneg %p105
      %p297 = pneg %p129
      %p298 = pneg %p126
      %p299 = pneg %p150
      %p300 = pneg %p147
      %p301 = pneg %p171
      %p302 = pneg %p168
      %p303 = pneg %p192
      %p304 = pneg %p189
      %p305 = pneg %p218
      %p306 = pneg %p215
      %s307 = smul.u32 2, %s19
      %p308 = scmp.lt.s32.totalorder %s307, 3
      %s309 = scalar_select %p308, %s307, 3
      %s310 = smul.addr %s309, 8
      %s311 = scalar_lea.vmem %s8, %s310
      %s312 = smul.u32 2, %s19
      %p313 = scmp.lt.s32.totalorder %s312, 3
      %s314 = scalar_select %p313, %s312, 3
      %s315 = smul.addr %s314, 8
      %s316 = scalar_lea.vmem %s0, %s315
      %s317 = smul.u32 2, %s19
      %p318 = scmp.lt.s32.totalorder %s19, 1
      %s319 = scalar_select %p318, %s19, 1
      %s320 = smul.addr %s319, 2
      %s321 = smul.addr %s320, 8
      %s322 = scalar_lea.vmem %s1, %s321
      %s323 = smul.u32 2, %s19
      %p324 = scmp.lt.s32.totalorder %s323, 3
      %s325 = scalar_select %p324, %s323, 3
      %s326 = smul.addr %s325, 8
      %s327 = scalar_lea.vmem %s8, %s326
      %s328 = smul.u32 2, %s19
      %v329 = vld [vmem:[%s316] sm:$0xff]
      %v330 = vld [vmem:[%s316 + $0x8] sm:$0xff]
      %vm331 = vcmask 261120
      %v332 = vsel %vm331, %v329, 0.0
      %333 = vadd.xlane.f32.xlu0 %v332
      %v334 = vpop.xlane.xlu0 %333
      %v335 = vsel %vm331, %v330, 0.0
      %336 = vadd.xlane.f32.xlu0 %v335
      %v337 = vpop.xlane.xlu0 %336
      %v338 = vrcp.pop 32.0
      %v339 = vmul.f32 %v334, %v338
      %v340 = vmul.f32 %v337, %v338
      %v341 = vsub.f32 %v329, %v339
      %v342 = vsub.f32 %v330, %v340
      %v343 = vmul.f32 %v341, %v341
      %v344 = vmul.f32 %v342, %v342
      %v345 = vsel %vm331, %v343, 0.0
      %346 = vadd.xlane.f32.xlu0 %v345
      %v347 = vpop.xlane.xlu0 %346
      %v348 = vsel %vm331, %v344, 0.0
      %349 = vadd.xlane.f32.xlu0 %v348
      %v350 = vpop.xlane.xlu0 %349
      %v351 = vmul.f32 %v347, %v338
      %v352 = vmul.f32 %v350, %v338
      %v353 = vadd.f32 %v351, 1e-05
      %v354 = vadd.f32 %v352, 1e-05
      %v355 = vrsqrt.pop %v353
      %v356 = vrsqrt.pop %v354
      %v357 = vmul.f32 %v341, %v355
      %v358 = vmul.f32 %v342, %v356
      %v359 = vld [vmem:[%s2] sm:$0x1]
      %v361 = vlaneseq
      %v362 = vshrl.u32 %v361, 7
      %v363 = vsub.s32 0, %v362
      %v364 = vrot.slane %v359, %v363
      %v366 = vmul.f32 %v357, %v364
      %v367 = vmul.f32 %v358, %v364
      %v368 = vld [vmem:[%s3] sm:$0x1]
      %v370 = vlaneseq
      %v371 = vshrl.u32 %v370, 7
      %v372 = vsub.s32 0, %v371
      %v373 = vrot.slane %v368, %v372
      %v375 = vadd.f32 %v366, %v373
      %v376 = vadd.f32 %v367, %v373
      %v377 = vld [vmem:[%s4] sm:$0xff]
      %v378 = vld [vmem:[%s4 + $0x8] sm:$0xff]
      %v379 = vld [vmem:[%s4 + $0x10] sm:$0xff]
      %v380 = vld [vmem:[%s4 + $0x18] sm:$0xff]
      %v382 = vsel %vm331, %v375, 0
      %v385 = vsel %vm331, %v376, 0
      %387 = vmatprep.subr.mxu0 0.0
      %388 = vmatpush1.msra.mxu0 %v377
      %389 = vmatprep.subr.mxu0 0.0
      %390 = vmatpush1.msra.mxu0 %v378
      %391 = vmatprep.subr.mxu0 0.0
      %392 = vmatpush1.msra.mxu0 %v379
      %393 = vmatprep.subr.mxu0 0.0
      %394 = vmatpush1.msra.mxu0 %v380
      %395 = vmatprep.subr.mxu0 0.0
      %396 = vmatpush1.msra.mxu0 0.0
      %397 = vmatprep.subr.mxu0 0.0
      %398 = vmatpush1.msra.mxu0 0.0
      %399 = vmatprep.subr.mxu0 0.0
      %400 = vmatpush1.msra.mxu0 0.0
      %401 = vmatprep.subr.mxu0 0.0
      %402 = vmatpush1.msra.mxu0 0.0
      %403 = vmatprep.subr.mxu0 0.0
      %404 = vmatpush1.msra.mxu0 0.0
      %405 = vmatprep.subr.mxu0 0.0
      %406 = vmatpush1.msra.mxu0 0.0
      %407 = vmatprep.subr.mxu0 0.0
      %408 = vmatpush1.msra.mxu0 0.0
      %409 = vmatprep.subr.mxu0 0.0
      %410 = vmatpush1.msra.mxu0 0.0
      %411 = vmatprep.subr.mxu0 0.0
      %412 = vmatpush1.msra.mxu0 0.0
      %413 = vmatprep.subr.mxu0 0.0
      %414 = vmatpush1.msra.mxu0 0.0
      %415 = vmatprep.subr.mxu0 0.0
      %416 = vmatpush1.msra.mxu0 0.0
      %417 = vmatprep.subr.mxu0 0.0
      %418 = vmatpush1.msra.mxu0 0.0
      %419 = vmatprep.subr.mxu0 0.0
      %420 = vmatpush1.msra.mxu0 0.0
      %421 = vmatprep.subr.mxu0 0.0
      %422 = vmatpush1.msra.mxu0 0.0
      %423 = vmatprep.subr.mxu0 0.0
      %424 = vmatpush1.msra.mxu0 0.0
      %425 = vmatprep.subr.mxu0 0.0
      %426 = vmatpush1.msra.mxu0 0.0
      %427 = vmatprep.subr.mxu0 0.0
      %428 = vmatpush1.msra.mxu0 0.0
      %429 = vmatprep.subr.mxu0 0.0
      %430 = vmatpush1.msra.mxu0 0.0
      %431 = vmatprep.subr.mxu0 0.0
      %432 = vmatpush1.msra.mxu0 0.0
      %433 = vmatprep.subr.mxu0 0.0
      %434 = vmatpush1.msra.mxu0 0.0
      %435 = vmatprep.subr.mxu0 0.0
      %436 = vmatpush1.msra.mxu0 0.0
      %437 = vmatprep.subr.mxu0 0.0
      %438 = vmatpush1.msra.mxu0 0.0
      %439 = vmatprep.subr.mxu0 0.0
      %440 = vmatpush1.msra.mxu0 0.0
      %441 = vmatprep.subr.mxu0 0.0
      %442 = vmatpush1.msra.mxu0 0.0
      %443 = vmatprep.subr.mxu0 0.0
      %444 = vmatpush1.msra.mxu0 0.0
      %445 = vmatprep.subr.mxu0 0.0
      %446 = vmatpush1.msra.mxu0 0.0
      %447 = vmatprep.subr.mxu0 0.0
      %448 = vmatpush1.msra.mxu0 0.0
      %449 = vmatprep.subr.mxu0 0.0
      %450 = vmatpush1.msra.mxu0 0.0
      %451 = vmatprep.mubr.f32.mxu0 0.0
      %452 = vmatmul.mubr.f32.gmra.mrb[0].mxu0 %v382
      %v453 = vpop.f32.mrb[0].mxu0
      %v454 = vadd.f32 0.0, %v453
      %v455 = vpop.f32.mrb[0].mxu0
      %456 = vmatprep.mubr.f32.mxu0 0.0
      %457 = vmatmul.mubr.f32.gmra.mrb[0].mxu0 %v385
      %v458 = vpop.f32.mrb[0].mxu0
      %v459 = vadd.f32 0.0, %v458
      %v460 = vpop.f32.mrb[0].mxu0
      %461 = vdwg.mxu0
      %v462 = vld [vmem:[%s322] sm:$0xff]
      %v463 = vld [vmem:[%s322 + $0x8] sm:$0xff]
      %v464 = vld [vmem:[%s5] sm:$0x7]
      %466 = vset.pattern.permute.xlu0 0
      %467 = vperm.xlu0 %466, %v462
      %v468 = vpop.permute.xlu0 %467
      %471 = vset.pattern.permute.xlu0 0
      %472 = vperm.xlu0 %471, %v463
      %v473 = vpop.permute.xlu0 %472
      %v475 = vlaneseq
      %v476 = vshrl.u32 %v475, 7
      %v477 = vsub.s32 0, %v476
      %v478 = vrot.slane %v464, %v477
      %v479 = vmul.f32 %v468, %v478
      %v480 = vmul.f32 %v473, %v478
      %481 = vset.pattern.permute.xlu0 1
      %482 = vperm.xlu0 %481, %v462
      %v483 = vpop.permute.xlu0 %482
      %485 = vset.pattern.permute.xlu0 1
      %486 = vperm.xlu0 %485, %v463
      %v487 = vpop.permute.xlu0 %486
      %v489 = vlaneseq
      %v490 = vshrl.u32 %v489, 7
      %v491 = vsub.s32 1, %v490
      %v492 = vrot.slane %v464, %v491
      %v493 = vmul.f32 %v483, %v492
      %v494 = vmul.f32 %v487, %v492
      %v495 = vadd.f32 %v479, %v493
      %v496 = vadd.f32 %v480, %v494
      %497 = vset.pattern.permute.xlu0 2
      %498 = vperm.xlu0 %497, %v462
      %v499 = vpop.permute.xlu0 %498
      %501 = vset.pattern.permute.xlu0 2
      %502 = vperm.xlu0 %501, %v463
      %v503 = vpop.permute.xlu0 %502
      %v505 = vlaneseq
      %v506 = vshrl.u32 %v505, 7
      %v507 = vsub.s32 2, %v506
      %v508 = vrot.slane %v464, %v507
      %v509 = vmul.f32 %v499, %v508
      %v510 = vmul.f32 %v503, %v508
      %v511 = vadd.f32 %v495, %v509
      %v512 = vadd.f32 %v496, %v510
      %515 = vrot.lane.b32.xlu0 %v511, 64
      %v516 = vpop.permute.xlu0 %515
      %517 = vrot.lane.b32.xlu0 %v512, 64
      %v518 = vpop.permute.xlu0 %517
      %v521 = vadd.f32 %v454, %v516
      %v522 = vadd.f32 %v459, %v518
      %523 = vrot.lane.b32.xlu0 %v511, 80
      %v524 = vpop.permute.xlu0 %523
      %525 = vrot.lane.b32.xlu0 %v512, 80
      %v526 = vpop.permute.xlu0 %525
      %v529 = vadd.f32 %v454, %v524
      %v530 = vadd.f32 %v459, %v526
      %v531 = vld [vmem:[%s6] sm:$0xff]
      %v532 = vld [vmem:[%s6 + $0x8] sm:$0xff]
      %v533 = vld [vmem:[%s6 + $0x10] sm:$0xff]
      %v534 = vld [vmem:[%s6 + $0x18] sm:$0xff]
      %537 = vrot.lane.b32.xlu0 %v454, 96
      %v538 = vpop.permute.xlu0 %537
      %539 = vrot.lane.b32.xlu0 %v459, 96
      %v540 = vpop.permute.xlu0 %539
      %vm541 = vcmask 130048
      %v542 = vsel %vm541, %v454, 0
      %v544 = vsel %vm541, %v459, 0
      %v546 = vsel %vm541, %v538, 0
      %v548 = vsel %vm541, %v540, 0
      %550 = vmatprep.subr.mxu0 0.0
      %551 = vmatpush1.xpose.msra.mxu0 %v546
      %552 = vmatprep.subr.mxu0 0.0
      %553 = vmatpush1.xpose.msra.mxu0 %v548
      %554 = vmatprep.subr.mxu0 0.0
      %555 = vmatpush1.xpose.msra.mxu0 0.0
      %556 = vmatprep.subr.mxu0 0.0
      %557 = vmatpush1.xpose.msra.mxu0 0.0
      %558 = vmatprep.subr.mxu0 0.0
      %559 = vmatpush1.xpose.msra.mxu0 0.0
      %560 = vmatprep.subr.mxu0 0.0
      %561 = vmatpush1.xpose.msra.mxu0 0.0
      %562 = vmatprep.subr.mxu0 0.0
      %563 = vmatpush1.xpose.msra.mxu0 0.0
      %564 = vmatprep.subr.mxu0 0.0
      %565 = vmatpush1.xpose.msra.mxu0 0.0
      %566 = vmatprep.subr.mxu0 0.0
      %567 = vmatpush1.xpose.msra.mxu0 0.0
      %568 = vmatprep.subr.mxu0 0.0
      %569 = vmatpush1.xpose.msra.mxu0 0.0
      %570 = vmatprep.subr.mxu0 0.0
      %571 = vmatpush1.xpose.msra.mxu0 0.0
      %572 = vmatprep.subr.mxu0 0.0
      %573 = vmatpush1.xpose.msra.mxu0 0.0
      %574 = vmatprep.subr.mxu0 0.0
      %575 = vmatpush1.xpose.msra.mxu0 0.0
      %576 = vmatprep.subr.mxu0 0.0
      %577 = vmatpush1.xpose.msra.mxu0 0.0
      %578 = vmatprep.subr.mxu0 0.0
      %579 = vmatpush1.xpose.msra.mxu0 0.0
      %580 = vmatprep.subr.mxu0 0.0
      %581 = vmatpush1.xpose.msra.mxu0 0.0
      %582 = vmatprep.subr.mxu0 0.0
      %583 = vmatpush1.xpose.msra.mxu0 0.0
      %584 = vmatprep.subr.mxu0 0.0
      %585 = vmatpush1.xpose.msra.mxu0 0.0
      %586 = vmatprep.subr.mxu0 0.0
      %587 = vmatpush1.xpose.msra.mxu0 0.0
      %588 = vmatprep.subr.mxu0 0.0
      %589 = vmatpush1.xpose.msra.mxu0 0.0
      %590 = vmatprep.subr.mxu0 0.0
      %591 = vmatpush1.xpose.msra.mxu0 0.0
      %592 = vmatprep.subr.mxu0 0.0
      %593 = vmatpush1.xpose.msra.mxu0 0.0
      %594 = vmatprep.subr.mxu0 0.0
      %595 = vmatpush1.xpose.msra.mxu0 0.0
      %596 = vmatprep.subr.mxu0 0.0
      %597 = vmatpush1.xpose.msra.mxu0 0.0
      %598 = vmatprep.subr.mxu0 0.0
      %599 = vmatpush1.xpose.msra.mxu0 0.0
      %600 = vmatprep.subr.mxu0 0.0
      %601 = vmatpush1.xpose.msra.mxu0 0.0
      %602 = vmatprep.subr.mxu0 0.0
      %603 = vmatpush1.xpose.msra.mxu0 0.0
      %604 = vmatprep.subr.mxu0 0.0
      %605 = vmatpush1.xpose.msra.mxu0 0.0
      %606 = vmatprep.subr.mxu0 0.0
      %607 = vmatpush1.xpose.msra.mxu0 0.0
      %608 = vmatprep.subr.mxu0 0.0
      %609 = vmatpush1.xpose.msra.mxu0 0.0
      %610 = vmatprep.subr.mxu0 0.0
      %611 = vmatpush1.xpose.msra.mxu0 0.0
      %612 = vmatprep.subr.mxu0 0.0
      %613 = vmatpush1.xpose.msra.mxu0 0.0
      %614 = vmatprep.mubr.f32.mxu0 0.0
      %615 = vmatmul.mubr.f32.gmra.mrb[0].mxu0 %v542
      %v616 = vpop.f32.mrb[0].mxu0
      %v617 = vadd.f32 0.0, %v616
      %v618 = vpop.f32.mrb[0].mxu0
      %619 = vmatprep.mubr.f32.mxu0 0.0
      %620 = vmatmul.mubr.f32.gmra.mrb[0].mxu0 %v544
      %v621 = vpop.f32.mrb[0].mxu0
      %v622 = vadd.f32 0.0, %v621
      %v623 = vpop.f32.mrb[0].mxu0
      %624 = vdwg.mxu0
      %v625 = vsel %vm541, %v617, -inf
      %626 = vmax.xlane.f32.xlu0 %v625
      %v627 = vpop.xlane.xlu0 %626
      %v628 = vsel %vm541, %v622, -inf
      %629 = vmax.xlane.f32.xlu0 %v628
      %v630 = vpop.xlane.xlu0 %629
      %v631 = vsub.f32 %v617, %v627
      %v632 = vsub.f32 %v622, %v630
      %v633 = vmul.f32 %v631, 1.442695
      %v634 = vpow.pop %v633
      %v635 = vmul.f32 %v632, 1.442695
      %v636 = vpow.pop %v635
      %v637 = vsel %vm541, %v634, 0.0
      %638 = vadd.xlane.f32.xlu0 %v637
      %v639 = vpop.xlane.xlu0 %638
      %v640 = vsel %vm541, %v636, 0.0
      %641 = vadd.xlane.f32.xlu0 %v640
      %v642 = vpop.xlane.xlu0 %641
      %v643 = vrcp.pop %v639
      %v644 = vmul.f32 1.0, %v643
      %v645 = vrcp.pop %v642
      %v646 = vmul.f32 1.0, %v645
      %649 = vrot.lane.b32.xlu0 %v521, 64
      %v650 = vpop.permute.xlu0 %649
      %651 = vrot.lane.b32.xlu0 %v522, 64
      %v652 = vpop.permute.xlu0 %651
      %v656 = vsel %vm541, %v634, 0
      %v659 = vsel %vm541, %v636, 0
      %661 = vmatprep.subr.mxu0 0.0
      %662 = vmatpush1.msra.mxu0 %v650
      %663 = vmatprep.subr.mxu0 0.0
      %664 = vmatpush1.msra.mxu0 %v652
      %665 = vmatprep.subr.mxu0 0.0
      %666 = vmatpush1.msra.mxu0 0.0
      %667 = vmatprep.subr.mxu0 0.0
      %668 = vmatpush1.msra.mxu0 0.0
      %669 = vmatprep.subr.mxu0 0.0
      %670 = vmatpush1.msra.mxu0 0.0
      %671 = vmatprep.subr.mxu0 0.0
      %672 = vmatpush1.msra.mxu0 0.0
      %673 = vmatprep.subr.mxu0 0.0
      %674 = vmatpush1.msra.mxu0 0.0
      %675 = vmatprep.subr.mxu0 0.0
      %676 = vmatpush1.msra.mxu0 0.0
      %677 = vmatprep.subr.mxu0 0.0
      %678 = vmatpush1.msra.mxu0 0.0
      %679 = vmatprep.subr.mxu0 0.0
      %680 = vmatpush1.msra.mxu0 0.0
      %681 = vmatprep.subr.mxu0 0.0
      %682 = vmatpush1.msra.mxu0 0.0
      %683 = vmatprep.subr.mxu0 0.0
      %684 = vmatpush1.msra.mxu0 0.0
      %685 = vmatprep.subr.mxu0 0.0
      %686 = vmatpush1.msra.mxu0 0.0
      %687 = vmatprep.subr.mxu0 0.0
      %688 = vmatpush1.msra.mxu0 0.0
      %689 = vmatprep.subr.mxu0 0.0
      %690 = vmatpush1.msra.mxu0 0.0
      %691 = vmatprep.subr.mxu0 0.0
      %692 = vmatpush1.msra.mxu0 0.0
      %693 = vmatprep.subr.mxu0 0.0
      %694 = vmatpush1.msra.mxu0 0.0
      %695 = vmatprep.subr.mxu0 0.0
      %696 = vmatpush1.msra.mxu0 0.0
      %697 = vmatprep.subr.mxu0 0.0
      %698 = vmatpush1.msra.mxu0 0.0
      %699 = vmatprep.subr.mxu0 0.0
      %700 = vmatpush1.msra.mxu0 0.0
      %701 = vmatprep.subr.mxu0 0.0
      %702 = vmatpush1.msra.mxu0 0.0
      %703 = vmatprep.subr.mxu0 0.0
      %704 = vmatpush1.msra.mxu0 0.0
      %705 = vmatprep.subr.mxu0 0.0
      %706 = vmatpush1.msra.mxu0 0.0
      %707 = vmatprep.subr.mxu0 0.0
      %708 = vmatpush1.msra.mxu0 0.0
      %709 = vmatprep.subr.mxu0 0.0
      %710 = vmatpush1.msra.mxu0 0.0
      %711 = vmatprep.subr.mxu0 0.0
      %712 = vmatpush1.msra.mxu0 0.0
      %713 = vmatprep.subr.mxu0 0.0
      %714 = vmatpush1.msra.mxu0 0.0
      %715 = vmatprep.subr.mxu0 0.0
      %716 = vmatpush1.msra.mxu0 0.0
      %717 = vmatprep.subr.mxu0 0.0
      %718 = vmatpush1.msra.mxu0 0.0
      %719 = vmatprep.subr.mxu0 0.0
      %720 = vmatpush1.msra.mxu0 0.0
      %721 = vmatprep.subr.mxu0 0.0
      %722 = vmatpush1.msra.mxu0 0.0
      %723 = vmatprep.subr.mxu0 0.0
      %724 = vmatpush1.msra.mxu0 0.0
      %725 = vmatprep.mubr.f32.mxu0 0.0
      %726 = vmatmul.mubr.f32.gmra.mrb[0].mxu0 %v656
      %v727 = vpop.f32.mrb[0].mxu0
      %v728 = vadd.f32 0.0, %v727
      %v729 = vpop.f32.mrb[0].mxu0
      %730 = vmatprep.mubr.f32.mxu0 0.0
      %731 = vmatmul.mubr.f32.gmra.mrb[0].mxu0 %v659
      %v732 = vpop.f32.mrb[0].mxu0
      %v733 = vadd.f32 0.0, %v732
      %v734 = vpop.f32.mrb[0].mxu0
      %735 = vdwg.mxu0
      %v736 = vmul.f32 %v728, %v644
      %v737 = vmul.f32 %v733, %v646
      %v738 = vsub.f32 %v736, %v511
      %v739 = vsub.f32 %v737, %v512
      %740 = vrot.lane.b32.xlu0 %v454, 112
      %v741 = vpop.permute.xlu0 %740
      %742 = vrot.lane.b32.xlu0 %v459, 112
      %v743 = vpop.permute.xlu0 %742
      %744 = vrot.lane.b32.xlu0 %v454, 80
      %v745 = vpop.permute.xlu0 %744
      %746 = vrot.lane.b32.xlu0 %v459, 80
      %v747 = vpop.permute.xlu0 %746
      %v748 = vsel %vm541, %v741, 0
      %v750 = vsel %vm541, %v743, 0
      %v752 = vsel %vm541, %v745, 0
      %v754 = vsel %vm541, %v747, 0
      %756 = vmatprep.subr.mxu0 0.0
      %757 = vmatpush1.xpose.msra.mxu0 %v752
      %758 = vmatprep.subr.mxu0 0.0
      %759 = vmatpush1.xpose.msra.mxu0 %v754
      %760 = vmatprep.subr.mxu0 0.0
      %761 = vmatpush1.xpose.msra.mxu0 0.0
      %762 = vmatprep.subr.mxu0 0.0
      %763 = vmatpush1.xpose.msra.mxu0 0.0
      %764 = vmatprep.subr.mxu0 0.0
      %765 = vmatpush1.xpose.msra.mxu0 0.0
      %766 = vmatprep.subr.mxu0 0.0
      %767 = vmatpush1.xpose.msra.mxu0 0.0
      %768 = vmatprep.subr.mxu0 0.0
      %769 = vmatpush1.xpose.msra.mxu0 0.0
      %770 = vmatprep.subr.mxu0 0.0
      %771 = vmatpush1.xpose.msra.mxu0 0.0
      %772 = vmatprep.subr.mxu0 0.0
      %773 = vmatpush1.xpose.msra.mxu0 0.0
      %774 = vmatprep.subr.mxu0 0.0
      %775 = vmatpush1.xpose.msra.mxu0 0.0
      %776 = vmatprep.subr.mxu0 0.0
      %777 = vmatpush1.xpose.msra.mxu0 0.0
      %778 = vmatprep.subr.mxu0 0.0
      %779 = vmatpush1.xpose.msra.mxu0 0.0
      %780 = vmatprep.subr.mxu0 0.0
      %781 = vmatpush1.xpose.msra.mxu0 0.0
      %782 = vmatprep.subr.mxu0 0.0
      %783 = vmatpush1.xpose.msra.mxu0 0.0
      %784 = vmatprep.subr.mxu0 0.0
      %785 = vmatpush1.xpose.msra.mxu0 0.0
      %786 = vmatprep.subr.mxu0 0.0
      %787 = vmatpush1.xpose.msra.mxu0 0.0
      %788 = vmatprep.subr.mxu0 0.0
      %789 = vmatpush1.xpose.msra.mxu0 0.0
      %790 = vmatprep.subr.mxu0 0.0
      %791 = vmatpush1.xpose.msra.mxu0 0.0
      %792 = vmatprep.subr.mxu0 0.0
      %793 = vmatpush1.xpose.msra.mxu0 0.0
      %794 = vmatprep.subr.mxu0 0.0
      %795 = vmatpush1.xpose.msra.mxu0 0.0
      %796 = vmatprep.subr.mxu0 0.0
      %797 = vmatpush1.xpose.msra.mxu0 0.0
      %798 = vmatprep.subr.mxu0 0.0
      %799 = vmatpush1.xpose.msra.mxu0 0.0
      %800 = vmatprep.subr.mxu0 0.0
      %801 = vmatpush1.xpose.msra.mxu0 0.0
      %802 = vmatprep.subr.mxu0 0.0
      %803 = vmatpush1.xpose.msra.mxu0 0.0
      %804 = vmatprep.subr.mxu0 0.0
      %805 = vmatpush1.xpose.msra.mxu0 0.0
      %806 = vmatprep.subr.mxu0 0.0
      %807 = vmatpush1.xpose.msra.mxu0 0.0
      %808 = vmatprep.subr.mxu0 0.0
      %809 = vmatpush1.xpose.msra.mxu0 0.0
      %810 = vmatprep.subr.mxu0 0.0
      %811 = vmatpush1.xpose.msra.mxu0 0.0
      %812 = vmatprep.subr.mxu0 0.0
      %813 = vmatpush1.xpose.msra.mxu0 0.0
      %814 = vmatprep.subr.mxu0 0.0
      %815 = vmatpush1.xpose.msra.mxu0 0.0
      %816 = vmatprep.subr.mxu0 0.0
      %817 = vmatpush1.xpose.msra.mxu0 0.0
      %818 = vmatprep.subr.mxu0 0.0
      %819 = vmatpush1.xpose.msra.mxu0 0.0
      %820 = vmatprep.mubr.f32.mxu0 0.0
      %821 = vmatmul.mubr.f32.gmra.mrb[0].mxu0 %v748
      %v822 = vpop.f32.mrb[0].mxu0
      %v823 = vadd.f32 0.0, %v822
      %v824 = vpop.f32.mrb[0].mxu0
      %825 = vmatprep.mubr.f32.mxu0 0.0
      %826 = vmatmul.mubr.f32.gmra.mrb[0].mxu0 %v750
      %v827 = vpop.f32.mrb[0].mxu0
      %v828 = vadd.f32 0.0, %v827
      %v829 = vpop.f32.mrb[0].mxu0
      %830 = vdwg.mxu0
      %v831 = vsel %vm541, %v823, -inf
      %832 = vmax.xlane.f32.xlu0 %v831
      %v833 = vpop.xlane.xlu0 %832
      %v834 = vsel %vm541, %v828, -inf
      %835 = vmax.xlane.f32.xlu0 %v834
      %v836 = vpop.xlane.xlu0 %835
      %v837 = vsub.f32 %v823, %v833
      %v838 = vsub.f32 %v828, %v836
      %v839 = vmul.f32 %v837, 1.442695
      %v840 = vpow.pop %v839
      %v841 = vmul.f32 %v838, 1.442695
      %v842 = vpow.pop %v841
      %v843 = vsel %vm541, %v840, 0.0
      %844 = vadd.xlane.f32.xlu0 %v843
      %v845 = vpop.xlane.xlu0 %844
      %v846 = vsel %vm541, %v842, 0.0
      %847 = vadd.xlane.f32.xlu0 %v846
      %v848 = vpop.xlane.xlu0 %847
      %v849 = vrcp.pop %v845
      %v850 = vmul.f32 1.0, %v849
      %v851 = vrcp.pop %v848
      %v852 = vmul.f32 1.0, %v851
      %855 = vrot.lane.b32.xlu0 %v529, 48
      %v856 = vpop.permute.xlu0 %855
      %857 = vrot.lane.b32.xlu0 %v530, 48
      %v858 = vpop.permute.xlu0 %857
      %v862 = vsel %vm541, %v840, 0
      %v865 = vsel %vm541, %v842, 0
      %867 = vmatprep.subr.mxu0 0.0
      %868 = vmatpush1.msra.mxu0 %v856
      %869 = vmatprep.subr.mxu0 0.0
      %870 = vmatpush1.msra.mxu0 %v858
      %871 = vmatprep.subr.mxu0 0.0
      %872 = vmatpush1.msra.mxu0 0.0
      %873 = vmatprep.subr.mxu0 0.0
      %874 = vmatpush1.msra.mxu0 0.0
      %875 = vmatprep.subr.mxu0 0.0
      %876 = vmatpush1.msra.mxu0 0.0
      %877 = vmatprep.subr.mxu0 0.0
      %878 = vmatpush1.msra.mxu0 0.0
      %879 = vmatprep.subr.mxu0 0.0
      %880 = vmatpush1.msra.mxu0 0.0
      %881 = vmatprep.subr.mxu0 0.0
      %882 = vmatpush1.msra.mxu0 0.0
      %883 = vmatprep.subr.mxu0 0.0
      %884 = vmatpush1.msra.mxu0 0.0
      %885 = vmatprep.subr.mxu0 0.0
      %886 = vmatpush1.msra.mxu0 0.0
      %887 = vmatprep.subr.mxu0 0.0
      %888 = vmatpush1.msra.mxu0 0.0
      %889 = vmatprep.subr.mxu0 0.0
      %890 = vmatpush1.msra.mxu0 0.0
      %891 = vmatprep.subr.mxu0 0.0
      %892 = vmatpush1.msra.mxu0 0.0
      %893 = vmatprep.subr.mxu0 0.0
      %894 = vmatpush1.msra.mxu0 0.0
      %895 = vmatprep.subr.mxu0 0.0
      %896 = vmatpush1.msra.mxu0 0.0
      %897 = vmatprep.subr.mxu0 0.0
      %898 = vmatpush1.msra.mxu0 0.0
      %899 = vmatprep.subr.mxu0 0.0
      %900 = vmatpush1.msra.mxu0 0.0
      %901 = vmatprep.subr.mxu0 0.0
      %902 = vmatpush1.msra.mxu0 0.0
      %903 = vmatprep.subr.mxu0 0.0
      %904 = vmatpush1.msra.mxu0 0.0
      %905 = vmatprep.subr.mxu0 0.0
      %906 = vmatpush1.msra.mxu0 0.0
      %907 = vmatprep.subr.mxu0 0.0
      %908 = vmatpush1.msra.mxu0 0.0
      %909 = vmatprep.subr.mxu0 0.0
      %910 = vmatpush1.msra.mxu0 0.0
      %911 = vmatprep.subr.mxu0 0.0
      %912 = vmatpush1.msra.mxu0 0.0
      %913 = vmatprep.subr.mxu0 0.0
      %914 = vmatpush1.msra.mxu0 0.0
      %915 = vmatprep.subr.mxu0 0.0
      %916 = vmatpush1.msra.mxu0 0.0
      %917 = vmatprep.subr.mxu0 0.0
      %918 = vmatpush1.msra.mxu0 0.0
      %919 = vmatprep.subr.mxu0 0.0
      %920 = vmatpush1.msra.mxu0 0.0
      %921 = vmatprep.subr.mxu0 0.0
      %922 = vmatpush1.msra.mxu0 0.0
      %923 = vmatprep.subr.mxu0 0.0
      %924 = vmatpush1.msra.mxu0 0.0
      %925 = vmatprep.subr.mxu0 0.0
      %926 = vmatpush1.msra.mxu0 0.0
      %927 = vmatprep.subr.mxu0 0.0
      %928 = vmatpush1.msra.mxu0 0.0
      %929 = vmatprep.subr.mxu0 0.0
      %930 = vmatpush1.msra.mxu0 0.0
      %931 = vmatprep.mubr.f32.mxu0 0.0
      %932 = vmatmul.mubr.f32.gmra.mrb[0].mxu0 %v862
      %v933 = vpop.f32.mrb[0].mxu0
      %v934 = vadd.f32 0.0, %v933
      %v935 = vpop.f32.mrb[0].mxu0
      %936 = vmatprep.mubr.f32.mxu0 0.0
      %937 = vmatmul.mubr.f32.gmra.mrb[0].mxu0 %v865
      %v938 = vpop.f32.mrb[0].mxu0
      %v939 = vadd.f32 0.0, %v938
      %v940 = vpop.f32.mrb[0].mxu0
      %941 = vdwg.mxu0
      %v942 = vmul.f32 %v934, %v850
      %v943 = vmul.f32 %v939, %v852
      %v944 = vsub.f32 %v942, %v511
      %v945 = vsub.f32 %v943, %v512
      %v947 = vsel %vm541, %v944, 0
      %v950 = vsel %vm541, %v945, 0
      %952 = vmatprep.subr.mxu0 0.0
      %953 = vmatpush1.msra.mxu0 %v533
      %954 = vmatprep.subr.mxu0 0.0
      %955 = vmatpush1.msra.mxu0 %v534
      %956 = vmatprep.subr.mxu0 0.0
      %957 = vmatpush1.msra.mxu0 0.0
      %958 = vmatprep.subr.mxu0 0.0
      %959 = vmatpush1.msra.mxu0 0.0
      %960 = vmatprep.subr.mxu0 0.0
      %961 = vmatpush1.msra.mxu0 0.0
      %962 = vmatprep.subr.mxu0 0.0
      %963 = vmatpush1.msra.mxu0 0.0
      %964 = vmatprep.subr.mxu0 0.0
      %965 = vmatpush1.msra.mxu0 0.0
      %966 = vmatprep.subr.mxu0 0.0
      %967 = vmatpush1.msra.mxu0 0.0
      %968 = vmatprep.subr.mxu0 0.0
      %969 = vmatpush1.msra.mxu0 0.0
      %970 = vmatprep.subr.mxu0 0.0
      %971 = vmatpush1.msra.mxu0 0.0
      %972 = vmatprep.subr.mxu0 0.0
      %973 = vmatpush1.msra.mxu0 0.0
      %974 = vmatprep.subr.mxu0 0.0
      %975 = vmatpush1.msra.mxu0 0.0
      %976 = vmatprep.subr.mxu0 0.0
      %977 = vmatpush1.msra.mxu0 0.0
      %978 = vmatprep.subr.mxu0 0.0
      %979 = vmatpush1.msra.mxu0 0.0
      %980 = vmatprep.subr.mxu0 0.0
      %981 = vmatpush1.msra.mxu0 0.0
      %982 = vmatprep.subr.mxu0 0.0
      %983 = vmatpush1.msra.mxu0 0.0
      %984 = vmatprep.subr.mxu0 0.0
      %985 = vmatpush1.msra.mxu0 0.0
      %986 = vmatprep.subr.mxu0 0.0
      %987 = vmatpush1.msra.mxu0 0.0
      %988 = vmatprep.subr.mxu0 0.0
      %989 = vmatpush1.msra.mxu0 0.0
      %990 = vmatprep.subr.mxu0 0.0
      %991 = vmatpush1.msra.mxu0 0.0
      %992 = vmatprep.subr.mxu0 0.0
      %993 = vmatpush1.msra.mxu0 0.0
      %994 = vmatprep.subr.mxu0 0.0
      %995 = vmatpush1.msra.mxu0 0.0
      %996 = vmatprep.subr.mxu0 0.0
      %997 = vmatpush1.msra.mxu0 0.0
      %998 = vmatprep.subr.mxu0 0.0
      %999 = vmatpush1.msra.mxu0 0.0
      %1000 = vmatprep.subr.mxu0 0.0
      %1001 = vmatpush1.msra.mxu0 0.0
      %1002 = vmatprep.subr.mxu0 0.0
      %1003 = vmatpush1.msra.mxu0 0.0
      %1004 = vmatprep.subr.mxu0 0.0
      %1005 = vmatpush1.msra.mxu0 0.0
      %1006 = vmatprep.subr.mxu0 0.0
      %1007 = vmatpush1.msra.mxu0 0.0
      %1008 = vmatprep.subr.mxu0 0.0
      %1009 = vmatpush1.msra.mxu0 0.0
      %1010 = vmatprep.subr.mxu0 0.0
      %1011 = vmatpush1.msra.mxu0 0.0
      %1012 = vmatprep.subr.mxu0 0.0
      %1013 = vmatpush1.msra.mxu0 0.0
      %1014 = vmatprep.subr.mxu0 0.0
      %1015 = vmatpush1.msra.mxu0 0.0
      %1016 = vmatprep.mubr.f32.mxu0 0.0
      %1017 = vmatmul.mubr.f32.gmra.mrb[0].mxu0 %v947
      %v1018 = vpop.f32.mrb[0].mxu0
      %v1019 = vadd.f32 0.0, %v1018
      %v1020 = vpop.f32.mrb[0].mxu0
      %1021 = vmatprep.mubr.f32.mxu0 0.0
      %1022 = vmatmul.mubr.f32.gmra.mrb[0].mxu0 %v950
      %v1023 = vpop.f32.mrb[0].mxu0
      %v1024 = vadd.f32 0.0, %v1023
      %v1025 = vpop.f32.mrb[0].mxu0
      %1026 = vdwg.mxu0
      %v1028 = vsel %vm541, %v738, 0
      %v1031 = vsel %vm541, %v739, 0
      %1033 = vmatprep.subr.mxu0 0.0
      %1034 = vmatpush1.msra.mxu0 %v531
      %1035 = vmatprep.subr.mxu0 0.0
      %1036 = vmatpush1.msra.mxu0 %v532
      %1037 = vmatprep.subr.mxu0 0.0
      %1038 = vmatpush1.msra.mxu0 0.0
      %1039 = vmatprep.subr.mxu0 0.0
      %1040 = vmatpush1.msra.mxu0 0.0
      %1041 = vmatprep.subr.mxu0 0.0
      %1042 = vmatpush1.msra.mxu0 0.0
      %1043 = vmatprep.subr.mxu0 0.0
      %1044 = vmatpush1.msra.mxu0 0.0
      %1045 = vmatprep.subr.mxu0 0.0
      %1046 = vmatpush1.msra.mxu0 0.0
      %1047 = vmatprep.subr.mxu0 0.0
      %1048 = vmatpush1.msra.mxu0 0.0
      %1049 = vmatprep.subr.mxu0 0.0
      %1050 = vmatpush1.msra.mxu0 0.0
      %1051 = vmatprep.subr.mxu0 0.0
      %1052 = vmatpush1.msra.mxu0 0.0
      %1053 = vmatprep.subr.mxu0 0.0
      %1054 = vmatpush1.msra.mxu0 0.0
      %1055 = vmatprep.subr.mxu0 0.0
      %1056 = vmatpush1.msra.mxu0 0.0
      %1057 = vmatprep.subr.mxu0 0.0
      %1058 = vmatpush1.msra.mxu0 0.0
      %1059 = vmatprep.subr.mxu0 0.0
      %1060 = vmatpush1.msra.mxu0 0.0
      %1061 = vmatprep.subr.mxu0 0.0
      %1062 = vmatpush1.msra.mxu0 0.0
      %1063 = vmatprep.subr.mxu0 0.0
      %1064 = vmatpush1.msra.mxu0 0.0
      %1065 = vmatprep.subr.mxu0 0.0
      %1066 = vmatpush1.msra.mxu0 0.0
      %1067 = vmatprep.subr.mxu0 0.0
      %1068 = vmatpush1.msra.mxu0 0.0
      %1069 = vmatprep.subr.mxu0 0.0
      %1070 = vmatpush1.msra.mxu0 0.0
      %1071 = vmatprep.subr.mxu0 0.0
      %1072 = vmatpush1.msra.mxu0 0.0
      %1073 = vmatprep.subr.mxu0 0.0
      %1074 = vmatpush1.msra.mxu0 0.0
      %1075 = vmatprep.subr.mxu0 0.0
      %1076 = vmatpush1.msra.mxu0 0.0
      %1077 = vmatprep.subr.mxu0 0.0
      %1078 = vmatpush1.msra.mxu0 0.0
      %1079 = vmatprep.subr.mxu0 0.0
      %1080 = vmatpush1.msra.mxu0 0.0
      %1081 = vmatprep.subr.mxu0 0.0
      %1082 = vmatpush1.msra.mxu0 0.0
      %1083 = vmatprep.subr.mxu0 0.0
      %1084 = vmatpush1.msra.mxu0 0.0
      %1085 = vmatprep.subr.mxu0 0.0
      %1086 = vmatpush1.msra.mxu0 0.0
      %1087 = vmatprep.subr.mxu0 0.0
      %1088 = vmatpush1.msra.mxu0 0.0
      %1089 = vmatprep.subr.mxu0 0.0
      %1090 = vmatpush1.msra.mxu0 0.0
      %1091 = vmatprep.subr.mxu0 0.0
      %1092 = vmatpush1.msra.mxu0 0.0
      %1093 = vmatprep.subr.mxu0 0.0
      %1094 = vmatpush1.msra.mxu0 0.0
      %1095 = vmatprep.subr.mxu0 0.0
      %1096 = vmatpush1.msra.mxu0 0.0
      %1097 = vmatprep.mubr.f32.mxu0 0.0
      %1098 = vmatmul.mubr.f32.gmra.mrb[0].mxu0 %v1028
      %v1099 = vpop.f32.mrb[0].mxu0
      %v1100 = vadd.f32 %v1019, %v1099
      %v1101 = vpop.f32.mrb[0].mxu0
      %1102 = vmatprep.mubr.f32.mxu0 0.0
      %1103 = vmatmul.mubr.f32.gmra.mrb[0].mxu0 %v1031
      %v1104 = vpop.f32.mrb[0].mxu0
      %v1105 = vadd.f32 %v1024, %v1104
      %v1106 = vpop.f32.mrb[0].mxu0
      %1107 = vdwg.mxu0
      %v1108 = vld [vmem:[%s7] sm:$0x1]
      %v1110 = vlaneseq
      %v1111 = vshrl.u32 %v1110, 7
      %v1112 = vsub.s32 0, %v1111
      %v1113 = vrot.slane %v1108, %v1112
      %v1115 = vadd.f32 %v1100, %v1113
      %v1116 = vadd.f32 %v1105, %v1113
      %v1117 = vand.u32 2147483647, %v1115
      %v1118 = vand.u32 2147483647, %v1116
      %v1119 = vmul.f32 %v1117, 0.70710677
      %v1120 = vmul.f32 %v1118, 0.70710677
      %v1121 = vmul.f32 %v1119, 0.3275911
      %v1122 = vmul.f32 %v1120, 0.3275911
      %v1123 = vadd.f32 %v1121, 1.0
      %v1124 = vadd.f32 %v1122, 1.0
      %v1125 = vrcp.pop %v1123
      %v1126 = vmul.f32 1.0, %v1125
      %v1127 = vrcp.pop %v1124
      %v1128 = vmul.f32 1.0, %v1127
      %v1129 = vmul.f32 %v1126, 1.0614054
      %v1130 = vmul.f32 %v1128, 1.0614054
      %v1131 = vsub.f32 %v1129, 1.4531521
      %v1132 = vsub.f32 %v1130, 1.4531521
      %v1133 = vmul.f32 %v1131, %v1126
      %v1134 = vmul.f32 %v1132, %v1128
      %v1135 = vadd.f32 %v1133, 1.4214138
      %v1136 = vadd.f32 %v1134, 1.4214138
      %v1137 = vmul.f32 %v1135, %v1126
      %v1138 = vmul.f32 %v1136, %v1128
      %v1139 = vsub.f32 %v1137, 0.28449672
      %v1140 = vsub.f32 %v1138, 0.28449672
      %v1141 = vmul.f32 %v1139, %v1126
      %v1142 = vmul.f32 %v1140, %v1128
      %v1143 = vadd.f32 %v1141, 0.2548296
      %v1144 = vadd.f32 %v1142, 0.2548296
      %v1145 = vmul.f32 %v1143, %v1126
      %v1146 = vmul.f32 %v1144, %v1128
      %v1147 = vsub.f32 0.0, %v1119
      %v1148 = vsub.f32 0.0, %v1120
      %v1149 = vmul.f32 %v1147, %v1119
      %v1150 = vmul.f32 %v1148, %v1120
      %v1151 = vmul.f32 %v1149, 1.442695
      %v1152 = vpow.pop %v1151
      %v1153 = vmul.f32 %v1150, 1.442695
      %v1154 = vpow.pop %v1153
      %v1155 = vmul.f32 %v1145, %v1152
      %v1156 = vmul.f32 %v1146, %v1154
      %v1157 = vsub.f32 1.0, %v1155
      %v1158 = vsub.f32 1.0, %v1156
      %vm1159 = vcmp.ge.f32.partialorder %v1115, 0.0
      %vm1160 = vcmp.ge.f32.partialorder %v1116, 0.0
      %v1161 = vsub.f32 0.0, %v1157
      %v1162 = vsub.f32 0.0, %v1158
      %v1163 = vsel %vm1159, %v1157, %v1161
      %v1164 = vsel %vm1160, %v1158, %v1162
      %v1165 = vmul.f32 %v1115, 0.5
      %v1166 = vmul.f32 %v1116, 0.5
      %v1167 = vadd.f32 %v1163, 1.0
      %v1168 = vadd.f32 %v1164, 1.0
      %v1169 = vmul.f32 %v1165, %v1167
      %v1170 = vmul.f32 %v1166, %v1168
      %v1171 = vadd.f32 %v1169, %v329
      %v1172 = vadd.f32 %v1170, %v330
      %1173 = vst.msk [vmem:[%s327] sm:$0xff] %vm331, %v1171
      %1174 = vst.msk [vmem:[%s327 + $0x8] sm:$0xff] %vm331, %v1172
      %s1175 = smul.u32 2, %s19
      %p1176 = scmp.lt.s32.totalorder %s1175, 3
      %s1177 = scalar_select %p1176, %s1175, 3
      %s1178 = smul.addr %s1177, 8
      %s1179 = scalar_lea.vmem %s8, %s1178
      // Predicated region
      $region53: #{pst_transformer_forward.4} parent=51 // pred_check
        %p1180 = pneg %p215
      $region54: #{pst_transformer_forward.4} parent=51 // pred_check_branch
        %1182 = sbr.rel (%p1180) target = $region56
      $region55: #{pst_transformer_forward.4} parent=51 // pred_region
        %s1183 = smul.u32 2, %s19
      $region56: #{pst_transformer_forward.4} parent=51 // pred_fallthru
        _
    $region52: #{pst_transformer_forward.4} parent=5 // pred_fallthru
      _
    %p1184 = scmp.le.s32.totalorder 2, %s14
    // Predicated region
    $region57: #{pst_transformer_forward.4} parent=5 // pred_check
      %p1185 = pneg %p1184
    $region58: #{pst_transformer_forward.4} parent=5 // pred_check_branch
      %1187 = sbr.rel (%p1185) target = $region60
    $region59: #{pst_transformer_forward.4} parent=5 // pred_region
      %s1188 = ssub.s32 %s14, 2
      // Predicated region
      $region61: #{pst_transformer_forward.4} parent=59 // pred_check
        %p1189 = pneg %p221
      $region62: #{pst_transformer_forward.4} parent=59 // pred_check_branch
        %1191 = sbr.rel (%p1189) target = $region64
      $region63: #{pst_transformer_forward.4} parent=59 // pred_region
        %s1192 = smul.u32 2, %s20
        %p1193 = scmp.lt.s32.totalorder %s1192, 3
        %s1194 = scalar_select %p1193, %s1192, 3
        %s1195 = smul.addr %s1194, 8
        %s1196 = scalar_lea.vmem %s8, %s1195
      $region64: #{pst_transformer_forward.4} parent=59 // pred_fallthru
        _
    $region60: #{pst_transformer_forward.4} parent=5 // pred_fallthru
      _
  $region6: #{pst_transformer_forward.4} parent=0 // loop_footer
    %s18 = sadd.s32 1, %s14
  $region7: #{pst_transformer_forward.4} parent=0 // loop_footer_branch
    %13 = sbr.rel target = $region3
  $region8: #{pst_transformer_forward.4} parent=0 // loop_exit
    _

// kernel: pst_transformer_forward.3
$region0: #{pst_transformer_forward.3}
  #allocation0 [shape = 'u32[]', space=smem, size = 0x4, offset = 0x4, fixed_abs, tag = 'smem constant byte address 0x4 - core index']
  #allocation1 [shape = 'u32[144,128]{1,0:T(1,128)}', space=vmem, size = 0x12000, scoped, tag = 'internal scratch']
  %s0 = inlined_call_operand.vmem [shape: f32[4,96,8], index: 0, kind: input, shape index: {}]
  %s1 = inlined_call_operand.vmem [shape: f32[32,4], index: 1, kind: input, shape index: {}]
  %s2 = inlined_call_operand.vmem [shape: f32[4,32,8], index: 2, kind: output, shape index: {}]
  %s3 = sld [smem:[#allocation0]]
  $region18: #{pst_transformer_forward.3} parent=0
    _
  %s5 = ssub.s32 1, %s3
  %s6 = scalar_select 0, %s5, %s3
  // Predicated region
  $region2: #{pst_transformer_forward.3} parent=0 // pred_check
    _
  $region3: #{pst_transformer_forward.3} parent=0 // pred_check_branch
    %8 = sbr.rel (0) target = $region5
  $region4: #{pst_transformer_forward.3} parent=0 // pred_region
    _
  $region5: #{pst_transformer_forward.3} parent=0 // pred_fallthru
    _
  // Predicated region
  $region6: #{pst_transformer_forward.3} parent=0 // pred_check
    _
  $region7: #{pst_transformer_forward.3} parent=0 // pred_check_branch
    %10 = sbr.rel (0) target = $region9
  $region8: #{pst_transformer_forward.3} parent=0 // pred_region
    _
  $region9: #{pst_transformer_forward.3} parent=0 // pred_fallthru
    _
  %v11 = vld [vmem:[%s1] sm:$0xff]
  %v12 = vld [vmem:[%s1 + $0x8] sm:$0xff]
  %v13 = vld [vmem:[%s1 + $0x10] sm:$0xff]
  %v14 = vld [vmem:[%s1 + $0x18] sm:$0xff]
  %16 = vset.pattern.permute.xlu0 0
  %17 = vperm.xlu0 %16, %v11
  %v18 = vpop.permute.xlu0 %17
  %21 = vset.pattern.permute.xlu0 0
  %22 = vperm.xlu0 %21, %v12
  %v23 = vpop.permute.xlu0 %22
  %26 = vset.pattern.permute.xlu0 0
  %27 = vperm.xlu0 %26, %v13
  %v28 = vpop.permute.xlu0 %27
  %31 = vset.pattern.permute.xlu0 0
  %32 = vperm.xlu0 %31, %v14
  %v33 = vpop.permute.xlu0 %32
  %35 = vset.pattern.permute.xlu0 1
  %36 = vperm.xlu0 %35, %v11
  %v37 = vpop.permute.xlu0 %36
  %39 = vset.pattern.permute.xlu0 1
  %40 = vperm.xlu0 %39, %v12
  %v41 = vpop.permute.xlu0 %40
  %43 = vset.pattern.permute.xlu0 1
  %44 = vperm.xlu0 %43, %v13
  %v45 = vpop.permute.xlu0 %44
  %47 = vset.pattern.permute.xlu0 1
  %48 = vperm.xlu0 %47, %v14
  %v49 = vpop.permute.xlu0 %48
  %51 = vset.pattern.permute.xlu0 2
  %52 = vperm.xlu0 %51, %v11
  %v53 = vpop.permute.xlu0 %52
  %55 = vset.pattern.permute.xlu0 2
  %56 = vperm.xlu0 %55, %v12
  %v57 = vpop.permute.xlu0 %56
  %59 = vset.pattern.permute.xlu0 2
  %60 = vperm.xlu0 %59, %v13
  %v61 = vpop.permute.xlu0 %60
  %63 = vset.pattern.permute.xlu0 2
  %64 = vperm.xlu0 %63, %v14
  %v65 = vpop.permute.xlu0 %64
  %67 = vset.pattern.permute.xlu0 3
  %68 = vperm.xlu0 %67, %v11
  %v69 = vpop.permute.xlu0 %68
  %71 = vset.pattern.permute.xlu0 3
  %72 = vperm.xlu0 %71, %v12
  %v73 = vpop.permute.xlu0 %72
  %75 = vset.pattern.permute.xlu0 3
  %76 = vperm.xlu0 %75, %v13
  %v77 = vpop.permute.xlu0 %76
  %79 = vset.pattern.permute.xlu0 3
  %80 = vperm.xlu0 %79, %v14
  %v81 = vpop.permute.xlu0 %80
  %v83 = vld [vmem:[%s0] sm:$0x1]
  %v84 = vlaneseq
  %v85 = vshrl.u32 %v84, 7
  %v86 = vsub.s32 0, %v85
  %v87 = vrot.slane %v83, %v86
  %v88 = vmul.f32 %v18, %v87
  %v89 = vmul.f32 %v23, %v87
  %v90 = vmul.f32 %v28, %v87
  %v91 = vmul.f32 %v33, %v87
  %v92 = vld [vmem:[%s0 + $0x1] sm:$0x1]
  %v93 = vlaneseq
  %v94 = vshrl.u32 %v93, 7
  %v95 = vsub.s32 0, %v94
  %v96 = vrot.slane %v92, %v95
  %v97 = vmul.f32 %v37, %v96
  %v98 = vmul.f32 %v41, %v96
  %v99 = vmul.f32 %v45, %v96
  %v100 = vmul.f32 %v49, %v96
  %v101 = vadd.f32 %v88, %v97
  %v102 = vadd.f32 %v89, %v98
  %v103 = vadd.f32 %v90, %v99
  %v104 = vadd.f32 %v91, %v100
  %v105 = vld [vmem:[%s0 + $0x2] sm:$0x1]
  %v106 = vlaneseq
  %v107 = vshrl.u32 %v106, 7
  %v108 = vsub.s32 0, %v107
  %v109 = vrot.slane %v105, %v108
  %v110 = vmul.f32 %v53, %v109
  %v111 = vmul.f32 %v57, %v109
  %v112 = vmul.f32 %v61, %v109
  %v113 = vmul.f32 %v65, %v109
  %v114 = vadd.f32 %v101, %v110
  %v115 = vadd.f32 %v102, %v111
  %v116 = vadd.f32 %v103, %v112
  %v117 = vadd.f32 %v104, %v113
  %v118 = vld [vmem:[%s0 + $0x3] sm:$0x1]
  %v119 = vlaneseq
  %v120 = vshrl.u32 %v119, 7
  %v121 = vsub.s32 0, %v120
  %v122 = vrot.slane %v118, %v121
  %v123 = vmul.f32 %v69, %v122
  %v124 = vmul.f32 %v73, %v122
  %v125 = vmul.f32 %v77, %v122
  %v126 = vmul.f32 %v81, %v122
  %v127 = vadd.f32 %v114, %v123
  %v128 = vadd.f32 %v115, %v124
  %v129 = vadd.f32 %v116, %v125
  %v130 = vadd.f32 %v117, %v126
  %v131 = vld [vmem:[%s0 + $0x4] sm:$0x1]
  %v132 = vlaneseq
  %v133 = vshrl.u32 %v132, 7
  %v134 = vsub.s32 0, %v133
  %v135 = vrot.slane %v131, %v134
  %v136 = vmul.f32 %v18, %v135
  %v137 = vmul.f32 %v23, %v135
  %v138 = vmul.f32 %v28, %v135
  %v139 = vmul.f32 %v33, %v135
  %v140 = vld [vmem:[%s0 + $0x5] sm:$0x1]
  %v141 = vlaneseq
  %v142 = vshrl.u32 %v141, 7
  %v143 = vsub.s32 0, %v142
  %v144 = vrot.slane %v140, %v143
  %v145 = vmul.f32 %v37, %v144
  %v146 = vmul.f32 %v41, %v144
  %v147 = vmul.f32 %v45, %v144
  %v148 = vmul.f32 %v49, %v144
  %v149 = vadd.f32 %v136, %v145
  %v150 = vadd.f32 %v137, %v146
  %v151 = vadd.f32 %v138, %v147
  %v152 = vadd.f32 %v139, %v148
  %v153 = vld [vmem:[%s0 + $0x6] sm:$0x1]
  %v154 = vlaneseq
  %v155 = vshrl.u32 %v154, 7
  %v156 = vsub.s32 0, %v155
  %v157 = vrot.slane %v153, %v156
  %v158 = vmul.f32 %v53, %v157
  %v159 = vmul.f32 %v57, %v157
  %v160 = vmul.f32 %v61, %v157
  %v161 = vmul.f32 %v65, %v157
  %v162 = vadd.f32 %v149, %v158
  %v163 = vadd.f32 %v150, %v159
  %v164 = vadd.f32 %v151, %v160
  %v165 = vadd.f32 %v152, %v161
  %v166 = vld [vmem:[%s0 + $0x7] sm:$0x1]
  %v167 = vlaneseq
  %v168 = vshrl.u32 %v167, 7
  %v169 = vsub.s32 0, %v168
  %v170 = vrot.slane %v166, %v169
  %v171 = vmul.f32 %v69, %v170
  %v172 = vmul.f32 %v73, %v170
  %v173 = vmul.f32 %v77, %v170
  %v174 = vmul.f32 %v81, %v170
  %v175 = vadd.f32 %v162, %v171
  %v176 = vadd.f32 %v163, %v172
  %v177 = vadd.f32 %v164, %v173
  %v178 = vadd.f32 %v165, %v174
  %v179 = vmax.f32 %v127, %v175
  %v180 = vmax.f32 %v128, %v176
  %v181 = vmax.f32 %v129, %v177
  %v182 = vmax.f32 %v130, %v178
  %v183 = vld [vmem:[%s0 + $0x8] sm:$0x1]
  %v184 = vlaneseq
  %v185 = vshrl.u32 %v184, 7
  %v186 = vsub.s32 0, %v185
  %v187 = vrot.slane %v183, %v186
  %v188 = vmul.f32 %v18, %v187
  %v189 = vmul.f32 %v23, %v187
  %v190 = vmul.f32 %v28, %v187
  %v191 = vmul.f32 %v33, %v187
  %v192 = vld [vmem:[%s0 + $0x9] sm:$0x1]
  %v193 = vlaneseq
  %v194 = vshrl.u32 %v193, 7
  %v195 = vsub.s32 0, %v194
  %v196 = vrot.slane %v192, %v195
  %v197 = vmul.f32 %v37, %v196
  %v198 = vmul.f32 %v41, %v196
  %v199 = vmul.f32 %v45, %v196
  %v200 = vmul.f32 %v49, %v196
  %v201 = vadd.f32 %v188, %v197
  %v202 = vadd.f32 %v189, %v198
  %v203 = vadd.f32 %v190, %v199
  %v204 = vadd.f32 %v191, %v200
  %v205 = vld [vmem:[%s0 + $0xa] sm:$0x1]
  %v206 = vlaneseq
  %v207 = vshrl.u32 %v206, 7
  %v208 = vsub.s32 0, %v207
  %v209 = vrot.slane %v205, %v208
  %v210 = vmul.f32 %v53, %v209
  %v211 = vmul.f32 %v57, %v209
  %v212 = vmul.f32 %v61, %v209
  %v213 = vmul.f32 %v65, %v209
  %v214 = vadd.f32 %v201, %v210
  %v215 = vadd.f32 %v202, %v211
  %v216 = vadd.f32 %v203, %v212
  %v217 = vadd.f32 %v204, %v213
  %v218 = vld [vmem:[%s0 + $0xb] sm:$0x1]
  %v219 = vlaneseq
  %v220 = vshrl.u32 %v219, 7
  %v221 = vsub.s32 0, %v220
  %v222 = vrot.slane %v218, %v221
  %v223 = vmul.f32 %v69, %v222
  %v224 = vmul.f32 %v73, %v222
  %v225 = vmul.f32 %v77, %v222
  %v226 = vmul.f32 %v81, %v222
  %v227 = vadd.f32 %v214, %v223
  %v228 = vadd.f32 %v215, %v224
  %v229 = vadd.f32 %v216, %v225
  %v230 = vadd.f32 %v217, %v226
  %v231 = vmax.f32 %v179, %v227
  %v232 = vmax.f32 %v180, %v228
  %v233 = vmax.f32 %v181, %v229
  %v234 = vmax.f32 %v182, %v230
  %v235 = vld [vmem:[%s0 + $0xc] sm:$0x1]
  %v236 = vlaneseq
  %v237 = vshrl.u32 %v236, 7
  %v238 = vsub.s32 0, %v237
  %v239 = vrot.slane %v235, %v238
  %v240 = vmul.f32 %v18, %v239
  %v241 = vmul.f32 %v23, %v239
  %v242 = vmul.f32 %v28, %v239
  %v243 = vmul.f32 %v33, %v239
  %v244 = vld [vmem:[%s0 + $0xd] sm:$0x1]
  %v245 = vlaneseq
  %v246 = vshrl.u32 %v245, 7
  %v247 = vsub.s32 0, %v246
  %v248 = vrot.slane %v244, %v247
  %v249 = vmul.f32 %v37, %v248
  %v250 = vmul.f32 %v41, %v248
  %v251 = vmul.f32 %v45, %v248
  %v252 = vmul.f32 %v49, %v248
  %v253 = vadd.f32 %v240, %v249
  %v254 = vadd.f32 %v241, %v250
  %v255 = vadd.f32 %v242, %v251
  %v256 = vadd.f32 %v243, %v252
  %v257 = vld [vmem:[%s0 + $0xe] sm:$0x1]
  %v258 = vlaneseq
  %v259 = vshrl.u32 %v258, 7
  %v260 = vsub.s32 0, %v259
  %v261 = vrot.slane %v257, %v260
  %v262 = vmul.f32 %v53, %v261
  %v263 = vmul.f32 %v57, %v261
  %v264 = vmul.f32 %v61, %v261
  %v265 = vmul.f32 %v65, %v261
  %v266 = vadd.f32 %v253, %v262
  %v267 = vadd.f32 %v254, %v263
  %v268 = vadd.f32 %v255, %v264
  %v269 = vadd.f32 %v256, %v265
  %v270 = vld [vmem:[%s0 + $0xf] sm:$0x1]
  %v271 = vlaneseq
  %v272 = vshrl.u32 %v271, 7
  %v273 = vsub.s32 0, %v272
  %v274 = vrot.slane %v270, %v273
  %v275 = vmul.f32 %v69, %v274
  %v276 = vmul.f32 %v73, %v274
  %v277 = vmul.f32 %v77, %v274
  %v278 = vmul.f32 %v81, %v274
  %v279 = vadd.f32 %v266, %v275
  %v280 = vadd.f32 %v267, %v276
  %v281 = vadd.f32 %v268, %v277
  %v282 = vadd.f32 %v269, %v278
  %v283 = vmax.f32 %v231, %v279
  %v284 = vmax.f32 %v232, %v280
  %v285 = vmax.f32 %v233, %v281
  %v286 = vmax.f32 %v234, %v282
  %v287 = vld [vmem:[%s0 + $0x10] sm:$0x1]
  %v288 = vlaneseq
  %v289 = vshrl.u32 %v288, 7
  %v290 = vsub.s32 0, %v289
  %v291 = vrot.slane %v287, %v290
  %v292 = vmul.f32 %v18, %v291
  %v293 = vmul.f32 %v23, %v291
  %v294 = vmul.f32 %v28, %v291
  %v295 = vmul.f32 %v33, %v291
  %v296 = vld [vmem:[%s0 + $0x11] sm:$0x1]
  %v297 = vlaneseq
  %v298 = vshrl.u32 %v297, 7
  %v299 = vsub.s32 0, %v298
  %v300 = vrot.slane %v296, %v299
  %v301 = vmul.f32 %v37, %v300
  %v302 = vmul.f32 %v41, %v300
  %v303 = vmul.f32 %v45, %v300
  %v304 = vmul.f32 %v49, %v300
  %v305 = vadd.f32 %v292, %v301
  %v306 = vadd.f32 %v293, %v302
  %v307 = vadd.f32 %v294, %v303
  %v308 = vadd.f32 %v295, %v304
  %v309 = vld [vmem:[%s0 + $0x12] sm:$0x1]
  %v310 = vlaneseq
  %v311 = vshrl.u32 %v310, 7
  %v312 = vsub.s32 0, %v311
  %v313 = vrot.slane %v309, %v312
  %v314 = vmul.f32 %v53, %v313
  %v315 = vmul.f32 %v57, %v313
  %v316 = vmul.f32 %v61, %v313
  %v317 = vmul.f32 %v65, %v313
  %v318 = vadd.f32 %v305, %v314
  %v319 = vadd.f32 %v306, %v315
  %v320 = vadd.f32 %v307, %v316
  %v321 = vadd.f32 %v308, %v317
  %v322 = vld [vmem:[%s0 + $0x13] sm:$0x1]
  %v323 = vlaneseq
  %v324 = vshrl.u32 %v323, 7
  %v325 = vsub.s32 0, %v324
  %v326 = vrot.slane %v322, %v325
  %v327 = vmul.f32 %v69, %v326
  %v328 = vmul.f32 %v73, %v326
  %v329 = vmul.f32 %v77, %v326
  %v330 = vmul.f32 %v81, %v326
  %v331 = vadd.f32 %v318, %v327
  %v332 = vadd.f32 %v319, %v328
  %v333 = vadd.f32 %v320, %v329
  %v334 = vadd.f32 %v321, %v330
  %v335 = vmax.f32 %v283, %v331
  %v336 = vmax.f32 %v284, %v332
  %v337 = vmax.f32 %v285, %v333
  %v338 = vmax.f32 %v286, %v334
  %v339 = vld [vmem:[%s0 + $0x14] sm:$0x1]
  %v340 = vlaneseq
  %v341 = vshrl.u32 %v340, 7
  %v342 = vsub.s32 0, %v341
  %v343 = vrot.slane %v339, %v342
  %v344 = vmul.f32 %v18, %v343
  %v345 = vmul.f32 %v23, %v343
  %v346 = vmul.f32 %v28, %v343
  %v347 = vmul.f32 %v33, %v343
  %v348 = vld [vmem:[%s0 + $0x15] sm:$0x1]
  %v349 = vlaneseq
  %v350 = vshrl.u32 %v349, 7
  %v351 = vsub.s32 0, %v350
  %v352 = vrot.slane %v348, %v351
  %v353 = vmul.f32 %v37, %v352
  %v354 = vmul.f32 %v41, %v352
  %v355 = vmul.f32 %v45, %v352
  %v356 = vmul.f32 %v49, %v352
  %v357 = vadd.f32 %v344, %v353
  %v358 = vadd.f32 %v345, %v354
  %v359 = vadd.f32 %v346, %v355
  %v360 = vadd.f32 %v347, %v356
  %v361 = vld [vmem:[%s0 + $0x16] sm:$0x1]
  %v362 = vlaneseq
  %v363 = vshrl.u32 %v362, 7
  %v364 = vsub.s32 0, %v363
  %v365 = vrot.slane %v361, %v364
  %v366 = vmul.f32 %v53, %v365
  %v367 = vmul.f32 %v57, %v365
  %v368 = vmul.f32 %v61, %v365
  %v369 = vmul.f32 %v65, %v365
  %v370 = vadd.f32 %v357, %v366
  %v371 = vadd.f32 %v358, %v367
  %v372 = vadd.f32 %v359, %v368
  %v373 = vadd.f32 %v360, %v369
  %v374 = vld [vmem:[%s0 + $0x17] sm:$0x1]
  %v375 = vlaneseq
  %v376 = vshrl.u32 %v375, 7
  %v377 = vsub.s32 0, %v376
  %v378 = vrot.slane %v374, %v377
  %v379 = vmul.f32 %v69, %v378
  %v380 = vmul.f32 %v73, %v378
  %v381 = vmul.f32 %v77, %v378
  %v382 = vmul.f32 %v81, %v378
  %v383 = vadd.f32 %v370, %v379
  %v384 = vadd.f32 %v371, %v380
  %v385 = vadd.f32 %v372, %v381
  %v386 = vadd.f32 %v373, %v382
  %v387 = vmax.f32 %v335, %v383
  %v388 = vmax.f32 %v336, %v384
  %v389 = vmax.f32 %v337, %v385
  %v390 = vmax.f32 %v338, %v386
  %v391 = vld [vmem:[%s0 + $0x18] sm:$0x1]
  %v392 = vlaneseq
  %v393 = vshrl.u32 %v392, 7
  %v394 = vsub.s32 0, %v393
  %v395 = vrot.slane %v391, %v394
  %v396 = vmul.f32 %v18, %v395
  %v397 = vmul.f32 %v23, %v395
  %v398 = vmul.f32 %v28, %v395
  %v399 = vmul.f32 %v33, %v395
  %v400 = vld [vmem:[%s0 + $0x19] sm:$0x1]
  %v401 = vlaneseq
  %v402 = vshrl.u32 %v401, 7
  %v403 = vsub.s32 0, %v402
  %v404 = vrot.slane %v400, %v403
  %v405 = vmul.f32 %v37, %v404
  %v406 = vmul.f32 %v41, %v404
  %v407 = vmul.f32 %v45, %v404
  %v408 = vmul.f32 %v49, %v404
  %v409 = vadd.f32 %v396, %v405
  %v410 = vadd.f32 %v397, %v406
  %v411 = vadd.f32 %v398, %v407
  %v412 = vadd.f32 %v399, %v408
  %v413 = vld [vmem:[%s0 + $0x1a] sm:$0x1]
  %v414 = vlaneseq
  %v415 = vshrl.u32 %v414, 7
  %v416 = vsub.s32 0, %v415
  %v417 = vrot.slane %v413, %v416
  %v418 = vmul.f32 %v53, %v417
  %v419 = vmul.f32 %v57, %v417
  %v420 = vmul.f32 %v61, %v417
  %v421 = vmul.f32 %v65, %v417
  %v422 = vadd.f32 %v409, %v418
  %v423 = vadd.f32 %v410, %v419
  %v424 = vadd.f32 %v411, %v420
  %v425 = vadd.f32 %v412, %v421
  %v426 = vld [vmem:[%s0 + $0x1b] sm:$0x1]
  %v427 = vlaneseq
  %v428 = vshrl.u32 %v427, 7
  %v429 = vsub.s32 0, %v428
  %v430 = vrot.slane %v426, %v429
  %v431 = vmul.f32 %v69, %v430
  %v432 = vmul.f32 %v73, %v430
  %v433 = vmul.f32 %v77, %v430
  %v434 = vmul.f32 %v81, %v430
  %v435 = vadd.f32 %v422, %v431
  %v436 = vadd.f32 %v423, %v432
  %v437 = vadd.f32 %v424, %v433
  %v438 = vadd.f32 %v425, %v434
  %v439 = vmax.f32 %v387, %v435
  %v440 = vmax.f32 %v388, %v436
  %v441 = vmax.f32 %v389, %v437
  %v442 = vmax.f32 %v390, %v438
  %v443 = vld [vmem:[%s0 + $0x1c] sm:$0x1]
  %v444 = vlaneseq
  %v445 = vshrl.u32 %v444, 7
  %v446 = vsub.s32 0, %v445
  %v447 = vrot.slane %v443, %v446
  %v448 = vmul.f32 %v18, %v447
  %v449 = vmul.f32 %v23, %v447
  %v450 = vmul.f32 %v28, %v447
  %v451 = vmul.f32 %v33, %v447
  %v452 = vld [vmem:[%s0 + $0x1d] sm:$0x1]
  %v453 = vlaneseq
  %v454 = vshrl.u32 %v453, 7
  %v455 = vsub.s32 0, %v454
  %v456 = vrot.slane %v452, %v455
  %v457 = vmul.f32 %v37, %v456
  %v458 = vmul.f32 %v41, %v456
  %v459 = vmul.f32 %v45, %v456
  %v460 = vmul.f32 %v49, %v456
  %v461 = vadd.f32 %v448, %v457
  %v462 = vadd.f32 %v449, %v458
  %v463 = vadd.f32 %v450, %v459
  %v464 = vadd.f32 %v451, %v460
  %v465 = vld [vmem:[%s0 + $0x1e] sm:$0x1]
  %v466 = vlaneseq
  %v467 = vshrl.u32 %v466, 7
  %v468 = vsub.s32 0, %v467
  %v469 = vrot.slane %v465, %v468
  %v470 = vmul.f32 %v53, %v469
  %v471 = vmul.f32 %v57, %v469
  %v472 = vmul.f32 %v61, %v469
  %v473 = vmul.f32 %v65, %v469
  %v474 = vadd.f32 %v461, %v470
  %v475 = vadd.f32 %v462, %v471
  %v476 = vadd.f32 %v463, %v472
  %v477 = vadd.f32 %v464, %v473
  %v478 = vld [vmem:[%s0 + $0x1f] sm:$0x1]
  %v479 = vlaneseq
  %v480 = vshrl.u32 %v479, 7
  %v481 = vsub.s32 0, %v480
  %v482 = vrot.slane %v478, %v481
  %v483 = vmul.f32 %v69, %v482
  %v484 = vmul.f32 %v73, %v482
  %v485 = vmul.f32 %v77, %v482
  %v486 = vmul.f32 %v81, %v482
  %v487 = vadd.f32 %v474, %v483
  %v488 = vadd.f32 %v475, %v484
  %v489 = vadd.f32 %v476, %v485
  %v490 = vadd.f32 %v477, %v486
  %v491 = vmax.f32 %v439, %v487
  %v492 = vmax.f32 %v440, %v488
  %v493 = vmax.f32 %v441, %v489
  %v494 = vmax.f32 %v442, %v490
  %v495 = vld [vmem:[%s0 + $0x20] sm:$0x1]
  %v496 = vlaneseq
  %v497 = vshrl.u32 %v496, 7
  %v498 = vsub.s32 0, %v497
  %v499 = vrot.slane %v495, %v498
  %v500 = vmul.f32 %v18, %v499
  %v501 = vmul.f32 %v23, %v499
  %v502 = vmul.f32 %v28, %v499
  %v503 = vmul.f32 %v33, %v499
  %v504 = vld [vmem:[%s0 + $0x21] sm:$0x1]
  %v505 = vlaneseq
  %v506 = vshrl.u32 %v505, 7
  %v507 = vsub.s32 0, %v506
  %v508 = vrot.slane %v504, %v507
  %v509 = vmul.f32 %v37, %v508
  %v510 = vmul.f32 %v41, %v508
  %v511 = vmul.f32 %v45, %v508
  %v512 = vmul.f32 %v49, %v508
  %v513 = vadd.f32 %v500, %v509
  %v514 = vadd.f32 %v501, %v510
  %v515 = vadd.f32 %v502, %v511
  %v516 = vadd.f32 %v503, %v512
  %v517 = vld [vmem:[%s0 + $0x22] sm:$0x1]
  %v518 = vlaneseq
  %v519 = vshrl.u32 %v518, 7
  %v520 = vsub.s32 0, %v519
  %v521 = vrot.slane %v517, %v520
  %v522 = vmul.f32 %v53, %v521
  %v523 = vmul.f32 %v57, %v521
  %v524 = vmul.f32 %v61, %v521
  %v525 = vmul.f32 %v65, %v521
  %v526 = vadd.f32 %v513, %v522
  %v527 = vadd.f32 %v514, %v523
  %v528 = vadd.f32 %v515, %v524
  %v529 = vadd.f32 %v516, %v525
  %v530 = vld [vmem:[%s0 + $0x23] sm:$0x1]
  %v531 = vlaneseq
  %v532 = vshrl.u32 %v531, 7
  %v533 = vsub.s32 0, %v532
  %v534 = vrot.slane %v530, %v533
  %v535 = vmul.f32 %v69, %v534
  %v536 = vmul.f32 %v73, %v534
  %v537 = vmul.f32 %v77, %v534
  %v538 = vmul.f32 %v81, %v534
  %v539 = vadd.f32 %v526, %v535
  %v540 = vadd.f32 %v527, %v536
  %v541 = vadd.f32 %v528, %v537
  %v542 = vadd.f32 %v529, %v538
  %v543 = vmax.f32 %v491, %v539
  %v544 = vmax.f32 %v492, %v540
  %v545 = vmax.f32 %v493, %v541
  %v546 = vmax.f32 %v494, %v542
  %v547 = vld [vmem:[%s0 + $0x24] sm:$0x1]
  %v548 = vlaneseq
  %v549 = vshrl.u32 %v548, 7
  %v550 = vsub.s32 0, %v549
  %v551 = vrot.slane %v547, %v550
  %v552 = vmul.f32 %v18, %v551
  %v553 = vmul.f32 %v23, %v551
  %v554 = vmul.f32 %v28, %v551
  %v555 = vmul.f32 %v33, %v551
  %v556 = vld [vmem:[%s0 + $0x25] sm:$0x1]
  %v557 = vlaneseq
  %v558 = vshrl.u32 %v557, 7
  %v559 = vsub.s32 0, %v558
  %v560 = vrot.slane %v556, %v559
  %v561 = vmul.f32 %v37, %v560
  %v562 = vmul.f32 %v41, %v560
  %v563 = vmul.f32 %v45, %v560
  %v564 = vmul.f32 %v49, %v560
  %v565 = vadd.f32 %v552, %v561
  %v566 = vadd.f32 %v553, %v562
  %v567 = vadd.f32 %v554, %v563
  %v568 = vadd.f32 %v555, %v564
  %v569 = vld [vmem:[%s0 + $0x26] sm:$0x1]
  %v570 = vlaneseq
  %v571 = vshrl.u32 %v570, 7
  %v572 = vsub.s32 0, %v571
  %v573 = vrot.slane %v569, %v572
  %v574 = vmul.f32 %v53, %v573
  %v575 = vmul.f32 %v57, %v573
  %v576 = vmul.f32 %v61, %v573
  %v577 = vmul.f32 %v65, %v573
  %v578 = vadd.f32 %v565, %v574
  %v579 = vadd.f32 %v566, %v575
  %v580 = vadd.f32 %v567, %v576
  %v581 = vadd.f32 %v568, %v577
  %v582 = vld [vmem:[%s0 + $0x27] sm:$0x1]
  %v583 = vlaneseq
  %v584 = vshrl.u32 %v583, 7
  %v585 = vsub.s32 0, %v584
  %v586 = vrot.slane %v582, %v585
  %v587 = vmul.f32 %v69, %v586
  %v588 = vmul.f32 %v73, %v586
  %v589 = vmul.f32 %v77, %v586
  %v590 = vmul.f32 %v81, %v586
  %v591 = vadd.f32 %v578, %v587
  %v592 = vadd.f32 %v579, %v588
  %v593 = vadd.f32 %v580, %v589
  %v594 = vadd.f32 %v581, %v590
  %v595 = vmax.f32 %v543, %v591
  %v596 = vmax.f32 %v544, %v592
  %v597 = vmax.f32 %v545, %v593
  %v598 = vmax.f32 %v546, %v594
  %v599 = vld [vmem:[%s0 + $0x28] sm:$0x1]
  %v600 = vlaneseq
  %v601 = vshrl.u32 %v600, 7
  %v602 = vsub.s32 0, %v601
  %v603 = vrot.slane %v599, %v602
  %v604 = vmul.f32 %v18, %v603
  %v605 = vmul.f32 %v23, %v603
  %v606 = vmul.f32 %v28, %v603
  %v607 = vmul.f32 %v33, %v603
  %v608 = vld [vmem:[%s0 + $0x29] sm:$0x1]
  %v609 = vlaneseq
  %v610 = vshrl.u32 %v609, 7
  %v611 = vsub.s32 0, %v610
  %v612 = vrot.slane %v608, %v611
  %v613 = vmul.f32 %v37, %v612
  %v614 = vmul.f32 %v41, %v612
  %v615 = vmul.f32 %v45, %v612
  %v616 = vmul.f32 %v49, %v612
  %v617 = vadd.f32 %v604, %v613
  %v618 = vadd.f32 %v605, %v614
  %v619 = vadd.f32 %v606, %v615
  %v620 = vadd.f32 %v607, %v616
  %v621 = vld [vmem:[%s0 + $0x2a] sm:$0x1]
  %v622 = vlaneseq
  %v623 = vshrl.u32 %v622, 7
  %v624 = vsub.s32 0, %v623
  %v625 = vrot.slane %v621, %v624
  %v626 = vmul.f32 %v53, %v625
  %v627 = vmul.f32 %v57, %v625
  %v628 = vmul.f32 %v61, %v625
  %v629 = vmul.f32 %v65, %v625
  %v630 = vadd.f32 %v617, %v626
  %v631 = vadd.f32 %v618, %v627
  %v632 = vadd.f32 %v619, %v628
  %v633 = vadd.f32 %v620, %v629
  %v634 = vld [vmem:[%s0 + $0x2b] sm:$0x1]
  %v635 = vlaneseq
  %v636 = vshrl.u32 %v635, 7
  %v637 = vsub.s32 0, %v636
  %v638 = vrot.slane %v634, %v637
  %v639 = vmul.f32 %v69, %v638
  %v640 = vmul.f32 %v73, %v638
  %v641 = vmul.f32 %v77, %v638
  %v642 = vmul.f32 %v81, %v638
  %v643 = vadd.f32 %v630, %v639
  %v644 = vadd.f32 %v631, %v640
  %v645 = vadd.f32 %v632, %v641
  %v646 = vadd.f32 %v633, %v642
  %v647 = vmax.f32 %v595, %v643
  %v648 = vmax.f32 %v596, %v644
  %v649 = vmax.f32 %v597, %v645
  %v650 = vmax.f32 %v598, %v646
  %v651 = vld [vmem:[%s0 + $0x2c] sm:$0x1]
  %v652 = vlaneseq
  %v653 = vshrl.u32 %v652, 7
  %v654 = vsub.s32 0, %v653
  %v655 = vrot.slane %v651, %v654
  %v656 = vmul.f32 %v18, %v655
  %v657 = vmul.f32 %v23, %v655
  %v658 = vmul.f32 %v28, %v655
  %v659 = vmul.f32 %v33, %v655
  %v660 = vld [vmem:[%s0 + $0x2d] sm:$0x1]
  %v661 = vlaneseq
  %v662 = vshrl.u32 %v661, 7
  %v663 = vsub.s32 0, %v662
  %v664 = vrot.slane %v660, %v663
  %v665 = vmul.f32 %v37, %v664
  %v666 = vmul.f32 %v41, %v664
  %v667 = vmul.f32 %v45, %v664
  %v668 = vmul.f32 %v49, %v664
  %v669 = vadd.f32 %v656, %v665
  %v670 = vadd.f32 %v657, %v666
  %v671 = vadd.f32 %v658, %v667
  %v672 = vadd.f32 %v659, %v668
  %v673 = vld [vmem:[%s0 + $0x2e] sm:$0x1]
  %v674 = vlaneseq
  %v675 = vshrl.u32 %v674, 7
  %v676 = vsub.s32 0, %v675
  %v677 = vrot.slane %v673, %v676
  %v678 = vmul.f32 %v53, %v677
  %v679 = vmul.f32 %v57, %v677
  %v680 = vmul.f32 %v61, %v677
  %v681 = vmul.f32 %v65, %v677
  %v682 = vadd.f32 %v669, %v678
  %v683 = vadd.f32 %v670, %v679
  %v684 = vadd.f32 %v671, %v680
  %v685 = vadd.f32 %v672, %v681
  %v686 = vld [vmem:[%s0 + $0x2f] sm:$0x1]
  %v687 = vlaneseq
  %v688 = vshrl.u32 %v687, 7
  %v689 = vsub.s32 0, %v688
  %v690 = vrot.slane %v686, %v689
  %v691 = vmul.f32 %v69, %v690
  %v692 = vmul.f32 %v73, %v690
  %v693 = vmul.f32 %v77, %v690
  %v694 = vmul.f32 %v81, %v690
  %v695 = vadd.f32 %v682, %v691
  %v696 = vadd.f32 %v683, %v692
  %v697 = vadd.f32 %v684, %v693
  %v698 = vadd.f32 %v685, %v694
  %v699 = vmax.f32 %v647, %v695
  %v700 = vmax.f32 %v648, %v696
  %v701 = vmax.f32 %v649, %v697
  %v702 = vmax.f32 %v650, %v698
  %v703 = vld [vmem:[%s0 + $0x30] sm:$0x1]
  %v704 = vlaneseq
  %v705 = vshrl.u32 %v704, 7
  %v706 = vsub.s32 0, %v705
  %v707 = vrot.slane %v703, %v706
  %v708 = vmul.f32 %v18, %v707
  %v709 = vmul.f32 %v23, %v707
  %v710 = vmul.f32 %v28, %v707
  %v711 = vmul.f32 %v33, %v707
  %v712 = vld [vmem:[%s0 + $0x31] sm:$0x1]
  %v713 = vlaneseq
  %v714 = vshrl.u32 %v713, 7
  %v715 = vsub.s32 0, %v714
  %v716 = vrot.slane %v712, %v715
  %v717 = vmul.f32 %v37, %v716
  %v718 = vmul.f32 %v41, %v716
  %v719 = vmul.f32 %v45, %v716
  %v720 = vmul.f32 %v49, %v716
  %v721 = vadd.f32 %v708, %v717
  %v722 = vadd.f32 %v709, %v718
  %v723 = vadd.f32 %v710, %v719
  %v724 = vadd.f32 %v711, %v720
  %v725 = vld [vmem:[%s0 + $0x32] sm:$0x1]
  %v726 = vlaneseq
  %v727 = vshrl.u32 %v726, 7
  %v728 = vsub.s32 0, %v727
  %v729 = vrot.slane %v725, %v728
  %v730 = vmul.f32 %v53, %v729
  %v731 = vmul.f32 %v57, %v729
  %v732 = vmul.f32 %v61, %v729
  %v733 = vmul.f32 %v65, %v729
  %v734 = vadd.f32 %v721, %v730
  %v735 = vadd.f32 %v722, %v731
  %v736 = vadd.f32 %v723, %v732
  %v737 = vadd.f32 %v724, %v733
  %v738 = vld [vmem:[%s0 + $0x33] sm:$0x1]
  %v739 = vlaneseq
  %v740 = vshrl.u32 %v739, 7
  %v741 = vsub.s32 0, %v740
  %v742 = vrot.slane %v738, %v741
  %v743 = vmul.f32 %v69, %v742
  %v744 = vmul.f32 %v73, %v742
  %v745 = vmul.f32 %v77, %v742
  %v746 = vmul.f32 %v81, %v742
  %v747 = vadd.f32 %v734, %v743
  %v748 = vadd.f32 %v735, %v744
  %v749 = vadd.f32 %v736, %v745
  %v750 = vadd.f32 %v737, %v746
  %v751 = vmax.f32 %v699, %v747
  %v752 = vmax.f32 %v700, %v748
  %v753 = vmax.f32 %v701, %v749
  %v754 = vmax.f32 %v702, %v750
  %v755 = vld [vmem:[%s0 + $0x34] sm:$0x1]
  %v756 = vlaneseq
  %v757 = vshrl.u32 %v756, 7
  %v758 = vsub.s32 0, %v757
  %v759 = vrot.slane %v755, %v758
  %v760 = vmul.f32 %v18, %v759
  %v761 = vmul.f32 %v23, %v759
  %v762 = vmul.f32 %v28, %v759
  %v763 = vmul.f32 %v33, %v759
  %v764 = vld [vmem:[%s0 + $0x35] sm:$0x1]
  %v765 = vlaneseq
  %v766 = vshrl.u32 %v765, 7
  %v767 = vsub.s32 0, %v766
  %v768 = vrot.slane %v764, %v767
  %v769 = vmul.f32 %v37, %v768
  %v770 = vmul.f32 %v41, %v768
  %v771 = vmul.f32 %v45, %v768
  %v772 = vmul.f32 %v49, %v768
  %v773 = vadd.f32 %v760, %v769
  %v774 = vadd.f32 %v761, %v770
  %v775 = vadd.f32 %v762, %v771
  %v776 = vadd.f32 %v763, %v772
  %v777 = vld [vmem:[%s0 + $0x36] sm:$0x1]
  %v778 = vlaneseq
  %v779 = vshrl.u32 %v778, 7
  %v780 = vsub.s32 0, %v779
  %v781 = vrot.slane %v777, %v780
  %v782 = vmul.f32 %v53, %v781
  %v783 = vmul.f32 %v57, %v781
  %v784 = vmul.f32 %v61, %v781
  %v785 = vmul.f32 %v65, %v781
  %v786 = vadd.f32 %v773, %v782
  %v787 = vadd.f32 %v774, %v783
  %v788 = vadd.f32 %v775, %v784
  %v789 = vadd.f32 %v776, %v785
  %v790 = vld [vmem:[%s0 + $0x37] sm:$0x1]
  %v791 = vlaneseq
  %v792 = vshrl.u32 %v791, 7
  %v793 = vsub.s32 0, %v792
  %v794 = vrot.slane %v790, %v793
  %v795 = vmul.f32 %v69, %v794
  %v796 = vmul.f32 %v73, %v794
  %v797 = vmul.f32 %v77, %v794
  %v798 = vmul.f32 %v81, %v794
  %v799 = vadd.f32 %v786, %v795
  %v800 = vadd.f32 %v787, %v796
  %v801 = vadd.f32 %v788, %v797
  %v802 = vadd.f32 %v789, %v798
  %v803 = vmax.f32 %v751, %v799
  %v804 = vmax.f32 %v752, %v800
  %v805 = vmax.f32 %v753, %v801
  %v806 = vmax.f32 %v754, %v802
  %v807 = vld [vmem:[%s0 + $0x38] sm:$0x1]
  %v808 = vlaneseq
  %v809 = vshrl.u32 %v808, 7
  %v810 = vsub.s32 0, %v809
  %v811 = vrot.slane %v807, %v810
  %v812 = vmul.f32 %v18, %v811
  %v813 = vmul.f32 %v23, %v811
  %v814 = vmul.f32 %v28, %v811
  %v815 = vmul.f32 %v33, %v811
  %v816 = vld [vmem:[%s0 + $0x39] sm:$0x1]
  %v817 = vlaneseq
  %v818 = vshrl.u32 %v817, 7
  %v819 = vsub.s32 0, %v818
  %v820 = vrot.slane %v816, %v819
  %v821 = vmul.f32 %v37, %v820
  %v822 = vmul.f32 %v41, %v820
  %v823 = vmul.f32 %v45, %v820
  %v824 = vmul.f32 %v49, %v820
  %v825 = vadd.f32 %v812, %v821
  %v826 = vadd.f32 %v813, %v822
  %v827 = vadd.f32 %v814, %v823
  %v828 = vadd.f32 %v815, %v824
  %v829 = vld [vmem:[%s0 + $0x3a] sm:$0x1]
  %v830 = vlaneseq
  %v831 = vshrl.u32 %v830, 7
  %v832 = vsub.s32 0, %v831
  %v833 = vrot.slane %v829, %v832
  %v834 = vmul.f32 %v53, %v833
  %v835 = vmul.f32 %v57, %v833
  %v836 = vmul.f32 %v61, %v833
  %v837 = vmul.f32 %v65, %v833
  %v838 = vadd.f32 %v825, %v834
  %v839 = vadd.f32 %v826, %v835
  %v840 = vadd.f32 %v827, %v836
  %v841 = vadd.f32 %v828, %v837
  %v842 = vld [vmem:[%s0 + $0x3b] sm:$0x1]
  %v843 = vlaneseq
  %v844 = vshrl.u32 %v843, 7
  %v845 = vsub.s32 0, %v844
  %v846 = vrot.slane %v842, %v845
  %v847 = vmul.f32 %v69, %v846
  %v848 = vmul.f32 %v73, %v846
  %v849 = vmul.f32 %v77, %v846
  %v850 = vmul.f32 %v81, %v846
  %v851 = vadd.f32 %v838, %v847
  %v852 = vadd.f32 %v839, %v848
  %v853 = vadd.f32 %v840, %v849
  %v854 = vadd.f32 %v841, %v850
  %v855 = vmax.f32 %v803, %v851
  %v856 = vmax.f32 %v804, %v852
  %v857 = vmax.f32 %v805, %v853
  %v858 = vmax.f32 %v806, %v854
  %v859 = vld [vmem:[%s0 + $0x3c] sm:$0x1]
  %v860 = vlaneseq
  %v861 = vshrl.u32 %v860, 7
  %v862 = vsub.s32 0, %v861
  %v863 = vrot.slane %v859, %v862
  %v864 = vmul.f32 %v18, %v863
  %v865 = vmul.f32 %v23, %v863
  %v866 = vmul.f32 %v28, %v863
  %v867 = vmul.f32 %v33, %v863
  %v868 = vld [vmem:[%s0 + $0x3d] sm:$0x1]
  %v869 = vlaneseq
  %v870 = vshrl.u32 %v869, 7
  %v871 = vsub.s32 0, %v870
  %v872 = vrot.slane %v868, %v871
  %v873 = vmul.f32 %v37, %v872
  %v874 = vmul.f32 %v41, %v872
  %v875 = vmul.f32 %v45, %v872
  %v876 = vmul.f32 %v49, %v872
  %v877 = vadd.f32 %v864, %v873
  %v878 = vadd.f32 %v865, %v874
  %v879 = vadd.f32 %v866, %v875
  %v880 = vadd.f32 %v867, %v876
  %v881 = vld [vmem:[%s0 + $0x3e] sm:$0x1]
  %v882 = vlaneseq
  %v883 = vshrl.u32 %v882, 7
  %v884 = vsub.s32 0, %v883
  %v885 = vrot.slane %v881, %v884
  %v886 = vmul.f32 %v53, %v885
  %v887 = vmul.f32 %v57, %v885
  %v888 = vmul.f32 %v61, %v885
  %v889 = vmul.f32 %v65, %v885
  %v890 = vadd.f32 %v877, %v886
  %v891 = vadd.f32 %v878, %v887
  %v892 = vadd.f32 %v879, %v888
  %v893 = vadd.f32 %v880, %v889
  %v894 = vld [vmem:[%s0 + $0x3f] sm:$0x1]
  %v895 = vlaneseq
  %v896 = vshrl.u32 %v895, 7
  %v897 = vsub.s32 0, %v896
  %v898 = vrot.slane %v894, %v897
  %v899 = vmul.f32 %v69, %v898
  %v900 = vmul.f32 %v73, %v898
  %v901 = vmul.f32 %v77, %v898
  %v902 = vmul.f32 %v81, %v898
  %v903 = vadd.f32 %v890, %v899
  %v904 = vadd.f32 %v891, %v900
  %v905 = vadd.f32 %v892, %v901
  %v906 = vadd.f32 %v893, %v902
  %v907 = vmax.f32 %v855, %v903
  %v908 = vmax.f32 %v856, %v904
  %v909 = vmax.f32 %v857, %v905
  %v910 = vmax.f32 %v858, %v906
  %v911 = vld [vmem:[%s0 + $0x40] sm:$0x1]
  %v912 = vlaneseq
  %v913 = vshrl.u32 %v912, 7
  %v914 = vsub.s32 0, %v913
  %v915 = vrot.slane %v911, %v914
  %v916 = vmul.f32 %v18, %v915
  %v917 = vmul.f32 %v23, %v915
  %v918 = vmul.f32 %v28, %v915
  %v919 = vmul.f32 %v33, %v915
  %v920 = vld [vmem:[%s0 + $0x41] sm:$0x1]
  %v921 = vlaneseq
  %v922 = vshrl.u32 %v921, 7
  %v923 = vsub.s32 0, %v922
  %v924 = vrot.slane %v920, %v923
  %v925 = vmul.f32 %v37, %v924
  %v926 = vmul.f32 %v41, %v924
  %v927 = vmul.f32 %v45, %v924
  %v928 = vmul.f32 %v49, %v924
  %v929 = vadd.f32 %v916, %v925
  %v930 = vadd.f32 %v917, %v926
  %v931 = vadd.f32 %v918, %v927
  %v932 = vadd.f32 %v919, %v928
  %v933 = vld [vmem:[%s0 + $0x42] sm:$0x1]
  %v934 = vlaneseq
  %v935 = vshrl.u32 %v934, 7
  %v936 = vsub.s32 0, %v935
  %v937 = vrot.slane %v933, %v936
  %v938 = vmul.f32 %v53, %v937
  %v939 = vmul.f32 %v57, %v937
  %v940 = vmul.f32 %v61, %v937
  %v941 = vmul.f32 %v65, %v937
  %v942 = vadd.f32 %v929, %v938
  %v943 = vadd.f32 %v930, %v939
  %v944 = vadd.f32 %v931, %v940
  %v945 = vadd.f32 %v932, %v941
  %v946 = vld [vmem:[%s0 + $0x43] sm:$0x1]
  %v947 = vlaneseq
  %v948 = vshrl.u32 %v947, 7
  %v949 = vsub.s32 0, %v948
  %v950 = vrot.slane %v946, %v949
  %v951 = vmul.f32 %v69, %v950
  %v952 = vmul.f32 %v73, %v950
  %v953 = vmul.f32 %v77, %v950
  %v954 = vmul.f32 %v81, %v950
  %v955 = vadd.f32 %v942, %v951
  %v956 = vadd.f32 %v943, %v952
  %v957 = vadd.f32 %v944, %v953
  %v958 = vadd.f32 %v945, %v954
  %v959 = vmax.f32 %v907, %v955
  %v960 = vmax.f32 %v908, %v956
  %v961 = vmax.f32 %v909, %v957
  %v962 = vmax.f32 %v910, %v958
  %v963 = vld [vmem:[%s0 + $0x44] sm:$0x1]
  %v964 = vlaneseq
  %v965 = vshrl.u32 %v964, 7
  %v966 = vsub.s32 0, %v965
  %v967 = vrot.slane %v963, %v966
  %v968 = vmul.f32 %v18, %v967
  %v969 = vmul.f32 %v23, %v967
  %v970 = vmul.f32 %v28, %v967
  %v971 = vmul.f32 %v33, %v967
  %v972 = vld [vmem:[%s0 + $0x45] sm:$0x1]
  %v973 = vlaneseq
  %v974 = vshrl.u32 %v973, 7
  %v975 = vsub.s32 0, %v974
  %v976 = vrot.slane %v972, %v975
  %v977 = vmul.f32 %v37, %v976
  %v978 = vmul.f32 %v41, %v976
  %v979 = vmul.f32 %v45, %v976
  %v980 = vmul.f32 %v49, %v976
  %v981 = vadd.f32 %v968, %v977
  %v982 = vadd.f32 %v969, %v978
  %v983 = vadd.f32 %v970, %v979
  %v984 = vadd.f32 %v971, %v980
  %v985 = vld [vmem:[%s0 + $0x46] sm:$0x1]
  %v986 = vlaneseq
  %v987 = vshrl.u32 %v986, 7
  %v988 = vsub.s32 0, %v987
  %v989 = vrot.slane %v985, %v988
  %v990 = vmul.f32 %v53, %v989
  %v991 = vmul.f32 %v57, %v989
  %v992 = vmul.f32 %v61, %v989
  %v993 = vmul.f32 %v65, %v989
  %v994 = vadd.f32 %v981, %v990
  %v995 = vadd.f32 %v982, %v991
  %v996 = vadd.f32 %v983, %v992
  %v997 = vadd.f32 %v984, %v993
  %v998 = vld [vmem:[%s0 + $0x47] sm:$0x1]
  %v999 = vlaneseq
  %v1000 = vshrl.u32 %v999, 7
  %v1001 = vsub.s32 0, %v1000
  %v1002 = vrot.slane %v998, %v1001
  %v1003 = vmul.f32 %v69, %v1002
  %v1004 = vmul.f32 %v73, %v1002
  %v1005 = vmul.f32 %v77, %v1002
  %v1006 = vmul.f32 %v81, %v1002
  %v1007 = vadd.f32 %v994, %v1003
  %v1008 = vadd.f32 %v995, %v1004
  %v1009 = vadd.f32 %v996, %v1005
  %v1010 = vadd.f32 %v997, %v1006
  %v1011 = vmax.f32 %v959, %v1007
  %v1012 = vmax.f32 %v960, %v1008
  %v1013 = vmax.f32 %v961, %v1009
  %v1014 = vmax.f32 %v962, %v1010
  %v1015 = vld [vmem:[%s0 + $0x48] sm:$0x1]
  %v1016 = vlaneseq
  %v1017 = vshrl.u32 %v1016, 7
  %v1018 = vsub.s32 0, %v1017
  %v1019 = vrot.slane %v1015, %v1018
  %v1020 = vmul.f32 %v18, %v1019
  %v1021 = vmul.f32 %v23, %v1019
  %v1022 = vmul.f32 %v28, %v1019
  %v1023 = vmul.f32 %v33, %v1019
  %v1024 = vld [vmem:[%s0 + $0x49] sm:$0x1]
  %v1025 = vlaneseq
  %v1026 = vshrl.u32 %v1025, 7
  %v1027 = vsub.s32 0, %v1026
  %v1028 = vrot.slane %v1024, %v1027
  %v1029 = vmul.f32 %v37, %v1028
  %v1030 = vmul.f32 %v41, %v1028
  %v1031 = vmul.f32 %v45, %v1028
  %v1032 = vmul.f32 %v49, %v1028
  %v1033 = vadd.f32 %v1020, %v1029
  %v1034 = vadd.f32 %v1021, %v1030
  %v1035 = vadd.f32 %v1022, %v1031
  %v1036 = vadd.f32 %v1023, %v1032
  %v1037 = vld [vmem:[%s0 + $0x4a] sm:$0x1]
  %v1038 = vlaneseq
  %v1039 = vshrl.u32 %v1038, 7
  %v1040 = vsub.s32 0, %v1039
  %v1041 = vrot.slane %v1037, %v1040
  %v1042 = vmul.f32 %v53, %v1041
  %v1043 = vmul.f32 %v57, %v1041
  %v1044 = vmul.f32 %v61, %v1041
  %v1045 = vmul.f32 %v65, %v1041
  %v1046 = vadd.f32 %v1033, %v1042
  %v1047 = vadd.f32 %v1034, %v1043
  %v1048 = vadd.f32 %v1035, %v1044
  %v1049 = vadd.f32 %v1036, %v1045
  %v1050 = vld [vmem:[%s0 + $0x4b] sm:$0x1]
  %v1051 = vlaneseq
  %v1052 = vshrl.u32 %v1051, 7
  %v1053 = vsub.s32 0, %v1052
  %v1054 = vrot.slane %v1050, %v1053
  %v1055 = vmul.f32 %v69, %v1054
  %v1056 = vmul.f32 %v73, %v1054
  %v1057 = vmul.f32 %v77, %v1054
  %v1058 = vmul.f32 %v81, %v1054
  %v1059 = vadd.f32 %v1046, %v1055
  %v1060 = vadd.f32 %v1047, %v1056
  %v1061 = vadd.f32 %v1048, %v1057
  %v1062 = vadd.f32 %v1049, %v1058
  %v1063 = vmax.f32 %v1011, %v1059
  %v1064 = vmax.f32 %v1012, %v1060
  %v1065 = vmax.f32 %v1013, %v1061
  %v1066 = vmax.f32 %v1014, %v1062
  %v1067 = vld [vmem:[%s0 + $0x4c] sm:$0x1]
  %v1068 = vlaneseq
  %v1069 = vshrl.u32 %v1068, 7
  %v1070 = vsub.s32 0, %v1069
  %v1071 = vrot.slane %v1067, %v1070
  %v1072 = vmul.f32 %v18, %v1071
  %v1073 = vmul.f32 %v23, %v1071
  %v1074 = vmul.f32 %v28, %v1071
  %v1075 = vmul.f32 %v33, %v1071
  %v1076 = vld [vmem:[%s0 + $0x4d] sm:$0x1]
  %v1077 = vlaneseq
  %v1078 = vshrl.u32 %v1077, 7
  %v1079 = vsub.s32 0, %v1078
  %v1080 = vrot.slane %v1076, %v1079
  %v1081 = vmul.f32 %v37, %v1080
  %v1082 = vmul.f32 %v41, %v1080
  %v1083 = vmul.f32 %v45, %v1080
  %v1084 = vmul.f32 %v49, %v1080
  %v1085 = vadd.f32 %v1072, %v1081
  %v1086 = vadd.f32 %v1073, %v1082
  %v1087 = vadd.f32 %v1074, %v1083
  %v1088 = vadd.f32 %v1075, %v1084
  %v1089 = vld [vmem:[%s0 + $0x4e] sm:$0x1]
  %v1090 = vlaneseq
  %v1091 = vshrl.u32 %v1090, 7
  %v1092 = vsub.s32 0, %v1091
  %v1093 = vrot.slane %v1089, %v1092
  %v1094 = vmul.f32 %v53, %v1093
  %v1095 = vmul.f32 %v57, %v1093
  %v1096 = vmul.f32 %v61, %v1093
  %v1097 = vmul.f32 %v65, %v1093
  %v1098 = vadd.f32 %v1085, %v1094
  %v1099 = vadd.f32 %v1086, %v1095
  %v1100 = vadd.f32 %v1087, %v1096
  %v1101 = vadd.f32 %v1088, %v1097
  %v1102 = vld [vmem:[%s0 + $0x4f] sm:$0x1]
  %v1103 = vlaneseq
  %v1104 = vshrl.u32 %v1103, 7
  %v1105 = vsub.s32 0, %v1104
  %v1106 = vrot.slane %v1102, %v1105
  %v1107 = vmul.f32 %v69, %v1106
  %v1108 = vmul.f32 %v73, %v1106
  %v1109 = vmul.f32 %v77, %v1106
  %v1110 = vmul.f32 %v81, %v1106
  %v1111 = vadd.f32 %v1098, %v1107
  %v1112 = vadd.f32 %v1099, %v1108
  %v1113 = vadd.f32 %v1100, %v1109
  %v1114 = vadd.f32 %v1101, %v1110
  %v1115 = vmax.f32 %v1063, %v1111
  %v1116 = vmax.f32 %v1064, %v1112
  %v1117 = vmax.f32 %v1065, %v1113
  %v1118 = vmax.f32 %v1066, %v1114
  %v1119 = vld [vmem:[%s0 + $0x50] sm:$0x1]
  %v1120 = vlaneseq
  %v1121 = vshrl.u32 %v1120, 7
  %v1122 = vsub.s32 0, %v1121
  %v1123 = vrot.slane %v1119, %v1122
  %v1124 = vmul.f32 %v18, %v1123
  %v1125 = vmul.f32 %v23, %v1123
  %v1126 = vmul.f32 %v28, %v1123
  %v1127 = vmul.f32 %v33, %v1123
  %v1128 = vld [vmem:[%s0 + $0x51] sm:$0x1]
  %v1129 = vlaneseq
  %v1130 = vshrl.u32 %v1129, 7
  %v1131 = vsub.s32 0, %v1130
  %v1132 = vrot.slane %v1128, %v1131
  %v1133 = vmul.f32 %v37, %v1132
  %v1134 = vmul.f32 %v41, %v1132
  %v1135 = vmul.f32 %v45, %v1132
  %v1136 = vmul.f32 %v49, %v1132
  %v1137 = vadd.f32 %v1124, %v1133
  %v1138 = vadd.f32 %v1125, %v1134
  %v1139 = vadd.f32 %v1126, %v1135
  %v1140 = vadd.f32 %v1127, %v1136
  %v1141 = vld [vmem:[%s0 + $0x52] sm:$0x1]
  %v1142 = vlaneseq
  %v1143 = vshrl.u32 %v1142, 7
  %v1144 = vsub.s32 0, %v1143
  %v1145 = vrot.slane %v1141, %v1144
  %v1146 = vmul.f32 %v53, %v1145
  %v1147 = vmul.f32 %v57, %v1145
  %v1148 = vmul.f32 %v61, %v1145
  %v1149 = vmul.f32 %v65, %v1145
  %v1150 = vadd.f32 %v1137, %v1146
  %v1151 = vadd.f32 %v1138, %v1147
  %v1152 = vadd.f32 %v1139, %v1148
  %v1153 = vadd.f32 %v1140, %v1149
  %v1154 = vld [vmem:[%s0 + $0x53] sm:$0x1]
  %v1155 = vlaneseq
  %v1156 = vshrl.u32 %v1155, 7
  %v1157 = vsub.s32 0, %v1156
  %v1158 = vrot.slane %v1154, %v1157
  %v1159 = vmul.f32 %v69, %v1158
  %v1160 = vmul.f32 %v73, %v1158
  %v1161 = vmul.f32 %v77, %v1158
  %v1162 = vmul.f32 %v81, %v1158
  %v1163 = vadd.f32 %v1150, %v1159
  %v1164 = vadd.f32 %v1151, %v1160
  %v1165 = vadd.f32 %v1152, %v1161
  %v1166 = vadd.f32 %v1153, %v1162
  %v1167 = vmax.f32 %v1115, %v1163
  %v1168 = vmax.f32 %v1116, %v1164
  %v1169 = vmax.f32 %v1117, %v1165
  %v1170 = vmax.f32 %v1118, %v1166
  %v1171 = vld [vmem:[%s0 + $0x54] sm:$0x1]
  %v1172 = vlaneseq
  %v1173 = vshrl.u32 %v1172, 7
  %v1174 = vsub.s32 0, %v1173
  %v1175 = vrot.slane %v1171, %v1174
  %v1176 = vmul.f32 %v18, %v1175
  %v1177 = vmul.f32 %v23, %v1175
  %v1178 = vmul.f32 %v28, %v1175
  %v1179 = vmul.f32 %v33, %v1175
  %v1180 = vld [vmem:[%s0 + $0x55] sm:$0x1]
  %v1181 = vlaneseq
  %v1182 = vshrl.u32 %v1181, 7
  %v1183 = vsub.s32 0, %v1182
  %v1184 = vrot.slane %v1180, %v1183
  %v1185 = vmul.f32 %v37, %v1184
  %v1186 = vmul.f32 %v41, %v1184
  %v1187 = vmul.f32 %v45, %v1184
  %v1188 = vmul.f32 %v49, %v1184
  %v1189 = vadd.f32 %v1176, %v1185
  %v1190 = vadd.f32 %v1177, %v1186
  %v1191 = vadd.f32 %v1178, %v1187
  %v1192 = vadd.f32 %v1179, %v1188
  %v1193 = vld [vmem:[%s0 + $0x56] sm:$0x1]
  %v1194 = vlaneseq
  %v1195 = vshrl.u32 %v1194, 7
  %v1196 = vsub.s32 0, %v1195
  %v1197 = vrot.slane %v1193, %v1196
  %v1198 = vmul.f32 %v53, %v1197
  %v1199 = vmul.f32 %v57, %v1197
  %v1200 = vmul.f32 %v61, %v1197
  %v1201 = vmul.f32 %v65, %v1197
  %v1202 = vadd.f32 %v1189, %v1198
  %v1203 = vadd.f32 %v1190, %v1199
  %v1204 = vadd.f32 %v1191, %v1200
  %v1205 = vadd.f32 %v1192, %v1201
  %v1206 = vld [vmem:[%s0 + $0x57] sm:$0x1]
  %v1207 = vlaneseq
  %v1208 = vshrl.u32 %v1207, 7
  %v1209 = vsub.s32 0, %v1208
  %v1210 = vrot.slane %v1206, %v1209
  %v1211 = vmul.f32 %v69, %v1210
  %v1212 = vmul.f32 %v73, %v1210
  %v1213 = vmul.f32 %v77, %v1210
  %v1214 = vmul.f32 %v81, %v1210
  %v1215 = vadd.f32 %v1202, %v1211
  %v1216 = vadd.f32 %v1203, %v1212
  %v1217 = vadd.f32 %v1204, %v1213
  %v1218 = vadd.f32 %v1205, %v1214
  %v1219 = vmax.f32 %v1167, %v1215
  %v1220 = vmax.f32 %v1168, %v1216
  %v1221 = vmax.f32 %v1169, %v1217
  %v1222 = vmax.f32 %v1170, %v1218
  %v1223 = vld [vmem:[%s0 + $0x58] sm:$0x1]
  %v1224 = vlaneseq
  %v1225 = vshrl.u32 %v1224, 7
  %v1226 = vsub.s32 0, %v1225
  %v1227 = vrot.slane %v1223, %v1226
  %v1228 = vmul.f32 %v18, %v1227
  %v1229 = vmul.f32 %v23, %v1227
  %v1230 = vmul.f32 %v28, %v1227
  %v1231 = vmul.f32 %v33, %v1227
  %v1232 = vld [vmem:[%s0 + $0x59] sm:$0x1]
  %v1233 = vlaneseq
  %v1234 = vshrl.u32 %v1233, 7
  %v1235 = vsub.s32 0, %v1234
  %v1236 = vrot.slane %v1232, %v1235
  %v1237 = vmul.f32 %v37, %v1236
  %v1238 = vmul.f32 %v41, %v1236
  %v1239 = vmul.f32 %v45, %v1236
  %v1240 = vmul.f32 %v49, %v1236
  %v1241 = vadd.f32 %v1228, %v1237
  %v1242 = vadd.f32 %v1229, %v1238
  %v1243 = vadd.f32 %v1230, %v1239
  %v1244 = vadd.f32 %v1231, %v1240
  %v1245 = vld [vmem:[%s0 + $0x5a] sm:$0x1]
  %v1246 = vlaneseq
  %v1247 = vshrl.u32 %v1246, 7
  %v1248 = vsub.s32 0, %v1247
  %v1249 = vrot.slane %v1245, %v1248
  %v1250 = vmul.f32 %v53, %v1249
  %v1251 = vmul.f32 %v57, %v1249
  %v1252 = vmul.f32 %v61, %v1249
  %v1253 = vmul.f32 %v65, %v1249
  %v1254 = vadd.f32 %v1241, %v1250
  %v1255 = vadd.f32 %v1242, %v1251
  %v1256 = vadd.f32 %v1243, %v1252
  %v1257 = vadd.f32 %v1244, %v1253
  %v1258 = vld [vmem:[%s0 + $0x5b] sm:$0x1]
  %v1259 = vlaneseq
  %v1260 = vshrl.u32 %v1259, 7
  %v1261 = vsub.s32 0, %v1260
  %v1262 = vrot.slane %v1258, %v1261
  %v1263 = vmul.f32 %v69, %v1262
  %v1264 = vmul.f32 %v73, %v1262
  %v1265 = vmul.f32 %v77, %v1262
  %v1266 = vmul.f32 %v81, %v1262
  %v1267 = vadd.f32 %v1254, %v1263
  %v1268 = vadd.f32 %v1255, %v1264
  %v1269 = vadd.f32 %v1256, %v1265
  %v1270 = vadd.f32 %v1257, %v1266
  %v1271 = vmax.f32 %v1219, %v1267
  %v1272 = vmax.f32 %v1220, %v1268
  %v1273 = vmax.f32 %v1221, %v1269
  %v1274 = vmax.f32 %v1222, %v1270
  %v1275 = vld [vmem:[%s0 + $0x5c] sm:$0x1]
  %v1276 = vlaneseq
  %v1277 = vshrl.u32 %v1276, 7
  %v1278 = vsub.s32 0, %v1277
  %v1279 = vrot.slane %v1275, %v1278
  %v1280 = vmul.f32 %v18, %v1279
  %v1281 = vmul.f32 %v23, %v1279
  %v1282 = vmul.f32 %v28, %v1279
  %v1283 = vmul.f32 %v33, %v1279
  %v1284 = vld [vmem:[%s0 + $0x5d] sm:$0x1]
  %v1285 = vlaneseq
  %v1286 = vshrl.u32 %v1285, 7
  %v1287 = vsub.s32 0, %v1286
  %v1288 = vrot.slane %v1284, %v1287
  %v1289 = vmul.f32 %v37, %v1288
  %v1290 = vmul.f32 %v41, %v1288
  %v1291 = vmul.f32 %v45, %v1288
  %v1292 = vmul.f32 %v49, %v1288
  %v1293 = vadd.f32 %v1280, %v1289
  %v1294 = vadd.f32 %v1281, %v1290
  %v1295 = vadd.f32 %v1282, %v1291
  %v1296 = vadd.f32 %v1283, %v1292
  %v1297 = vld [vmem:[%s0 + $0x5e] sm:$0x1]
  %v1298 = vlaneseq
  %v1299 = vshrl.u32 %v1298, 7
  %v1300 = vsub.s32 0, %v1299
  %v1301 = vrot.slane %v1297, %v1300
  %v1302 = vmul.f32 %v53, %v1301
  %v1303 = vmul.f32 %v57, %v1301
  %v1304 = vmul.f32 %v61, %v1301
  %v1305 = vmul.f32 %v65, %v1301
  %v1306 = vadd.f32 %v1293, %v1302
  %v1307 = vadd.f32 %v1294, %v1303
  %v1308 = vadd.f32 %v1295, %v1304
  %v1309 = vadd.f32 %v1296, %v1305
  %v1310 = vld [vmem:[%s0 + $0x5f] sm:$0x1]
  %v1311 = vlaneseq
  %v1312 = vshrl.u32 %v1311, 7
  %v1313 = vsub.s32 0, %v1312
  %v1314 = vrot.slane %v1310, %v1313
  %v1315 = vmul.f32 %v69, %v1314
  %v1316 = vmul.f32 %v73, %v1314
  %v1317 = vmul.f32 %v77, %v1314
  %v1318 = vmul.f32 %v81, %v1314
  %v1319 = vadd.f32 %v1306, %v1315
  %v1320 = vadd.f32 %v1307, %v1316
  %v1321 = vadd.f32 %v1308, %v1317
  %v1322 = vadd.f32 %v1309, %v1318
  %v1323 = vmax.f32 %v1271, %v1319
  %v1324 = vmax.f32 %v1272, %v1320
  %v1325 = vmax.f32 %v1273, %v1321
  %v1326 = vmax.f32 %v1274, %v1322
  %vm1327 = vcmask 64512
  %1328 = vst.msk [vmem:[%s2] sm:$0xff] %vm1327, %v1323
  %1329 = vst.msk [vmem:[%s2 + $0x8] sm:$0xff] %vm1327, %v1324
  %1330 = vst.msk [vmem:[%s2 + $0x10] sm:$0xff] %vm1327, %v1325
  %1331 = vst.msk [vmem:[%s2 + $0x18] sm:$0xff] %vm1327, %v1326
  %s1332 = scalar_lea.vmem %s0, 96
  %v1333 = vld [vmem:[%s1332] sm:$0x1]
  %v1334 = vlaneseq
  %v1335 = vshrl.u32 %v1334, 7
  %v1336 = vsub.s32 0, %v1335
  %v1337 = vrot.slane %v1333, %v1336
  %v1338 = vmul.f32 %v18, %v1337
  %v1339 = vmul.f32 %v23, %v1337
  %v1340 = vmul.f32 %v28, %v1337
  %v1341 = vmul.f32 %v33, %v1337
  %v1342 = vld [vmem:[%s1332 + $0x1] sm:$0x1]
  %v1343 = vlaneseq
  %v1344 = vshrl.u32 %v1343, 7
  %v1345 = vsub.s32 0, %v1344
  %v1346 = vrot.slane %v1342, %v1345
  %v1347 = vmul.f32 %v37, %v1346
  %v1348 = vmul.f32 %v41, %v1346
  %v1349 = vmul.f32 %v45, %v1346
  %v1350 = vmul.f32 %v49, %v1346
  %v1351 = vadd.f32 %v1338, %v1347
  %v1352 = vadd.f32 %v1339, %v1348
  %v1353 = vadd.f32 %v1340, %v1349
  %v1354 = vadd.f32 %v1341, %v1350
  %v1355 = vld [vmem:[%s1332 + $0x2] sm:$0x1]
  %v1356 = vlaneseq
  %v1357 = vshrl.u32 %v1356, 7
  %v1358 = vsub.s32 0, %v1357
  %v1359 = vrot.slane %v1355, %v1358
  %v1360 = vmul.f32 %v53, %v1359
  %v1361 = vmul.f32 %v57, %v1359
  %v1362 = vmul.f32 %v61, %v1359
  %v1363 = vmul.f32 %v65, %v1359
  %v1364 = vadd.f32 %v1351, %v1360
  %v1365 = vadd.f32 %v1352, %v1361
  %v1366 = vadd.f32 %v1353, %v1362
  %v1367 = vadd.f32 %v1354, %v1363
  %v1368 = vld [vmem:[%s1332 + $0x3] sm:$0x1]
  %v1369 = vlaneseq
  %v1370 = vshrl.u32 %v1369, 7
  %v1371 = vsub.s32 0, %v1370
  %v1372 = vrot.slane %v1368, %v1371
  %v1373 = vmul.f32 %v69, %v1372
  %v1374 = vmul.f32 %v73, %v1372
  %v1375 = vmul.f32 %v77, %v1372
  %v1376 = vmul.f32 %v81, %v1372
  %v1377 = vadd.f32 %v1364, %v1373
  %v1378 = vadd.f32 %v1365, %v1374
  %v1379 = vadd.f32 %v1366, %v1375
  %v1380 = vadd.f32 %v1367, %v1376
  %v1381 = vld [vmem:[%s1332 + $0x4] sm:$0x1]
  %v1382 = vlaneseq
  %v1383 = vshrl.u32 %v1382, 7
  %v1384 = vsub.s32 0, %v1383
  %v1385 = vrot.slane %v1381, %v1384
  %v1386 = vmul.f32 %v18, %v1385
  %v1387 = vmul.f32 %v23, %v1385
  %v1388 = vmul.f32 %v28, %v1385
  %v1389 = vmul.f32 %v33, %v1385
  %v1390 = vld [vmem:[%s1332 + $0x5] sm:$0x1]
  %v1391 = vlaneseq
  %v1392 = vshrl.u32 %v1391, 7
  %v1393 = vsub.s32 0, %v1392
  %v1394 = vrot.slane %v1390, %v1393
  %v1395 = vmul.f32 %v37, %v1394
  %v1396 = vmul.f32 %v41, %v1394
  %v1397 = vmul.f32 %v45, %v1394
  %v1398 = vmul.f32 %v49, %v1394
  %v1399 = vadd.f32 %v1386, %v1395
  %v1400 = vadd.f32 %v1387, %v1396
  %v1401 = vadd.f32 %v1388, %v1397
  %v1402 = vadd.f32 %v1389, %v1398
  %v1403 = vld [vmem:[%s1332 + $0x6] sm:$0x1]
  %v1404 = vlaneseq
  %v1405 = vshrl.u32 %v1404, 7
  %v1406 = vsub.s32 0, %v1405
  %v1407 = vrot.slane %v1403, %v1406
  %v1408 = vmul.f32 %v53, %v1407
  %v1409 = vmul.f32 %v57, %v1407
  %v1410 = vmul.f32 %v61, %v1407
  %v1411 = vmul.f32 %v65, %v1407
  %v1412 = vadd.f32 %v1399, %v1408
  %v1413 = vadd.f32 %v1400, %v1409
  %v1414 = vadd.f32 %v1401, %v1410
  %v1415 = vadd.f32 %v1402, %v1411
  %v1416 = vld [vmem:[%s1332 + $0x7] sm:$0x1]
  %v1417 = vlaneseq
  %v1418 = vshrl.u32 %v1417, 7
  %v1419 = vsub.s32 0, %v1418
  %v1420 = vrot.slane %v1416, %v1419
  %v1421 = vmul.f32 %v69, %v1420
  %v1422 = vmul.f32 %v73, %v1420
  %v1423 = vmul.f32 %v77, %v1420
  %v1424 = vmul.f32 %v81, %v1420
  %v1425 = vadd.f32 %v1412, %v1421
  %v1426 = vadd.f32 %v1413, %v1422
  %v1427 = vadd.f32 %v1414, %v1423
  %v1428 = vadd.f32 %v1415, %v1424
  %v1429 = vmax.f32 %v1377, %v1425
  %v1430 = vmax.f32 %v1378, %v1426
  %v1431 = vmax.f32 %v1379, %v1427
  %v1432 = vmax.f32 %v1380, %v1428
  %v1433 = vld [vmem:[%s1332 + $0x8] sm:$0x1]
  %v1434 = vlaneseq
  %v1435 = vshrl.u32 %v1434, 7
  %v1436 = vsub.s32 0, %v1435
  %v1437 = vrot.slane %v1433, %v1436
  %v1438 = vmul.f32 %v18, %v1437
  %v1439 = vmul.f32 %v23, %v1437
  %v1440 = vmul.f32 %v28, %v1437
  %v1441 = vmul.f32 %v33, %v1437
  %v1442 = vld [vmem:[%s1332 + $0x9] sm:$0x1]
  %v1443 = vlaneseq
  %v1444 = vshrl.u32 %v1443, 7
  %v1445 = vsub.s32 0, %v1444
  %v1446 = vrot.slane %v1442, %v1445
  %v1447 = vmul.f32 %v37, %v1446
  %v1448 = vmul.f32 %v41, %v1446
  %v1449 = vmul.f32 %v45, %v1446
  %v1450 = vmul.f32 %v49, %v1446
  %v1451 = vadd.f32 %v1438, %v1447
  %v1452 = vadd.f32 %v1439, %v1448
  %v1453 = vadd.f32 %v1440, %v1449
  %v1454 = vadd.f32 %v1441, %v1450
  %v1455 = vld [vmem:[%s1332 + $0xa] sm:$0x1]
  %v1456 = vlaneseq
  %v1457 = vshrl.u32 %v1456, 7
  %v1458 = vsub.s32 0, %v1457
  %v1459 = vrot.slane %v1455, %v1458
  %v1460 = vmul.f32 %v53, %v1459
  %v1461 = vmul.f32 %v57, %v1459
  %v1462 = vmul.f32 %v61, %v1459
  %v1463 = vmul.f32 %v65, %v1459
  %v1464 = vadd.f32 %v1451, %v1460
  %v1465 = vadd.f32 %v1452, %v1461
  %v1466 = vadd.f32 %v1453, %v1462
  %v1467 = vadd.f32 %v1454, %v1463
  %v1468 = vld [vmem:[%s1332 + $0xb] sm:$0x1]
  %v1469 = vlaneseq
  %v1470 = vshrl.u32 %v1469, 7
  %v1471 = vsub.s32 0, %v1470
  %v1472 = vrot.slane %v1468, %v1471
  %v1473 = vmul.f32 %v69, %v1472
  %v1474 = vmul.f32 %v73, %v1472
  %v1475 = vmul.f32 %v77, %v1472
  %v1476 = vmul.f32 %v81, %v1472
  %v1477 = vadd.f32 %v1464, %v1473
  %v1478 = vadd.f32 %v1465, %v1474
  %v1479 = vadd.f32 %v1466, %v1475
  %v1480 = vadd.f32 %v1467, %v1476
  %v1481 = vmax.f32 %v1429, %v1477
  %v1482 = vmax.f32 %v1430, %v1478
  %v1483 = vmax.f32 %v1431, %v1479
  %v1484 = vmax.f32 %v1432, %v1480
  %v1485 = vld [vmem:[%s1332 + $0xc] sm:$0x1]
  %v1486 = vlaneseq
  %v1487 = vshrl.u32 %v1486, 7
  %v1488 = vsub.s32 0, %v1487
  %v1489 = vrot.slane %v1485, %v1488
  %v1490 = vmul.f32 %v18, %v1489
  %v1491 = vmul.f32 %v23, %v1489
  %v1492 = vmul.f32 %v28, %v1489
  %v1493 = vmul.f32 %v33, %v1489
  %v1494 = vld [vmem:[%s1332 + $0xd] sm:$0x1]
  %v1495 = vlaneseq
  %v1496 = vshrl.u32 %v1495, 7
  %v1497 = vsub.s32 0, %v1496
  %v1498 = vrot.slane %v1494, %v1497
  %v1499 = vmul.f32 %v37, %v1498
  %v1500 = vmul.f32 %v41, %v1498
  %v1501 = vmul.f32 %v45, %v1498
  %v1502 = vmul.f32 %v49, %v1498
  %v1503 = vadd.f32 %v1490, %v1499
  %v1504 = vadd.f32 %v1491, %v1500
  %v1505 = vadd.f32 %v1492, %v1501
  %v1506 = vadd.f32 %v1493, %v1502
  %v1507 = vld [vmem:[%s1332 + $0xe] sm:$0x1]
  %v1508 = vlaneseq
  %v1509 = vshrl.u32 %v1508, 7
  %v1510 = vsub.s32 0, %v1509
  %v1511 = vrot.slane %v1507, %v1510
  %v1512 = vmul.f32 %v53, %v1511
  %v1513 = vmul.f32 %v57, %v1511
  %v1514 = vmul.f32 %v61, %v1511
  %v1515 = vmul.f32 %v65, %v1511
  %v1516 = vadd.f32 %v1503, %v1512
  %v1517 = vadd.f32 %v1504, %v1513
  %v1518 = vadd.f32 %v1505, %v1514
  %v1519 = vadd.f32 %v1506, %v1515
  %v1520 = vld [vmem:[%s1332 + $0xf] sm:$0x1]
  %v1521 = vlaneseq
  %v1522 = vshrl.u32 %v1521, 7
  %v1523 = vsub.s32 0, %v1522
  %v1524 = vrot.slane %v1520, %v1523
  %v1525 = vmul.f32 %v69, %v1524
  %v1526 = vmul.f32 %v73, %v1524
  %v1527 = vmul.f32 %v77, %v1524
  %v1528 = vmul.f32 %v81, %v1524
  %v1529 = vadd.f32 %v1516, %v1525
  %v1530 = vadd.f32 %v1517, %v1526
  %v1531 = vadd.f32 %v1518, %v1527
  %v1532 = vadd.f32 %v1519, %v1528
  %v1533 = vmax.f32 %v1481, %v1529
  %v1534 = vmax.f32 %v1482, %v1530
  %v1535 = vmax.f32 %v1483, %v1531
  %v1536 = vmax.f32 %v1484, %v1532
  %v1537 = vld [vmem:[%s1332 + $0x10] sm:$0x1]
  %v1538 = vlaneseq
  %v1539 = vshrl.u32 %v1538, 7
  %v1540 = vsub.s32 0, %v1539
  %v1541 = vrot.slane %v1537, %v1540
  %v1542 = vmul.f32 %v18, %v1541
  %v1543 = vmul.f32 %v23, %v1541
  %v1544 = vmul.f32 %v28, %v1541
  %v1545 = vmul.f32 %v33, %v1541
  %v1546 = vld [vmem:[%s1332 + $0x11] sm:$0x1]
  %v1547 = vlaneseq
  %v1548 = vshrl.u32 %v1547, 7
  %v1549 = vsub.s32 0, %v1548
  %v1550 = vrot.slane %v1546, %v1549
  %v1551 = vmul.f32 %v37, %v1550
  %v1552 = vmul.f32 %v41, %v1550
  %v1553 = vmul.f32 %v45, %v1550
  %v1554 = vmul.f32 %v49, %v1550
  %v1555 = vadd.f32 %v1542, %v1551
  %v1556 = vadd.f32 %v1543, %v1552
  %v1557 = vadd.f32 %v1544, %v1553
  %v1558 = vadd.f32 %v1545, %v1554
  %v1559 = vld [vmem:[%s1332 + $0x12] sm:$0x1]
  %v1560 = vlaneseq
  %v1561 = vshrl.u32 %v1560, 7
  %v1562 = vsub.s32 0, %v1561
  %v1563 = vrot.slane %v1559, %v1562
  %v1564 = vmul.f32 %v53, %v1563
  %v1565 = vmul.f32 %v57, %v1563
  %v1566 = vmul.f32 %v61, %v1563
  %v1567 = vmul.f32 %v65, %v1563
  %v1568 = vadd.f32 %v1555, %v1564
  %v1569 = vadd.f32 %v1556, %v1565
  %v1570 = vadd.f32 %v1557, %v1566
  %v1571 = vadd.f32 %v1558, %v1567
  %v1572 = vld [vmem:[%s1332 + $0x13] sm:$0x1]
  %v1573 = vlaneseq
  %v1574 = vshrl.u32 %v1573, 7
  %v1575 = vsub.s32 0, %v1574
  %v1576 = vrot.slane %v1572, %v1575
  %v1577 = vmul.f32 %v69, %v1576
  %v1578 = vmul.f32 %v73, %v1576
  %v1579 = vmul.f32 %v77, %v1576
  %v1580 = vmul.f32 %v81, %v1576
  %v1581 = vadd.f32 %v1568, %v1577
  %v1582 = vadd.f32 %v1569, %v1578
  %v1583 = vadd.f32 %v1570, %v1579
  %v1584 = vadd.f32 %v1571, %v1580
  %v1585 = vmax.f32 %v1533, %v1581
  %v1586 = vmax.f32 %v1534, %v1582
  %v1587 = vmax.f32 %v1535, %v1583
  %v1588 = vmax.f32 %v1536, %v1584
  %v1589 = vld [vmem:[%s1332 + $0x14] sm:$0x1]
  %v1590 = vlaneseq
  %v1591 = vshrl.u32 %v1590, 7
  %v1592 = vsub.s32 0, %v1591
  %v1593 = vrot.slane %v1589, %v1592
  %v1594 = vmul.f32 %v18, %v1593
  %v1595 = vmul.f32 %v23, %v1593
  %v1596 = vmul.f32 %v28, %v1593
  %v1597 = vmul.f32 %v33, %v1593
  %v1598 = vld [vmem:[%s1332 + $0x15] sm:$0x1]
  %v1599 = vlaneseq
  %v1600 = vshrl.u32 %v1599, 7
  %v1601 = vsub.s32 0, %v1600
  %v1602 = vrot.slane %v1598, %v1601
  %v1603 = vmul.f32 %v37, %v1602
  %v1604 = vmul.f32 %v41, %v1602
  %v1605 = vmul.f32 %v45, %v1602
  %v1606 = vmul.f32 %v49, %v1602
  %v1607 = vadd.f32 %v1594, %v1603
  %v1608 = vadd.f32 %v1595, %v1604
  %v1609 = vadd.f32 %v1596, %v1605
  %v1610 = vadd.f32 %v1597, %v1606
  %v1611 = vld [vmem:[%s1332 + $0x16] sm:$0x1]
  %v1612 = vlaneseq
  %v1613 = vshrl.u32 %v1612, 7
  %v1614 = vsub.s32 0, %v1613
  %v1615 = vrot.slane %v1611, %v1614
  %v1616 = vmul.f32 %v53, %v1615
  %v1617 = vmul.f32 %v57, %v1615
  %v1618 = vmul.f32 %v61, %v1615
  %v1619 = vmul.f32 %v65, %v1615
  %v1620 = vadd.f32 %v1607, %v1616
  %v1621 = vadd.f32 %v1608, %v1617
  %v1622 = vadd.f32 %v1609, %v1618
  %v1623 = vadd.f32 %v1610, %v1619
  %v1624 = vld [vmem:[%s1332 + $0x17] sm:$0x1]
  %v1625 = vlaneseq
  %v1626 = vshrl.u32 %v1625, 7
  %v1627 = vsub.s32 0, %v1626
  %v1628 = vrot.slane %v1624, %v1627
  %v1629 = vmul.f32 %v69, %v1628
  %v1630 = vmul.f32 %v73, %v1628
  %v1631 = vmul.f32 %v77, %v1628
  %v1632 = vmul.f32 %v81, %v1628
  %v1633 = vadd.f32 %v1620, %v1629
  %v1634 = vadd.f32 %v1621, %v1630
  %v1635 = vadd.f32 %v1622, %v1631
  %v1636 = vadd.f32 %v1623, %v1632
  %v1637 = vmax.f32 %v1585, %v1633
  %v1638 = vmax.f32 %v1586, %v1634
  %v1639 = vmax.f32 %v1587, %v1635
  %v1640 = vmax.f32 %v1588, %v1636
  %v1641 = vld [vmem:[%s1332 + $0x18] sm:$0x1]
  %v1642 = vlaneseq
  %v1643 = vshrl.u32 %v1642, 7
  %v1644 = vsub.s32 0, %v1643
  %v1645 = vrot.slane %v1641, %v1644
  %v1646 = vmul.f32 %v18, %v1645
  %v1647 = vmul.f32 %v23, %v1645
  %v1648 = vmul.f32 %v28, %v1645
  %v1649 = vmul.f32 %v33, %v1645
  %v1650 = vld [vmem:[%s1332 + $0x19] sm:$0x1]
  %v1651 = vlaneseq
  %v1652 = vshrl.u32 %v1651, 7
  %v1653 = vsub.s32 0, %v1652
  %v1654 = vrot.slane %v1650, %v1653
  %v1655 = vmul.f32 %v37, %v1654
  %v1656 = vmul.f32 %v41, %v1654
  %v1657 = vmul.f32 %v45, %v1654
  %v1658 = vmul.f32 %v49, %v1654
  %v1659 = vadd.f32 %v1646, %v1655
  %v1660 = vadd.f32 %v1647, %v1656
  %v1661 = vadd.f32 %v1648, %v1657
  %v1662 = vadd.f32 %v1649, %v1658
  %v1663 = vld [vmem:[%s1332 + $0x1a] sm:$0x1]
  %v1664 = vlaneseq
  %v1665 = vshrl.u32 %v1664, 7
  %v1666 = vsub.s32 0, %v1665
  %v1667 = vrot.slane %v1663, %v1666
  %v1668 = vmul.f32 %v53, %v1667
  %v1669 = vmul.f32 %v57, %v1667
  %v1670 = vmul.f32 %v61, %v1667
  %v1671 = vmul.f32 %v65, %v1667
  %v1672 = vadd.f32 %v1659, %v1668
  %v1673 = vadd.f32 %v1660, %v1669
  %v1674 = vadd.f32 %v1661, %v1670
  %v1675 = vadd.f32 %v1662, %v1671
  %v1676 = vld [vmem:[%s1332 + $0x1b] sm:$0x1]
  %v1677 = vlaneseq
  %v1678 = vshrl.u32 %v1677, 7
  %v1679 = vsub.s32 0, %v1678
  %v1680 = vrot.slane %v1676, %v1679
  %v1681 = vmul.f32 %v69, %v1680
  %v1682 = vmul.f32 %v73, %v1680
  %v1683 = vmul.f32 %v77, %v1680
  %v1684 = vmul.f32 %v81, %v1680
  %v1685 = vadd.f32 %v1672, %v1681
  %v1686 = vadd.f32 %v1673, %v1682
  %v1687 = vadd.f32 %v1674, %v1683
  %v1688 = vadd.f32 %v1675, %v1684
  %v1689 = vmax.f32 %v1637, %v1685
  %v1690 = vmax.f32 %v1638, %v1686
  %v1691 = vmax.f32 %v1639, %v1687
  %v1692 = vmax.f32 %v1640, %v1688
  %v1693 = vld [vmem:[%s1332 + $0x1c] sm:$0x1]
  %v1694 = vlaneseq
  %v1695 = vshrl.u32 %v1694, 7
  %v1696 = vsub.s32 0, %v1695
  %v1697 = vrot.slane %v1693, %v1696
  %v1698 = vmul.f32 %v18, %v1697
  %v1699 = vmul.f32 %v23, %v1697
  %v1700 = vmul.f32 %v28, %v1697
  %v1701 = vmul.f32 %v33, %v1697
  %v1702 = vld [vmem:[%s1332 + $0x1d] sm:$0x1]
  %v1703 = vlaneseq
  %v1704 = vshrl.u32 %v1703, 7
  %v1705 = vsub.s32 0, %v1704
  %v1706 = vrot.slane %v1702, %v1705
  %v1707 = vmul.f32 %v37, %v1706
  %v1708 = vmul.f32 %v41, %v1706
  %v1709 = vmul.f32 %v45, %v1706
  %v1710 = vmul.f32 %v49, %v1706
  %v1711 = vadd.f32 %v1698, %v1707
  %v1712 = vadd.f32 %v1699, %v1708
  %v1713 = vadd.f32 %v1700, %v1709
  %v1714 = vadd.f32 %v1701, %v1710
  %v1715 = vld [vmem:[%s1332 + $0x1e] sm:$0x1]
  %v1716 = vlaneseq
  %v1717 = vshrl.u32 %v1716, 7
  %v1718 = vsub.s32 0, %v1717
  %v1719 = vrot.slane %v1715, %v1718
  %v1720 = vmul.f32 %v53, %v1719
  %v1721 = vmul.f32 %v57, %v1719
  %v1722 = vmul.f32 %v61, %v1719
  %v1723 = vmul.f32 %v65, %v1719
  %v1724 = vadd.f32 %v1711, %v1720
  %v1725 = vadd.f32 %v1712, %v1721
  %v1726 = vadd.f32 %v1713, %v1722
  %v1727 = vadd.f32 %v1714, %v1723
  %v1728 = vld [vmem:[%s1332 + $0x1f] sm:$0x1]
  %v1729 = vlaneseq
  %v1730 = vshrl.u32 %v1729, 7
  %v1731 = vsub.s32 0, %v1730
  %v1732 = vrot.slane %v1728, %v1731
  %v1733 = vmul.f32 %v69, %v1732
  %v1734 = vmul.f32 %v73, %v1732
  %v1735 = vmul.f32 %v77, %v1732
  %v1736 = vmul.f32 %v81, %v1732
  %v1737 = vadd.f32 %v1724, %v1733
  %v1738 = vadd.f32 %v1725, %v1734
  %v1739 = vadd.f32 %v1726, %v1735
  %v1740 = vadd.f32 %v1727, %v1736
  %v1741 = vmax.f32 %v1689, %v1737
  %v1742 = vmax.f32 %v1690, %v1738
  %v1743 = vmax.f32 %v1691, %v1739
  %v1744 = vmax.f32 %v1692, %v1740
  %v1745 = vld [vmem:[%s1332 + $0x20] sm:$0x1]
  %v1746 = vlaneseq
  %v1747 = vshrl.u32 %v1746, 7
  %v1748 = vsub.s32 0, %v1747
  %v1749 = vrot.slane %v1745, %v1748
  %v1750 = vmul.f32 %v18, %v1749
  %v1751 = vmul.f32 %v23, %v1749
  %v1752 = vmul.f32 %v28, %v1749
  %v1753 = vmul.f32 %v33, %v1749
  %v1754 = vld [vmem:[%s1332 + $0x21] sm:$0x1]
  %v1755 = vlaneseq
  %v1756 = vshrl.u32 %v1755, 7
  %v1757 = vsub.s32 0, %v1756
  %v1758 = vrot.slane %v1754, %v1757
  %v1759 = vmul.f32 %v37, %v1758
  %v1760 = vmul.f32 %v41, %v1758
  %v1761 = vmul.f32 %v45, %v1758
  %v1762 = vmul.f32 %v49, %v1758
  %v1763 = vadd.f32 %v1750, %v1759
  %v1764 = vadd.f32 %v1751, %v1760
  %v1765 = vadd.f32 %v1752, %v1761
  %v1766 = vadd.f32 %v1753, %v1762
  %v1767 = vld [vmem:[%s1332 + $0x22] sm:$0x1]
  %v1768 = vlaneseq
  %v1769 = vshrl.u32 %v1768, 7
  %v1770 = vsub.s32 0, %v1769
  %v1771 = vrot.slane %v1767, %v1770
  %v1772 = vmul.f32 %v53, %v1771
  %v1773 = vmul.f32 %v57, %v1771
  %v1774 = vmul.f32 %v61, %v1771
  %v1775 = vmul.f32 %v65, %v1771
  %v1776 = vadd.f32 %v1763, %v1772
  %v1777 = vadd.f32 %v1764, %v1773
  %v1778 = vadd.f32 %v1765, %v1774
  %v1779 = vadd.f32 %v1766, %v1775
  %v1780 = vld [vmem:[%s1332 + $0x23] sm:$0x1]
  %v1781 = vlaneseq
  %v1782 = vshrl.u32 %v1781, 7
  %v1783 = vsub.s32 0, %v1782
  %v1784 = vrot.slane %v1780, %v1783
  %v1785 = vmul.f32 %v69, %v1784
  %v1786 = vmul.f32 %v73, %v1784
  %v1787 = vmul.f32 %v77, %v1784
  %v1788 = vmul.f32 %v81, %v1784
  %v1789 = vadd.f32 %v1776, %v1785
  %v1790 = vadd.f32 %v1777, %v1786
  %v1791 = vadd.f32 %v1778, %v1787
  %v1792 = vadd.f32 %v1779, %v1788
  %v1793 = vmax.f32 %v1741, %v1789
  %v1794 = vmax.f32 %v1742, %v1790
  %v1795 = vmax.f32 %v1743, %v1791
  %v1796 = vmax.f32 %v1744, %v1792
  %v1797 = vld [vmem:[%s1332 + $0x24] sm:$0x1]
  %v1798 = vlaneseq
  %v1799 = vshrl.u32 %v1798, 7
  %v1800 = vsub.s32 0, %v1799
  %v1801 = vrot.slane %v1797, %v1800
  %v1802 = vmul.f32 %v18, %v1801
  %v1803 = vmul.f32 %v23, %v1801
  %v1804 = vmul.f32 %v28, %v1801
  %v1805 = vmul.f32 %v33, %v1801
  %v1806 = vld [vmem:[%s1332 + $0x25] sm:$0x1]
  %v1807 = vlaneseq
  %v1808 = vshrl.u32 %v1807, 7
  %v1809 = vsub.s32 0, %v1808
  %v1810 = vrot.slane %v1806, %v1809
  %v1811 = vmul.f32 %v37, %v1810
  %v1812 = vmul.f32 %v41, %v1810
  %v1813 = vmul.f32 %v45, %v1810
  %v1814 = vmul.f32 %v49, %v1810
  %v1815 = vadd.f32 %v1802, %v1811
  %v1816 = vadd.f32 %v1803, %v1812
  %v1817 = vadd.f32 %v1804, %v1813
  %v1818 = vadd.f32 %v1805, %v1814
  %v1819 = vld [vmem:[%s1332 + $0x26] sm:$0x1]
  %v1820 = vlaneseq
  %v1821 = vshrl.u32 %v1820, 7
  %v1822 = vsub.s32 0, %v1821
  %v1823 = vrot.slane %v1819, %v1822
  %v1824 = vmul.f32 %v53, %v1823
  %v1825 = vmul.f32 %v57, %v1823
  %v1826 = vmul.f32 %v61, %v1823
  %v1827 = vmul.f32 %v65, %v1823
  %v1828 = vadd.f32 %v1815, %v1824
  %v1829 = vadd.f32 %v1816, %v1825
  %v1830 = vadd.f32 %v1817, %v1826
  %v1831 = vadd.f32 %v1818, %v1827
  %v1832 = vld [vmem:[%s1332 + $0x27] sm:$0x1]
  %v1833 = vlaneseq
  %v1834 = vshrl.u32 %v1833, 7
  %v1835 = vsub.s32 0, %v1834
  %v1836 = vrot.slane %v1832, %v1835
  %v1837 = vmul.f32 %v69, %v1836
  %v1838 = vmul.f32 %v73, %v1836
  %v1839 = vmul.f32 %v77, %v1836
  %v1840 = vmul.f32 %v81, %v1836
  %v1841 = vadd.f32 %v1828, %v1837
  %v1842 = vadd.f32 %v1829, %v1838
  %v1843 = vadd.f32 %v1830, %v1839
  %v1844 = vadd.f32 %v1831, %v1840
  %v1845 = vmax.f32 %v1793, %v1841
  %v1846 = vmax.f32 %v1794, %v1842
  %v1847 = vmax.f32 %v1795, %v1843
  %v1848 = vmax.f32 %v1796, %v1844
  %v1849 = vld [vmem:[%s1332 + $0x28] sm:$0x1]
  %v1850 = vlaneseq
  %v1851 = vshrl.u32 %v1850, 7
  %v1852 = vsub.s32 0, %v1851
  %v1853 = vrot.slane %v1849, %v1852
  %v1854 = vmul.f32 %v18, %v1853
  %v1855 = vmul.f32 %v23, %v1853
  %v1856 = vmul.f32 %v28, %v1853
  %v1857 = vmul.f32 %v33, %v1853
  %v1858 = vld [vmem:[%s1332 + $0x29] sm:$0x1]
  %v1859 = vlaneseq
  %v1860 = vshrl.u32 %v1859, 7
  %v1861 = vsub.s32 0, %v1860
  %v1862 = vrot.slane %v1858, %v1861
  %v1863 = vmul.f32 %v37, %v1862
  %v1864 = vmul.f32 %v41, %v1862
  %v1865 = vmul.f32 %v45, %v1862
  %v1866 = vmul.f32 %v49, %v1862
  %v1867 = vadd.f32 %v1854, %v1863
  %v1868 = vadd.f32 %v1855, %v1864
  %v1869 = vadd.f32 %v1856, %v1865
  %v1870 = vadd.f32 %v1857, %v1866
  %v1871 = vld [vmem:[%s1332 + $0x2a] sm:$0x1]
  %v1872 = vlaneseq
  %v1873 = vshrl.u32 %v1872, 7
  %v1874 = vsub.s32 0, %v1873
  %v1875 = vrot.slane %v1871, %v1874
  %v1876 = vmul.f32 %v53, %v1875
  %v1877 = vmul.f32 %v57, %v1875
  %v1878 = vmul.f32 %v61, %v1875
  %v1879 = vmul.f32 %v65, %v1875
  %v1880 = vadd.f32 %v1867, %v1876
  %v1881 = vadd.f32 %v1868, %v1877
  %v1882 = vadd.f32 %v1869, %v1878
  %v1883 = vadd.f32 %v1870, %v1879
  %v1884 = vld [vmem:[%s1332 + $0x2b] sm:$0x1]
  %v1885 = vlaneseq
  %v1886 = vshrl.u32 %v1885, 7
  %v1887 = vsub.s32 0, %v1886
  %v1888 = vrot.slane %v1884, %v1887
  %v1889 = vmul.f32 %v69, %v1888
  %v1890 = vmul.f32 %v73, %v1888
  %v1891 = vmul.f32 %v77, %v1888
  %v1892 = vmul.f32 %v81, %v1888
  %v1893 = vadd.f32 %v1880, %v1889
  %v1894 = vadd.f32 %v1881, %v1890
  %v1895 = vadd.f32 %v1882, %v1891
  %v1896 = vadd.f32 %v1883, %v1892
  %v1897 = vmax.f32 %v1845, %v1893
  %v1898 = vmax.f32 %v1846, %v1894
  %v1899 = vmax.f32 %v1847, %v1895
  %v1900 = vmax.f32 %v1848, %v1896
  %v1901 = vld [vmem:[%s1332 + $0x2c] sm:$0x1]
  %v1902 = vlaneseq
  %v1903 = vshrl.u32 %v1902, 7
  %v1904 = vsub.s32 0, %v1903
  %v1905 = vrot.slane %v1901, %v1904
  %v1906 = vmul.f32 %v18, %v1905
  %v1907 = vmul.f32 %v23, %v1905
  %v1908 = vmul.f32 %v28, %v1905
  %v1909 = vmul.f32 %v33, %v1905
  %v1910 = vld [vmem:[%s1332 + $0x2d] sm:$0x1]
  %v1911 = vlaneseq
  %v1912 = vshrl.u32 %v1911, 7
  %v1913 = vsub.s32 0, %v1912
  %v1914 = vrot.slane %v1910, %v1913
  %v1915 = vmul.f32 %v37, %v1914
  %v1916 = vmul.f32 %v41, %v1914
  %v1917 = vmul.f32 %v45, %v1914
  %v1918 = vmul.f32 %v49, %v1914
  %v1919 = vadd.f32 %v1906, %v1915
  %v1920 = vadd.f32 %v1907, %v1916
  %v1921 = vadd.f32 %v1908, %v1917
  %v1922 = vadd.f32 %v1909, %v1918
  %v1923 = vld [vmem:[%s1332 + $0x2e] sm:$0x1]
  %v1924 = vlaneseq
  %v1925 = vshrl.u32 %v1924, 7
  %v1926 = vsub.s32 0, %v1925
  %v1927 = vrot.slane %v1923, %v1926
  %v1928 = vmul.f32 %v53, %v1927
  %v1929 = vmul.f32 %v57, %v1927
  %v1930 = vmul.f32 %v61, %v1927
  %v1931 = vmul.f32 %v65, %v1927
  %v1932 = vadd.f32 %v1919, %v1928
  %v1933 = vadd.f32 %v1920, %v1929
  %v1934 = vadd.f32 %v1921, %v1930
  %v1935 = vadd.f32 %v1922, %v1931
  %v1936 = vld [vmem:[%s1332 + $0x2f] sm:$0x1]
  %v1937 = vlaneseq
  %v1938 = vshrl.u32 %v1937, 7
  %v1939 = vsub.s32 0, %v1938
  %v1940 = vrot.slane %v1936, %v1939
  %v1941 = vmul.f32 %v69, %v1940
  %v1942 = vmul.f32 %v73, %v1940
  %v1943 = vmul.f32 %v77, %v1940
  %v1944 = vmul.f32 %v81, %v1940
  %v1945 = vadd.f32 %v1932, %v1941
  %v1946 = vadd.f32 %v1933, %v1942
  %v1947 = vadd.f32 %v1934, %v1943
  %v1948 = vadd.f32 %v1935, %v1944
  %v1949 = vmax.f32 %v1897, %v1945
  %v1950 = vmax.f32 %v1898, %v1946
  %v1951 = vmax.f32 %v1899, %v1947
  %v1952 = vmax.f32 %v1900, %v1948
  %v1953 = vld [vmem:[%s1332 + $0x30] sm:$0x1]
  %v1954 = vlaneseq
  %v1955 = vshrl.u32 %v1954, 7
  %v1956 = vsub.s32 0, %v1955
  %v1957 = vrot.slane %v1953, %v1956
  %v1958 = vmul.f32 %v18, %v1957
  %v1959 = vmul.f32 %v23, %v1957
  %v1960 = vmul.f32 %v28, %v1957
  %v1961 = vmul.f32 %v33, %v1957
  %v1962 = vld [vmem:[%s1332 + $0x31] sm:$0x1]
  %v1963 = vlaneseq
  %v1964 = vshrl.u32 %v1963, 7
  %v1965 = vsub.s32 0, %v1964
  %v1966 = vrot.slane %v1962, %v1965
  %v1967 = vmul.f32 %v37, %v1966
  %v1968 = vmul.f32 %v41, %v1966
  %v1969 = vmul.f32 %v45, %v1966
  %v1970 = vmul.f32 %v49, %v1966
  %v1971 = vadd.f32 %v1958, %v1967
  %v1972 = vadd.f32 %v1959, %v1968
  %v1973 = vadd.f32 %v1960, %v1969
  %v1974 = vadd.f32 %v1961, %v1970
  %v1975 = vld [vmem:[%s1332 + $0x32] sm:$0x1]
  %v1976 = vlaneseq
  %v1977 = vshrl.u32 %v1976, 7
  %v1978 = vsub.s32 0, %v1977
  %v1979 = vrot.slane %v1975, %v1978
  %v1980 = vmul.f32 %v53, %v1979
  %v1981 = vmul.f32 %v57, %v1979
  %v1982 = vmul.f32 %v61, %v1979
  %v1983 = vmul.f32 %v65, %v1979
  %v1984 = vadd.f32 %v1971, %v1980
  %v1985 = vadd.f32 %v1972, %v1981
  %v1986 = vadd.f32 %v1973, %v1982
  %v1987 = vadd.f32 %v1974, %v1983
  %v1988 = vld [vmem:[%s1332 + $0x33] sm:$0x1]
  %v1989 = vlaneseq
  %v1990 = vshrl.u32 %v1989, 7
  %v1991 = vsub.s32 0, %v1990
  %v1992 = vrot.slane %v1988, %v1991
  %v1993 = vmul.f32 %v69, %v1992
  %v1994 = vmul.f32 %v73, %v1992
  %v1995 = vmul.f32 %v77, %v1992
  %v1996 = vmul.f32 %v81, %v1992
  %v1997 = vadd.f32 %v1984, %v1993
  %v1998 = vadd.f32 %v1985, %v1994
  %v1999 = vadd.f32 %v1986, %v1995
  %v2000 = vadd.f32 %v1987, %v1996
  %v2001 = vmax.f32 %v1949, %v1997
  %v2002 = vmax.f32 %v1950, %v1998
  %v2003 = vmax.f32 %v1951, %v1999
  %v2004 = vmax.f32 %v1952, %v2000
  %v2005 = vld [vmem:[%s1332 + $0x34] sm:$0x1]
  %v2006 = vlaneseq
  %v2007 = vshrl.u32 %v2006, 7
  %v2008 = vsub.s32 0, %v2007
  %v2009 = vrot.slane %v2005, %v2008
  %v2010 = vmul.f32 %v18, %v2009
  %v2011 = vmul.f32 %v23, %v2009
  %v2012 = vmul.f32 %v28, %v2009
  %v2013 = vmul.f32 %v33, %v2009
  %v2014 = vld [vmem:[%s1332 + $0x35] sm:$0x1]
  %v2015 = vlaneseq
  %v2016 = vshrl.u32 %v2015, 7
  %v2017 = vsub.s32 0, %v2016
  %v2018 = vrot.slane %v2014, %v2017
  %v2019 = vmul.f32 %v37, %v2018
  %v2020 = vmul.f32 %v41, %v2018
  %v2021 = vmul.f32 %v45, %v2018
  %v2022 = vmul.f32 %v49, %v2018
  %v2023 = vadd.f32 %v2010, %v2019
  %v2024 = vadd.f32 %v2011, %v2020
  %v2025 = vadd.f32 %v2012, %v2021
  %v2026 = vadd.f32 %v2013, %v2022
  %v2027 = vld [vmem:[%s1332 + $0x36] sm:$0x1]
  %v2028 = vlaneseq
  %v2029 = vshrl.u32 %v2028, 7
  %v2030 = vsub.s32 0, %v2029
  %v2031 = vrot.slane %v2027, %v2030
  %v2032 = vmul.f32 %v53, %v2031
  %v2033 = vmul.f32 %v57, %v2031
  %v2034 = vmul.f32 %v61, %v2031
  %v2035 = vmul.f32 %v65, %v2031
  %v2036 = vadd.f32 %v2023, %v2032
  %v2037 = vadd.f32 %v2024, %v2033
  %v2038 = vadd.f32 %v2025, %v2034
  %v2039 = vadd.f32 %v2026, %v2035
  %v2040 = vld [vmem:[%s1332 + $0x37] sm:$0x1]
  %v2041 = vlaneseq
  %v2042 = vshrl.u32 %v2041, 7
  %v2043 = vsub.s32 0, %v2042
  %v2044 = vrot.slane %v2040, %v2043
  %v2045 = vmul.f32 %v69, %v2044
  %v2046 = vmul.f32 %v73, %v2044
  %v2047 = vmul.f32 %v77, %v2044
  %v2048 = vmul.f32 %v81, %v2044
  %v2049 = vadd.f32 %v2036, %v2045
  %v2050 = vadd.f32 %v2037, %v2046
  %v2051 = vadd.f32 %v2038, %v2047
  %v2052 = vadd.f32 %v2039, %v2048
  %v2053 = vmax.f32 %v2001, %v2049
  %v2054 = vmax.f32 %v2002, %v2050
  %v2055 = vmax.f32 %v2003, %v2051
  %v2056 = vmax.f32 %v2004, %v2052
  %v2057 = vld [vmem:[%s1332 + $0x38] sm:$0x1]
  %v2058 = vlaneseq
  %v2059 = vshrl.u32 %v2058, 7
  %v2060 = vsub.s32 0, %v2059
  %v2061 = vrot.slane %v2057, %v2060
  %v2062 = vmul.f32 %v18, %v2061
  %v2063 = vmul.f32 %v23, %v2061
  %v2064 = vmul.f32 %v28, %v2061
  %v2065 = vmul.f32 %v33, %v2061
  %v2066 = vld [vmem:[%s1332 + $0x39] sm:$0x1]
  %v2067 = vlaneseq
  %v2068 = vshrl.u32 %v2067, 7
  %v2069 = vsub.s32 0, %v2068
  %v2070 = vrot.slane %v2066, %v2069
  %v2071 = vmul.f32 %v37, %v2070
  %v2072 = vmul.f32 %v41, %v2070
  %v2073 = vmul.f32 %v45, %v2070
  %v2074 = vmul.f32 %v49, %v2070
  %v2075 = vadd.f32 %v2062, %v2071
  %v2076 = vadd.f32 %v2063, %v2072
  %v2077 = vadd.f32 %v2064, %v2073
  %v2078 = vadd.f32 %v2065, %v2074
  %v2079 = vld [vmem:[%s1332 + $0x3a] sm:$0x1]
  %v2080 = vlaneseq
  %v2081 = vshrl.u32 %v2080, 7
  %v2082 = vsub.s32 0, %v2081
  %v2083 = vrot.slane %v2079, %v2082
  %v2084 = vmul.f32 %v53, %v2083
  %v2085 = vmul.f32 %v57, %v2083
  %v2086 = vmul.f32 %v61, %v2083
  %v2087 = vmul.f32 %v65, %v2083
  %v2088 = vadd.f32 %v2075, %v2084
  %v2089 = vadd.f32 %v2076, %v2085
  %v2090 = vadd.f32 %v2077, %v2086
  %v2091 = vadd.f32 %v2078, %v2087
  %v2092 = vld [vmem:[%s1332 + $0x3b] sm:$0x1]
  %v2093 = vlaneseq
  %v2094 = vshrl.u32 %v2093, 7
  %v2095 = vsub.s32 0, %v2094
  %v2096 = vrot.slane %v2092, %v2095
  %v2097 = vmul.f32 %v69, %v2096
  %v2098 = vmul.f32 %v73, %v2096
  %v2099 = vmul.f32 %v77, %v2096
  %v2100 = vmul.f32 %v81, %v2096
  %v2101 = vadd.f32 %v2088, %v2097
  %v2102 = vadd.f32 %v2089, %v2098
  %v2103 = vadd.f32 %v2090, %v2099
  %v2104 = vadd.f32 %v2091, %v2100
  %v2105 = vmax.f32 %v2053, %v2101
  %v2106 = vmax.f32 %v2054, %v2102
  %v2107 = vmax.f32 %v2055, %v2103
  %v2108 = vmax.f32 %v2056, %v2104
  %v2109 = vld [vmem:[%s1332 + $0x3c] sm:$0x1]
  %v2110 = vlaneseq
  %v2111 = vshrl.u32 %v2110, 7
  %v2112 = vsub.s32 0, %v2111
  %v2113 = vrot.slane %v2109, %v2112
  %v2114 = vmul.f32 %v18, %v2113
  %v2115 = vmul.f32 %v23, %v2113
  %v2116 = vmul.f32 %v28, %v2113
  %v2117 = vmul.f32 %v33, %v2113
  %v2118 = vld [vmem:[%s1332 + $0x3d] sm:$0x1]
  %v2119 = vlaneseq
  %v2120 = vshrl.u32 %v2119, 7
  %v2121 = vsub.s32 0, %v2120
  %v2122 = vrot.slane %v2118, %v2121
  %v2123 = vmul.f32 %v37, %v2122
  %v2124 = vmul.f32 %v41, %v2122
  %v2125 = vmul.f32 %v45, %v2122
  %v2126 = vmul.f32 %v49, %v2122
  %v2127 = vadd.f32 %v2114, %v2123
  %v2128 = vadd.f32 %v2115, %v2124
  %v2129 = vadd.f32 %v2116, %v2125
  %v2130 = vadd.f32 %v2117, %v2126
  %v2131 = vld [vmem:[%s1332 + $0x3e] sm:$0x1]
  %v2132 = vlaneseq
  %v2133 = vshrl.u32 %v2132, 7
  %v2134 = vsub.s32 0, %v2133
  %v2135 = vrot.slane %v2131, %v2134
  %v2136 = vmul.f32 %v53, %v2135
  %v2137 = vmul.f32 %v57, %v2135
  %v2138 = vmul.f32 %v61, %v2135
  %v2139 = vmul.f32 %v65, %v2135
  %v2140 = vadd.f32 %v2127, %v2136
  %v2141 = vadd.f32 %v2128, %v2137
  %v2142 = vadd.f32 %v2129, %v2138
  %v2143 = vadd.f32 %v2130, %v2139
  %v2144 = vld [vmem:[%s1332 + $0x3f] sm:$0x1]
  %v2145 = vlaneseq
  %v2146 = vshrl.u32 %v2145, 7
  %v2147 = vsub.s32 0, %v2146
  %v2148 = vrot.slane %v2144, %v2147
  %v2149 = vmul.f32 %v69, %v2148
  %v2150 = vmul.f32 %v73, %v2148
  %v2151 = vmul.f32 %v77, %v2148
  %v2152 = vmul.f32 %v81, %v2148
  %v2153 = vadd.f32 %v2140, %v2149
  %v2154 = vadd.f32 %v2141, %v2150
  %v2155 = vadd.f32 %v2142, %v2151
  %v2156 = vadd.f32 %v2143, %v2152
  %v2157 = vmax.f32 %v2105, %v2153
  %v2158 = vmax.f32 %v2106, %v2154
  %v2159 = vmax.f32 %v2107, %v2155
  %v2160 = vmax.f32 %v2108, %v2156
  %v2161 = vld [vmem:[%s1332 + $0x40] sm:$0x1]
  %v2162 = vlaneseq
  %v2163 = vshrl.u32 %v2162, 7
  %v2164 = vsub.s32 0, %v2163
  %v2165 = vrot.slane %v2161, %v2164
  %v2166 = vmul.f32 %v18, %v2165
  %v2167 = vmul.f32 %v23, %v2165
  %v2168 = vmul.f32 %v28, %v2165
  %v2169 = vmul.f32 %v33, %v2165
  %v2170 = vld [vmem:[%s1332 + $0x41] sm:$0x1]
  %v2171 = vlaneseq
  %v2172 = vshrl.u32 %v2171, 7
  %v2173 = vsub.s32 0, %v2172
  %v2174 = vrot.slane %v2170, %v2173
  %v2175 = vmul.f32 %v37, %v2174
  %v2176 = vmul.f32 %v41, %v2174
  %v2177 = vmul.f32 %v45, %v2174
  %v2178 = vmul.f32 %v49, %v2174
  %v2179 = vadd.f32 %v2166, %v2175
  %v2180 = vadd.f32 %v2167, %v2176
  %v2181 = vadd.f32 %v2168, %v2177
  %v2182 = vadd.f32 %v2169, %v2178
  %v2183 = vld [vmem:[%s1332 + $0x42] sm:$0x1]
  %v2184 = vlaneseq
  %v2185 = vshrl.u32 %v2184, 7
  %v2186 = vsub.s32 0, %v2185
  %v2187 = vrot.slane %v2183, %v2186
  %v2188 = vmul.f32 %v53, %v2187
  %v2189 = vmul.f32 %v57, %v2187
  %v2190 = vmul.f32 %v61, %v2187
  %v2191 = vmul.f32 %v65, %v2187
  %v2192 = vadd.f32 %v2179, %v2188
  %v2193 = vadd.f32 %v2180, %v2189
  %v2194 = vadd.f32 %v2181, %v2190
  %v2195 = vadd.f32 %v2182, %v2191
  %v2196 = vld [vmem:[%s1332 + $0x43] sm:$0x1]
  %v2197 = vlaneseq
  %v2198 = vshrl.u32 %v2197, 7
  %v2199 = vsub.s32 0, %v2198
  %v2200 = vrot.slane %v2196, %v2199
  %v2201 = vmul.f32 %v69, %v2200
  %v2202 = vmul.f32 %v73, %v2200
  %v2203 = vmul.f32 %v77, %v2200
  %v2204 = vmul.f32 %v81, %v2200
  %v2205 = vadd.f32 %v2192, %v2201
  %v2206 = vadd.f32 %v2193, %v2202
  %v2207 = vadd.f32 %v2194, %v2203
  %v2208 = vadd.f32 %v2195, %v2204
  %v2209 = vmax.f32 %v2157, %v2205
  %v2210 = vmax.f32 %v2158, %v2206
  %v2211 = vmax.f32 %v2159, %v2207
  %v2212 = vmax.f32 %v2160, %v2208
  %v2213 = vld [vmem:[%s1332 + $0x44] sm:$0x1]
  %v2214 = vlaneseq
  %v2215 = vshrl.u32 %v2214, 7
  %v2216 = vsub.s32 0, %v2215
  %v2217 = vrot.slane %v2213, %v2216
  %v2218 = vmul.f32 %v18, %v2217
  %v2219 = vmul.f32 %v23, %v2217
  %v2220 = vmul.f32 %v28, %v2217
  %v2221 = vmul.f32 %v33, %v2217
  %v2222 = vld [vmem:[%s1332 + $0x45] sm:$0x1]
  %v2223 = vlaneseq
  %v2224 = vshrl.u32 %v2223, 7
  %v2225 = vsub.s32 0, %v2224
  %v2226 = vrot.slane %v2222, %v2225
  %v2227 = vmul.f32 %v37, %v2226
  %v2228 = vmul.f32 %v41, %v2226
  %v2229 = vmul.f32 %v45, %v2226
  %v2230 = vmul.f32 %v49, %v2226
  %v2231 = vadd.f32 %v2218, %v2227
  %v2232 = vadd.f32 %v2219, %v2228
  %v2233 = vadd.f32 %v2220, %v2229
  %v2234 = vadd.f32 %v2221, %v2230
  %v2235 = vld [vmem:[%s1332 + $0x46] sm:$0x1]
  %v2236 = vlaneseq
  %v2237 = vshrl.u32 %v2236, 7
  %v2238 = vsub.s32 0, %v2237
  %v2239 = vrot.slane %v2235, %v2238
  %v2240 = vmul.f32 %v53, %v2239
  %v2241 = vmul.f32 %v57, %v2239
  %v2242 = vmul.f32 %v61, %v2239
  %v2243 = vmul.f32 %v65, %v2239
  %v2244 = vadd.f32 %v2231, %v2240
  %v2245 = vadd.f32 %v2232, %v2241
  %v2246 = vadd.f32 %v2233, %v2242
  %v2247 = vadd.f32 %v2234, %v2243
  %v2248 = vld [vmem:[%s1332 + $0x47] sm:$0x1]
  %v2249 = vlaneseq
  %v2250 = vshrl.u32 %v2249, 7
  %v2251 = vsub.s32 0, %v2250
  %v2252 = vrot.slane %v2248, %v2251
  %v2253 = vmul.f32 %v69, %v2252
  %v2254 = vmul.f32 %v73, %v2252
  %v2255 = vmul.f32 %v77, %v2252
  %v2256 = vmul.f32 %v81, %v2252
  %v2257 = vadd.f32 %v2244, %v2253
  %v2258 = vadd.f32 %v2245, %v2254
  %v2259 = vadd.f32 %v2246, %v2255
  %v2260 = vadd.f32 %v2247, %v2256
  %v2261 = vmax.f32 %v2209, %v2257
  %v2262 = vmax.f32 %v2210, %v2258
  %v2263 = vmax.f32 %v2211, %v2259
  %v2264 = vmax.f32 %v2212, %v2260
  %v2265 = vld [vmem:[%s1332 + $0x48] sm:$0x1]
  %v2266 = vlaneseq
  %v2267 = vshrl.u32 %v2266, 7
  %v2268 = vsub.s32 0, %v2267
  %v2269 = vrot.slane %v2265, %v2268
  %v2270 = vmul.f32 %v18, %v2269
  %v2271 = vmul.f32 %v23, %v2269
  %v2272 = vmul.f32 %v28, %v2269
  %v2273 = vmul.f32 %v33, %v2269
  %v2274 = vld [vmem:[%s1332 + $0x49] sm:$0x1]
  %v2275 = vlaneseq
  %v2276 = vshrl.u32 %v2275, 7
  %v2277 = vsub.s32 0, %v2276
  %v2278 = vrot.slane %v2274, %v2277
  %v2279 = vmul.f32 %v37, %v2278
  %v2280 = vmul.f32 %v41, %v2278
  %v2281 = vmul.f32 %v45, %v2278
  %v2282 = vmul.f32 %v49, %v2278
  %v2283 = vadd.f32 %v2270, %v2279
  %v2284 = vadd.f32 %v2271, %v2280
  %v2285 = vadd.f32 %v2272, %v2281
  %v2286 = vadd.f32 %v2273, %v2282
  %v2287 = vld [vmem:[%s1332 + $0x4a] sm:$0x1]
  %v2288 = vlaneseq
  %v2289 = vshrl.u32 %v2288, 7
  %v2290 = vsub.s32 0, %v2289
  %v2291 = vrot.slane %v2287, %v2290
  %v2292 = vmul.f32 %v53, %v2291
  %v2293 = vmul.f32 %v57, %v2291
  %v2294 = vmul.f32 %v61, %v2291
  %v2295 = vmul.f32 %v65, %v2291
  %v2296 = vadd.f32 %v2283, %v2292
  %v2297 = vadd.f32 %v2284, %v2293
  %v2298 = vadd.f32 %v2285, %v2294
  %v2299 = vadd.f32 %v2286, %v2295
  %v2300 = vld [vmem:[%s1332 + $0x4b] sm:$0x1]
  %v2301 = vlaneseq
  %v2302 = vshrl.u32 %v2301, 7
  %v2303 = vsub.s32 0, %v2302
  %v2304 = vrot.slane %v2300, %v2303
  %v2305 = vmul.f32 %v69, %v2304
  %v2306 = vmul.f32 %v73, %v2304
  %v2307 = vmul.f32 %v77, %v2304
  %v2308 = vmul.f32 %v81, %v2304
  %v2309 = vadd.f32 %v2296, %v2305
  %v2310 = vadd.f32 %v2297, %v2306
  %v2311 = vadd.f32 %v2298, %v2307
  %v2312 = vadd.f32 %v2299, %v2308
  %v2313 = vmax.f32 %v2261, %v2309
  %v2314 = vmax.f32 %v2262, %v2310
  %v2315 = vmax.f32 %v2263, %v2311
  %v2316 = vmax.f32 %v2264, %v2312
  %v2317 = vld [vmem:[%s1332 + $0x4c] sm:$0x1]
  %v2318 = vlaneseq
  %v2319 = vshrl.u32 %v2318, 7
  %v2320 = vsub.s32 0, %v2319
  %v2321 = vrot.slane %v2317, %v2320
  %v2322 = vmul.f32 %v18, %v2321
  %v2323 = vmul.f32 %v23, %v2321
  %v2324 = vmul.f32 %v28, %v2321
  %v2325 = vmul.f32 %v33, %v2321
  %v2326 = vld [vmem:[%s1332 + $0x4d] sm:$0x1]
  %v2327 = vlaneseq
  %v2328 = vshrl.u32 %v2327, 7
  %v2329 = vsub.s32 0, %v2328
  %v2330 = vrot.slane %v2326, %v2329
  %v2331 = vmul.f32 %v37, %v2330
  %v2332 = vmul.f32 %v41, %v2330
  %v2333 = vmul.f32 %v45, %v2330
  %v2334 = vmul.f32 %v49, %v2330
  %v2335 = vadd.f32 %v2322, %v2331
  %v2336 = vadd.f32 %v2323, %v2332
  %v2337 = vadd.f32 %v2324, %v2333
  %v2338 = vadd.f32 %v2325, %v2334
  %v2339 = vld [vmem:[%s1332 + $0x4e] sm:$0x1]
  %v2340 = vlaneseq
  %v2341 = vshrl.u32 %v2340, 7
  %v2342 = vsub.s32 0, %v2341
  %v2343 = vrot.slane %v2339, %v2342
  %v2344 = vmul.f32 %v53, %v2343
  %v2345 = vmul.f32 %v57, %v2343
  %v2346 = vmul.f32 %v61, %v2343
  %v2347 = vmul.f32 %v65, %v2343
  %v2348 = vadd.f32 %v2335, %v2344
  %v2349 = vadd.f32 %v2336, %v2345
  %v2350 = vadd.f32 %v2337, %v2346
  %v2351 = vadd.f32 %v2338, %v2347
  %v2352 = vld [vmem:[%s1332 + $0x4f] sm:$0x1]
  %v2353 = vlaneseq
  %v2354 = vshrl.u32 %v2353, 7
  %v2355 = vsub.s32 0, %v2354
  %v2356 = vrot.slane %v2352, %v2355
  %v2357 = vmul.f32 %v69, %v2356
  %v2358 = vmul.f32 %v73, %v2356
  %v2359 = vmul.f32 %v77, %v2356
  %v2360 = vmul.f32 %v81, %v2356
  %v2361 = vadd.f32 %v2348, %v2357
  %v2362 = vadd.f32 %v2349, %v2358
  %v2363 = vadd.f32 %v2350, %v2359
  %v2364 = vadd.f32 %v2351, %v2360
  %v2365 = vmax.f32 %v2313, %v2361
  %v2366 = vmax.f32 %v2314, %v2362
  %v2367 = vmax.f32 %v2315, %v2363
  %v2368 = vmax.f32 %v2316, %v2364
  %v2369 = vld [vmem:[%s1332 + $0x50] sm:$0x1]
  %v2370 = vlaneseq
  %v2371 = vshrl.u32 %v2370, 7
  %v2372 = vsub.s32 0, %v2371
  %v2373 = vrot.slane %v2369, %v2372
  %v2374 = vmul.f32 %v18, %v2373
  %v2375 = vmul.f32 %v23, %v2373
  %v2376 = vmul.f32 %v28, %v2373
  %v2377 = vmul.f32 %v33, %v2373
  %v2378 = vld [vmem:[%s1332 + $0x51] sm:$0x1]
  %v2379 = vlaneseq
  %v2380 = vshrl.u32 %v2379, 7
  %v2381 = vsub.s32 0, %v2380
  %v2382 = vrot.slane %v2378, %v2381
  %v2383 = vmul.f32 %v37, %v2382
  %v2384 = vmul.f32 %v41, %v2382
  %v2385 = vmul.f32 %v45, %v2382
  %v2386 = vmul.f32 %v49, %v2382
  %v2387 = vadd.f32 %v2374, %v2383
  %v2388 = vadd.f32 %v2375, %v2384
  %v2389 = vadd.f32 %v2376, %v2385
  %v2390 = vadd.f32 %v2377, %v2386
  %v2391 = vld [vmem:[%s1332 + $0x52] sm:$0x1]
  %v2392 = vlaneseq
  %v2393 = vshrl.u32 %v2392, 7
  %v2394 = vsub.s32 0, %v2393
  %v2395 = vrot.slane %v2391, %v2394
  %v2396 = vmul.f32 %v53, %v2395
  %v2397 = vmul.f32 %v57, %v2395
  %v2398 = vmul.f32 %v61, %v2395
  %v2399 = vmul.f32 %v65, %v2395
  %v2400 = vadd.f32 %v2387, %v2396
  %v2401 = vadd.f32 %v2388, %v2397
  %v2402 = vadd.f32 %v2389, %v2398
  %v2403 = vadd.f32 %v2390, %v2399
  %v2404 = vld [vmem:[%s1332 + $0x53] sm:$0x1]
  %v2405 = vlaneseq
  %v2406 = vshrl.u32 %v2405, 7
  %v2407 = vsub.s32 0, %v2406
  %v2408 = vrot.slane %v2404, %v2407
  %v2409 = vmul.f32 %v69, %v2408
  %v2410 = vmul.f32 %v73, %v2408
  %v2411 = vmul.f32 %v77, %v2408
  %v2412 = vmul.f32 %v81, %v2408
  %v2413 = vadd.f32 %v2400, %v2409
  %v2414 = vadd.f32 %v2401, %v2410
  %v2415 = vadd.f32 %v2402, %v2411
  %v2416 = vadd.f32 %v2403, %v2412
  %v2417 = vmax.f32 %v2365, %v2413
  %v2418 = vmax.f32 %v2366, %v2414
  %v2419 = vmax.f32 %v2367, %v2415
  %v2420 = vmax.f32 %v2368, %v2416
  %v2421 = vld [vmem:[%s1332 + $0x54] sm:$0x1]
  %v2422 = vlaneseq
  %v2423 = vshrl.u32 %v2422, 7
  %v2424 = vsub.s32 0, %v2423
  %v2425 = vrot.slane %v2421, %v2424
  %v2426 = vmul.f32 %v18, %v2425
  %v2427 = vmul.f32 %v23, %v2425
  %v2428 = vmul.f32 %v28, %v2425
  %v2429 = vmul.f32 %v33, %v2425
  %v2430 = vld [vmem:[%s1332 + $0x55] sm:$0x1]
  %v2431 = vlaneseq
  %v2432 = vshrl.u32 %v2431, 7
  %v2433 = vsub.s32 0, %v2432
  %v2434 = vrot.slane %v2430, %v2433
  %v2435 = vmul.f32 %v37, %v2434
  %v2436 = vmul.f32 %v41, %v2434
  %v2437 = vmul.f32 %v45, %v2434
  %v2438 = vmul.f32 %v49, %v2434
  %v2439 = vadd.f32 %v2426, %v2435
  %v2440 = vadd.f32 %v2427, %v2436
  %v2441 = vadd.f32 %v2428, %v2437
  %v2442 = vadd.f32 %v2429, %v2438
  %v2443 = vld [vmem:[%s1332 + $0x56] sm:$0x1]
  %v2444 = vlaneseq
  %v2445 = vshrl.u32 %v2444, 7
  %v2446 = vsub.s32 0, %v2445
  %v2447 = vrot.slane %v2443, %v2446
  %v2448 = vmul.f32 %v53, %v2447
  %v2449 = vmul.f32 %v57, %v2447
  %v2450 = vmul.f32 %v61, %v2447
  %v2451 = vmul.f32 %v65, %v2447
  %v2452 = vadd.f32 %v2439, %v2448
  %v2453 = vadd.f32 %v2440, %v2449
  %v2454 = vadd.f32 %v2441, %v2450
  %v2455 = vadd.f32 %v2442, %v2451
  %v2456 = vld [vmem:[%s1332 + $0x57] sm:$0x1]
  %v2457 = vlaneseq
  %v2458 = vshrl.u32 %v2457, 7
  %v2459 = vsub.s32 0, %v2458
  %v2460 = vrot.slane %v2456, %v2459
  %v2461 = vmul.f32 %v69, %v2460
  %v2462 = vmul.f32 %v73, %v2460
  %v2463 = vmul.f32 %v77, %v2460
  %v2464 = vmul.f32 %v81, %v2460
  %v2465 = vadd.f32 %v2452, %v2461
  %v2466 = vadd.f32 %v2453, %v2462
  %v2467 = vadd.f32 %v2454, %v2463
  %v2468 = vadd.f32 %v2455, %v2464
  %v2469 = vmax.f32 %v2417, %v2465
  %v2470 = vmax.f32 %v2418, %v2466
  %v2471 = vmax.f32 %v2419, %v2467
  %v2472 = vmax.f32 %v2420, %v2468
  %v2473 = vld [vmem:[%s1332 + $0x58] sm:$0x1]
  %v2474 = vlaneseq
  %v2475 = vshrl.u32 %v2474, 7
  %v2476 = vsub.s32 0, %v2475
  %v2477 = vrot.slane %v2473, %v2476
  %v2478 = vmul.f32 %v18, %v2477
  %v2479 = vmul.f32 %v23, %v2477
  %v2480 = vmul.f32 %v28, %v2477
  %v2481 = vmul.f32 %v33, %v2477
  %v2482 = vld [vmem:[%s1332 + $0x59] sm:$0x1]
  %v2483 = vlaneseq
  %v2484 = vshrl.u32 %v2483, 7
  %v2485 = vsub.s32 0, %v2484
  %v2486 = vrot.slane %v2482, %v2485
  %v2487 = vmul.f32 %v37, %v2486
  %v2488 = vmul.f32 %v41, %v2486
  %v2489 = vmul.f32 %v45, %v2486
  %v2490 = vmul.f32 %v49, %v2486
  %v2491 = vadd.f32 %v2478, %v2487
  %v2492 = vadd.f32 %v2479, %v2488
  %v2493 = vadd.f32 %v2480, %v2489
  %v2494 = vadd.f32 %v2481, %v2490
  %v2495 = vld [vmem:[%s1332 + $0x5a] sm:$0x1]
  %v2496 = vlaneseq
  %v2497 = vshrl.u32 %v2496, 7
  %v2498 = vsub.s32 0, %v2497
  %v2499 = vrot.slane %v2495, %v2498
  %v2500 = vmul.f32 %v53, %v2499
  %v2501 = vmul.f32 %v57, %v2499
  %v2502 = vmul.f32 %v61, %v2499
  %v2503 = vmul.f32 %v65, %v2499
  %v2504 = vadd.f32 %v2491, %v2500
  %v2505 = vadd.f32 %v2492, %v2501
  %v2506 = vadd.f32 %v2493, %v2502
  %v2507 = vadd.f32 %v2494, %v2503
  %v2508 = vld [vmem:[%s1332 + $0x5b] sm:$0x1]
  %v2509 = vlaneseq
  %v2510 = vshrl.u32 %v2509, 7
  %v2511 = vsub.s32 0, %v2510
  %v2512 = vrot.slane %v2508, %v2511
  %v2513 = vmul.f32 %v69, %v2512
  %v2514 = vmul.f32 %v73, %v2512
  %v2515 = vmul.f32 %v77, %v2512
  %v2516 = vmul.f32 %v81, %v2512
  %v2517 = vadd.f32 %v2504, %v2513
  %v2518 = vadd.f32 %v2505, %v2514
  %v2519 = vadd.f32 %v2506, %v2515
  %v2520 = vadd.f32 %v2507, %v2516
  %v2521 = vmax.f32 %v2469, %v2517
  %v2522 = vmax.f32 %v2470, %v2518
  %v2523 = vmax.f32 %v2471, %v2519
  %v2524 = vmax.f32 %v2472, %v2520
  %v2525 = vld [vmem:[%s1332 + $0x5c] sm:$0x1]
  %v2526 = vlaneseq
  %v2527 = vshrl.u32 %v2526, 7
  %v2528 = vsub.s32 0, %v2527
  %v2529 = vrot.slane %v2525, %v2528
  %v2530 = vmul.f32 %v18, %v2529
  %v2531 = vmul.f32 %v23, %v2529
  %v2532 = vmul.f32 %v28, %v2529
  %v2533 = vmul.f32 %v33, %v2529
  %v2534 = vld [vmem:[%s1332 + $0x5d] sm:$0x1]
  %v2535 = vlaneseq
  %v2536 = vshrl.u32 %v2535, 7
  %v2537 = vsub.s32 0, %v2536
  %v2538 = vrot.slane %v2534, %v2537
  %v2539 = vmul.f32 %v37, %v2538
  %v2540 = vmul.f32 %v41, %v2538
  %v2541 = vmul.f32 %v45, %v2538
  %v2542 = vmul.f32 %v49, %v2538
  %v2543 = vadd.f32 %v2530, %v2539
  %v2544 = vadd.f32 %v2531, %v2540
  %v2545 = vadd.f32 %v2532, %v2541
  %v2546 = vadd.f32 %v2533, %v2542
  %v2547 = vld [vmem:[%s1332 + $0x5e] sm:$0x1]
  %v2548 = vlaneseq
  %v2549 = vshrl.u32 %v2548, 7
  %v2550 = vsub.s32 0, %v2549
  %v2551 = vrot.slane %v2547, %v2550
  %v2552 = vmul.f32 %v53, %v2551
  %v2553 = vmul.f32 %v57, %v2551
  %v2554 = vmul.f32 %v61, %v2551
  %v2555 = vmul.f32 %v65, %v2551
  %v2556 = vadd.f32 %v2543, %v2552
  %v2557 = vadd.f32 %v2544, %v2553
  %v2558 = vadd.f32 %v2545, %v2554
  %v2559 = vadd.f32 %v2546, %v2555
  %v2560 = vld [vmem:[%s1332 + $0x5f] sm:$0x1]
  %v2561 = vlaneseq
  %v2562 = vshrl.u32 %v2561, 7
  %v2563 = vsub.s32 0, %v2562
  %v2564 = vrot.slane %v2560, %v2563
  %v2565 = vmul.f32 %v69, %v2564
  %v2566 = vmul.f32 %v73, %v2564
  %v2567 = vmul.f32 %v77, %v2564
  %v2568 = vmul.f32 %v81, %v2564
  %v2569 = vadd.f32 %v2556, %v2565
  %v2570 = vadd.f32 %v2557, %v2566
  %v2571 = vadd.f32 %v2558, %v2567
  %v2572 = vadd.f32 %v2559, %v2568
  %v2573 = vmax.f32 %v2521, %v2569
  %v2574 = vmax.f32 %v2522, %v2570
  %v2575 = vmax.f32 %v2523, %v2571
  %v2576 = vmax.f32 %v2524, %v2572
  %s2577 = scalar_lea.vmem %s2, 32
  %2578 = vst.msk [vmem:[%s2577] sm:$0xff] %vm1327, %v2573
  %2579 = vst.msk [vmem:[%s2577 + $0x8] sm:$0xff] %vm1327, %v2574
  %2580 = vst.msk [vmem:[%s2577 + $0x10] sm:$0xff] %vm1327, %v2575
  %2581 = vst.msk [vmem:[%s2577 + $0x18] sm:$0xff] %vm1327, %v2576
  %s2582 = scalar_lea.vmem %s0, 192
  %v2583 = vld [vmem:[%s2582] sm:$0x1]
  %v2584 = vlaneseq
  %v2585 = vshrl.u32 %v2584, 7
  %v2586 = vsub.s32 0, %v2585
  %v2587 = vrot.slane %v2583, %v2586
  %v2588 = vmul.f32 %v18, %v2587
  %v2589 = vmul.f32 %v23, %v2587
  %v2590 = vmul.f32 %v28, %v2587
  %v2591 = vmul.f32 %v33, %v2587
  %v2592 = vld [vmem:[%s2582 + $0x1] sm:$0x1]
  %v2593 = vlaneseq
  %v2594 = vshrl.u32 %v2593, 7
  %v2595 = vsub.s32 0, %v2594
  %v2596 = vrot.slane %v2592, %v2595
  %v2597 = vmul.f32 %v37, %v2596
  %v2598 = vmul.f32 %v41, %v2596
  %v2599 = vmul.f32 %v45, %v2596
  %v2600 = vmul.f32 %v49, %v2596
  %v2601 = vadd.f32 %v2588, %v2597
  %v2602 = vadd.f32 %v2589, %v2598
  %v2603 = vadd.f32 %v2590, %v2599
  %v2604 = vadd.f32 %v2591, %v2600
  %v2605 = vld [vmem:[%s2582 + $0x2] sm:$0x1]
  %v2606 = vlaneseq
  %v2607 = vshrl.u32 %v2606, 7
  %v2608 = vsub.s32 0, %v2607
  %v2609 = vrot.slane %v2605, %v2608
  %v2610 = vmul.f32 %v53, %v2609
  %v2611 = vmul.f32 %v57, %v2609
  %v2612 = vmul.f32 %v61, %v2609
  %v2613 = vmul.f32 %v65, %v2609
  %v2614 = vadd.f32 %v2601, %v2610
  %v2615 = vadd.f32 %v2602, %v2611
  %v2616 = vadd.f32 %v2603, %v2612
  %v2617 = vadd.f32 %v2604, %v2613
  %v2618 = vld [vmem:[%s2582 + $0x3] sm:$0x1]
  %v2619 = vlaneseq
  %v2620 = vshrl.u32 %v2619, 7
  %v2621 = vsub.s32 0, %v2620
  %v2622 = vrot.slane %v2618, %v2621
  %v2623 = vmul.f32 %v69, %v2622
  %v2624 = vmul.f32 %v73, %v2622
  %v2625 = vmul.f32 %v77, %v2622
  %v2626 = vmul.f32 %v81, %v2622
  %v2627 = vadd.f32 %v2614, %v2623
  %v2628 = vadd.f32 %v2615, %v2624
  %v2629 = vadd.f32 %v2616, %v2625
  %v2630 = vadd.f32 %v2617, %v2626
  %v2631 = vld [vmem:[%s2582 + $0x4] sm:$0x1]
  %v2632 = vlaneseq
  %v2633 = vshrl.u32 %v2632, 7
  %v2634 = vsub.s32 0, %v2633
  %v2635 = vrot.slane %v2631, %v2634
  %v2636 = vmul.f32 %v18, %v2635
  %v2637 = vmul.f32 %v23, %v2635
  %v2638 = vmul.f32 %v28, %v2635
  %v2639 = vmul.f32 %v33, %v2635
  %v2640 = vld [vmem:[%s2582 + $0x5] sm:$0x1]
  %v2641 = vlaneseq
  %v2642 = vshrl.u32 %v2641, 7
  %v2643 = vsub.s32 0, %v2642
  %v2644 = vrot.slane %v2640, %v2643
  %v2645 = vmul.f32 %v37, %v2644
  %v2646 = vmul.f32 %v41, %v2644
  %v2647 = vmul.f32 %v45, %v2644
  %v2648 = vmul.f32 %v49, %v2644
  %v2649 = vadd.f32 %v2636, %v2645
  %v2650 = vadd.f32 %v2637, %v2646
  %v2651 = vadd.f32 %v2638, %v2647
  %v2652 = vadd.f32 %v2639, %v2648
  %v2653 = vld [vmem:[%s2582 + $0x6] sm:$0x1]
  %v2654 = vlaneseq
  %v2655 = vshrl.u32 %v2654, 7
  %v2656 = vsub.s32 0, %v2655
  %v2657 = vrot.slane %v2653, %v2656
  %v2658 = vmul.f32 %v53, %v2657
  %v2659 = vmul.f32 %v57, %v2657
  %v2660 = vmul.f32 %v61, %v2657
  %v2661 = vmul.f32 %v65, %v2657
  %v2662 = vadd.f32 %v2649, %v2658
  %v2663 = vadd.f32 %v2650, %v2659
  %v2664 = vadd.f32 %v2651, %v2660
  %v2665 = vadd.f32 %v2652, %v2661
  %v2666 = vld [vmem:[%s2582 + $0x7] sm:$0x1]
  %v2667 = vlaneseq
  %v2668 = vshrl.u32 %v2667, 7
  %v2669 = vsub.s32 0, %v2668
  %v2670 = vrot.slane %v2666, %v2669
  %v2671 = vmul.f32 %v69, %v2670
  %v2672 = vmul.f32 %v73, %v2670
  %v2673 = vmul.f32 %v77, %v2670
  %v2674 = vmul.f32 %v81, %v2670
  %v2675 = vadd.f32 %v2662, %v2671
  %v2676 = vadd.f32 %v2663, %v2672
  %v2677 = vadd.f32 %v2664, %v2673
  %v2678 = vadd.f32 %v2665, %v2674
  %v2679 = vmax.f32 %v2627, %v2675
  %v2680 = vmax.f32 %v2628, %v2676
  %v2681 = vmax.f32 %v2629, %v2677
  %v2682 = vmax.f32 %v2630, %v2678
  %v2683 = vld [vmem:[%s2582 + $0x8] sm:$0x1]
  %v2684 = vlaneseq
  %v2685 = vshrl.u32 %v2684, 7
  %v2686 = vsub.s32 0, %v2685
  %v2687 = vrot.slane %v2683, %v2686
  %v2688 = vmul.f32 %v18, %v2687
  %v2689 = vmul.f32 %v23, %v2687
  %v2690 = vmul.f32 %v28, %v2687
  %v2691 = vmul.f32 %v33, %v2687
  %v2692 = vld [vmem:[%s2582 + $0x9] sm:$0x1]
  %v2693 = vlaneseq
  %v2694 = vshrl.u32 %v2693, 7
  %v2695 = vsub.s32 0, %v2694
  %v2696 = vrot.slane %v2692, %v2695
  %v2697 = vmul.f32 %v37, %v2696
  %v2698 = vmul.f32 %v41, %v2696
  %v2699 = vmul.f32 %v45, %v2696
  %v2700 = vmul.f32 %v49, %v2696
  %v2701 = vadd.f32 %v2688, %v2697
  %v2702 = vadd.f32 %v2689, %v2698
  %v2703 = vadd.f32 %v2690, %v2699
  %v2704 = vadd.f32 %v2691, %v2700
  %v2705 = vld [vmem:[%s2582 + $0xa] sm:$0x1]
  %v2706 = vlaneseq
  %v2707 = vshrl.u32 %v2706, 7
  %v2708 = vsub.s32 0, %v2707
  %v2709 = vrot.slane %v2705, %v2708
  %v2710 = vmul.f32 %v53, %v2709
  %v2711 = vmul.f32 %v57, %v2709
  %v2712 = vmul.f32 %v61, %v2709
  %v2713 = vmul.f32 %v65, %v2709
  %v2714 = vadd.f32 %v2701, %v2710
  %v2715 = vadd.f32 %v2702, %v2711
  %v2716 = vadd.f32 %v2703, %v2712
  %v2717 = vadd.f32 %v2704, %v2713
  %v2718 = vld [vmem:[%s2582 + $0xb] sm:$0x1]
  %v2719 = vlaneseq
  %v2720 = vshrl.u32 %v2719, 7
  %v2721 = vsub.s32 0, %v2720
  %v2722 = vrot.slane %v2718, %v2721
  %v2723 = vmul.f32 %v69, %v2722
  %v2724 = vmul.f32 %v73, %v2722
  %v2725 = vmul.f32 %v77, %v2722
  %v2726 = vmul.f32 %v81, %v2722
  %v2727 = vadd.f32 %v2714, %v2723
  %v2728 = vadd.f32 %v2715, %v2724
  %v2729 = vadd.f32 %v2716, %v2725
  %v2730 = vadd.f32 %v2717, %v2726
  %v2731 = vmax.f32 %v2679, %v2727
  %v2732 = vmax.f32 %v2680, %v2728
  %v2733 = vmax.f32 %v2681, %v2729
  %v2734 = vmax.f32 %v2682, %v2730
  %v2735 = vld [vmem:[%s2582 + $0xc] sm:$0x1]
  %v2736 = vlaneseq
  %v2737 = vshrl.u32 %v2736, 7
  %v2738 = vsub.s32 0, %v2737
  %v2739 = vrot.slane %v2735, %v2738
  %v2740 = vmul.f32 %v18, %v2739
  %v2741 = vmul.f32 %v23, %v2739
  %v2742 = vmul.f32 %v28, %v2739
  %v2743 = vmul.f32 %v33, %v2739
  %v2744 = vld [vmem:[%s2582 + $0xd] sm:$0x1]
  %v2745 = vlaneseq
  %v2746 = vshrl.u32 %v2745, 7
  %v2747 = vsub.s32 0, %v2746
  %v2748 = vrot.slane %v2744, %v2747
  %v2749 = vmul.f32 %v37, %v2748
  %v2750 = vmul.f32 %v41, %v2748
  %v2751 = vmul.f32 %v45, %v2748
  %v2752 = vmul.f32 %v49, %v2748
  %v2753 = vadd.f32 %v2740, %v2749
  %v2754 = vadd.f32 %v2741, %v2750
  %v2755 = vadd.f32 %v2742, %v2751
  %v2756 = vadd.f32 %v2743, %v2752
  %v2757 = vld [vmem:[%s2582 + $0xe] sm:$0x1]
  %v2758 = vlaneseq
  %v2759 = vshrl.u32 %v2758, 7
  %v2760 = vsub.s32 0, %v2759
  %v2761 = vrot.slane %v2757, %v2760
  %v2762 = vmul.f32 %v53, %v2761
  %v2763 = vmul.f32 %v57, %v2761
  %v2764 = vmul.f32 %v61, %v2761
  %v2765 = vmul.f32 %v65, %v2761
  %v2766 = vadd.f32 %v2753, %v2762
  %v2767 = vadd.f32 %v2754, %v2763
  %v2768 = vadd.f32 %v2755, %v2764
  %v2769 = vadd.f32 %v2756, %v2765
  %v2770 = vld [vmem:[%s2582 + $0xf] sm:$0x1]
  %v2771 = vlaneseq
  %v2772 = vshrl.u32 %v2771, 7
  %v2773 = vsub.s32 0, %v2772
  %v2774 = vrot.slane %v2770, %v2773
  %v2775 = vmul.f32 %v69, %v2774
  %v2776 = vmul.f32 %v73, %v2774
  %v2777 = vmul.f32 %v77, %v2774
  %v2778 = vmul.f32 %v81, %v2774
  %v2779 = vadd.f32 %v2766, %v2775
  %v2780 = vadd.f32 %v2767, %v2776
  %v2781 = vadd.f32 %v2768, %v2777
  %v2782 = vadd.f32 %v2769, %v2778
  %v2783 = vmax.f32 %v2731, %v2779
  %v2784 = vmax.f32 %v2732, %v2780
  %v2785 = vmax.f32 %v2733, %v2781
  %v2786 = vmax.f32 %v2734, %v2782
  %v2787 = vld [vmem:[%s2582 + $0x10] sm:$0x1]
  %v2788 = vlaneseq
  %v2789 = vshrl.u32 %v2788, 7
  %v2790 = vsub.s32 0, %v2789
  %v2791 = vrot.slane %v2787, %v2790
  %v2792 = vmul.f32 %v18, %v2791
  %v2793 = vmul.f32 %v23, %v2791
  %v2794 = vmul.f32 %v28, %v2791
  %v2795 = vmul.f32 %v33, %v2791
  %v2796 = vld [vmem:[%s2582 + $0x11] sm:$0x1]
  %v2797 = vlaneseq
  %v2798 = vshrl.u32 %v2797, 7
  %v2799 = vsub.s32 0, %v2798
  %v2800 = vrot.slane %v2796, %v2799
  %v2801 = vmul.f32 %v37, %v2800
  %v2802 = vmul.f32 %v41, %v2800
  %v2803 = vmul.f32 %v45, %v2800
  %v2804 = vmul.f32 %v49, %v2800
  %v2805 = vadd.f32 %v2792, %v2801
  %v2806 = vadd.f32 %v2793, %v2802
  %v2807 = vadd.f32 %v2794, %v2803
  %v2808 = vadd.f32 %v2795, %v2804
  %v2809 = vld [vmem:[%s2582 + $0x12] sm:$0x1]
  %v2810 = vlaneseq
  %v2811 = vshrl.u32 %v2810, 7
  %v2812 = vsub.s32 0, %v2811
  %v2813 = vrot.slane %v2809, %v2812
  %v2814 = vmul.f32 %v53, %v2813
  %v2815 = vmul.f32 %v57, %v2813
  %v2816 = vmul.f32 %v61, %v2813
  %v2817 = vmul.f32 %v65, %v2813
  %v2818 = vadd.f32 %v2805, %v2814
  %v2819 = vadd.f32 %v2806, %v2815
  %v2820 = vadd.f32 %v2807, %v2816
  %v2821 = vadd.f32 %v2808, %v2817
  %v2822 = vld [vmem:[%s2582 + $0x13] sm:$0x1]
  %v2823 = vlaneseq
  %v2824 = vshrl.u32 %v2823, 7
  %v2825 = vsub.s32 0, %v2824
  %v2826 = vrot.slane %v2822, %v2825
  %v2827 = vmul.f32 %v69, %v2826
  %v2828 = vmul.f32 %v73, %v2826
  %v2829 = vmul.f32 %v77, %v2826
  %v2830 = vmul.f32 %v81, %v2826
  %v2831 = vadd.f32 %v2818, %v2827
  %v2832 = vadd.f32 %v2819, %v2828
  %v2833 = vadd.f32 %v2820, %v2829
  %v2834 = vadd.f32 %v2821, %v2830
  %v2835 = vmax.f32 %v2783, %v2831
  %v2836 = vmax.f32 %v2784, %v2832
  %v2837 = vmax.f32 %v2785, %v2833
  %v2838 = vmax.f32 %v2786, %v2834
  %v2839 = vld [vmem:[%s2582 + $0x14] sm:$0x1]
  %v2840 = vlaneseq
  %v2841 = vshrl.u32 %v2840, 7
  %v2842 = vsub.s32 0, %v2841
  %v2843 = vrot.slane %v2839, %v2842
  %v2844 = vmul.f32 %v18, %v2843
  %v2845 = vmul.f32 %v23, %v2843
  %v2846 = vmul.f32 %v28, %v2843
  %v2847 = vmul.f32 %v33, %v2843
  %v2848 = vld [vmem:[%s2582 + $0x15] sm:$0x1]
  %v2849 = vlaneseq
  %v2850 = vshrl.u32 %v2849, 7
  %v2851 = vsub.s32 0, %v2850
  %v2852 = vrot.slane %v2848, %v2851
  %v2853 = vmul.f32 %v37, %v2852
  %v2854 = vmul.f32 %v41, %v2852
  %v2855 = vmul.f32 %v45, %v2852
  %v2856 = vmul.f32 %v49, %v2852
  %v2857 = vadd.f32 %v2844, %v2853
  %v2858 = vadd.f32 %v2845, %v2854
  %v2859 = vadd.f32 %v2846, %v2855
  %v2860 = vadd.f32 %v2847, %v2856
  %v2861 = vld [vmem:[%s2582 + $0x16] sm:$0x1]
  %v2862 = vlaneseq
  %v2863 = vshrl.u32 %v2862, 7
  %v2864 = vsub.s32 0, %v2863
  %v2865 = vrot.slane %v2861, %v2864
  %v2866 = vmul.f32 %v53, %v2865
  %v2867 = vmul.f32 %v57, %v2865
  %v2868 = vmul.f32 %v61, %v2865
  %v2869 = vmul.f32 %v65, %v2865
  %v2870 = vadd.f32 %v2857, %v2866
  %v2871 = vadd.f32 %v2858, %v2867
  %v2872 = vadd.f32 %v2859, %v2868
  %v2873 = vadd.f32 %v2860, %v2869
  %v2874 = vld [vmem:[%s2582 + $0x17] sm:$0x1]
  %v2875 = vlaneseq
  %v2876 = vshrl.u32 %v2875, 7
  %v2877 = vsub.s32 0, %v2876
  %v2878 = vrot.slane %v2874, %v2877
  %v2879 = vmul.f32 %v69, %v2878
  %v2880 = vmul.f32 %v73, %v2878
  %v2881 = vmul.f32 %v77, %v2878
  %v2882 = vmul.f32 %v81, %v2878
  %v2883 = vadd.f32 %v2870, %v2879
  %v2884 = vadd.f32 %v2871, %v2880
  %v2885 = vadd.f32 %v2872, %v2881
  %v2886 = vadd.f32 %v2873, %v2882
  %v2887 = vmax.f32 %v2835, %v2883
  %v2888 = vmax.f32 %v2836, %v2884
  %v2889 = vmax.f32 %v2837, %v2885
  %v2890 = vmax.f32 %v2838, %v2886
  %v2891 = vld [vmem:[%s2582 + $0x18] sm:$0x1]
  %v2892 = vlaneseq
  %v2893 = vshrl.u32 %v2892, 7
  %v2894 = vsub.s32 0, %v2893
  %v2895 = vrot.slane %v2891, %v2894
  %v2896 = vmul.f32 %v18, %v2895
  %v2897 = vmul.f32 %v23, %v2895
  %v2898 = vmul.f32 %v28, %v2895
  %v2899 = vmul.f32 %v33, %v2895
  %v2900 = vld [vmem:[%s2582 + $0x19] sm:$0x1]
  %v2901 = vlaneseq
  %v2902 = vshrl.u32 %v2901, 7
  %v2903 = vsub.s32 0, %v2902
  %v2904 = vrot.slane %v2900, %v2903
  %v2905 = vmul.f32 %v37, %v2904
  %v2906 = vmul.f32 %v41, %v2904
  %v2907 = vmul.f32 %v45, %v2904
  %v2908 = vmul.f32 %v49, %v2904
  %v2909 = vadd.f32 %v2896, %v2905
  %v2910 = vadd.f32 %v2897, %v2906
  %v2911 = vadd.f32 %v2898, %v2907
  %v2912 = vadd.f32 %v2899, %v2908
  %v2913 = vld [vmem:[%s2582 + $0x1a] sm:$0x1]
  %v2914 = vlaneseq
  %v2915 = vshrl.u32 %v2914, 7
  %v2916 = vsub.s32 0, %v2915
  %v2917 = vrot.slane %v2913, %v2916
  %v2918 = vmul.f32 %v53, %v2917
  %v2919 = vmul.f32 %v57, %v2917
  %v2920 = vmul.f32 %v61, %v2917
  %v2921 = vmul.f32 %v65, %v2917
  %v2922 = vadd.f32 %v2909, %v2918
  %v2923 = vadd.f32 %v2910, %v2919
  %v2924 = vadd.f32 %v2911, %v2920
  %v2925 = vadd.f32 %v2912, %v2921
  %v2926 = vld [vmem:[%s2582 + $0x1b] sm:$0x1]
  %v2927 = vlaneseq
  %v2928 = vshrl.u32 %v2927, 7
  %v2929 = vsub.s32 0, %v2928
  %v2930 = vrot.slane %v2926, %v2929
  %v2931 = vmul.f32 %v69, %v2930
  %v2932 = vmul.f32 %v73, %v2930
  %v2933 = vmul.f32 %v77, %v2930
  %v2934 = vmul.f32 %v81, %v2930
  %v2935 = vadd.f32 %v2922, %v2931
  %v2936 = vadd.f32 %v2923, %v2932
  %v2937 = vadd.f32 %v2924, %v2933
  %v2938 = vadd.f32 %v2925, %v2934
  %v2939 = vmax.f32 %v2887, %v2935
  %v2940 = vmax.f32 %v2888, %v2936
  %v2941 = vmax.f32 %v2889, %v2937
  %v2942 = vmax.f32 %v2890, %v2938
  %v2943 = vld [vmem:[%s2582 + $0x1c] sm:$0x1]
  %v2944 = vlaneseq
  %v2945 = vshrl.u32 %v2944, 7
  %v2946 = vsub.s32 0, %v2945
  %v2947 = vrot.slane %v2943, %v2946
  %v2948 = vmul.f32 %v18, %v2947
  %v2949 = vmul.f32 %v23, %v2947
  %v2950 = vmul.f32 %v28, %v2947
  %v2951 = vmul.f32 %v33, %v2947
  %v2952 = vld [vmem:[%s2582 + $0x1d] sm:$0x1]
  %v2953 = vlaneseq
  %v2954 = vshrl.u32 %v2953, 7
  %v2955 = vsub.s32 0, %v2954
  %v2956 = vrot.slane %v2952, %v2955
  %v2957 = vmul.f32 %v37, %v2956
  %v2958 = vmul.f32 %v41, %v2956
  %v2959 = vmul.f32 %v45, %v2956
  %v2960 = vmul.f32 %v49, %v2956
  %v2961 = vadd.f32 %v2948, %v2957
  %v2962 = vadd.f32 %v2949, %v2958
  %v2963 = vadd.f32 %v2950, %v2959
  %v2964 = vadd.f32 %v2951, %v2960
  %v2965 = vld [vmem:[%s2582 + $0x1e] sm:$0x1]
  %v2966 = vlaneseq
  %v2967 = vshrl.u32 %v2966, 7
  %v2968 = vsub.s32 0, %v2967
  %v2969 = vrot.slane %v2965, %v2968
  %v2970 = vmul.f32 %v53, %v2969
  %v2971 = vmul.f32 %v57, %v2969
  %v2972 = vmul.f32 %v61, %v2969
  %v2973 = vmul.f32 %v65, %v2969
  %v2974 = vadd.f32 %v2961, %v2970
  %v2975 = vadd.f32 %v2962, %v2971
  %v2976 = vadd.f32 %v2963, %v2972
  %v2977 = vadd.f32 %v2964, %v2973
  %v2978 = vld [vmem:[%s2582 + $0x1f] sm:$0x1]
  %v2979 = vlaneseq
  %v2980 = vshrl.u32 %v2979, 7
  %v2981 = vsub.s32 0, %v2980
  %v2982 = vrot.slane %v2978, %v2981
  %v2983 = vmul.f32 %v69, %v2982
  %v2984 = vmul.f32 %v73, %v2982
  %v2985 = vmul.f32 %v77, %v2982
  %v2986 = vmul.f32 %v81, %v2982
  %v2987 = vadd.f32 %v2974, %v2983
  %v2988 = vadd.f32 %v2975, %v2984
  %v2989 = vadd.f32 %v2976, %v2985
  %v2990 = vadd.f32 %v2977, %v2986
  %v2991 = vmax.f32 %v2939, %v2987
  %v2992 = vmax.f32 %v2940, %v2988
  %v2993 = vmax.f32 %v2941, %v2989
  %v2994 = vmax.f32 %v2942, %v2990
  %v2995 = vld [vmem:[%s2582 + $0x20] sm:$0x1]
  %v2996 = vlaneseq
  %v2997 = vshrl.u32 %v2996, 7
  %v2998 = vsub.s32 0, %v2997
  %v2999 = vrot.slane %v2995, %v2998
  %v3000 = vmul.f32 %v18, %v2999
  %v3001 = vmul.f32 %v23, %v2999
  %v3002 = vmul.f32 %v28, %v2999
  %v3003 = vmul.f32 %v33, %v2999
  %v3004 = vld [vmem:[%s2582 + $0x21] sm:$0x1]
  %v3005 = vlaneseq
  %v3006 = vshrl.u32 %v3005, 7
  %v3007 = vsub.s32 0, %v3006
  %v3008 = vrot.slane %v3004, %v3007
  %v3009 = vmul.f32 %v37, %v3008
  %v3010 = vmul.f32 %v41, %v3008
  %v3011 = vmul.f32 %v45, %v3008
  %v3012 = vmul.f32 %v49, %v3008
  %v3013 = vadd.f32 %v3000, %v3009
  %v3014 = vadd.f32 %v3001, %v3010
  %v3015 = vadd.f32 %v3002, %v3011
  %v3016 = vadd.f32 %v3003, %v3012
  %v3017 = vld [vmem:[%s2582 + $0x22] sm:$0x1]
  %v3018 = vlaneseq
  %v3019 = vshrl.u32 %v3018, 7
  %v3020 = vsub.s32 0, %v3019
  %v3021 = vrot.slane %v3017, %v3020
  %v3022 = vmul.f32 %v53, %v3021
  %v3023 = vmul.f32 %v57, %v3021
  %v3024 = vmul.f32 %v61, %v3021
  %v3025 = vmul.f32 %v65, %v3021
  %v3026 = vadd.f32 %v3013, %v3022
  %v3027 = vadd.f32 %v3014, %v3023
  %v3028 = vadd.f32 %v3015, %v3024
  %v3029 = vadd.f32 %v3016, %v3025
  %v3030 = vld [vmem:[%s2582 + $0x23] sm:$0x1]
  %v3031 = vlaneseq
  %v3032 = vshrl.u32 %v3031, 7
  %v3033 = vsub.s32 0, %v3032
  %v3034 = vrot.slane %v3030, %v3033
  %v3035 = vmul.f32 %v69, %v3034
  %v3036 = vmul.f32 %v73, %v3034
  %v3037 = vmul.f32 %v77, %v3034
  %v3038 = vmul.f32 %v81, %v3034
  %v3039 = vadd.f32 %v3026, %v3035
  %v3040 = vadd.f32 %v3027, %v3036
  %v3041 = vadd.f32 %v3028, %v3037
  %v3042 = vadd.f32 %v3029, %v3038
  %v3043 = vmax.f32 %v2991, %v3039
  %v3044 = vmax.f32 %v2992, %v3040
  %v3045 = vmax.f32 %v2993, %v3041
  %v3046 = vmax.f32 %v2994, %v3042
  %v3047 = vld [vmem:[%s2582 + $0x24] sm:$0x1]
  %v3048 = vlaneseq
  %v3049 = vshrl.u32 %v3048, 7
  %v3050 = vsub.s32 0, %v3049
  %v3051 = vrot.slane %v3047, %v3050
  %v3052 = vmul.f32 %v18, %v3051
  %v3053 = vmul.f32 %v23, %v3051
  %v3054 = vmul.f32 %v28, %v3051
  %v3055 = vmul.f32 %v33, %v3051
  %v3056 = vld [vmem:[%s2582 + $0x25] sm:$0x1]
  %v3057 = vlaneseq
  %v3058 = vshrl.u32 %v3057, 7
  %v3059 = vsub.s32 0, %v3058
  %v3060 = vrot.slane %v3056, %v3059
  %v3061 = vmul.f32 %v37, %v3060
  %v3062 = vmul.f32 %v41, %v3060
  %v3063 = vmul.f32 %v45, %v3060
  %v3064 = vmul.f32 %v49, %v3060
  %v3065 = vadd.f32 %v3052, %v3061
  %v3066 = vadd.f32 %v3053, %v3062
  %v3067 = vadd.f32 %v3054, %v3063
  %v3068 = vadd.f32 %v3055, %v3064
  %v3069 = vld [vmem:[%s2582 + $0x26] sm:$0x1]
  %v3070 = vlaneseq
  %v3071 = vshrl.u32 %v3070, 7
  %v3072 = vsub.s32 0, %v3071
  %v3073 = vrot.slane %v3069, %v3072
  %v3074 = vmul.f32 %v53, %v3073
  %v3075 = vmul.f32 %v57, %v3073
  %v3076 = vmul.f32 %v61, %v3073
  %v3077 = vmul.f32 %v65, %v3073
  %v3078 = vadd.f32 %v3065, %v3074
  %v3079 = vadd.f32 %v3066, %v3075
  %v3080 = vadd.f32 %v3067, %v3076
  %v3081 = vadd.f32 %v3068, %v3077
  %v3082 = vld [vmem:[%s2582 + $0x27] sm:$0x1]
  %v3083 = vlaneseq
  %v3084 = vshrl.u32 %v3083, 7
  %v3085 = vsub.s32 0, %v3084
  %v3086 = vrot.slane %v3082, %v3085
  %v3087 = vmul.f32 %v69, %v3086
  %v3088 = vmul.f32 %v73, %v3086
  %v3089 = vmul.f32 %v77, %v3086
  %v3090 = vmul.f32 %v81, %v3086
  %v3091 = vadd.f32 %v3078, %v3087
  %v3092 = vadd.f32 %v3079, %v3088
  %v3093 = vadd.f32 %v3080, %v3089
  %v3094 = vadd.f32 %v3081, %v3090
  %v3095 = vmax.f32 %v3043, %v3091
  %v3096 = vmax.f32 %v3044, %v3092
  %v3097 = vmax.f32 %v3045, %v3093
  %v3098 = vmax.f32 %v3046, %v3094
  %v3099 = vld [vmem:[%s2582 + $0x28] sm:$0x1]
  %v3100 = vlaneseq
  %v3101 = vshrl.u32 %v3100, 7
  %v3102 = vsub.s32 0, %v3101
  %v3103 = vrot.slane %v3099, %v3102
  %v3104 = vmul.f32 %v18, %v3103
  %v3105 = vmul.f32 %v23, %v3103
  %v3106 = vmul.f32 %v28, %v3103
  %v3107 = vmul.f32 %v33, %v3103
  %v3108 = vld [vmem:[%s2582 + $0x29] sm:$0x1]
  %v3109 = vlaneseq
  %v3110 = vshrl.u32 %v3109, 7
  %v3111 = vsub.s32 0, %v3110
  %v3112 = vrot.slane %v3108, %v3111
  %v3113 = vmul.f32 %v37, %v3112
  %v3114 = vmul.f32 %v41, %v3112
  %v3115 = vmul.f32 %v45, %v3112
  %v3116 = vmul.f32 %v49, %v3112
  %v3117 = vadd.f32 %v3104, %v3113
  %v3118 = vadd.f32 %v3105, %v3114
  %v3119 = vadd.f32 %v3106, %v3115
  %v3120 = vadd.f32 %v3107, %v3116
  %v3121 = vld [vmem:[%s2582 + $0x2a] sm:$0x1]
  %v3122 = vlaneseq
  %v3123 = vshrl.u32 %v3122, 7
  %v3124 = vsub.s32 0, %v3123
  %v3125 = vrot.slane %v3121, %v3124
  %v3126 = vmul.f32 %v53, %v3125
  %v3127 = vmul.f32 %v57, %v3125
  %v3128 = vmul.f32 %v61, %v3125
  %v3129 = vmul.f32 %v65, %v3125
  %v3130 = vadd.f32 %v3117, %v3126
  %v3131 = vadd.f32 %v3118, %v3127
  %v3132 = vadd.f32 %v3119, %v3128
  %v3133 = vadd.f32 %v3120, %v3129
  %v3134 = vld [vmem:[%s2582 + $0x2b] sm:$0x1]
  %v3135 = vlaneseq
  %v3136 = vshrl.u32 %v3135, 7
  %v3137 = vsub.s32 0, %v3136
  %v3138 = vrot.slane %v3134, %v3137
  %v3139 = vmul.f32 %v69, %v3138
  %v3140 = vmul.f32 %v73, %v3138
  %v3141 = vmul.f32 %v77, %v3138
  %v3142 = vmul.f32 %v81, %v3138
  %v3143 = vadd.f32 %v3130, %v3139
  %v3144 = vadd.f32 %v3131, %v3140
  %v3145 = vadd.f32 %v3132, %v3141
  %v3146 = vadd.f32 %v3133, %v3142
  %v3147 = vmax.f32 %v3095, %v3143
  %v3148 = vmax.f32 %v3096, %v3144
  %v3149 = vmax.f32 %v3097, %v3145
  %v3150 = vmax.f32 %v3098, %v3146
  %v3151 = vld [vmem:[%s2582 + $0x2c] sm:$0x1]
  %v3152 = vlaneseq
  %v3153 = vshrl.u32 %v3152, 7
  %v3154 = vsub.s32 0, %v3153
  %v3155 = vrot.slane %v3151, %v3154
  %v3156 = vmul.f32 %v18, %v3155
  %v3157 = vmul.f32 %v23, %v3155
  %v3158 = vmul.f32 %v28, %v3155
  %v3159 = vmul.f32 %v33, %v3155
  %v3160 = vld [vmem:[%s2582 + $0x2d] sm:$0x1]
  %v3161 = vlaneseq
  %v3162 = vshrl.u32 %v3161, 7
  %v3163 = vsub.s32 0, %v3162
  %v3164 = vrot.slane %v3160, %v3163
  %v3165 = vmul.f32 %v37, %v3164
  %v3166 = vmul.f32 %v41, %v3164
  %v3167 = vmul.f32 %v45, %v3164
  %v3168 = vmul.f32 %v49, %v3164
  %v3169 = vadd.f32 %v3156, %v3165
  %v3170 = vadd.f32 %v3157, %v3166
  %v3171 = vadd.f32 %v3158, %v3167
  %v3172 = vadd.f32 %v3159, %v3168
  %v3173 = vld [vmem:[%s2582 + $0x2e] sm:$0x1]
  %v3174 = vlaneseq
  %v3175 = vshrl.u32 %v3174, 7
  %v3176 = vsub.s32 0, %v3175
  %v3177 = vrot.slane %v3173, %v3176
  %v3178 = vmul.f32 %v53, %v3177
  %v3179 = vmul.f32 %v57, %v3177
  %v3180 = vmul.f32 %v61, %v3177
  %v3181 = vmul.f32 %v65, %v3177
  %v3182 = vadd.f32 %v3169, %v3178
  %v3183 = vadd.f32 %v3170, %v3179
  %v3184 = vadd.f32 %v3171, %v3180
  %v3185 = vadd.f32 %v3172, %v3181
  %v3186 = vld [vmem:[%s2582 + $0x2f] sm:$0x1]
  %v3187 = vlaneseq
  %v3188 = vshrl.u32 %v3187, 7
  %v3189 = vsub.s32 0, %v3188
  %v3190 = vrot.slane %v3186, %v3189
  %v3191 = vmul.f32 %v69, %v3190
  %v3192 = vmul.f32 %v73, %v3190
  %v3193 = vmul.f32 %v77, %v3190
  %v3194 = vmul.f32 %v81, %v3190
  %v3195 = vadd.f32 %v3182, %v3191
  %v3196 = vadd.f32 %v3183, %v3192
  %v3197 = vadd.f32 %v3184, %v3193
  %v3198 = vadd.f32 %v3185, %v3194
  %v3199 = vmax.f32 %v3147, %v3195
  %v3200 = vmax.f32 %v3148, %v3196
  %v3201 = vmax.f32 %v3149, %v3197
  %v3202 = vmax.f32 %v3150, %v3198
  %v3203 = vld [vmem:[%s2582 + $0x30] sm:$0x1]
  %v3204 = vlaneseq
  %v3205 = vshrl.u32 %v3204, 7
  %v3206 = vsub.s32 0, %v3205
  %v3207 = vrot.slane %v3203, %v3206
  %v3208 = vmul.f32 %v18, %v3207
  %v3209 = vmul.f32 %v23, %v3207
  %v3210 = vmul.f32 %v28, %v3207
  %v3211 = vmul.f32 %v33, %v3207
  %v3212 = vld [vmem:[%s2582 + $0x31] sm:$0x1]
  %v3213 = vlaneseq
  %v3214 = vshrl.u32 %v3213, 7
  %v3215 = vsub.s32 0, %v3214
  %v3216 = vrot.slane %v3212, %v3215
  %v3217 = vmul.f32 %v37, %v3216
  %v3218 = vmul.f32 %v41, %v3216
  %v3219 = vmul.f32 %v45, %v3216
  %v3220 = vmul.f32 %v49, %v3216
  %v3221 = vadd.f32 %v3208, %v3217
  %v3222 = vadd.f32 %v3209, %v3218
  %v3223 = vadd.f32 %v3210, %v3219
  %v3224 = vadd.f32 %v3211, %v3220
  %v3225 = vld [vmem:[%s2582 + $0x32] sm:$0x1]
  %v3226 = vlaneseq
  %v3227 = vshrl.u32 %v3226, 7
  %v3228 = vsub.s32 0, %v3227
  %v3229 = vrot.slane %v3225, %v3228
  %v3230 = vmul.f32 %v53, %v3229
  %v3231 = vmul.f32 %v57, %v3229
  %v3232 = vmul.f32 %v61, %v3229
  %v3233 = vmul.f32 %v65, %v3229
  %v3234 = vadd.f32 %v3221, %v3230
  %v3235 = vadd.f32 %v3222, %v3231
  %v3236 = vadd.f32 %v3223, %v3232
  %v3237 = vadd.f32 %v3224, %v3233
  %v3238 = vld [vmem:[%s2582 + $0x33] sm:$0x1]
  %v3239 = vlaneseq
  %v3240 = vshrl.u32 %v3239, 7
  %v3241 = vsub.s32 0, %v3240
  %v3242 = vrot.slane %v3238, %v3241
  %v3243 = vmul.f32 %v69, %v3242
  %v3244 = vmul.f32 %v73, %v3242
  %v3245 = vmul.f32 %v77, %v3242
  %v3246 = vmul.f32 %v81, %v3242
  %v3247 = vadd.f32 %v3234, %v3243
  %v3248 = vadd.f32 %v3235, %v3244
  %v3249 = vadd.f32 %v3236, %v3245
  %v3250 = vadd.f32 %v3237, %v3246
  %v3251 = vmax.f32 %v3199, %v3247
  %v3252 = vmax.f32 %v3200, %v3248
  %v3253 = vmax.f32 %v3201, %v3249
  %v3254 = vmax.f32 %v3202, %v3250
  %v3255 = vld [vmem:[%s2582 + $0x34] sm:$0x1]
  %v3256 = vlaneseq
  %v3257 = vshrl.u32 %v3256, 7
  %v3258 = vsub.s32 0, %v3257
  %v3259 = vrot.slane %v3255, %v3258
  %v3260 = vmul.f32 %v18, %v3259
  %v3261 = vmul.f32 %v23, %v3259
  %v3262 = vmul.f32 %v28, %v3259
  %v3263 = vmul.f32 %v33, %v3259
  %v3264 = vld [vmem:[%s2582 + $0x35] sm:$0x1]
  %v3265 = vlaneseq
  %v3266 = vshrl.u32 %v3265, 7
  %v3267 = vsub.s32 0, %v3266
  %v3268 = vrot.slane %v3264, %v3267
  %v3269 = vmul.f32 %v37, %v3268
  %v3270 = vmul.f32 %v41, %v3268
  %v3271 = vmul.f32 %v45, %v3268
  %v3272 = vmul.f32 %v49, %v3268
  %v3273 = vadd.f32 %v3260, %v3269
  %v3274 = vadd.f32 %v3261, %v3270
  %v3275 = vadd.f32 %v3262, %v3271
  %v3276 = vadd.f32 %v3263, %v3272
  %v3277 = vld [vmem:[%s2582 + $0x36] sm:$0x1]
  %v3278 = vlaneseq
  %v3279 = vshrl.u32 %v3278, 7
  %v3280 = vsub.s32 0, %v3279
  %v3281 = vrot.slane %v3277, %v3280
  %v3282 = vmul.f32 %v53, %v3281
  %v3283 = vmul.f32 %v57, %v3281
  %v3284 = vmul.f32 %v61, %v3281
  %v3285 = vmul.f32 %v65, %v3281
  %v3286 = vadd.f32 %v3273, %v3282
  %v3287 = vadd.f32 %v3274, %v3283
  %v3288 = vadd.f32 %v3275, %v3284
  %v3289 = vadd.f32 %v3276, %v3285
  %v3290 = vld [vmem:[%s2582 + $0x37] sm:$0x1]
  %v3291 = vlaneseq
  %v3292 = vshrl.u32 %v3291, 7
  %v3293 = vsub.s32 0, %v3292
  %v3294 = vrot.slane %v3290, %v3293
  %v3295 = vmul.f32 %v69, %v3294
  %v3296 = vmul.f32 %v73, %v3294
  %v3297 = vmul.f32 %v77, %v3294
  %v3298 = vmul.f32 %v81, %v3294
  %v3299 = vadd.f32 %v3286, %v3295
  %v3300 = vadd.f32 %v3287, %v3296
  %v3301 = vadd.f32 %v3288, %v3297
  %v3302 = vadd.f32 %v3289, %v3298
  %v3303 = vmax.f32 %v3251, %v3299
  %v3304 = vmax.f32 %v3252, %v3300
  %v3305 = vmax.f32 %v3253, %v3301
  %v3306 = vmax.f32 %v3254, %v3302
  %v3307 = vld [vmem:[%s2582 + $0x38] sm:$0x1]
  %v3308 = vlaneseq
  %v3309 = vshrl.u32 %v3308, 7
  %v3310 = vsub.s32 0, %v3309
  %v3311 = vrot.slane %v3307, %v3310
  %v3312 = vmul.f32 %v18, %v3311
  %v3313 = vmul.f32 %v23, %v3311
  %v3314 = vmul.f32 %v28, %v3311
  %v3315 = vmul.f32 %v33, %v3311
  %v3316 = vld [vmem:[%s2582 + $0x39] sm:$0x1]
  %v3317 = vlaneseq
  %v3318 = vshrl.u32 %v3317, 7
  %v3319 = vsub.s32 0, %v3318
  %v3320 = vrot.slane %v3316, %v3319
  %v3321 = vmul.f32 %v37, %v3320
  %v3322 = vmul.f32 %v41, %v3320
  %v3323 = vmul.f32 %v45, %v3320
  %v3324 = vmul.f32 %v49, %v3320
  %v3325 = vadd.f32 %v3312, %v3321
  %v3326 = vadd.f32 %v3313, %v3322
  %v3327 = vadd.f32 %v3314, %v3323
  %v3328 = vadd.f32 %v3315, %v3324
  %v3329 = vld [vmem:[%s2582 + $0x3a] sm:$0x1]
  %v3330 = vlaneseq
  %v3331 = vshrl.u32 %v3330, 7
  %v3332 = vsub.s32 0, %v3331
  %v3333 = vrot.slane %v3329, %v3332
  %v3334 = vmul.f32 %v53, %v3333
  %v3335 = vmul.f32 %v57, %v3333
  %v3336 = vmul.f32 %v61, %v3333
  %v3337 = vmul.f32 %v65, %v3333
  %v3338 = vadd.f32 %v3325, %v3334
  %v3339 = vadd.f32 %v3326, %v3335
  %v3340 = vadd.f32 %v3327, %v3336
  %v3341 = vadd.f32 %v3328, %v3337
  %v3342 = vld [vmem:[%s2582 + $0x3b] sm:$0x1]
  %v3343 = vlaneseq
  %v3344 = vshrl.u32 %v3343, 7
  %v3345 = vsub.s32 0, %v3344
  %v3346 = vrot.slane %v3342, %v3345
  %v3347 = vmul.f32 %v69, %v3346
  %v3348 = vmul.f32 %v73, %v3346
  %v3349 = vmul.f32 %v77, %v3346
  %v3350 = vmul.f32 %v81, %v3346
  %v3351 = vadd.f32 %v3338, %v3347
  %v3352 = vadd.f32 %v3339, %v3348
  %v3353 = vadd.f32 %v3340, %v3349
  %v3354 = vadd.f32 %v3341, %v3350
  %v3355 = vmax.f32 %v3303, %v3351
  %v3356 = vmax.f32 %v3304, %v3352
  %v3357 = vmax.f32 %v3305, %v3353
  %v3358 = vmax.f32 %v3306, %v3354
  %v3359 = vld [vmem:[%s2582 + $0x3c] sm:$0x1]
  %v3360 = vlaneseq
  %v3361 = vshrl.u32 %v3360, 7
  %v3362 = vsub.s32 0, %v3361
  %v3363 = vrot.slane %v3359, %v3362
  %v3364 = vmul.f32 %v18, %v3363
  %v3365 = vmul.f32 %v23, %v3363
  %v3366 = vmul.f32 %v28, %v3363
  %v3367 = vmul.f32 %v33, %v3363
  %v3368 = vld [vmem:[%s2582 + $0x3d] sm:$0x1]
  %v3369 = vlaneseq
  %v3370 = vshrl.u32 %v3369, 7
  %v3371 = vsub.s32 0, %v3370
  %v3372 = vrot.slane %v3368, %v3371
  %v3373 = vmul.f32 %v37, %v3372
  %v3374 = vmul.f32 %v41, %v3372
  %v3375 = vmul.f32 %v45, %v3372
  %v3376 = vmul.f32 %v49, %v3372
  %v3377 = vadd.f32 %v3364, %v3373
  %v3378 = vadd.f32 %v3365, %v3374
  %v3379 = vadd.f32 %v3366, %v3375
  %v3380 = vadd.f32 %v3367, %v3376
  %v3381 = vld [vmem:[%s2582 + $0x3e] sm:$0x1]
  %v3382 = vlaneseq
  %v3383 = vshrl.u32 %v3382, 7
  %v3384 = vsub.s32 0, %v3383
  %v3385 = vrot.slane %v3381, %v3384
  %v3386 = vmul.f32 %v53, %v3385
  %v3387 = vmul.f32 %v57, %v3385
  %v3388 = vmul.f32 %v61, %v3385
  %v3389 = vmul.f32 %v65, %v3385
  %v3390 = vadd.f32 %v3377, %v3386
  %v3391 = vadd.f32 %v3378, %v3387
  %v3392 = vadd.f32 %v3379, %v3388
  %v3393 = vadd.f32 %v3380, %v3389
  %v3394 = vld [vmem:[%s2582 + $0x3f] sm:$0x1]
  %v3395 = vlaneseq
  %v3396 = vshrl.u32 %v3395, 7
  %v3397 = vsub.s32 0, %v3396
  %v3398 = vrot.slane %v3394, %v3397
  %v3399 = vmul.f32 %v69, %v3398
  %v3400 = vmul.f32 %v73, %v3398
  %v3401 = vmul.f32 %v77, %v3398
  %v3402 = vmul.f32 %v81, %v3398
  %v3403 = vadd.f32 %v3390, %v3399
  %v3404 = vadd.f32 %v3391, %v3400
  %v3405 = vadd.f32 %v3392, %v3401
  %v3406 = vadd.f32 %v3393, %v3402
  %v3407 = vmax.f32 %v3355, %v3403
  %v3408 = vmax.f32 %v3356, %v3404
  %v3409 = vmax.f32 %v3357, %v3405
  %v3410 = vmax.f32 %v3358, %v3406
  %v3411 = vld [vmem:[%s2582 + $0x40] sm:$0x1]
  %v3412 = vlaneseq
  %v3413 = vshrl.u32 %v3412, 7
  %v3414 = vsub.s32 0, %v3413
  %v3415 = vrot.slane %v3411, %v3414
  %v3416 = vmul.f32 %v18, %v3415
  %v3417 = vmul.f32 %v23, %v3415
  %v3418 = vmul.f32 %v28, %v3415
  %v3419 = vmul.f32 %v33, %v3415
  %v3420 = vld [vmem:[%s2582 + $0x41] sm:$0x1]
  %v3421 = vlaneseq
  %v3422 = vshrl.u32 %v3421, 7
  %v3423 = vsub.s32 0, %v3422
  %v3424 = vrot.slane %v3420, %v3423
  %v3425 = vmul.f32 %v37, %v3424
  %v3426 = vmul.f32 %v41, %v3424
  %v3427 = vmul.f32 %v45, %v3424
  %v3428 = vmul.f32 %v49, %v3424
  %v3429 = vadd.f32 %v3416, %v3425
  %v3430 = vadd.f32 %v3417, %v3426
  %v3431 = vadd.f32 %v3418, %v3427
  %v3432 = vadd.f32 %v3419, %v3428
  %v3433 = vld [vmem:[%s2582 + $0x42] sm:$0x1]
  %v3434 = vlaneseq
  %v3435 = vshrl.u32 %v3434, 7
  %v3436 = vsub.s32 0, %v3435
  %v3437 = vrot.slane %v3433, %v3436
  %v3438 = vmul.f32 %v53, %v3437
  %v3439 = vmul.f32 %v57, %v3437
  %v3440 = vmul.f32 %v61, %v3437
  %v3441 = vmul.f32 %v65, %v3437
  %v3442 = vadd.f32 %v3429, %v3438
  %v3443 = vadd.f32 %v3430, %v3439
  %v3444 = vadd.f32 %v3431, %v3440
  %v3445 = vadd.f32 %v3432, %v3441
  %v3446 = vld [vmem:[%s2582 + $0x43] sm:$0x1]
  %v3447 = vlaneseq
  %v3448 = vshrl.u32 %v3447, 7
  %v3449 = vsub.s32 0, %v3448
  %v3450 = vrot.slane %v3446, %v3449
  %v3451 = vmul.f32 %v69, %v3450
  %v3452 = vmul.f32 %v73, %v3450
  %v3453 = vmul.f32 %v77, %v3450
  %v3454 = vmul.f32 %v81, %v3450
  %v3455 = vadd.f32 %v3442, %v3451
  %v3456 = vadd.f32 %v3443, %v3452
  %v3457 = vadd.f32 %v3444, %v3453
  %v3458 = vadd.f32 %v3445, %v3454
  %v3459 = vmax.f32 %v3407, %v3455
  %v3460 = vmax.f32 %v3408, %v3456
  %v3461 = vmax.f32 %v3409, %v3457
  %v3462 = vmax.f32 %v3410, %v3458
  %v3463 = vld [vmem:[%s2582 + $0x44] sm:$0x1]
  %v3464 = vlaneseq
  %v3465 = vshrl.u32 %v3464, 7
  %v3466 = vsub.s32 0, %v3465
  %v3467 = vrot.slane %v3463, %v3466
  %v3468 = vmul.f32 %v18, %v3467
  %v3469 = vmul.f32 %v23, %v3467
  %v3470 = vmul.f32 %v28, %v3467
  %v3471 = vmul.f32 %v33, %v3467
  %v3472 = vld [vmem:[%s2582 + $0x45] sm:$0x1]
  %v3473 = vlaneseq
  %v3474 = vshrl.u32 %v3473, 7
  %v3475 = vsub.s32 0, %v3474
  %v3476 = vrot.slane %v3472, %v3475
  %v3477 = vmul.f32 %v37, %v3476
  %v3478 = vmul.f32 %v41, %v3476
  %v3479 = vmul.f32 %v45, %v3476
  %v3480 = vmul.f32 %v49, %v3476
  %v3481 = vadd.f32 %v3468, %v3477
  %v3482 = vadd.f32 %v3469, %v3478
  %v3483 = vadd.f32 %v3470, %v3479
  %v3484 = vadd.f32 %v3471, %v3480
  %v3485 = vld [vmem:[%s2582 + $0x46] sm:$0x1]
  %v3486 = vlaneseq
  %v3487 = vshrl.u32 %v3486, 7
  %v3488 = vsub.s32 0, %v3487
  %v3489 = vrot.slane %v3485, %v3488
  %v3490 = vmul.f32 %v53, %v3489
  %v3491 = vmul.f32 %v57, %v3489
  %v3492 = vmul.f32 %v61, %v3489
  %v3493 = vmul.f32 %v65, %v3489
  %v3494 = vadd.f32 %v3481, %v3490
  %v3495 = vadd.f32 %v3482, %v3491
  %v3496 = vadd.f32 %v3483, %v3492
  %v3497 = vadd.f32 %v3484, %v3493
  %v3498 = vld [vmem:[%s2582 + $0x47] sm:$0x1]
  %v3499 = vlaneseq
  %v3500 = vshrl.u32 %v3499, 7
  %v3501 = vsub.s32 0, %v3500
  %v3502 = vrot.slane %v3498, %v3501
  %v3503 = vmul.f32 %v69, %v3502
  %v3504 = vmul.f32 %v73, %v3502
  %v3505 = vmul.f32 %v77, %v3502
  %v3506 = vmul.f32 %v81, %v3502
  %v3507 = vadd.f32 %v3494, %v3503
  %v3508 = vadd.f32 %v3495, %v3504
  %v3509 = vadd.f32 %v3496, %v3505
  %v3510 = vadd.f32 %v3497, %v3506
  %v3511 = vmax.f32 %v3459, %v3507
  %v3512 = vmax.f32 %v3460, %v3508
  %v3513 = vmax.f32 %v3461, %v3509
  %v3514 = vmax.f32 %v3462, %v3510
  %v3515 = vld [vmem:[%s2582 + $0x48] sm:$0x1]
  %v3516 = vlaneseq
  %v3517 = vshrl.u32 %v3516, 7
  %v3518 = vsub.s32 0, %v3517
  %v3519 = vrot.slane %v3515, %v3518
  %v3520 = vmul.f32 %v18, %v3519
  %v3521 = vmul.f32 %v23, %v3519
  %v3522 = vmul.f32 %v28, %v3519
  %v3523 = vmul.f32 %v33, %v3519
  %v3524 = vld [vmem:[%s2582 + $0x49] sm:$0x1]
  %v3525 = vlaneseq
  %v3526 = vshrl.u32 %v3525, 7
  %v3527 = vsub.s32 0, %v3526
  %v3528 = vrot.slane %v3524, %v3527
  %v3529 = vmul.f32 %v37, %v3528
  %v3530 = vmul.f32 %v41, %v3528
  %v3531 = vmul.f32 %v45, %v3528
  %v3532 = vmul.f32 %v49, %v3528
  %v3533 = vadd.f32 %v3520, %v3529
  %v3534 = vadd.f32 %v3521, %v3530
  %v3535 = vadd.f32 %v3522, %v3531
  %v3536 = vadd.f32 %v3523, %v3532
  %v3537 = vld [vmem:[%s2582 + $0x4a] sm:$0x1]
  %v3538 = vlaneseq
  %v3539 = vshrl.u32 %v3538, 7
  %v3540 = vsub.s32 0, %v3539
  %v3541 = vrot.slane %v3537, %v3540
  %v3542 = vmul.f32 %v53, %v3541
  %v3543 = vmul.f32 %v57, %v3541
  %v3544 = vmul.f32 %v61, %v3541
  %v3545 = vmul.f32 %v65, %v3541
  %v3546 = vadd.f32 %v3533, %v3542
  %v3547 = vadd.f32 %v3534, %v3543
  %v3548 = vadd.f32 %v3535, %v3544
  %v3549 = vadd.f32 %v3536, %v3545
  %v3550 = vld [vmem:[%s2582 + $0x4b] sm:$0x1]
  %v3551 = vlaneseq
  %v3552 = vshrl.u32 %v3551, 7
  %v3553 = vsub.s32 0, %v3552
  %v3554 = vrot.slane %v3550, %v3553
  %v3555 = vmul.f32 %v69, %v3554
  %v3556 = vmul.f32 %v73, %v3554
  %v3557 = vmul.f32 %v77, %v3554
  %v3558 = vmul.f32 %v81, %v3554
  %v3559 = vadd.f32 %v3546, %v3555
  %v3560 = vadd.f32 %v3547, %v3556
  %v3561 = vadd.f32 %v3548, %v3557
  %v3562 = vadd.f32 %v3549, %v3558
  %v3563 = vmax.f32 %v3511, %v3559
  %v3564 = vmax.f32 %v3512, %v3560
  %v3565 = vmax.f32 %v3513, %v3561
  %v3566 = vmax.f32 %v3514, %v3562
  %v3567 = vld [vmem:[%s2582 + $0x4c] sm:$0x1]
  %v3568 = vlaneseq
  %v3569 = vshrl.u32 %v3568, 7
  %v3570 = vsub.s32 0, %v3569
  %v3571 = vrot.slane %v3567, %v3570
  %v3572 = vmul.f32 %v18, %v3571
  %v3573 = vmul.f32 %v23, %v3571
  %v3574 = vmul.f32 %v28, %v3571
  %v3575 = vmul.f32 %v33, %v3571
  %v3576 = vld [vmem:[%s2582 + $0x4d] sm:$0x1]
  %v3577 = vlaneseq
  %v3578 = vshrl.u32 %v3577, 7
  %v3579 = vsub.s32 0, %v3578
  %v3580 = vrot.slane %v3576, %v3579
  %v3581 = vmul.f32 %v37, %v3580
  %v3582 = vmul.f32 %v41, %v3580
  %v3583 = vmul.f32 %v45, %v3580
  %v3584 = vmul.f32 %v49, %v3580
  %v3585 = vadd.f32 %v3572, %v3581
  %v3586 = vadd.f32 %v3573, %v3582
  %v3587 = vadd.f32 %v3574, %v3583
  %v3588 = vadd.f32 %v3575, %v3584
  %v3589 = vld [vmem:[%s2582 + $0x4e] sm:$0x1]
  %v3590 = vlaneseq
  %v3591 = vshrl.u32 %v3590, 7
  %v3592 = vsub.s32 0, %v3591
  %v3593 = vrot.slane %v3589, %v3592
  %v3594 = vmul.f32 %v53, %v3593
  %v3595 = vmul.f32 %v57, %v3593
  %v3596 = vmul.f32 %v61, %v3593
  %v3597 = vmul.f32 %v65, %v3593
  %v3598 = vadd.f32 %v3585, %v3594
  %v3599 = vadd.f32 %v3586, %v3595
  %v3600 = vadd.f32 %v3587, %v3596
  %v3601 = vadd.f32 %v3588, %v3597
  %v3602 = vld [vmem:[%s2582 + $0x4f] sm:$0x1]
  %v3603 = vlaneseq
  %v3604 = vshrl.u32 %v3603, 7
  %v3605 = vsub.s32 0, %v3604
  %v3606 = vrot.slane %v3602, %v3605
  %v3607 = vmul.f32 %v69, %v3606
  %v3608 = vmul.f32 %v73, %v3606
  %v3609 = vmul.f32 %v77, %v3606
  %v3610 = vmul.f32 %v81, %v3606
  %v3611 = vadd.f32 %v3598, %v3607
  %v3612 = vadd.f32 %v3599, %v3608
  %v3613 = vadd.f32 %v3600, %v3609
  %v3614 = vadd.f32 %v3601, %v3610
  %v3615 = vmax.f32 %v3563, %v3611
  %v3616 = vmax.f32 %v3564, %v3612
  %v3617 = vmax.f32 %v3565, %v3613
  %v3618 = vmax.f32 %v3566, %v3614
  %v3619 = vld [vmem:[%s2582 + $0x50] sm:$0x1]
  %v3620 = vlaneseq
  %v3621 = vshrl.u32 %v3620, 7
  %v3622 = vsub.s32 0, %v3621
  %v3623 = vrot.slane %v3619, %v3622
  %v3624 = vmul.f32 %v18, %v3623
  %v3625 = vmul.f32 %v23, %v3623
  %v3626 = vmul.f32 %v28, %v3623
  %v3627 = vmul.f32 %v33, %v3623
  %v3628 = vld [vmem:[%s2582 + $0x51] sm:$0x1]
  %v3629 = vlaneseq
  %v3630 = vshrl.u32 %v3629, 7
  %v3631 = vsub.s32 0, %v3630
  %v3632 = vrot.slane %v3628, %v3631
  %v3633 = vmul.f32 %v37, %v3632
  %v3634 = vmul.f32 %v41, %v3632
  %v3635 = vmul.f32 %v45, %v3632
  %v3636 = vmul.f32 %v49, %v3632
  %v3637 = vadd.f32 %v3624, %v3633
  %v3638 = vadd.f32 %v3625, %v3634
  %v3639 = vadd.f32 %v3626, %v3635
  %v3640 = vadd.f32 %v3627, %v3636
  %v3641 = vld [vmem:[%s2582 + $0x52] sm:$0x1]
  %v3642 = vlaneseq
  %v3643 = vshrl.u32 %v3642, 7
  %v3644 = vsub.s32 0, %v3643
  %v3645 = vrot.slane %v3641, %v3644
  %v3646 = vmul.f32 %v53, %v3645
  %v3647 = vmul.f32 %v57, %v3645
  %v3648 = vmul.f32 %v61, %v3645
  %v3649 = vmul.f32 %v65, %v3645
  %v3650 = vadd.f32 %v3637, %v3646
  %v3651 = vadd.f32 %v3638, %v3647
  %v3652 = vadd.f32 %v3639, %v3648
  %v3653 = vadd.f32 %v3640, %v3649
  %v3654 = vld [vmem:[%s2582 + $0x53] sm:$0x1]
  %v3655 = vlaneseq
  %v3656 = vshrl.u32 %v3655, 7
  %v3657 = vsub.s32 0, %v3656
  %v3658 = vrot.slane %v3654, %v3657
  %v3659 = vmul.f32 %v69, %v3658
  %v3660 = vmul.f32 %v73, %v3658
  %v3661 = vmul.f32 %v77, %v3658
  %v3662 = vmul.f32 %v81, %v3658
  %v3663 = vadd.f32 %v3650, %v3659
  %v3664 = vadd.f32 %v3651, %v3660
  %v3665 = vadd.f32 %v3652, %v3661
  %v3666 = vadd.f32 %v3653, %v3662
  %v3667 = vmax.f32 %v3615, %v3663
  %v3668 = vmax.f32 %v3616, %v3664
  %v3669 = vmax.f32 %v3617, %v3665
  %v3670 = vmax.f32 %v3618, %v3666
  %v3671 = vld [vmem:[%s2582 + $0x54] sm:$0x1]
  %v3672 = vlaneseq
  %v3673 = vshrl.u32 %v3672, 7
  %v3674 = vsub.s32 0, %v3673
  %v3675 = vrot.slane %v3671, %v3674
  %v3676 = vmul.f32 %v18, %v3675
  %v3677 = vmul.f32 %v23, %v3675
  %v3678 = vmul.f32 %v28, %v3675
  %v3679 = vmul.f32 %v33, %v3675
  %v3680 = vld [vmem:[%s2582 + $0x55] sm:$0x1]
  %v3681 = vlaneseq
  %v3682 = vshrl.u32 %v3681, 7
  %v3683 = vsub.s32 0, %v3682
  %v3684 = vrot.slane %v3680, %v3683
  %v3685 = vmul.f32 %v37, %v3684
  %v3686 = vmul.f32 %v41, %v3684
  %v3687 = vmul.f32 %v45, %v3684
  %v3688 = vmul.f32 %v49, %v3684
  %v3689 = vadd.f32 %v3676, %v3685
  %v3690 = vadd.f32 %v3677, %v3686
  %v3691 = vadd.f32 %v3678, %v3687
  %v3692 = vadd.f32 %v3679, %v3688
  %v3693 = vld [vmem:[%s2582 + $0x56] sm:$0x1]
  %v3694 = vlaneseq
  %v3695 = vshrl.u32 %v3694, 7
  %v3696 = vsub.s32 0, %v3695
  %v3697 = vrot.slane %v3693, %v3696
  %v3698 = vmul.f32 %v53, %v3697
  %v3699 = vmul.f32 %v57, %v3697
  %v3700 = vmul.f32 %v61, %v3697
  %v3701 = vmul.f32 %v65, %v3697
  %v3702 = vadd.f32 %v3689, %v3698
  %v3703 = vadd.f32 %v3690, %v3699
  %v3704 = vadd.f32 %v3691, %v3700
  %v3705 = vadd.f32 %v3692, %v3701
  %v3706 = vld [vmem:[%s2582 + $0x57] sm:$0x1]
  %v3707 = vlaneseq
  %v3708 = vshrl.u32 %v3707, 7
  %v3709 = vsub.s32 0, %v3708
  %v3710 = vrot.slane %v3706, %v3709
  %v3711 = vmul.f32 %v69, %v3710
  %v3712 = vmul.f32 %v73, %v3710
  %v3713 = vmul.f32 %v77, %v3710
  %v3714 = vmul.f32 %v81, %v3710
  %v3715 = vadd.f32 %v3702, %v3711
  %v3716 = vadd.f32 %v3703, %v3712
  %v3717 = vadd.f32 %v3704, %v3713
  %v3718 = vadd.f32 %v3705, %v3714
  %v3719 = vmax.f32 %v3667, %v3715
  %v3720 = vmax.f32 %v3668, %v3716
  %v3721 = vmax.f32 %v3669, %v3717
  %v3722 = vmax.f32 %v3670, %v3718
  %v3723 = vld [vmem:[%s2582 + $0x58] sm:$0x1]
  %v3724 = vlaneseq
  %v3725 = vshrl.u32 %v3724, 7
  %v3726 = vsub.s32 0, %v3725
  %v3727 = vrot.slane %v3723, %v3726
  %v3728 = vmul.f32 %v18, %v3727
  %v3729 = vmul.f32 %v23, %v3727
  %v3730 = vmul.f32 %v28, %v3727
  %v3731 = vmul.f32 %v33, %v3727
  %v3732 = vld [vmem:[%s2582 + $0x59] sm:$0x1]
  %v3733 = vlaneseq
  %v3734 = vshrl.u32 %v3733, 7
  %v3735 = vsub.s32 0, %v3734
  %v3736 = vrot.slane %v3732, %v3735
  %v3737 = vmul.f32 %v37, %v3736
  %v3738 = vmul.f32 %v41, %v3736
  %v3739 = vmul.f32 %v45, %v3736
  %v3740 = vmul.f32 %v49, %v3736
  %v3741 = vadd.f32 %v3728, %v3737
  %v3742 = vadd.f32 %v3729, %v3738
  %v3743 = vadd.f32 %v3730, %v3739
  %v3744 = vadd.f32 %v3731, %v3740
  %v3745 = vld [vmem:[%s2582 + $0x5a] sm:$0x1]
  %v3746 = vlaneseq
  %v3747 = vshrl.u32 %v3746, 7
  %v3748 = vsub.s32 0, %v3747
  %v3749 = vrot.slane %v3745, %v3748
  %v3750 = vmul.f32 %v53, %v3749
  %v3751 = vmul.f32 %v57, %v3749
  %v3752 = vmul.f32 %v61, %v3749
  %v3753 = vmul.f32 %v65, %v3749
  %v3754 = vadd.f32 %v3741, %v3750
  %v3755 = vadd.f32 %v3742, %v3751
  %v3756 = vadd.f32 %v3743, %v3752
  %v3757 = vadd.f32 %v3744, %v3753
  %v3758 = vld [vmem:[%s2582 + $0x5b] sm:$0x1]
  %v3759 = vlaneseq
  %v3760 = vshrl.u32 %v3759, 7
  %v3761 = vsub.s32 0, %v3760
  %v3762 = vrot.slane %v3758, %v3761
  %v3763 = vmul.f32 %v69, %v3762
  %v3764 = vmul.f32 %v73, %v3762
  %v3765 = vmul.f32 %v77, %v3762
  %v3766 = vmul.f32 %v81, %v3762
  %v3767 = vadd.f32 %v3754, %v3763
  %v3768 = vadd.f32 %v3755, %v3764
  %v3769 = vadd.f32 %v3756, %v3765
  %v3770 = vadd.f32 %v3757, %v3766
  %v3771 = vmax.f32 %v3719, %v3767
  %v3772 = vmax.f32 %v3720, %v3768
  %v3773 = vmax.f32 %v3721, %v3769
  %v3774 = vmax.f32 %v3722, %v3770
  %v3775 = vld [vmem:[%s2582 + $0x5c] sm:$0x1]
  %v3776 = vlaneseq
  %v3777 = vshrl.u32 %v3776, 7
  %v3778 = vsub.s32 0, %v3777
  %v3779 = vrot.slane %v3775, %v3778
  %v3780 = vmul.f32 %v18, %v3779
  %v3781 = vmul.f32 %v23, %v3779
  %v3782 = vmul.f32 %v28, %v3779
  %v3783 = vmul.f32 %v33, %v3779
  %v3784 = vld [vmem:[%s2582 + $0x5d] sm:$0x1]
  %v3785 = vlaneseq
  %v3786 = vshrl.u32 %v3785, 7
  %v3787 = vsub.s32 0, %v3786
  %v3788 = vrot.slane %v3784, %v3787
  %v3789 = vmul.f32 %v37, %v3788
  %v3790 = vmul.f32 %v41, %v3788
  %v3791 = vmul.f32 %v45, %v3788
  %v3792 = vmul.f32 %v49, %v3788
  %v3793 = vadd.f32 %v3780, %v3789
  %v3794 = vadd.f32 %v3781, %v3790
  %v3795 = vadd.f32 %v3782, %v3791
  %v3796 = vadd.f32 %v3783, %v3792
  %v3797 = vld [vmem:[%s2582 + $0x5e] sm:$0x1]
  %v3798 = vlaneseq
  %v3799 = vshrl.u32 %v3798, 7
  %v3800 = vsub.s32 0, %v3799
  %v3801 = vrot.slane %v3797, %v3800
  %v3802 = vmul.f32 %v53, %v3801
  %v3803 = vmul.f32 %v57, %v3801
  %v3804 = vmul.f32 %v61, %v3801
  %v3805 = vmul.f32 %v65, %v3801
  %v3806 = vadd.f32 %v3793, %v3802
  %v3807 = vadd.f32 %v3794, %v3803
  %v3808 = vadd.f32 %v3795, %v3804
  %v3809 = vadd.f32 %v3796, %v3805
  %v3810 = vld [vmem:[%s2582 + $0x5f] sm:$0x1]
  %v3811 = vlaneseq
  %v3812 = vshrl.u32 %v3811, 7
  %v3813 = vsub.s32 0, %v3812
  %v3814 = vrot.slane %v3810, %v3813
  %v3815 = vmul.f32 %v69, %v3814
  %v3816 = vmul.f32 %v73, %v3814
  %v3817 = vmul.f32 %v77, %v3814
  %v3818 = vmul.f32 %v81, %v3814
  %v3819 = vadd.f32 %v3806, %v3815
  %v3820 = vadd.f32 %v3807, %v3816
  %v3821 = vadd.f32 %v3808, %v3817
  %v3822 = vadd.f32 %v3809, %v3818
  %v3823 = vmax.f32 %v3771, %v3819
  %v3824 = vmax.f32 %v3772, %v3820
  %v3825 = vmax.f32 %v3773, %v3821
  %v3826 = vmax.f32 %v3774, %v3822
  %s3827 = scalar_lea.vmem %s2, 64
  %3828 = vst.msk [vmem:[%s3827] sm:$0xff] %vm1327, %v3823
  %3829 = vst.msk [vmem:[%s3827 + $0x8] sm:$0xff] %vm1327, %v3824
  %3830 = vst.msk [vmem:[%s3827 + $0x10] sm:$0xff] %vm1327, %v3825
  %3831 = vst.msk [vmem:[%s3827 + $0x18] sm:$0xff] %vm1327, %v3826
  %s3832 = scalar_lea.vmem %s0, 288
  %v3833 = vld [vmem:[%s3832] sm:$0x1]
  %v3834 = vlaneseq
  %v3835 = vshrl.u32 %v3834, 7
  %v3836 = vsub.s32 0, %v3835
  %v3837 = vrot.slane %v3833, %v3836
  %v3838 = vmul.f32 %v18, %v3837
  %v3839 = vmul.f32 %v23, %v3837
  %v3840 = vmul.f32 %v28, %v3837
  %v3841 = vmul.f32 %v33, %v3837
  %v3842 = vld [vmem:[%s3832 + $0x1] sm:$0x1]
  %v3843 = vlaneseq
  %v3844 = vshrl.u32 %v3843, 7
  %v3845 = vsub.s32 0, %v3844
  %v3846 = vrot.slane %v3842, %v3845
  %v3847 = vmul.f32 %v37, %v3846
  %v3848 = vmul.f32 %v41, %v3846
  %v3849 = vmul.f32 %v45, %v3846
  %v3850 = vmul.f32 %v49, %v3846
  %v3851 = vadd.f32 %v3838, %v3847
  %v3852 = vadd.f32 %v3839, %v3848
  %v3853 = vadd.f32 %v3840, %v3849
  %v3854 = vadd.f32 %v3841, %v3850
  %v3855 = vld [vmem:[%s3832 + $0x2] sm:$0x1]
  %v3856 = vlaneseq
  %v3857 = vshrl.u32 %v3856, 7
  %v3858 = vsub.s32 0, %v3857
  %v3859 = vrot.slane %v3855, %v3858
  %v3860 = vmul.f32 %v53, %v3859
  %v3861 = vmul.f32 %v57, %v3859
  %v3862 = vmul.f32 %v61, %v3859
  %v3863 = vmul.f32 %v65, %v3859
  %v3864 = vadd.f32 %v3851, %v3860
  %v3865 = vadd.f32 %v3852, %v3861
  %v3866 = vadd.f32 %v3853, %v3862
  %v3867 = vadd.f32 %v3854, %v3863
  %v3868 = vld [vmem:[%s3832 + $0x3] sm:$0x1]
  %v3869 = vlaneseq
  %v3870 = vshrl.u32 %v3869, 7
  %v3871 = vsub.s32 0, %v3870
  %v3872 = vrot.slane %v3868, %v3871
  %v3873 = vmul.f32 %v69, %v3872
  %v3874 = vmul.f32 %v73, %v3872
  %v3875 = vmul.f32 %v77, %v3872
  %v3876 = vmul.f32 %v81, %v3872
  %v3877 = vadd.f32 %v3864, %v3873
  %v3878 = vadd.f32 %v3865, %v3874
  %v3879 = vadd.f32 %v3866, %v3875
  %v3880 = vadd.f32 %v3867, %v3876
  %v3881 = vld [vmem:[%s3832 + $0x4] sm:$0x1]
  %v3882 = vlaneseq
  %v3883 = vshrl.u32 %v3882, 7
  %v3884 = vsub.s32 0, %v3883
  %v3885 = vrot.slane %v3881, %v3884
  %v3886 = vmul.f32 %v18, %v3885
  %v3887 = vmul.f32 %v23, %v3885
  %v3888 = vmul.f32 %v28, %v3885
  %v3889 = vmul.f32 %v33, %v3885
  %v3890 = vld [vmem:[%s3832 + $0x5] sm:$0x1]
  %v3891 = vlaneseq
  %v3892 = vshrl.u32 %v3891, 7
  %v3893 = vsub.s32 0, %v3892
  %v3894 = vrot.slane %v3890, %v3893
  %v3895 = vmul.f32 %v37, %v3894
  %v3896 = vmul.f32 %v41, %v3894
  %v3897 = vmul.f32 %v45, %v3894
  %v3898 = vmul.f32 %v49, %v3894
  %v3899 = vadd.f32 %v3886, %v3895
  %v3900 = vadd.f32 %v3887, %v3896
  %v3901 = vadd.f32 %v3888, %v3897
  %v3902 = vadd.f32 %v3889, %v3898
  %v3903 = vld [vmem:[%s3832 + $0x6] sm:$0x1]
  %v3904 = vlaneseq
  %v3905 = vshrl.u32 %v3904, 7
  %v3906 = vsub.s32 0, %v3905
  %v3907 = vrot.slane %v3903, %v3906
  %v3908 = vmul.f32 %v53, %v3907
  %v3909 = vmul.f32 %v57, %v3907
  %v3910 = vmul.f32 %v61, %v3907
  %v3911 = vmul.f32 %v65, %v3907
  %v3912 = vadd.f32 %v3899, %v3908
  %v3913 = vadd.f32 %v3900, %v3909
  %v3914 = vadd.f32 %v3901, %v3910
  %v3915 = vadd.f32 %v3902, %v3911
  %v3916 = vld [vmem:[%s3832 + $0x7] sm:$0x1]
  %v3917 = vlaneseq
  %v3918 = vshrl.u32 %v3917, 7
  %v3919 = vsub.s32 0, %v3918
  %v3920 = vrot.slane %v3916, %v3919
  %v3921 = vmul.f32 %v69, %v3920
  %v3922 = vmul.f32 %v73, %v3920
  %v3923 = vmul.f32 %v77, %v3920
  %v3924 = vmul.f32 %v81, %v3920
  %v3925 = vadd.f32 %v3912, %v3921
  %v3926 = vadd.f32 %v3913, %v3922
  %v3927 = vadd.f32 %v3914, %v3923
  %v3928 = vadd.f32 %v3915, %v3924
  %v3929 = vmax.f32 %v3877, %v3925
  %v3930 = vmax.f32 %v3878, %v3926
  %v3931 = vmax.f32 %v3879, %v3927
  %v3932 = vmax.f32 %v3880, %v3928
  %v3933 = vld [vmem:[%s3832 + $0x8] sm:$0x1]
  %v3934 = vlaneseq
  %v3935 = vshrl.u32 %v3934, 7
  %v3936 = vsub.s32 0, %v3935
  %v3937 = vrot.slane %v3933, %v3936
  %v3938 = vmul.f32 %v18, %v3937
  %v3939 = vmul.f32 %v23, %v3937
  %v3940 = vmul.f32 %v28, %v3937
  %v3941 = vmul.f32 %v33, %v3937
  %v3942 = vld [vmem:[%s3832 + $0x9] sm:$0x1]
  %v3943 = vlaneseq
  %v3944 = vshrl.u32 %v3943, 7
  %v3945 = vsub.s32 0, %v3944
  %v3946 = vrot.slane %v3942, %v3945
  %v3947 = vmul.f32 %v37, %v3946
  %v3948 = vmul.f32 %v41, %v3946
  %v3949 = vmul.f32 %v45, %v3946
  %v3950 = vmul.f32 %v49, %v3946
  %v3951 = vadd.f32 %v3938, %v3947
  %v3952 = vadd.f32 %v3939, %v3948
  %v3953 = vadd.f32 %v3940, %v3949
  %v3954 = vadd.f32 %v3941, %v3950
  %v3955 = vld [vmem:[%s3832 + $0xa] sm:$0x1]
  %v3956 = vlaneseq
  %v3957 = vshrl.u32 %v3956, 7
  %v3958 = vsub.s32 0, %v3957
  %v3959 = vrot.slane %v3955, %v3958
  %v3960 = vmul.f32 %v53, %v3959
  %v3961 = vmul.f32 %v57, %v3959
  %v3962 = vmul.f32 %v61, %v3959
  %v3963 = vmul.f32 %v65, %v3959
  %v3964 = vadd.f32 %v3951, %v3960
  %v3965 = vadd.f32 %v3952, %v3961
  %v3966 = vadd.f32 %v3953, %v3962
  %v3967 = vadd.f32 %v3954, %v3963
  %v3968 = vld [vmem:[%s3832 + $0xb] sm:$0x1]
  %v3969 = vlaneseq
  %v3970 = vshrl.u32 %v3969, 7
  %v3971 = vsub.s32 0, %v3970
  %v3972 = vrot.slane %v3968, %v3971
  %v3973 = vmul.f32 %v69, %v3972
  %v3974 = vmul.f32 %v73, %v3972
  %v3975 = vmul.f32 %v77, %v3972
  %v3976 = vmul.f32 %v81, %v3972
  %v3977 = vadd.f32 %v3964, %v3973
  %v3978 = vadd.f32 %v3965, %v3974
  %v3979 = vadd.f32 %v3966, %v3975
  %v3980 = vadd.f32 %v3967, %v3976
  %v3981 = vmax.f32 %v3929, %v3977
  %v3982 = vmax.f32 %v3930, %v3978
  %v3983 = vmax.f32 %v3931, %v3979
  %v3984 = vmax.f32 %v3932, %v3980
  %v3985 = vld [vmem:[%s3832 + $0xc] sm:$0x1]
  %v3986 = vlaneseq
  %v3987 = vshrl.u32 %v3986, 7
  %v3988 = vsub.s32 0, %v3987
  %v3989 = vrot.slane %v3985, %v3988
  %v3990 = vmul.f32 %v18, %v3989
  %v3991 = vmul.f32 %v23, %v3989
  %v3992 = vmul.f32 %v28, %v3989
  %v3993 = vmul.f32 %v33, %v3989
  %v3994 = vld [vmem:[%s3832 + $0xd] sm:$0x1]
  %v3995 = vlaneseq
  %v3996 = vshrl.u32 %v3995, 7
  %v3997 = vsub.s32 0, %v3996
  %v3998 = vrot.slane %v3994, %v3997
  %v3999 = vmul.f32 %v37, %v3998
  %v4000 = vmul.f32 %v41, %v3998
  %v4001 = vmul.f32 %v45, %v3998
  %v4002 = vmul.f32 %v49, %v3998
  %v4003 = vadd.f32 %v3990, %v3999
  %v4004 = vadd.f32 %v3991, %v4000
  %v4005 = vadd.f32 %v3992, %v4001
  %v4006 = vadd.f32 %v3993, %v4002
  %v4007 = vld [vmem:[%s3832 + $0xe] sm:$0x1]
  %v4008 = vlaneseq
  %v4009 = vshrl.u32 %v4008, 7
  %v4010 = vsub.s32 0, %v4009
  %v4011 = vrot.slane %v4007, %v4010
  %v4012 = vmul.f32 %v53, %v4011
  %v4013 = vmul.f32 %v57, %v4011
  %v4014 = vmul.f32 %v61, %v4011
  %v4015 = vmul.f32 %v65, %v4011
  %v4016 = vadd.f32 %v4003, %v4012
  %v4017 = vadd.f32 %v4004, %v4013
  %v4018 = vadd.f32 %v4005, %v4014
  %v4019 = vadd.f32 %v4006, %v4015
  %v4020 = vld [vmem:[%s3832 + $0xf] sm:$0x1]
  %v4021 = vlaneseq
  %v4022 = vshrl.u32 %v4021, 7
  %v4023 = vsub.s32 0, %v4022
  %v4024 = vrot.slane %v4020, %v4023
  %v4025 = vmul.f32 %v69, %v4024
  %v4026 = vmul.f32 %v73, %v4024
  %v4027 = vmul.f32 %v77, %v4024
  %v4028 = vmul.f32 %v81, %v4024
  %v4029 = vadd.f32 %v4016, %v4025
  %v4030 = vadd.f32 %v4017, %v4026
  %v4031 = vadd.f32 %v4018, %v4027
  %v4032 = vadd.f32 %v4019, %v4028
  %v4033 = vmax.f32 %v3981, %v4029
  %v4034 = vmax.f32 %v3982, %v4030
  %v4035 = vmax.f32 %v3983, %v4031
  %v4036 = vmax.f32 %v3984, %v4032
  %v4037 = vld [vmem:[%s3832 + $0x10] sm:$0x1]
  %v4038 = vlaneseq
  %v4039 = vshrl.u32 %v4038, 7
  %v4040 = vsub.s32 0, %v4039
  %v4041 = vrot.slane %v4037, %v4040
  %v4042 = vmul.f32 %v18, %v4041
  %v4043 = vmul.f32 %v23, %v4041
  %v4044 = vmul.f32 %v28, %v4041
  %v4045 = vmul.f32 %v33, %v4041
  %v4046 = vld [vmem:[%s3832 + $0x11] sm:$0x1]
  %v4047 = vlaneseq
  %v4048 = vshrl.u32 %v4047, 7
  %v4049 = vsub.s32 0, %v4048
  %v4050 = vrot.slane %v4046, %v4049
  %v4051 = vmul.f32 %v37, %v4050
  %v4052 = vmul.f32 %v41, %v4050
  %v4053 = vmul.f32 %v45, %v4050
  %v4054 = vmul.f32 %v49, %v4050
  %v4055 = vadd.f32 %v4042, %v4051
  %v4056 = vadd.f32 %v4043, %v4052
  %v4057 = vadd.f32 %v4044, %v4053
  %v4058 = vadd.f32 %v4045, %v4054
  %v4059 = vld [vmem:[%s3832 + $0x12] sm:$0x1]
  %v4060 = vlaneseq
  %v4061 = vshrl.u32 %v4060, 7
  %v4062 = vsub.s32 0, %v4061
  %v4063 = vrot.slane %v4059, %v4062
  %v4064 = vmul.f32 %v53, %v4063
  %v4065 = vmul.f32 %v57, %v4063
  %v4066 = vmul.f32 %v61, %v4063
  %v4067 = vmul.f32 %v65, %v4063
  %v4068 = vadd.f32 %v4055, %v4064
  %v4069 = vadd.f32 %v4056, %v4065
  %v4070 = vadd.f32 %v4057, %v4066
  %v4071 = vadd.f32 %v4058, %v4067
  %v4072 = vld [vmem:[%s3832 + $0x13] sm:$0x1]
  %v4073 = vlaneseq
  %v4074 = vshrl.u32 %v4073, 7
  %v4075 = vsub.s32 0, %v4074
  %v4076 = vrot.slane %v4072, %v4075
  %v4077 = vmul.f32 %v69, %v4076
  %v4078 = vmul.f32 %v73, %v4076
  %v4079 = vmul.f32 %v77, %v4076
  %v4080 = vmul.f32 %v81, %v4076
  %v4081 = vadd.f32 %v4068, %v4077
  %v4082 = vadd.f32 %v4069, %v4078
  %v4083 = vadd.f32 %v4070, %v4079
  %v4084 = vadd.f32 %v4071, %v4080
  %v4085 = vmax.f32 %v4033, %v4081
  %v4086 = vmax.f32 %v4034, %v4082
  %v4087 = vmax.f32 %v4035, %v4083
  %v4088 = vmax.f32 %v4036, %v4084
  %v4089 = vld [vmem:[%s3832 + $0x14] sm:$0x1]
  %v4090 = vlaneseq
  %v4091 = vshrl.u32 %v4090, 7
  %v4092 = vsub.s32 0, %v4091
  %v4093 = vrot.slane %v4089, %v4092
  %v4094 = vmul.f32 %v18, %v4093
  %v4095 = vmul.f32 %v23, %v4093
  %v4096 = vmul.f32 %v28, %v4093
  %v4097 = vmul.f32 %v33, %v4093
  %v4098 = vld [vmem:[%s3832 + $0x15] sm:$0x1]
  %v4099 = vlaneseq
  %v4100 = vshrl.u32 %v4099, 7
  %v4101 = vsub.s32 0, %v4100
  %v4102 = vrot.slane %v4098, %v4101
  %v4103 = vmul.f32 %v37, %v4102
  %v4104 = vmul.f32 %v41, %v4102
  %v4105 = vmul.f32 %v45, %v4102
  %v4106 = vmul.f32 %v49, %v4102
  %v4107 = vadd.f32 %v4094, %v4103
  %v4108 = vadd.f32 %v4095, %v4104
  %v4109 = vadd.f32 %v4096, %v4105
  %v4110 = vadd.f32 %v4097, %v4106
  %v4111 = vld [vmem:[%s3832 + $0x16] sm:$0x1]
  %v4112 = vlaneseq
  %v4113 = vshrl.u32 %v4112, 7
  %v4114 = vsub.s32 0, %v4113
  %v4115 = vrot.slane %v4111, %v4114
  %v4116 = vmul.f32 %v53, %v4115
  %v4117 = vmul.f32 %v57, %v4115
  %v4118 = vmul.f32 %v61, %v4115
  %v4119 = vmul.f32 %v65, %v4115
  %v4120 = vadd.f32 %v4107, %v4116
  %v4121 = vadd.f32 %v4108, %v4117
  %v4122 = vadd.f32 %v4109, %v4118
  %v4123 = vadd.f32 %v4110, %v4119
  %v4124 = vld [vmem:[%s3832 + $0x17] sm:$0x1]
  %v4125 = vlaneseq
  %v4126 = vshrl.u32 %v4125, 7
  %v4127 = vsub.s32 0, %v4126
  %v4128 = vrot.slane %v4124, %v4127
  %v4129 = vmul.f32 %v69, %v4128
  %v4130 = vmul.f32 %v73, %v4128
  %v4131 = vmul.f32 %v77, %v4128
  %v4132 = vmul.f32 %v81, %v4128
  %v4133 = vadd.f32 %v4120, %v4129
  %v4134 = vadd.f32 %v4121, %v4130
  %v4135 = vadd.f32 %v4122, %v4131
  %v4136 = vadd.f32 %v4123, %v4132
  %v4137 = vmax.f32 %v4085, %v4133
  %v4138 = vmax.f32 %v4086, %v4134
  %v4139 = vmax.f32 %v4087, %v4135
  %v4140 = vmax.f32 %v4088, %v4136
  %v4141 = vld [vmem:[%s3832 + $0x18] sm:$0x1]
  %v4142 = vlaneseq
  %v4143 = vshrl.u32 %v4142, 7
  %v4144 = vsub.s32 0, %v4143
  %v4145 = vrot.slane %v4141, %v4144
  %v4146 = vmul.f32 %v18, %v4145
  %v4147 = vmul.f32 %v23, %v4145
  %v4148 = vmul.f32 %v28, %v4145
  %v4149 = vmul.f32 %v33, %v4145
  %v4150 = vld [vmem:[%s3832 + $0x19] sm:$0x1]
  %v4151 = vlaneseq
  %v4152 = vshrl.u32 %v4151, 7
  %v4153 = vsub.s32 0, %v4152
  %v4154 = vrot.slane %v4150, %v4153
  %v4155 = vmul.f32 %v37, %v4154
  %v4156 = vmul.f32 %v41, %v4154
  %v4157 = vmul.f32 %v45, %v4154
  %v4158 = vmul.f32 %v49, %v4154
  %v4159 = vadd.f32 %v4146, %v4155
  %v4160 = vadd.f32 %v4147, %v4156
  %v4161 = vadd.f32 %v4148, %v4157
  %v4162 = vadd.f32 %v4149, %v4158
  %v4163 = vld [vmem:[%s3832 + $0x1a] sm:$0x1]
  %v4164 = vlaneseq
  %v4165 = vshrl.u32 %v4164, 7
  %v4166 = vsub.s32 0, %v4165
  %v4167 = vrot.slane %v4163, %v4166
  %v4168 = vmul.f32 %v53, %v4167
  %v4169 = vmul.f32 %v57, %v4167
  %v4170 = vmul.f32 %v61, %v4167
  %v4171 = vmul.f32 %v65, %v4167
  %v4172 = vadd.f32 %v4159, %v4168
  %v4173 = vadd.f32 %v4160, %v4169
  %v4174 = vadd.f32 %v4161, %v4170
  %v4175 = vadd.f32 %v4162, %v4171
  %v4176 = vld [vmem:[%s3832 + $0x1b] sm:$0x1]
  %v4177 = vlaneseq
  %v4178 = vshrl.u32 %v4177, 7
  %v4179 = vsub.s32 0, %v4178
  %v4180 = vrot.slane %v4176, %v4179
  %v4181 = vmul.f32 %v69, %v4180
  %v4182 = vmul.f32 %v73, %v4180
  %v4183 = vmul.f32 %v77, %v4180
  %v4184 = vmul.f32 %v81, %v4180
  %v4185 = vadd.f32 %v4172, %v4181
  %v4186 = vadd.f32 %v4173, %v4182
  %v4187 = vadd.f32 %v4174, %v4183
  %v4188 = vadd.f32 %v4175, %v4184
  %v4189 = vmax.f32 %v4137, %v4185
  %v4190 = vmax.f32 %v4138, %v4186
  %v4191 = vmax.f32 %v4139, %v4187
  %v4192 = vmax.f32 %v4140, %v4188
  %v4193 = vld [vmem:[%s3832 + $0x1c] sm:$0x1]
  %v4194 = vlaneseq
  %v4195 = vshrl.u32 %v4194, 7
  %v4196 = vsub.s32 0, %v4195
  %v4197 = vrot.slane %v4193, %v4196
  %v4198 = vmul.f32 %v18, %v4197
  %v4199 = vmul.f32 %v23, %v4197
  %v4200 = vmul.f32 %v28, %v4197
  %v4201 = vmul.f32 %v33, %v4197
  %v4202 = vld [vmem:[%s3832 + $0x1d] sm:$0x1]
  %v4203 = vlaneseq
  %v4204 = vshrl.u32 %v4203, 7
  %v4205 = vsub.s32 0, %v4204
  %v4206 = vrot.slane %v4202, %v4205
  %v4207 = vmul.f32 %v37, %v4206
  %v4208 = vmul.f32 %v41, %v4206
  %v4209 = vmul.f32 %v45, %v4206
  %v4210 = vmul.f32 %v49, %v4206
  %v4211 = vadd.f32 %v4198, %v4207
  %v4212 = vadd.f32 %v4199, %v4208
  %v4213 = vadd.f32 %v4200, %v4209
  %v4214 = vadd.f32 %v4201, %v4210
  %v4215 = vld [vmem:[%s3832 + $0x1e] sm:$0x1]
  %v4216 = vlaneseq
  %v4217 = vshrl.u32 %v4216, 7
  %v4218 = vsub.s32 0, %v4217
  %v4219 = vrot.slane %v4215, %v4218
  %v4220 = vmul.f32 %v53, %v4219
  %v4221 = vmul.f32 %v57, %v4219
  %v4222 = vmul.f32 %v61, %v4219
  %v4223 = vmul.f32 %v65, %v4219
  %v4224 = vadd.f32 %v4211, %v4220
  %v4225 = vadd.f32 %v4212, %v4221
  %v4226 = vadd.f32 %v4213, %v4222
  %v4227 = vadd.f32 %v4214, %v4223
  %v4228 = vld [vmem:[%s3832 + $0x1f] sm:$0x1]
  %v4229 = vlaneseq
  %v4230 = vshrl.u32 %v4229, 7
  %v4231 = vsub.s32 0, %v4230
  %v4232 = vrot.slane %v4228, %v4231
  %v4233 = vmul.f32 %v69, %v4232
  %v4234 = vmul.f32 %v73, %v4232
  %v4235 = vmul.f32 %v77, %v4232
  %v4236 = vmul.f32 %v81, %v4232
  %v4237 = vadd.f32 %v4224, %v4233
  %v4238 = vadd.f32 %v4225, %v4234
  %v4239 = vadd.f32 %v4226, %v4235
  %v4240 = vadd.f32 %v4227, %v4236
  %v4241 = vmax.f32 %v4189, %v4237
  %v4242 = vmax.f32 %v4190, %v4238
  %v4243 = vmax.f32 %v4191, %v4239
  %v4244 = vmax.f32 %v4192, %v4240
  %v4245 = vld [vmem:[%s3832 + $0x20] sm:$0x1]
  %v4246 = vlaneseq
  %v4247 = vshrl.u32 %v4246, 7
  %v4248 = vsub.s32 0, %v4247
  %v4249 = vrot.slane %v4245, %v4248
  %v4250 = vmul.f32 %v18, %v4249
  %v4251 = vmul.f32 %v23, %v4249
  %v4252 = vmul.f32 %v28, %v4249
  %v4253 = vmul.f32 %v33, %v4249
  %v4254 = vld [vmem:[%s3832 + $0x21] sm:$0x1]
  %v4255 = vlaneseq
  %v4256 = vshrl.u32 %v4255, 7
  %v4257 = vsub.s32 0, %v4256
  %v4258 = vrot.slane %v4254, %v4257
  %v4259 = vmul.f32 %v37, %v4258
  %v4260 = vmul.f32 %v41, %v4258
  %v4261 = vmul.f32 %v45, %v4258
  %v4262 = vmul.f32 %v49, %v4258
  %v4263 = vadd.f32 %v4250, %v4259
  %v4264 = vadd.f32 %v4251, %v4260
  %v4265 = vadd.f32 %v4252, %v4261
  %v4266 = vadd.f32 %v4253, %v4262
  %v4267 = vld [vmem:[%s3832 + $0x22] sm:$0x1]
  %v4268 = vlaneseq
  %v4269 = vshrl.u32 %v4268, 7
  %v4270 = vsub.s32 0, %v4269
  %v4271 = vrot.slane %v4267, %v4270
  %v4272 = vmul.f32 %v53, %v4271
  %v4273 = vmul.f32 %v57, %v4271
  %v4274 = vmul.f32 %v61, %v4271
  %v4275 = vmul.f32 %v65, %v4271
  %v4276 = vadd.f32 %v4263, %v4272
  %v4277 = vadd.f32 %v4264, %v4273
  %v4278 = vadd.f32 %v4265, %v4274
  %v4279 = vadd.f32 %v4266, %v4275
  %v4280 = vld [vmem:[%s3832 + $0x23] sm:$0x1]
  %v4281 = vlaneseq
  %v4282 = vshrl.u32 %v4281, 7
  %v4283 = vsub.s32 0, %v4282
  %v4284 = vrot.slane %v4280, %v4283
  %v4285 = vmul.f32 %v69, %v4284
  %v4286 = vmul.f32 %v73, %v4284
  %v4287 = vmul.f32 %v77, %v4284
  %v4288 = vmul.f32 %v81, %v4284
  %v4289 = vadd.f32 %v4276, %v4285
  %v4290 = vadd.f32 %v4277, %v4286
  %v4291 = vadd.f32 %v4278, %v4287
  %v4292 = vadd.f32 %v4279, %v4288
  %v4293 = vmax.f32 %v4241, %v4289
  %v4294 = vmax.f32 %v4242, %v4290
  %v4295 = vmax.f32 %v4243, %v4291
  %v4296 = vmax.f32 %v4244, %v4292
  %v4297 = vld [vmem:[%s3832 + $0x24] sm:$0x1]
  %v4298 = vlaneseq
  %v4299 = vshrl.u32 %v4298, 7
  %v4300 = vsub.s32 0, %v4299
  %v4301 = vrot.slane %v4297, %v4300
  %v4302 = vmul.f32 %v18, %v4301
  %v4303 = vmul.f32 %v23, %v4301
  %v4304 = vmul.f32 %v28, %v4301
  %v4305 = vmul.f32 %v33, %v4301
  %v4306 = vld [vmem:[%s3832 + $0x25] sm:$0x1]
  %v4307 = vlaneseq
  %v4308 = vshrl.u32 %v4307, 7
  %v4309 = vsub.s32 0, %v4308
  %v4310 = vrot.slane %v4306, %v4309
  %v4311 = vmul.f32 %v37, %v4310
  %v4312 = vmul.f32 %v41, %v4310
  %v4313 = vmul.f32 %v45, %v4310
  %v4314 = vmul.f32 %v49, %v4310
  %v4315 = vadd.f32 %v4302, %v4311
  %v4316 = vadd.f32 %v4303, %v4312
  %v4317 = vadd.f32 %v4304, %v4313
  %v4318 = vadd.f32 %v4305, %v4314
  %v4319 = vld [vmem:[%s3832 + $0x26] sm:$0x1]
  %v4320 = vlaneseq
  %v4321 = vshrl.u32 %v4320, 7
  %v4322 = vsub.s32 0, %v4321
  %v4323 = vrot.slane %v4319, %v4322
  %v4324 = vmul.f32 %v53, %v4323
  %v4325 = vmul.f32 %v57, %v4323
  %v4326 = vmul.f32 %v61, %v4323
  %v4327 = vmul.f32 %v65, %v4323
  %v4328 = vadd.f32 %v4315, %v4324
  %v4329 = vadd.f32 %v4316, %v4325
  %v4330 = vadd.f32 %v4317, %v4326
  %v4331 = vadd.f32 %v4318, %v4327
  %v4332 = vld [vmem:[%s3832 + $0x27] sm:$0x1]
  %v4333 = vlaneseq
  %v4334 = vshrl.u32 %v4333, 7
  %v4335 = vsub.s32 0, %v4334
  %v4336 = vrot.slane %v4332, %v4335
  %v4337 = vmul.f32 %v69, %v4336
  %v4338 = vmul.f32 %v73, %v4336
  %v4339 = vmul.f32 %v77, %v4336
  %v4340 = vmul.f32 %v81, %v4336
  %v4341 = vadd.f32 %v4328, %v4337
  %v4342 = vadd.f32 %v4329, %v4338
  %v4343 = vadd.f32 %v4330, %v4339
  %v4344 = vadd.f32 %v4331, %v4340
  %v4345 = vmax.f32 %v4293, %v4341
  %v4346 = vmax.f32 %v4294, %v4342
  %v4347 = vmax.f32 %v4295, %v4343
  %v4348 = vmax.f32 %v4296, %v4344
  %v4349 = vld [vmem:[%s3832 + $0x28] sm:$0x1]
  %v4350 = vlaneseq
  %v4351 = vshrl.u32 %v4350, 7
  %v4352 = vsub.s32 0, %v4351
  %v4353 = vrot.slane %v4349, %v4352
  %v4354 = vmul.f32 %v18, %v4353
  %v4355 = vmul.f32 %v23, %v4353
  %v4356 = vmul.f32 %v28, %v4353
  %v4357 = vmul.f32 %v33, %v4353
  %v4358 = vld [vmem:[%s3832 + $0x29] sm:$0x1]
  %v4359 = vlaneseq
  %v4360 = vshrl.u32 %v4359, 7
  %v4361 = vsub.s32 0, %v4360
  %v4362 = vrot.slane %v4358, %v4361
  %v4363 = vmul.f32 %v37, %v4362
  %v4364 = vmul.f32 %v41, %v4362
  %v4365 = vmul.f32 %v45, %v4362
  %v4366 = vmul.f32 %v49, %v4362
  %v4367 = vadd.f32 %v4354, %v4363
  %v4368 = vadd.f32 %v4355, %v4364
  %v4369 = vadd.f32 %v4356, %v4365
  %v4370 = vadd.f32 %v4357, %v4366
  %v4371 = vld [vmem:[%s3832 + $0x2a] sm:$0x1]
  %v4372 = vlaneseq
  %v4373 = vshrl.u32 %v4372, 7
  %v4374 = vsub.s32 0, %v4373
  %v4375 = vrot.slane %v4371, %v4374
  %v4376 = vmul.f32 %v53, %v4375
  %v4377 = vmul.f32 %v57, %v4375
  %v4378 = vmul.f32 %v61, %v4375
  %v4379 = vmul.f32 %v65, %v4375
  %v4380 = vadd.f32 %v4367, %v4376
  %v4381 = vadd.f32 %v4368, %v4377
  %v4382 = vadd.f32 %v4369, %v4378
  %v4383 = vadd.f32 %v4370, %v4379
  %v4384 = vld [vmem:[%s3832 + $0x2b] sm:$0x1]
  %v4385 = vlaneseq
  %v4386 = vshrl.u32 %v4385, 7
  %v4387 = vsub.s32 0, %v4386
  %v4388 = vrot.slane %v4384, %v4387
  %v4389 = vmul.f32 %v69, %v4388
  %v4390 = vmul.f32 %v73, %v4388
  %v4391 = vmul.f32 %v77, %v4388
  %v4392 = vmul.f32 %v81, %v4388
  %v4393 = vadd.f32 %v4380, %v4389
  %v4394 = vadd.f32 %v4381, %v4390
  %v4395 = vadd.f32 %v4382, %v4391
  %v4396 = vadd.f32 %v4383, %v4392
  %v4397 = vmax.f32 %v4345, %v4393
  %v4398 = vmax.f32 %v4346, %v4394
  %v4399 = vmax.f32 %v4347, %v4395
  %v4400 = vmax.f32 %v4348, %v4396
  %v4401 = vld [vmem:[%s3832 + $0x2c] sm:$0x1]
  %v4402 = vlaneseq
  %v4403 = vshrl.u32 %v4402, 7
  %v4404 = vsub.s32 0, %v4403
  %v4405 = vrot.slane %v4401, %v4404
  %v4406 = vmul.f32 %v18, %v4405
  %v4407 = vmul.f32 %v23, %v4405
  %v4408 = vmul.f32 %v28, %v4405
  %v4409 = vmul.f32 %v33, %v4405
  %v4410 = vld [vmem:[%s3832 + $0x2d] sm:$0x1]
  %v4411 = vlaneseq
  %v4412 = vshrl.u32 %v4411, 7
  %v4413 = vsub.s32 0, %v4412
  %v4414 = vrot.slane %v4410, %v4413
  %v4415 = vmul.f32 %v37, %v4414
  %v4416 = vmul.f32 %v41, %v4414
  %v4417 = vmul.f32 %v45, %v4414
  %v4418 = vmul.f32 %v49, %v4414
  %v4419 = vadd.f32 %v4406, %v4415
  %v4420 = vadd.f32 %v4407, %v4416
  %v4421 = vadd.f32 %v4408, %v4417
  %v4422 = vadd.f32 %v4409, %v4418
  %v4423 = vld [vmem:[%s3832 + $0x2e] sm:$0x1]
  %v4424 = vlaneseq
  %v4425 = vshrl.u32 %v4424, 7
  %v4426 = vsub.s32 0, %v4425
  %v4427 = vrot.slane %v4423, %v4426
  %v4428 = vmul.f32 %v53, %v4427
  %v4429 = vmul.f32 %v57, %v4427
  %v4430 = vmul.f32 %v61, %v4427
  %v4431 = vmul.f32 %v65, %v4427
  %v4432 = vadd.f32 %v4419, %v4428
  %v4433 = vadd.f32 %v4420, %v4429
  %v4434 = vadd.f32 %v4421, %v4430
  %v4435 = vadd.f32 %v4422, %v4431
  %v4436 = vld [vmem:[%s3832 + $0x2f] sm:$0x1]
  %v4437 = vlaneseq
  %v4438 = vshrl.u32 %v4437, 7
  %v4439 = vsub.s32 0, %v4438
  %v4440 = vrot.slane %v4436, %v4439
  %v4441 = vmul.f32 %v69, %v4440
  %v4442 = vmul.f32 %v73, %v4440
  %v4443 = vmul.f32 %v77, %v4440
  %v4444 = vmul.f32 %v81, %v4440
  %v4445 = vadd.f32 %v4432, %v4441
  %v4446 = vadd.f32 %v4433, %v4442
  %v4447 = vadd.f32 %v4434, %v4443
  %v4448 = vadd.f32 %v4435, %v4444
  %v4449 = vmax.f32 %v4397, %v4445
  %v4450 = vmax.f32 %v4398, %v4446
  %v4451 = vmax.f32 %v4399, %v4447
  %v4452 = vmax.f32 %v4400, %v4448
  %v4453 = vld [vmem:[%s3832 + $0x30] sm:$0x1]
  %v4454 = vlaneseq
  %v4455 = vshrl.u32 %v4454, 7
  %v4456 = vsub.s32 0, %v4455
  %v4457 = vrot.slane %v4453, %v4456
  %v4458 = vmul.f32 %v18, %v4457
  %v4459 = vmul.f32 %v23, %v4457
  %v4460 = vmul.f32 %v28, %v4457
  %v4461 = vmul.f32 %v33, %v4457
  %v4462 = vld [vmem:[%s3832 + $0x31] sm:$0x1]
  %v4463 = vlaneseq
  %v4464 = vshrl.u32 %v4463, 7
  %v4465 = vsub.s32 0, %v4464
  %v4466 = vrot.slane %v4462, %v4465
  %v4467 = vmul.f32 %v37, %v4466
  %v4468 = vmul.f32 %v41, %v4466
  %v4469 = vmul.f32 %v45, %v4466
  %v4470 = vmul.f32 %v49, %v4466
  %v4471 = vadd.f32 %v4458, %v4467
  %v4472 = vadd.f32 %v4459, %v4468
  %v4473 = vadd.f32 %v4460, %v4469
  %v4474 = vadd.f32 %v4461, %v4470
  %v4475 = vld [vmem:[%s3832 + $0x32] sm:$0x1]
  %v4476 = vlaneseq
  %v4477 = vshrl.u32 %v4476, 7
  %v4478 = vsub.s32 0, %v4477
  %v4479 = vrot.slane %v4475, %v4478
  %v4480 = vmul.f32 %v53, %v4479
  %v4481 = vmul.f32 %v57, %v4479
  %v4482 = vmul.f32 %v61, %v4479
  %v4483 = vmul.f32 %v65, %v4479
  %v4484 = vadd.f32 %v4471, %v4480
  %v4485 = vadd.f32 %v4472, %v4481
  %v4486 = vadd.f32 %v4473, %v4482
  %v4487 = vadd.f32 %v4474, %v4483
  %v4488 = vld [vmem:[%s3832 + $0x33] sm:$0x1]
  %v4489 = vlaneseq
  %v4490 = vshrl.u32 %v4489, 7
  %v4491 = vsub.s32 0, %v4490
  %v4492 = vrot.slane %v4488, %v4491
  %v4493 = vmul.f32 %v69, %v4492
  %v4494 = vmul.f32 %v73, %v4492
  %v4495 = vmul.f32 %v77, %v4492
  %v4496 = vmul.f32 %v81, %v4492
  %v4497 = vadd.f32 %v4484, %v4493
  %v4498 = vadd.f32 %v4485, %v4494
  %v4499 = vadd.f32 %v4486, %v4495
  %v4500 = vadd.f32 %v4487, %v4496
  %v4501 = vmax.f32 %v4449, %v4497
  %v4502 = vmax.f32 %v4450, %v4498
  %v4503 = vmax.f32 %v4451, %v4499
  %v4504 = vmax.f32 %v4452, %v4500
  %v4505 = vld [vmem:[%s3832 + $0x34] sm:$0x1]
  %v4506 = vlaneseq
  %v4507 = vshrl.u32 %v4506, 7
  %v4508 = vsub.s32 0, %v4507
  %v4509 = vrot.slane %v4505, %v4508
  %v4510 = vmul.f32 %v18, %v4509
  %v4511 = vmul.f32 %v23, %v4509
  %v4512 = vmul.f32 %v28, %v4509
  %v4513 = vmul.f32 %v33, %v4509
  %v4514 = vld [vmem:[%s3832 + $0x35] sm:$0x1]
  %v4515 = vlaneseq
  %v4516 = vshrl.u32 %v4515, 7
  %v4517 = vsub.s32 0, %v4516
  %v4518 = vrot.slane %v4514, %v4517
  %v4519 = vmul.f32 %v37, %v4518
  %v4520 = vmul.f32 %v41, %v4518
  %v4521 = vmul.f32 %v45, %v4518
  %v4522 = vmul.f32 %v49, %v4518
  %v4523 = vadd.f32 %v4510, %v4519
  %v4524 = vadd.f32 %v4511, %v4520
  %v4525 = vadd.f32 %v4512, %v4521
  %v4526 = vadd.f32 %v4513, %v4522
  %v4527 = vld [vmem:[%s3832 + $0x36] sm:$0x1]
  %v4528 = vlaneseq
  %v4529 = vshrl.u32 %v4528, 7
  %v4530 = vsub.s32 0, %v4529
  %v4531 = vrot.slane %v4527, %v4530
  %v4532 = vmul.f32 %v53, %v4531
  %v4533 = vmul.f32 %v57, %v4531
  %v4534 = vmul.f32 %v61, %v4531
  %v4535 = vmul.f32 %v65, %v4531
  %v4536 = vadd.f32 %v4523, %v4532
  %v4537 = vadd.f32 %v4524, %v4533
  %v4538 = vadd.f32 %v4525, %v4534
  %v4539 = vadd.f32 %v4526, %v4535
  %v4540 = vld [vmem:[%s3832 + $0x37] sm:$0x1]
  %v4541 = vlaneseq
  %v4542 = vshrl.u32 %v4541, 7
  %v4543 = vsub.s32 0, %v4542
  %v4544 = vrot.slane %v4540, %v4543
  %v4545 = vmul.f32 %v69, %v4544
  %v4546 = vmul.f32 %v73, %v4544
  %v4547 = vmul.f32 %v77, %v4544
  %v4548 = vmul.f32 %v81, %v4544
  %v4549 = vadd.f32 %v4536, %v4545
  %v4550 = vadd.f32 %v4537, %v4546
  %v4551 = vadd.f32 %v4538, %v4547
  %v4552 = vadd.f32 %v4539, %v4548
  %v4553 = vmax.f32 %v4501, %v4549
  %v4554 = vmax.f32 %v4502, %v4550
  %v4555 = vmax.f32 %v4503, %v4551
  %v4556 = vmax.f32 %v4504, %v4552
  %v4557 = vld [vmem:[%s3832 + $0x38] sm:$0x1]
  %v4558 = vlaneseq
  %v4559 = vshrl.u32 %v4558, 7
  %v4560 = vsub.s32 0, %v4559
  %v4561 = vrot.slane %v4557, %v4560
  %v4562 = vmul.f32 %v18, %v4561
  %v4563 = vmul.f32 %v23, %v4561
  %v4564 = vmul.f32 %v28, %v4561
  %v4565 = vmul.f32 %v33, %v4561
  %v4566 = vld [vmem:[%s3832 + $0x39] sm:$0x1]
  %v4567 = vlaneseq
  %v4568 = vshrl.u32 %v4567, 7
  %v4569 = vsub.s32 0, %v4568
  %v4570 = vrot.slane %v4566, %v4569
  %v4571 = vmul.f32 %v37, %v4570
  %v4572 = vmul.f32 %v41, %v4570
  %v4573 = vmul.f32 %v45, %v4570
  %v4574 = vmul.f32 %v49, %v4570
  %v4575 = vadd.f32 %v4562, %v4571
  %v4576 = vadd.f32 %v4563, %v4572
  %v4577 = vadd.f32 %v4564, %v4573
  %v4578 = vadd.f32 %v4565, %v4574
  %v4579 = vld [vmem:[%s3832 + $0x3a] sm:$0x1]
  %v4580 = vlaneseq
  %v4581 = vshrl.u32 %v4580, 7
  %v4582 = vsub.s32 0, %v4581
  %v4583 = vrot.slane %v4579, %v4582
  %v4584 = vmul.f32 %v53, %v4583
  %v4585 = vmul.f32 %v57, %v4583
  %v4586 = vmul.f32 %v61, %v4583
  %v4587 = vmul.f32 %v65, %v4583
  %v4588 = vadd.f32 %v4575, %v4584
  %v4589 = vadd.f32 %v4576, %v4585
  %v4590 = vadd.f32 %v4577, %v4586
  %v4591 = vadd.f32 %v4578, %v4587
  %v4592 = vld [vmem:[%s3832 + $0x3b] sm:$0x1]
  %v4593 = vlaneseq
  %v4594 = vshrl.u32 %v4593, 7
  %v4595 = vsub.s32 0, %v4594
  %v4596 = vrot.slane %v4592, %v4595
  %v4597 = vmul.f32 %v69, %v4596
  %v4598 = vmul.f32 %v73, %v4596
  %v4599 = vmul.f32 %v77, %v4596
  %v4600 = vmul.f32 %v81, %v4596
  %v4601 = vadd.f32 %v4588, %v4597
  %v4602 = vadd.f32 %v4589, %v4598
  %v4603 = vadd.f32 %v4590, %v4599
  %v4604 = vadd.f32 %v4591, %v4600
  %v4605 = vmax.f32 %v4553, %v4601
  %v4606 = vmax.f32 %v4554, %v4602
  %v4607 = vmax.f32 %v4555, %v4603
  %v4608 = vmax.f32 %v4556, %v4604
  %v4609 = vld [vmem:[%s3832 + $0x3c] sm:$0x1]
  %v4610 = vlaneseq
  %v4611 = vshrl.u32 %v4610, 7
  %v4612 = vsub.s32 0, %v4611
  %v4613 = vrot.slane %v4609, %v4612
  %v4614 = vmul.f32 %v18, %v4613
  %v4615 = vmul.f32 %v23, %v4613
  %v4616 = vmul.f32 %v28, %v4613
  %v4617 = vmul.f32 %v33, %v4613
  %v4618 = vld [vmem:[%s3832 + $0x3d] sm:$0x1]
  %v4619 = vlaneseq
  %v4620 = vshrl.u32 %v4619, 7
  %v4621 = vsub.s32 0, %v4620
  %v4622 = vrot.slane %v4618, %v4621
  %v4623 = vmul.f32 %v37, %v4622
  %v4624 = vmul.f32 %v41, %v4622
  %v4625 = vmul.f32 %v45, %v4622
  %v4626 = vmul.f32 %v49, %v4622
  %v4627 = vadd.f32 %v4614, %v4623
  %v4628 = vadd.f32 %v4615, %v4624
  %v4629 = vadd.f32 %v4616, %v4625
  %v4630 = vadd.f32 %v4617, %v4626
  %v4631 = vld [vmem:[%s3832 + $0x3e] sm:$0x1]
  %v4632 = vlaneseq
  %v4633 = vshrl.u32 %v4632, 7
  %v4634 = vsub.s32 0, %v4633
  %v4635 = vrot.slane %v4631, %v4634
  %v4636 = vmul.f32 %v53, %v4635
  %v4637 = vmul.f32 %v57, %v4635
  %v4638 = vmul.f32 %v61, %v4635
  %v4639 = vmul.f32 %v65, %v4635
  %v4640 = vadd.f32 %v4627, %v4636
  %v4641 = vadd.f32 %v4628, %v4637
  %v4642 = vadd.f32 %v4629, %v4638
  %v4643 = vadd.f32 %v4630, %v4639
  %v4644 = vld [vmem:[%s3832 + $0x3f] sm:$0x1]
  %v4645 = vlaneseq
  %v4646 = vshrl.u32 %v4645, 7
  %v4647 = vsub.s32 0, %v4646
  %v4648 = vrot.slane %v4644, %v4647
  %v4649 = vmul.f32 %v69, %v4648
  %v4650 = vmul.f32 %v73, %v4648
  %v4651 = vmul.f32 %v77, %v4648
  %v4652 = vmul.f32 %v81, %v4648
  %v4653 = vadd.f32 %v4640, %v4649
  %v4654 = vadd.f32 %v4641, %v4650
  %v4655 = vadd.f32 %v4642, %v4651
  %v4656 = vadd.f32 %v4643, %v4652
  %v4657 = vmax.f32 %v4605, %v4653
  %v4658 = vmax.f32 %v4606, %v4654
  %v4659 = vmax.f32 %v4607, %v4655
  %v4660 = vmax.f32 %v4608, %v4656
  %v4661 = vld [vmem:[%s3832 + $0x40] sm:$0x1]
  %v4662 = vlaneseq
  %v4663 = vshrl.u32 %v4662, 7
  %v4664 = vsub.s32 0, %v4663
  %v4665 = vrot.slane %v4661, %v4664
  %v4666 = vmul.f32 %v18, %v4665
  %v4667 = vmul.f32 %v23, %v4665
  %v4668 = vmul.f32 %v28, %v4665
  %v4669 = vmul.f32 %v33, %v4665
  %v4670 = vld [vmem:[%s3832 + $0x41] sm:$0x1]
  %v4671 = vlaneseq
  %v4672 = vshrl.u32 %v4671, 7
  %v4673 = vsub.s32 0, %v4672
  %v4674 = vrot.slane %v4670, %v4673
  %v4675 = vmul.f32 %v37, %v4674
  %v4676 = vmul.f32 %v41, %v4674
  %v4677 = vmul.f32 %v45, %v4674
  %v4678 = vmul.f32 %v49, %v4674
  %v4679 = vadd.f32 %v4666, %v4675
  %v4680 = vadd.f32 %v4667, %v4676
  %v4681 = vadd.f32 %v4668, %v4677
  %v4682 = vadd.f32 %v4669, %v4678
  %v4683 = vld [vmem:[%s3832 + $0x42] sm:$0x1]
  %v4684 = vlaneseq
  %v4685 = vshrl.u32 %v4684, 7
  %v4686 = vsub.s32 0, %v4685
  %v4687 = vrot.slane %v4683, %v4686
  %v4688 = vmul.f32 %v53, %v4687
  %v4689 = vmul.f32 %v57, %v4687
  %v4690 = vmul.f32 %v61, %v4687
  %v4691 = vmul.f32 %v65, %v4687
  %v4692 = vadd.f32 %v4679, %v4688
  %v4693 = vadd.f32 %v4680, %v4689
  %v4694 = vadd.f32 %v4681, %v4690
  %v4695 = vadd.f32 %v4682, %v4691
  %v4696 = vld [vmem:[%s3832 + $0x43] sm:$0x1]
  %v4697 = vlaneseq
  %v4698 = vshrl.u32 %v4697, 7
  %v4699 = vsub.s32 0, %v4698
  %v4700 = vrot.slane %v4696, %v4699
  %v4701 = vmul.f32 %v69, %v4700
  %v4702 = vmul.f32 %v73, %v4700
  %v4703 = vmul.f32 %v77, %v4700
  %v4704 = vmul.f32 %v81, %v4700
  %v4705 = vadd.f32 %v4692, %v4701
  %v4706 = vadd.f32 %v4693, %v4702
  %v4707 = vadd.f32 %v4694, %v4703
  %v4708 = vadd.f32 %v4695, %v4704
  %v4709 = vmax.f32 %v4657, %v4705
  %v4710 = vmax.f32 %v4658, %v4706
  %v4711 = vmax.f32 %v4659, %v4707
  %v4712 = vmax.f32 %v4660, %v4708
  %v4713 = vld [vmem:[%s3832 + $0x44] sm:$0x1]
  %v4714 = vlaneseq
  %v4715 = vshrl.u32 %v4714, 7
  %v4716 = vsub.s32 0, %v4715
  %v4717 = vrot.slane %v4713, %v4716
  %v4718 = vmul.f32 %v18, %v4717
  %v4719 = vmul.f32 %v23, %v4717
  %v4720 = vmul.f32 %v28, %v4717
  %v4721 = vmul.f32 %v33, %v4717
  %v4722 = vld [vmem:[%s3832 + $0x45] sm:$0x1]
  %v4723 = vlaneseq
  %v4724 = vshrl.u32 %v4723, 7
  %v4725 = vsub.s32 0, %v4724
  %v4726 = vrot.slane %v4722, %v4725
  %v4727 = vmul.f32 %v37, %v4726
  %v4728 = vmul.f32 %v41, %v4726
  %v4729 = vmul.f32 %v45, %v4726
  %v4730 = vmul.f32 %v49, %v4726
  %v4731 = vadd.f32 %v4718, %v4727
  %v4732 = vadd.f32 %v4719, %v4728
  %v4733 = vadd.f32 %v4720, %v4729
  %v4734 = vadd.f32 %v4721, %v4730
  %v4735 = vld [vmem:[%s3832 + $0x46] sm:$0x1]
  %v4736 = vlaneseq
  %v4737 = vshrl.u32 %v4736, 7
  %v4738 = vsub.s32 0, %v4737
  %v4739 = vrot.slane %v4735, %v4738
  %v4740 = vmul.f32 %v53, %v4739
  %v4741 = vmul.f32 %v57, %v4739
  %v4742 = vmul.f32 %v61, %v4739
  %v4743 = vmul.f32 %v65, %v4739
  %v4744 = vadd.f32 %v4731, %v4740
  %v4745 = vadd.f32 %v4732, %v4741
  %v4746 = vadd.f32 %v4733, %v4742
  %v4747 = vadd.f32 %v4734, %v4743
  %v4748 = vld [vmem:[%s3832 + $0x47] sm:$0x1]
  %v4749 = vlaneseq
  %v4750 = vshrl.u32 %v4749, 7
  %v4751 = vsub.s32 0, %v4750
  %v4752 = vrot.slane %v4748, %v4751
  %v4753 = vmul.f32 %v69, %v4752
  %v4754 = vmul.f32 %v73, %v4752
  %v4755 = vmul.f32 %v77, %v4752
  %v4756 = vmul.f32 %v81, %v4752
  %v4757 = vadd.f32 %v4744, %v4753
  %v4758 = vadd.f32 %v4745, %v4754
  %v4759 = vadd.f32 %v4746, %v4755
  %v4760 = vadd.f32 %v4747, %v4756
  %v4761 = vmax.f32 %v4709, %v4757
  %v4762 = vmax.f32 %v4710, %v4758
  %v4763 = vmax.f32 %v4711, %v4759
  %v4764 = vmax.f32 %v4712, %v4760
  %v4765 = vld [vmem:[%s3832 + $0x48] sm:$0x1]
  %v4766 = vlaneseq
  %v4767 = vshrl.u32 %v4766, 7
  %v4768 = vsub.s32 0, %v4767
  %v4769 = vrot.slane %v4765, %v4768
  %v4770 = vmul.f32 %v18, %v4769
  %v4771 = vmul.f32 %v23, %v4769
  %v4772 = vmul.f32 %v28, %v4769
  %v4773 = vmul.f32 %v33, %v4769
  %v4774 = vld [vmem:[%s3832 + $0x49] sm:$0x1]
  %v4775 = vlaneseq
  %v4776 = vshrl.u32 %v4775, 7
  %v4777 = vsub.s32 0, %v4776
  %v4778 = vrot.slane %v4774, %v4777
  %v4779 = vmul.f32 %v37, %v4778
  %v4780 = vmul.f32 %v41, %v4778
  %v4781 = vmul.f32 %v45, %v4778
  %v4782 = vmul.f32 %v49, %v4778
  %v4783 = vadd.f32 %v4770, %v4779
  %v4784 = vadd.f32 %v4771, %v4780
  %v4785 = vadd.f32 %v4772, %v4781
  %v4786 = vadd.f32 %v4773, %v4782
  %v4787 = vld [vmem:[%s3832 + $0x4a] sm:$0x1]
  %v4788 = vlaneseq
  %v4789 = vshrl.u32 %v4788, 7
  %v4790 = vsub.s32 0, %v4789
  %v4791 = vrot.slane %v4787, %v4790
  %v4792 = vmul.f32 %v53, %v4791
  %v4793 = vmul.f32 %v57, %v4791
  %v4794 = vmul.f32 %v61, %v4791
  %v4795 = vmul.f32 %v65, %v4791
  %v4796 = vadd.f32 %v4783, %v4792
  %v4797 = vadd.f32 %v4784, %v4793
  %v4798 = vadd.f32 %v4785, %v4794
  %v4799 = vadd.f32 %v4786, %v4795
  %v4800 = vld [vmem:[%s3832 + $0x4b] sm:$0x1]
  %v4801 = vlaneseq
  %v4802 = vshrl.u32 %v4801, 7
  %v4803 = vsub.s32 0, %v4802
  %v4804 = vrot.slane %v4800, %v4803
  %v4805 = vmul.f32 %v69, %v4804
  %v4806 = vmul.f32 %v73, %v4804
  %v4807 = vmul.f32 %v77, %v4804
  %v4808 = vmul.f32 %v81, %v4804
  %v4809 = vadd.f32 %v4796, %v4805
  %v4810 = vadd.f32 %v4797, %v4806
  %v4811 = vadd.f32 %v4798, %v4807
  %v4812 = vadd.f32 %v4799, %v4808
  %v4813 = vmax.f32 %v4761, %v4809
  %v4814 = vmax.f32 %v4762, %v4810
  %v4815 = vmax.f32 %v4763, %v4811
  %v4816 = vmax.f32 %v4764, %v4812
  %v4817 = vld [vmem:[%s3832 + $0x4c] sm:$0x1]
  %v4818 = vlaneseq
  %v4819 = vshrl.u32 %v4818, 7
  %v4820 = vsub.s32 0, %v4819
  %v4821 = vrot.slane %v4817, %v4820
  %v4822 = vmul.f32 %v18, %v4821
  %v4823 = vmul.f32 %v23, %v4821
  %v4824 = vmul.f32 %v28, %v4821
  %v4825 = vmul.f32 %v33, %v4821
  %v4826 = vld [vmem:[%s3832 + $0x4d] sm:$0x1]
  %v4827 = vlaneseq
  %v4828 = vshrl.u32 %v4827, 7
  %v4829 = vsub.s32 0, %v4828
  %v4830 = vrot.slane %v4826, %v4829
  %v4831 = vmul.f32 %v37, %v4830
  %v4832 = vmul.f32 %v41, %v4830
  %v4833 = vmul.f32 %v45, %v4830
  %v4834 = vmul.f32 %v49, %v4830
  %v4835 = vadd.f32 %v4822, %v4831
  %v4836 = vadd.f32 %v4823, %v4832
  %v4837 = vadd.f32 %v4824, %v4833
  %v4838 = vadd.f32 %v4825, %v4834
  %v4839 = vld [vmem:[%s3832 + $0x4e] sm:$0x1]
  %v4840 = vlaneseq
  %v4841 = vshrl.u32 %v4840, 7
  %v4842 = vsub.s32 0, %v4841
  %v4843 = vrot.slane %v4839, %v4842
  %v4844 = vmul.f32 %v53, %v4843
  %v4845 = vmul.f32 %v57, %v4843
  %v4846 = vmul.f32 %v61, %v4843
  %v4847 = vmul.f32 %v65, %v4843
  %v4848 = vadd.f32 %v4835, %v4844
  %v4849 = vadd.f32 %v4836, %v4845
  %v4850 = vadd.f32 %v4837, %v4846
  %v4851 = vadd.f32 %v4838, %v4847
  %v4852 = vld [vmem:[%s3832 + $0x4f] sm:$0x1]
  %v4853 = vlaneseq
  %v4854 = vshrl.u32 %v4853, 7
  %v4855 = vsub.s32 0, %v4854
  %v4856 = vrot.slane %v4852, %v4855
  %v4857 = vmul.f32 %v69, %v4856
  %v4858 = vmul.f32 %v73, %v4856
  %v4859 = vmul.f32 %v77, %v4856
  %v4860 = vmul.f32 %v81, %v4856
  %v4861 = vadd.f32 %v4848, %v4857
  %v4862 = vadd.f32 %v4849, %v4858
  %v4863 = vadd.f32 %v4850, %v4859
  %v4864 = vadd.f32 %v4851, %v4860
  %v4865 = vmax.f32 %v4813, %v4861
  %v4866 = vmax.f32 %v4814, %v4862
  %v4867 = vmax.f32 %v4815, %v4863
  %v4868 = vmax.f32 %v4816, %v4864
  %v4869 = vld [vmem:[%s3832 + $0x50] sm:$0x1]
  %v4870 = vlaneseq
  %v4871 = vshrl.u32 %v4870, 7
  %v4872 = vsub.s32 0, %v4871
  %v4873 = vrot.slane %v4869, %v4872
  %v4874 = vmul.f32 %v18, %v4873
  %v4875 = vmul.f32 %v23, %v4873
  %v4876 = vmul.f32 %v28, %v4873
  %v4877 = vmul.f32 %v33, %v4873
  %v4878 = vld [vmem:[%s3832 + $0x51] sm:$0x1]
  %v4879 = vlaneseq
  %v4880 = vshrl.u32 %v4879, 7
  %v4881 = vsub.s32 0, %v4880
  %v4882 = vrot.slane %v4878, %v4881
  %v4883 = vmul.f32 %v37, %v4882
  %v4884 = vmul.f32 %v41, %v4882
  %v4885 = vmul.f32 %v45, %v4882
  %v4886 = vmul.f32 %v49, %v4882
  %v4887 = vadd.f32 %v4874, %v4883
  %v4888 = vadd.f32 %v4875, %v4884
  %v4889 = vadd.f32 %v4876, %v4885
  %v4890 = vadd.f32 %v4877, %v4886
  %v4891 = vld [vmem:[%s3832 + $0x52] sm:$0x1]
  %v4892 = vlaneseq
  %v4893 = vshrl.u32 %v4892, 7
  %v4894 = vsub.s32 0, %v4893
  %v4895 = vrot.slane %v4891, %v4894
  %v4896 = vmul.f32 %v53, %v4895
  %v4897 = vmul.f32 %v57, %v4895
  %v4898 = vmul.f32 %v61, %v4895
  %v4899 = vmul.f32 %v65, %v4895
  %v4900 = vadd.f32 %v4887, %v4896
  %v4901 = vadd.f32 %v4888, %v4897
  %v4902 = vadd.f32 %v4889, %v4898
  %v4903 = vadd.f32 %v4890, %v4899
  %v4904 = vld [vmem:[%s3832 + $0x53] sm:$0x1]
  %v4905 = vlaneseq
  %v4906 = vshrl.u32 %v4905, 7
  %v4907 = vsub.s32 0, %v4906
  %v4908 = vrot.slane %v4904, %v4907
  %v4909 = vmul.f32 %v69, %v4908
  %v4910 = vmul.f32 %v73, %v4908
  %v4911 = vmul.f32 %v77, %v4908
  %v4912 = vmul.f32 %v81, %v4908
  %v4913 = vadd.f32 %v4900, %v4909
  %v4914 = vadd.f32 %v4901, %v4910
  %v4915 = vadd.f32 %v4902, %v4911
  %v4916 = vadd.f32 %v4903, %v4912
  %v4917 = vmax.f32 %v4865, %v4913
  %v4918 = vmax.f32 %v4866, %v4914
  %v4919 = vmax.f32 %v4867, %v4915
  %v4920 = vmax.f32 %v4868, %v4916
  %v4921 = vld [vmem:[%s3832 + $0x54] sm:$0x1]
  %v4922 = vlaneseq
  %v4923 = vshrl.u32 %v4922, 7
  %v4924 = vsub.s32 0, %v4923
  %v4925 = vrot.slane %v4921, %v4924
  %v4926 = vmul.f32 %v18, %v4925
  %v4927 = vmul.f32 %v23, %v4925
  %v4928 = vmul.f32 %v28, %v4925
  %v4929 = vmul.f32 %v33, %v4925
  %v4930 = vld [vmem:[%s3832 + $0x55] sm:$0x1]
  %v4931 = vlaneseq
  %v4932 = vshrl.u32 %v4931, 7
  %v4933 = vsub.s32 0, %v4932
  %v4934 = vrot.slane %v4930, %v4933
  %v4935 = vmul.f32 %v37, %v4934
  %v4936 = vmul.f32 %v41, %v4934
  %v4937 = vmul.f32 %v45, %v4934
  %v4938 = vmul.f32 %v49, %v4934
  %v4939 = vadd.f32 %v4926, %v4935
  %v4940 = vadd.f32 %v4927, %v4936
  %v4941 = vadd.f32 %v4928, %v4937
  %v4942 = vadd.f32 %v4929, %v4938
  %v4943 = vld [vmem:[%s3832 + $0x56] sm:$0x1]
  %v4944 = vlaneseq
  %v4945 = vshrl.u32 %v4944, 7
  %v4946 = vsub.s32 0, %v4945
  %v4947 = vrot.slane %v4943, %v4946
  %v4948 = vmul.f32 %v53, %v4947
  %v4949 = vmul.f32 %v57, %v4947
  %v4950 = vmul.f32 %v61, %v4947
  %v4951 = vmul.f32 %v65, %v4947
  %v4952 = vadd.f32 %v4939, %v4948
  %v4953 = vadd.f32 %v4940, %v4949
  %v4954 = vadd.f32 %v4941, %v4950
  %v4955 = vadd.f32 %v4942, %v4951
  %v4956 = vld [vmem:[%s3832 + $0x57] sm:$0x1]
  %v4957 = vlaneseq
  %v4958 = vshrl.u32 %v4957, 7
  %v4959 = vsub.s32 0, %v4958
  %v4960 = vrot.slane %v4956, %v4959
  %v4961 = vmul.f32 %v69, %v4960
  %v4962 = vmul.f32 %v73, %v4960
  %v4963 = vmul.f32 %v77, %v4960
  %v4964 = vmul.f32 %v81, %v4960
  %v4965 = vadd.f32 %v4952, %v4961
  %v4966 = vadd.f32 %v4953, %v4962
  %v4967 = vadd.f32 %v4954, %v4963
  %v4968 = vadd.f32 %v4955, %v4964
  %v4969 = vmax.f32 %v4917, %v4965
  %v4970 = vmax.f32 %v4918, %v4966
  %v4971 = vmax.f32 %v4919, %v4967
  %v4972 = vmax.f32 %v4920, %v4968
  %v4973 = vld [vmem:[%s3832 + $0x58] sm:$0x1]
  %v4974 = vlaneseq
  %v4975 = vshrl.u32 %v4974, 7
  %v4976 = vsub.s32 0, %v4975
  %v4977 = vrot.slane %v4973, %v4976
  %v4978 = vmul.f32 %v18, %v4977
  %v4979 = vmul.f32 %v23, %v4977
  %v4980 = vmul.f32 %v28, %v4977
  %v4981 = vmul.f32 %v33, %v4977
  %v4982 = vld [vmem:[%s3832 + $0x59] sm:$0x1]
  %v4983 = vlaneseq
  %v4984 = vshrl.u32 %v4983, 7
  %v4985 = vsub.s32 0, %v4984
  %v4986 = vrot.slane %v4982, %v4985
  %v4987 = vmul.f32 %v37, %v4986
  %v4988 = vmul.f32 %v41, %v4986
  %v4989 = vmul.f32 %v45, %v4986
  %v4990 = vmul.f32 %v49, %v4986
  %v4991 = vadd.f32 %v4978, %v4987
  %v4992 = vadd.f32 %v4979, %v4988
  %v4993 = vadd.f32 %v4980, %v4989
  %v4994 = vadd.f32 %v4981, %v4990
  %v4995 = vld [vmem:[%s3832 + $0x5a] sm:$0x1]
  %v4996 = vlaneseq
  %v4997 = vshrl.u32 %v4996, 7
  %v4998 = vsub.s32 0, %v4997
  %v4999 = vrot.slane %v4995, %v4998
  %v5000 = vmul.f32 %v53, %v4999
  %v5001 = vmul.f32 %v57, %v4999
  %v5002 = vmul.f32 %v61, %v4999
  %v5003 = vmul.f32 %v65, %v4999
  %v5004 = vadd.f32 %v4991, %v5000
  %v5005 = vadd.f32 %v4992, %v5001
  %v5006 = vadd.f32 %v4993, %v5002
  %v5007 = vadd.f32 %v4994, %v5003
  %v5008 = vld [vmem:[%s3832 + $0x5b] sm:$0x1]
  %v5009 = vlaneseq
  %v5010 = vshrl.u32 %v5009, 7
  %v5011 = vsub.s32 0, %v5010
  %v5012 = vrot.slane %v5008, %v5011
  %v5013 = vmul.f32 %v69, %v5012
  %v5014 = vmul.f32 %v73, %v5012
  %v5015 = vmul.f32 %v77, %v5012
  %v5016 = vmul.f32 %v81, %v5012
  %v5017 = vadd.f32 %v5004, %v5013
  %v5018 = vadd.f32 %v5005, %v5014
  %v5019 = vadd.f32 %v5006, %v5015
  %v5020 = vadd.f32 %v5007, %v5016
  %v5021 = vmax.f32 %v4969, %v5017
  %v5022 = vmax.f32 %v4970, %v5018
  %v5023 = vmax.f32 %v4971, %v5019
  %v5024 = vmax.f32 %v4972, %v5020
  %v5025 = vld [vmem:[%s3832 + $0x5c] sm:$0x1]
  %v5026 = vlaneseq
  %v5027 = vshrl.u32 %v5026, 7
  %v5028 = vsub.s32 0, %v5027
  %v5029 = vrot.slane %v5025, %v5028
  %v5030 = vmul.f32 %v18, %v5029
  %v5031 = vmul.f32 %v23, %v5029
  %v5032 = vmul.f32 %v28, %v5029
  %v5033 = vmul.f32 %v33, %v5029
  %v5034 = vld [vmem:[%s3832 + $0x5d] sm:$0x1]
  %v5035 = vlaneseq
  %v5036 = vshrl.u32 %v5035, 7
  %v5037 = vsub.s32 0, %v5036
  %v5038 = vrot.slane %v5034, %v5037
  %v5039 = vmul.f32 %v37, %v5038
  %v5040 = vmul.f32 %v41, %v5038
  %v5041 = vmul.f32 %v45, %v5038
  %v5042 = vmul.f32 %v49, %v5038
  %v5043 = vadd.f32 %v5030, %v5039
  %v5044 = vadd.f32 %v5031, %v5040
  %v5045 = vadd.f32 %v5032, %v5041
  %v5046 = vadd.f32 %v5033, %v5042
  %v5047 = vld [vmem:[%s3832 + $0x5e] sm:$0x1]
  %v5048 = vlaneseq
  %v5049 = vshrl.u32 %v5048, 7
  %v5050 = vsub.s32 0, %v5049
  %v5051 = vrot.slane %v5047, %v5050
  %v5052 = vmul.f32 %v53, %v5051
  %v5053 = vmul.f32 %v57, %v5051
  %v5054 = vmul.f32 %v61, %v5051
  %v5055 = vmul.f32 %v65, %v5051
  %v5056 = vadd.f32 %v5043, %v5052
  %v5057 = vadd.f32 %v5044, %v5053
  %v5058 = vadd.f32 %v5045, %v5054
  %v5059 = vadd.f32 %v5046, %v5055
  %v5060 = vld [vmem:[%s3832 + $0x5f] sm:$0x1]
  %v5061 = vlaneseq
  %v5062 = vshrl.u32 %v5061, 7
  %v5063 = vsub.s32 0, %v5062
  %v5064 = vrot.slane %v5060, %v5063
  %v5065 = vmul.f32 %v69, %v5064
  %v5066 = vmul.f32 %v73, %v5064
  %v5067 = vmul.f32 %v77, %v5064
  %v5068 = vmul.f32 %v81, %v5064
  %v5069 = vadd.f32 %v5056, %v5065
  %v5070 = vadd.f32 %v5057, %v5066
  %v5071 = vadd.f32 %v5058, %v5067
  %v5072 = vadd.f32 %v5059, %v5068
  %v5073 = vmax.f32 %v5021, %v5069
  %v5074 = vmax.f32 %v5022, %v5070
  %v5075 = vmax.f32 %v5023, %v5071
  %v5076 = vmax.f32 %v5024, %v5072
  %s5077 = scalar_lea.vmem %s2, 96
  %5078 = vst.msk [vmem:[%s5077] sm:$0xff] %vm1327, %v5073
  %5079 = vst.msk [vmem:[%s5077 + $0x8] sm:$0xff] %vm1327, %v5074
  %5080 = vst.msk [vmem:[%s5077 + $0x10] sm:$0xff] %vm1327, %v5075
  %5081 = vst.msk [vmem:[%s5077 + $0x18] sm:$0xff] %vm1327, %v5076
  // Predicated region
  $region10: #{pst_transformer_forward.3} parent=0 // pred_check
    _
  $region11: #{pst_transformer_forward.3} parent=0 // pred_check_branch
    %5083 = sbr.rel (0) target = $region13
  $region12: #{pst_transformer_forward.3} parent=0 // pred_region
    _
  $region13: #{pst_transformer_forward.3} parent=0 // pred_fallthru
    _
  // Predicated region
  $region14: #{pst_transformer_forward.3} parent=0 // pred_check
    _
  $region15: #{pst_transformer_forward.3} parent=0 // pred_check_branch
    %5085 = sbr.rel (0) target = $region17
  $region16: #{pst_transformer_forward.3} parent=0 // pred_region
    _
  $region17: #{pst_transformer_forward.3} parent=0 // pred_fallthru
    _

</llo_original>
